<compile_context>
chip_gen: v7x
topology: tpu7x:2x2x1
jax: 0.10.0
libtpu: 0.0.40
codegen_flags: <defaults>
</compile_context>

<pallas_src>
import jax
import jax.numpy as jnp
from jax.experimental import pallas as pl
from jax.experimental.pallas import tpu as pltpu

# Logical layer sizes from the PyTorch module.
D_IN, D_H1, D_H2, D_H3, D_H4, D_OUT = 28 * 28, 676, 676, 512, 512, 10


def _round_up(x, m):
    return ((x + m - 1) // m) * m


# Lane-aligned (multiple-of-128) padded OUTPUT feature sizes.  The K dim of layer 1
# is intentionally left at 784 (full-dim block, multiple of 16 for bf16 packing).
D_H1_P = _round_up(D_H1, 128)    # 768
D_H2_P = _round_up(D_H2, 128)    # 768
D_H3_P = _round_up(D_H3, 128)    # 512
D_H4_P = _round_up(D_H4, 128)    # 512
D_OUT_P = _round_up(D_OUT, 128)  # 128

TB_MAX = 512  # max batch-tile rows per grid step (fills 256-wide MXU M on v6e/v7x)

# Padded (K, N) shapes of the five weight matrices as seen by the kernel.
_W_SHAPES = [(D_IN, D_H1_P), (D_H1_P, D_H2_P), (D_H2_P, D_H3_P),
             (D_H3_P, D_H4_P), (D_H4_P, D_OUT_P)]


def _mlp_kernel(x_ref,
                w1_ref, b1_ref,
                w2_ref, b2_ref,
                w3_ref, b3_ref,
                w4_ref, b4_ref,
                w5_ref, b5_ref,
                out_ref):
    """Fused 5-layer MLP on one (TB, 784) batch tile.

    f32 x is cast to bf16 in-kernel (VPU), bf16 operands feed the MXU with f32
    accumulation; bias-add / ReLU stay in f32, then re-cast to bf16 for the next matmul.
    """
    x = x_ref[...].astype(jnp.bfloat16)                              # (TB, 784)

    h = jnp.dot(x, w1_ref[...],
                preferred_element_type=jnp.float32) + b1_ref[...]
    h = jnp.maximum(h, 0.0).astype(jnp.bfloat16)                     # (TB, 768)

    h = jnp.dot(h, w2_ref[...],
                preferred_element_type=jnp.float32) + b2_ref[...]
    h = jnp.maximum(h, 0.0).astype(jnp.bfloat16)                     # (TB, 768)

    h = jnp.dot(h, w3_ref[...],
                preferred_element_type=jnp.float32) + b3_ref[...]
    h = jnp.maximum(h, 0.0).astype(jnp.bfloat16)                     # (TB, 512)

    h = jnp.dot(h, w4_ref[...],
                preferred_element_type=jnp.float32) + b4_ref[...]
    h = jnp.maximum(h, 0.0).astype(jnp.bfloat16)                     # (TB, 512)

    logits = jnp.dot(h, w5_ref[...],
                     preferred_element_type=jnp.float32) + b5_ref[...]
    out_ref[...] = logits.astype(out_ref.dtype)                      # (TB, 128)


def prepare_params(params):
    """Zero-pad weights/biases to the kernel's padded (K, N) shapes.

    Zero rows/cols are a numerical identity (ReLU(0 + 0) = 0 feeds zero weight rows).
    Weights -> bf16, biases -> f32 rows of shape (1, N_pad).
    """
    prepped = {}
    for i, (din_p, dout_p) in enumerate(_W_SHAPES, start=1):
        w = params[f"w{i}"]
        b = params[f"b{i}"].reshape(1, -1)
        prepped[f"w{i}"] = jnp.pad(
            w, ((0, din_p - w.shape[0]), (0, dout_p - w.shape[1]))
        ).astype(jnp.bfloat16)
        prepped[f"b{i}"] = jnp.pad(
            b, ((0, 0), (0, dout_p - b.shape[-1]))
        ).astype(jnp.float32)
    return prepped


def neural_network_forward(x_nchw, padded_params):
    """x_nchw: (B, 1, 28, 28) float32.  padded_params: output of prepare_params."""
    B = x_nchw.shape[0]
    # nn.Flatten: flatten all dims except batch (row-major, same as torch).
    x_flat = x_nchw.reshape(B, -1).astype(jnp.float32)
    assert x_flat.shape[1] == D_IN

    # Adaptive batch tile: fill the MXU for large batches, avoid wasted padded-row
    # compute for tiny ones.  B is padded only along the batch axis (features stay 784).
    TB = min(TB_MAX, _round_up(max(B, 1), 128))
    B_pad = _round_up(B, TB)
    x_p = x_flat if B_pad == B else jnp.pad(x_flat, ((0, B_pad - B), (0, 0)))

    p = padded_params
    operands = (
        x_p,
        p["w1"], p["b1"],
        p["w2"], p["b2"],
        p["w3"], p["b3"],
        p["w4"], p["b4"],
        p["w5"], p["b5"],
    )

    # Batch-tiled x/out; weights/biases use a constant index_map so they stay
    # resident in VMEM across the batch grid (only fetched once).
    def const_map(i):
        return (0, 0)

    in_specs = [pl.BlockSpec((TB, D_IN), lambda i: (i, 0))]
    for (din_p, dout_p) in _W_SHAPES:
        in_specs.append(pl.BlockSpec((din_p, dout_p), const_map))
        in_specs.append(pl.BlockSpec((1, dout_p), const_map))

    # Advisory cost estimate so XLA schedules the flatten / final slice around us.
    n_weight_elems = sum(din * dout for din, dout in _W_SHAPES)
    cost = pl.CostEstimate(
        flops=2 * B_pad * n_weight_elems,
        transcendentals=0,
        bytes_accessed=(2 * n_weight_elems                      # bf16 weights
                        + 4 * sum(d for _, d in _W_SHAPES)      # f32 biases
                        + 4 * B_pad * D_IN                      # f32 x stream
                        + 4 * B_pad * D_OUT_P),                 # f32 logits writeback
    )

    out_padded = pl.pallas_call(
        _mlp_kernel,
        out_shape=jax.ShapeDtypeStruct((B_pad, D_OUT_P), jnp.float32),
        grid=(pl.cdiv(B_pad, TB),),
        in_specs=in_specs,
        out_specs=pl.BlockSpec((TB, D_OUT_P), lambda i: (i, 0)),
        compiler_params=pltpu.CompilerParams(
            dimension_semantics=("parallel",),
            vmem_limit_bytes=32 << 20,
        ),
        cost_estimate=cost,
    )(*operands)

    return out_padded[:B, :D_OUT]


def init_params(key):
    """Deterministic synthetic parameters matching nn.Linear shapes.

    PyTorch stores Linear weight as (out, in); we store the transpose (in, out)
    so the kernel can do x @ W directly.
    """
    dims = [(D_IN, D_H1), (D_H1, D_H2), (D_H2, D_H3), (D_H3, D_H4), (D_H4, D_OUT)]
    params = {}
    for i, (din, dout) in enumerate(dims, start=1):
        key, kw, kb = jax.random.split(key, 3)
        bound = 1.0 / (din ** 0.5)   # same scale as torch's default init
        params[f"w{i}"] = jax.random.uniform(
            kw, (din, dout), jnp.float32, minval=-bound, maxval=bound)
        params[f"b{i}"] = jax.random.uniform(
            kb, (1, dout), jnp.float32, minval=-bound, maxval=bound)
    return params


if __name__ == "__main__":
    key = jax.random.PRNGKey(0)
    k_params, k_x = jax.random.split(key)

    params = init_params(k_params)
    padded_params = prepare_params(params)

    # Small MNIST-shaped batch: (B, C, H, W) = (2, 1, 28, 28).
    x = jax.random.normal(k_x, (2, 1, 28, 28), dtype=jnp.float32)

    logits = neural_network_forward(x, padded_params)
    logits = jax.block_until_ready(logits)
    assert logits.shape == (2, D_OUT)

    # Reference: same bf16-weight / f32-accumulation forward pass in pure JAX.
    # (bf16 weights will not bit-match a full-fp32 PyTorch forward; tolerance below
    #  covers bf16 rounding differences only.)
    h = x.reshape(x.shape[0], -1).astype(jnp.bfloat16)
    for i in range(1, 6):
        h = jnp.dot(h, params[f"w{i}"].astype(jnp.bfloat16),
                    preferred_element_type=jnp.float32) + params[f"b{i}"]
        if i < 5:
            h = jnp.maximum(h, 0.0).astype(jnp.bfloat16)
    ref = h.astype(jnp.float32)

    assert jnp.allclose(logits, ref, atol=1e-2, rtol=1e-2), (
        float(jnp.max(jnp.abs(logits - ref))))

    print("KERNEL_OK")
</pallas_src>

<mosaic_0001>
module attributes {stable_mosaic.version = 11 : i64} {
  func.func @_mlp_kernel(%arg0: i32, %arg1: memref<128x784xf32, #tpu.memory_space<vmem>>, %arg2: memref<784x768xbf16, #tpu.memory_space<vmem>>, %arg3: memref<1x768xf32, #tpu.memory_space<vmem>>, %arg4: memref<768x768xbf16, #tpu.memory_space<vmem>>, %arg5: memref<1x768xf32, #tpu.memory_space<vmem>>, %arg6: memref<768x512xbf16, #tpu.memory_space<vmem>>, %arg7: memref<1x512xf32, #tpu.memory_space<vmem>>, %arg8: memref<512x512xbf16, #tpu.memory_space<vmem>>, %arg9: memref<1x512xf32, #tpu.memory_space<vmem>>, %arg10: memref<512x128xbf16, #tpu.memory_space<vmem>>, %arg11: memref<1x128xf32, #tpu.memory_space<vmem>>, %arg12: memref<128x128xf32, #tpu.memory_space<vmem>>) attributes {dimension_semantics = [#tpu.dimension_semantics<parallel>], iteration_bounds = array<i64: 1>, scalar_prefetch = 0 : i64, scratch_operands = 0 : i64, tpu.core_type = #tpu.core_type<tc>, window_params = [{transform_indices = @transform_0, window_bounds = array<i64: 128, 784>}, {pipeline_mode = #tpu.pipeline_mode<synchronous>, transform_indices = @transform_1, window_bounds = array<i64: 784, 768>}, {pipeline_mode = #tpu.pipeline_mode<synchronous>, transform_indices = @transform_2, window_bounds = array<i64: 1, 768>}, {pipeline_mode = #tpu.pipeline_mode<synchronous>, transform_indices = @transform_3, window_bounds = array<i64: 768, 768>}, {pipeline_mode = #tpu.pipeline_mode<synchronous>, transform_indices = @transform_4, window_bounds = array<i64: 1, 768>}, {pipeline_mode = #tpu.pipeline_mode<synchronous>, transform_indices = @transform_5, window_bounds = array<i64: 768, 512>}, {pipeline_mode = #tpu.pipeline_mode<synchronous>, transform_indices = @transform_6, window_bounds = array<i64: 1, 512>}, {pipeline_mode = #tpu.pipeline_mode<synchronous>, transform_indices = @transform_7, window_bounds = array<i64: 512, 512>}, {pipeline_mode = #tpu.pipeline_mode<synchronous>, transform_indices = @transform_8, window_bounds = array<i64: 1, 512>}, {pipeline_mode = #tpu.pipeline_mode<synchronous>, transform_indices = @transform_9, window_bounds = array<i64: 512, 128>}, {pipeline_mode = #tpu.pipeline_mode<synchronous>, transform_indices = @transform_10, window_bounds = array<i64: 1, 128>}, {transform_indices = @transform_11, window_bounds = array<i64: 128, 128>}]} {
    %c0 = arith.constant 0 : index
    %c0_0 = arith.constant 0 : index
    %0 = vector.load %arg1[%c0, %c0_0] : memref<128x784xf32, #tpu.memory_space<vmem>>, vector<128x784xf32>
    %1 = arith.truncf %0 : vector<128x784xf32> to vector<128x784xbf16>
    %c0_1 = arith.constant 0 : index
    %c0_2 = arith.constant 0 : index
    %2 = vector.load %arg2[%c0_1, %c0_2] : memref<784x768xbf16, #tpu.memory_space<vmem>>, vector<784x768xbf16>
    %cst = arith.constant dense<0.000000e+00> : vector<128x768xf32>
    %3 = tpu.matmul %1, %2, %cst {dimension_numbers = #tpu.dot_dimension_numbers<[1], [0], [0], [1], [0, 0, 1, 1], [], []>} : vector<128x784xbf16>, vector<784x768xbf16>, vector<128x768xf32> -> vector<128x768xf32>
    %c0_3 = arith.constant 0 : index
    %c0_4 = arith.constant 0 : index
    %4 = vector.load %arg3[%c0_3, %c0_4] : memref<1x768xf32, #tpu.memory_space<vmem>>, vector<1x768xf32>
    %5 = vector.broadcast %4 : vector<1x768xf32> to vector<128x768xf32>
    %6 = arith.addf %3, %5 : vector<128x768xf32>
    %cst_5 = arith.constant 0.000000e+00 : f32
    %7 = vector.broadcast %cst_5 : f32 to vector<128x768xf32>
    %8 = arith.maximumf %6, %7 : vector<128x768xf32>
    %9 = arith.truncf %8 : vector<128x768xf32> to vector<128x768xbf16>
    %c0_6 = arith.constant 0 : index
    %c0_7 = arith.constant 0 : index
    %10 = vector.load %arg4[%c0_6, %c0_7] : memref<768x768xbf16, #tpu.memory_space<vmem>>, vector<768x768xbf16>
    %cst_8 = arith.constant dense<0.000000e+00> : vector<128x768xf32>
    %11 = tpu.matmul %9, %10, %cst_8 {dimension_numbers = #tpu.dot_dimension_numbers<[1], [0], [0], [1], [0, 0, 1, 1], [], []>} : vector<128x768xbf16>, vector<768x768xbf16>, vector<128x768xf32> -> vector<128x768xf32>
    %c0_9 = arith.constant 0 : index
    %c0_10 = arith.constant 0 : index
    %12 = vector.load %arg5[%c0_9, %c0_10] : memref<1x768xf32, #tpu.memory_space<vmem>>, vector<1x768xf32>
    %13 = vector.broadcast %12 : vector<1x768xf32> to vector<128x768xf32>
    %14 = arith.addf %11, %13 : vector<128x768xf32>
    %cst_11 = arith.constant 0.000000e+00 : f32
    %15 = vector.broadcast %cst_11 : f32 to vector<128x768xf32>
    %16 = arith.maximumf %14, %15 : vector<128x768xf32>
    %17 = arith.truncf %16 : vector<128x768xf32> to vector<128x768xbf16>
    %c0_12 = arith.constant 0 : index
    %c0_13 = arith.constant 0 : index
    %18 = vector.load %arg6[%c0_12, %c0_13] : memref<768x512xbf16, #tpu.memory_space<vmem>>, vector<768x512xbf16>
    %cst_14 = arith.constant dense<0.000000e+00> : vector<128x512xf32>
    %19 = tpu.matmul %17, %18, %cst_14 {dimension_numbers = #tpu.dot_dimension_numbers<[1], [0], [0], [1], [0, 0, 1, 1], [], []>} : vector<128x768xbf16>, vector<768x512xbf16>, vector<128x512xf32> -> vector<128x512xf32>
    %c0_15 = arith.constant 0 : index
    %c0_16 = arith.constant 0 : index
    %20 = vector.load %arg7[%c0_15, %c0_16] : memref<1x512xf32, #tpu.memory_space<vmem>>, vector<1x512xf32>
    %21 = vector.broadcast %20 : vector<1x512xf32> to vector<128x512xf32>
    %22 = arith.addf %19, %21 : vector<128x512xf32>
    %cst_17 = arith.constant 0.000000e+00 : f32
    %23 = vector.broadcast %cst_17 : f32 to vector<128x512xf32>
    %24 = arith.maximumf %22, %23 : vector<128x512xf32>
    %25 = arith.truncf %24 : vector<128x512xf32> to vector<128x512xbf16>
    %c0_18 = arith.constant 0 : index
    %c0_19 = arith.constant 0 : index
    %26 = vector.load %arg8[%c0_18, %c0_19] : memref<512x512xbf16, #tpu.memory_space<vmem>>, vector<512x512xbf16>
    %cst_20 = arith.constant dense<0.000000e+00> : vector<128x512xf32>
    %27 = tpu.matmul %25, %26, %cst_20 {dimension_numbers = #tpu.dot_dimension_numbers<[1], [0], [0], [1], [0, 0, 1, 1], [], []>} : vector<128x512xbf16>, vector<512x512xbf16>, vector<128x512xf32> -> vector<128x512xf32>
    %c0_21 = arith.constant 0 : index
    %c0_22 = arith.constant 0 : index
    %28 = vector.load %arg9[%c0_21, %c0_22] : memref<1x512xf32, #tpu.memory_space<vmem>>, vector<1x512xf32>
    %29 = vector.broadcast %28 : vector<1x512xf32> to vector<128x512xf32>
    %30 = arith.addf %27, %29 : vector<128x512xf32>
    %cst_23 = arith.constant 0.000000e+00 : f32
    %31 = vector.broadcast %cst_23 : f32 to vector<128x512xf32>
    %32 = arith.maximumf %30, %31 : vector<128x512xf32>
    %33 = arith.truncf %32 : vector<128x512xf32> to vector<128x512xbf16>
    %c0_24 = arith.constant 0 : index
    %c0_25 = arith.constant 0 : index
    %34 = vector.load %arg10[%c0_24, %c0_25] : memref<512x128xbf16, #tpu.memory_space<vmem>>, vector<512x128xbf16>
    %cst_26 = arith.constant dense<0.000000e+00> : vector<128x128xf32>
    %35 = tpu.matmul %33, %34, %cst_26 {dimension_numbers = #tpu.dot_dimension_numbers<[1], [0], [0], [1], [0, 0, 1, 1], [], []>} : vector<128x512xbf16>, vector<512x128xbf16>, vector<128x128xf32> -> vector<128x128xf32>
    %c0_27 = arith.constant 0 : index
    %c0_28 = arith.constant 0 : index
    %36 = vector.load %arg11[%c0_27, %c0_28] : memref<1x128xf32, #tpu.memory_space<vmem>>, vector<1x128xf32>
    %37 = vector.broadcast %36 : vector<1x128xf32> to vector<128x128xf32>
    %38 = arith.addf %35, %37 : vector<128x128xf32>
    %c0_29 = arith.constant 0 : index
    %c0_30 = arith.constant 0 : index
    %39 = vector.load %arg12[%c0_29, %c0_30] : memref<128x128xf32, #tpu.memory_space<vmem>>, vector<128x128xf32>
    tpu.vector_store %arg12[%c0_29, %c0_30], %38 {strides = array<i32>} : memref<128x128xf32, #tpu.memory_space<vmem>>, vector<128x128xf32>,
    return
  }
  func.func @transform_0(%arg0: i32) -> (i32, i32) {
    %c0_i32 = arith.constant 0 : i32
    %c0_i32_0 = arith.constant 0 : i32
    return %arg0, %c0_i32 : i32, i32
  }
  func.func @transform_1(%arg0: i32) -> (i32, i32) {
    %c0_i32 = arith.constant 0 : i32
    %c0_i32_0 = arith.constant 0 : i32
    %c0_i32_1 = arith.constant 0 : i32
    return %c0_i32, %c0_i32_0 : i32, i32
  }
  func.func @transform_2(%arg0: i32) -> (i32, i32) {
    %c0_i32 = arith.constant 0 : i32
    %c0_i32_0 = arith.constant 0 : i32
    %c0_i32_1 = arith.constant 0 : i32
    return %c0_i32, %c0_i32_0 : i32, i32
  }
  func.func @transform_3(%arg0: i32) -> (i32, i32) {
    %c0_i32 = arith.constant 0 : i32
    %c0_i32_0 = arith.constant 0 : i32
    %c0_i32_1 = arith.constant 0 : i32
    return %c0_i32, %c0_i32_0 : i32, i32
  }
  func.func @transform_4(%arg0: i32) -> (i32, i32) {
    %c0_i32 = arith.constant 0 : i32
    %c0_i32_0 = arith.constant 0 : i32
    %c0_i32_1 = arith.constant 0 : i32
    return %c0_i32, %c0_i32_0 : i32, i32
  }
  func.func @transform_5(%arg0: i32) -> (i32, i32) {
    %c0_i32 = arith.constant 0 : i32
    %c0_i32_0 = arith.constant 0 : i32
    %c0_i32_1 = arith.constant 0 : i32
    return %c0_i32, %c0_i32_0 : i32, i32
  }
  func.func @transform_6(%arg0: i32) -> (i32, i32) {
    %c0_i32 = arith.constant 0 : i32
    %c0_i32_0 = arith.constant 0 : i32
    %c0_i32_1 = arith.constant 0 : i32
    return %c0_i32, %c0_i32_0 : i32, i32
  }
  func.func @transform_7(%arg0: i32) -> (i32, i32) {
    %c0_i32 = arith.constant 0 : i32
    %c0_i32_0 = arith.constant 0 : i32
    %c0_i32_1 = arith.constant 0 : i32
    return %c0_i32, %c0_i32_0 : i32, i32
  }
  func.func @transform_8(%arg0: i32) -> (i32, i32) {
    %c0_i32 = arith.constant 0 : i32
    %c0_i32_0 = arith.constant 0 : i32
    %c0_i32_1 = arith.constant 0 : i32
    return %c0_i32, %c0_i32_0 : i32, i32
  }
  func.func @transform_9(%arg0: i32) -> (i32, i32) {
    %c0_i32 = arith.constant 0 : i32
    %c0_i32_0 = arith.constant 0 : i32
    %c0_i32_1 = arith.constant 0 : i32
    return %c0_i32, %c0_i32_0 : i32, i32
  }
  func.func @transform_10(%arg0: i32) -> (i32, i32) {
    %c0_i32 = arith.constant 0 : i32
    %c0_i32_0 = arith.constant 0 : i32
    %c0_i32_1 = arith.constant 0 : i32
    return %c0_i32, %c0_i32_0 : i32, i32
  }
  func.func @transform_11(%arg0: i32) -> (i32, i32) {
    %c0_i32 = arith.constant 0 : i32
    %c0_i32_0 = arith.constant 0 : i32
    return %arg0, %c0_i32 : i32, i32
  }
}

</mosaic_0001>

<llo_original>
// kernel: tpu_custom_call.1
$region0: #{tpu_custom_call.1}
  #allocation0 [shape = 'u32[]', space=smem, size = 0x4, offset = 0x4, fixed_abs, tag = 'smem constant byte address 0x4 - core index']
  #allocation1 [shape = 'u32[144,128]{1,0:T(1,128)}', space=vmem, size = 0x12000, scoped, tag = 'internal scratch']
  %s0 = inlined_call_operand.vmem [shape: f32[128,784], index: 0, kind: input, shape index: {}]
  %s1 = inlined_call_operand.hbm [shape: bf16[784,768], index: 1, kind: input, shape index: {}]
  %s2 = inlined_call_operand.hbm [shape: f32[1,768], index: 2, kind: input, shape index: {}]
  %s3 = inlined_call_operand.hbm [shape: bf16[768,768], index: 3, kind: input, shape index: {}]
  %s4 = inlined_call_operand.hbm [shape: f32[1,768], index: 4, kind: input, shape index: {}]
  %s5 = inlined_call_operand.vmem [shape: bf16[768,512], index: 5, kind: input, shape index: {}]
  %s6 = inlined_call_operand.hbm [shape: f32[1,512], index: 6, kind: input, shape index: {}]
  %s7 = inlined_call_operand.hbm [shape: bf16[512,512], index: 7, kind: input, shape index: {}]
  %s8 = inlined_call_operand.hbm [shape: f32[1,512], index: 8, kind: input, shape index: {}]
  %s9 = inlined_call_operand.hbm [shape: bf16[512,128], index: 9, kind: input, shape index: {}]
  %s10 = inlined_call_operand.hbm [shape: f32[1,128], index: 10, kind: input, shape index: {}]
  %s11 = inlined_call_operand.hbm [shape: f32[128,128], index: 11, kind: output, shape index: {}]
  %s12 = sld [smem:[#allocation0]]
  $region90: #{tpu_custom_call.1} parent=0
    _
  %s14 = ssub.s32 1, %s12
  %s15 = scalar_select 0, %s14, %s12
  $region1: #{tpu_custom_call.1} parent=0
    #allocation2 [shape = 'u8[1204224]{0}', space=vmem, size = 0x126000, scoped, tag = 'input window, operand 1, single buffered']
    #allocation3 [shape = 's32[1]{0}', space=sflag, size = 0x4, scoped, tag = 'scoped memory for tpu_custom_call.1']
    #allocation4 [shape = 's32[1]{0}', space=sflag, size = 0x4, scoped, tag = 'scoped memory for tpu_custom_call.1']
    #allocation5 [shape = 'u8[3072]{0}', space=vmem, size = 0xc00, scoped, tag = 'input window, operand 2, single buffered']
    #allocation6 [shape = 's32[1]{0}', space=sflag, size = 0x4, scoped, tag = 'scoped memory for tpu_custom_call.1']
    #allocation7 [shape = 'u8[1179648]{0}', space=vmem, size = 0x120000, scoped, tag = 'input window, operand 3, single buffered']
    #allocation8 [shape = 'u8[3072]{0}', space=vmem, size = 0xc00, scoped, tag = 'input window, operand 4, single buffered']
    #allocation9 [shape = 's32[1]{0}', space=sflag, size = 0x4, scoped, tag = 'scoped memory for tpu_custom_call.1']
    #allocation10 [shape = 'u8[2048]{0}', space=vmem, size = 0x800, scoped, tag = 'input window, operand 6, single buffered']
    #allocation11 [shape = 'u8[524288]{0}', space=vmem, size = 0x80000, scoped, tag = 'input window, operand 7, single buffered']
    #allocation12 [shape = 's32[1]{0}', space=sflag, size = 0x4, scoped, tag = 'scoped memory for tpu_custom_call.1']
    #allocation13 [shape = 'u8[2048]{0}', space=vmem, size = 0x800, scoped, tag = 'input window, operand 8, single buffered']
    #allocation14 [shape = 'u8[131072]{0}', space=vmem, size = 0x20000, scoped, tag = 'input window, operand 9, single buffered']
    #allocation15 [shape = 's32[1]{0}', space=sflag, size = 0x4, scoped, tag = 'scoped memory for tpu_custom_call.1']
    #allocation16 [shape = 'u8[512]{0}', space=vmem, size = 0x400, scoped, tag = 'input window, operand 10, single buffered']
    #allocation17 [shape = 'u8[65536]{0}', space=vmem, size = 0x10000, scoped, tag = 'output window, operand 0, single buffered']
    %16 = vsyncpa [#allocation3], 0
    %17 = vsyncpa [#allocation6], 0
    %18 = vsyncpa [#allocation9], 0
    %19 = vsyncpa [#allocation12], 0
    %20 = vsyncpa [#allocation15], 0
    %21 = vsyncpa [#allocation4], 0
    // Predicated region
    $region2: #{tpu_custom_call.1} parent=1 // pred_check
      _
    $region3: #{tpu_custom_call.1} parent=1 // pred_check_branch
      %23 = sbr.rel (0) target = $region5
    $region4: #{tpu_custom_call.1} parent=1 // pred_region
      _
    $region5: #{tpu_custom_call.1} parent=1 // pred_fallthru
      _
    // Predicated region
    $region6: #{tpu_custom_call.1} parent=1 // pred_check
      _
    $region7: #{tpu_custom_call.1} parent=1 // pred_check_branch
      %25 = sbr.rel (0) target = $region9
    $region8: #{tpu_custom_call.1} parent=1 // pred_region
      %s27 = ssub.s32 37632, 37632
      %28 = vsyncadd [#allocation3], %s27
      %s29 = sshll.u32 [#allocation2], 4
      %s30 = int_to_ptr.vmem [resolvable:$true] %s29
      %35 = dma.hbm_to_vmem [thread:$0]  %s1, 37632, %s30, [#allocation3], 384, 384, 24
    $region9: #{tpu_custom_call.1} parent=1 // pred_fallthru
      _
    // Predicated region
    $region10: #{tpu_custom_call.1} parent=1 // pred_check
      _
    $region11: #{tpu_custom_call.1} parent=1 // pred_check_branch
      %37 = sbr.rel (0) target = $region13
    $region12: #{tpu_custom_call.1} parent=1 // pred_region
      %s39 = ssub.s32 96, 96
      %40 = vsyncadd [#allocation6], %s39
      %s42 = sshll.u32 [#allocation5], 4
      %s43 = int_to_ptr.vmem [resolvable:$true] %s42
      %45 = dma.hbm_to_vmem [thread:$0]  %s2, 96, %s43, [#allocation6]
    $region13: #{tpu_custom_call.1} parent=1 // pred_fallthru
      _
    // Predicated region
    $region14: #{tpu_custom_call.1} parent=1 // pred_check
      _
    $region15: #{tpu_custom_call.1} parent=1 // pred_check_branch
      %47 = sbr.rel (0) target = $region17
    $region16: #{tpu_custom_call.1} parent=1 // pred_region
      %s49 = ssub.s32 36864, 36864
      %50 = vsyncadd [#allocation6], %s49
      %s51 = sshll.u32 [#allocation7], 4
      %s52 = int_to_ptr.vmem [resolvable:$true] %s51
      %57 = dma.hbm_to_vmem [thread:$0]  %s3, 36864, %s52, [#allocation6], 384, 384, 24
    $region17: #{tpu_custom_call.1} parent=1 // pred_fallthru
      _
    // Predicated region
    $region18: #{tpu_custom_call.1} parent=1 // pred_check
      _
    $region19: #{tpu_custom_call.1} parent=1 // pred_check_branch
      %59 = sbr.rel (0) target = $region21
    $region20: #{tpu_custom_call.1} parent=1 // pred_region
      %s61 = ssub.s32 96, 96
      %62 = vsyncadd [#allocation9], %s61
      %s64 = sshll.u32 [#allocation8], 4
      %s65 = int_to_ptr.vmem [resolvable:$true] %s64
      %67 = dma.hbm_to_vmem [thread:$0]  %s4, 96, %s65, [#allocation9]
    $region21: #{tpu_custom_call.1} parent=1 // pred_fallthru
      _
    // Predicated region
    $region22: #{tpu_custom_call.1} parent=1 // pred_check
      _
    $region23: #{tpu_custom_call.1} parent=1 // pred_check_branch
      %69 = sbr.rel (0) target = $region25
    $region24: #{tpu_custom_call.1} parent=1 // pred_region
      _
    $region25: #{tpu_custom_call.1} parent=1 // pred_fallthru
      _
    // Predicated region
    $region26: #{tpu_custom_call.1} parent=1 // pred_check
      _
    $region27: #{tpu_custom_call.1} parent=1 // pred_check_branch
      %71 = sbr.rel (0) target = $region29
    $region28: #{tpu_custom_call.1} parent=1 // pred_region
      %s73 = ssub.s32 64, 64
      %74 = vsyncadd [#allocation9], %s73
      %s76 = sshll.u32 [#allocation10], 4
      %s77 = int_to_ptr.vmem [resolvable:$true] %s76
      %79 = dma.hbm_to_vmem [thread:$0]  %s6, 64, %s77, [#allocation9]
    $region29: #{tpu_custom_call.1} parent=1 // pred_fallthru
      _
    // Predicated region
    $region30: #{tpu_custom_call.1} parent=1 // pred_check
      _
    $region31: #{tpu_custom_call.1} parent=1 // pred_check_branch
      %81 = sbr.rel (0) target = $region33
    $region32: #{tpu_custom_call.1} parent=1 // pred_region
      %s83 = ssub.s32 16384, 16384
      %84 = vsyncadd [#allocation12], %s83
      %s85 = sshll.u32 [#allocation11], 4
      %s86 = int_to_ptr.vmem [resolvable:$true] %s85
      %91 = dma.hbm_to_vmem [thread:$0]  %s7, 16384, %s86, [#allocation12], 256, 256, 16
    $region33: #{tpu_custom_call.1} parent=1 // pred_fallthru
      _
    // Predicated region
    $region34: #{tpu_custom_call.1} parent=1 // pred_check
      _
    $region35: #{tpu_custom_call.1} parent=1 // pred_check_branch
      %93 = sbr.rel (0) target = $region37
    $region36: #{tpu_custom_call.1} parent=1 // pred_region
      %s95 = ssub.s32 64, 64
      %96 = vsyncadd [#allocation12], %s95
      %s98 = sshll.u32 [#allocation13], 4
      %s99 = int_to_ptr.vmem [resolvable:$true] %s98
      %101 = dma.hbm_to_vmem [thread:$0]  %s8, 64, %s99, [#allocation12]
    $region37: #{tpu_custom_call.1} parent=1 // pred_fallthru
      _
    // Predicated region
    $region38: #{tpu_custom_call.1} parent=1 // pred_check
      _
    $region39: #{tpu_custom_call.1} parent=1 // pred_check_branch
      %103 = sbr.rel (0) target = $region41
    $region40: #{tpu_custom_call.1} parent=1 // pred_region
      %s105 = ssub.s32 4096, 4096
      %106 = vsyncadd [#allocation15], %s105
      %s107 = sshll.u32 [#allocation14], 4
      %s108 = int_to_ptr.vmem [resolvable:$true] %s107
      %113 = dma.hbm_to_vmem [thread:$0]  %s9, 4096, %s108, [#allocation15], 64, 64, 4
    $region41: #{tpu_custom_call.1} parent=1 // pred_fallthru
      _
    // Predicated region
    $region42: #{tpu_custom_call.1} parent=1 // pred_check
      _
    $region43: #{tpu_custom_call.1} parent=1 // pred_check_branch
      %115 = sbr.rel (0) target = $region45
    $region44: #{tpu_custom_call.1} parent=1 // pred_region
      %s117 = ssub.s32 16, 16
      %118 = vsyncadd [#allocation15], %s117
      %s120 = sshll.u32 [#allocation16], 4
      %s121 = int_to_ptr.vmem [resolvable:$true] %s120
      %123 = dma.hbm_to_vmem [thread:$0]  %s10, 16, %s121, [#allocation15]
    $region45: #{tpu_custom_call.1} parent=1 // pred_fallthru
      _
    // Predicated region
    $region46: #{tpu_custom_call.1} parent=1 // pred_check
      _
    $region47: #{tpu_custom_call.1} parent=1 // pred_check_branch
      %125 = sbr.rel (0) target = $region49
    $region48: #{tpu_custom_call.1} parent=1 // pred_region
      %126 = dma.done [#allocation3], 37632
    $region49: #{tpu_custom_call.1} parent=1 // pred_fallthru
      _
    // Predicated region
    $region50: #{tpu_custom_call.1} parent=1 // pred_check
      _
    $region51: #{tpu_custom_call.1} parent=1 // pred_check_branch
      %128 = sbr.rel (0) target = $region53
    $region52: #{tpu_custom_call.1} parent=1 // pred_region
      %129 = dma.done [#allocation6], 96
    $region53: #{tpu_custom_call.1} parent=1 // pred_fallthru
      _
    // Predicated region
    $region54: #{tpu_custom_call.1} parent=1 // pred_check
      _
    $region55: #{tpu_custom_call.1} parent=1 // pred_check_branch
      %131 = sbr.rel (0) target = $region57
    $region56: #{tpu_custom_call.1} parent=1 // pred_region
      %132 = dma.done [#allocation6], 36864
    $region57: #{tpu_custom_call.1} parent=1 // pred_fallthru
      _
    // Predicated region
    $region58: #{tpu_custom_call.1} parent=1 // pred_check
      _
    $region59: #{tpu_custom_call.1} parent=1 // pred_check_branch
      %134 = sbr.rel (0) target = $region61
    $region60: #{tpu_custom_call.1} parent=1 // pred_region
      %135 = dma.done [#allocation9], 96
    $region61: #{tpu_custom_call.1} parent=1 // pred_fallthru
      _
    // Predicated region
    $region62: #{tpu_custom_call.1} parent=1 // pred_check
      _
    $region63: #{tpu_custom_call.1} parent=1 // pred_check_branch
      %137 = sbr.rel (0) target = $region65
    $region64: #{tpu_custom_call.1} parent=1 // pred_region
      %138 = dma.done [#allocation9], 64
    $region65: #{tpu_custom_call.1} parent=1 // pred_fallthru
      _
    // Predicated region
    $region66: #{tpu_custom_call.1} parent=1 // pred_check
      _
    $region67: #{tpu_custom_call.1} parent=1 // pred_check_branch
      %140 = sbr.rel (0) target = $region69
    $region68: #{tpu_custom_call.1} parent=1 // pred_region
      %141 = dma.done [#allocation12], 16384
    $region69: #{tpu_custom_call.1} parent=1 // pred_fallthru
      _
    // Predicated region
    $region70: #{tpu_custom_call.1} parent=1 // pred_check
      _
    $region71: #{tpu_custom_call.1} parent=1 // pred_check_branch
      %143 = sbr.rel (0) target = $region73
    $region72: #{tpu_custom_call.1} parent=1 // pred_region
      %144 = dma.done [#allocation12], 64
    $region73: #{tpu_custom_call.1} parent=1 // pred_fallthru
      _
    // Predicated region
    $region74: #{tpu_custom_call.1} parent=1 // pred_check
      _
    $region75: #{tpu_custom_call.1} parent=1 // pred_check_branch
      %146 = sbr.rel (0) target = $region77
    $region76: #{tpu_custom_call.1} parent=1 // pred_region
      %147 = dma.done [#allocation15], 4096
    $region77: #{tpu_custom_call.1} parent=1 // pred_fallthru
      _
    // Predicated region
    $region78: #{tpu_custom_call.1} parent=1 // pred_check
      _
    $region79: #{tpu_custom_call.1} parent=1 // pred_check_branch
      %149 = sbr.rel (0) target = $region81
    $region80: #{tpu_custom_call.1} parent=1 // pred_region
      %150 = dma.done [#allocation15], 16
    $region81: #{tpu_custom_call.1} parent=1 // pred_fallthru
      _
    %v152 = vld [vmem:[%s0] sm:$0xff]
    %v153 = vld [vmem:[%s0 + $0x8] sm:$0xff]
    %v154 = vld [vmem:[%s0 + $0x10] sm:$0xff]
    %v155 = vld [vmem:[%s0 + $0x18] sm:$0xff]
    %v156 = vld [vmem:[%s0 + $0x20] sm:$0xff]
    %v157 = vld [vmem:[%s0 + $0x28] sm:$0xff]
    %v158 = vld [vmem:[%s0 + $0x30] sm:$0xff]
    %v159 = vld [vmem:[%s0 + $0x38] sm:$0xff]
    %v160 = vld [vmem:[%s0 + $0x40] sm:$0xff]
    %v161 = vld [vmem:[%s0 + $0x48] sm:$0xff]
    %v162 = vld [vmem:[%s0 + $0x50] sm:$0xff]
    %v163 = vld [vmem:[%s0 + $0x58] sm:$0xff]
    %v164 = vld [vmem:[%s0 + $0x60] sm:$0xff]
    %v165 = vld [vmem:[%s0 + $0x68] sm:$0xff]
    %v166 = vld [vmem:[%s0 + $0x70] sm:$0xff]
    %v167 = vld [vmem:[%s0 + $0x78] sm:$0xff]
    %v168 = vld [vmem:[%s0 + $0x80] sm:$0xff]
    %v169 = vld [vmem:[%s0 + $0x88] sm:$0xff]
    %v170 = vld [vmem:[%s0 + $0x90] sm:$0xff]
    %v171 = vld [vmem:[%s0 + $0x98] sm:$0xff]
    %v172 = vld [vmem:[%s0 + $0xa0] sm:$0xff]
    %v173 = vld [vmem:[%s0 + $0xa8] sm:$0xff]
    %v174 = vld [vmem:[%s0 + $0xb0] sm:$0xff]
    %v175 = vld [vmem:[%s0 + $0xb8] sm:$0xff]
    %v176 = vld [vmem:[%s0 + $0xc0] sm:$0xff]
    %v177 = vld [vmem:[%s0 + $0xc8] sm:$0xff]
    %v178 = vld [vmem:[%s0 + $0xd0] sm:$0xff]
    %v179 = vld [vmem:[%s0 + $0xd8] sm:$0xff]
    %v180 = vld [vmem:[%s0 + $0xe0] sm:$0xff]
    %v181 = vld [vmem:[%s0 + $0xe8] sm:$0xff]
    %v182 = vld [vmem:[%s0 + $0xf0] sm:$0xff]
    %v183 = vld [vmem:[%s0 + $0xf8] sm:$0xff]
    %v184 = vld [vmem:[%s0 + $0x100] sm:$0xff]
    %v185 = vld [vmem:[%s0 + $0x108] sm:$0xff]
    %v186 = vld [vmem:[%s0 + $0x110] sm:$0xff]
    %v187 = vld [vmem:[%s0 + $0x118] sm:$0xff]
    %v188 = vld [vmem:[%s0 + $0x120] sm:$0xff]
    %v189 = vld [vmem:[%s0 + $0x128] sm:$0xff]
    %v190 = vld [vmem:[%s0 + $0x130] sm:$0xff]
    %v191 = vld [vmem:[%s0 + $0x138] sm:$0xff]
    %v192 = vld [vmem:[%s0 + $0x140] sm:$0xff]
    %v193 = vld [vmem:[%s0 + $0x148] sm:$0xff]
    %v194 = vld [vmem:[%s0 + $0x150] sm:$0xff]
    %v195 = vld [vmem:[%s0 + $0x158] sm:$0xff]
    %v196 = vld [vmem:[%s0 + $0x160] sm:$0xff]
    %v197 = vld [vmem:[%s0 + $0x168] sm:$0xff]
    %v198 = vld [vmem:[%s0 + $0x170] sm:$0xff]
    %v199 = vld [vmem:[%s0 + $0x178] sm:$0xff]
    %v200 = vld [vmem:[%s0 + $0x180] sm:$0xff]
    %v201 = vld [vmem:[%s0 + $0x188] sm:$0xff]
    %v202 = vld [vmem:[%s0 + $0x190] sm:$0xff]
    %v203 = vld [vmem:[%s0 + $0x198] sm:$0xff]
    %v204 = vld [vmem:[%s0 + $0x1a0] sm:$0xff]
    %v205 = vld [vmem:[%s0 + $0x1a8] sm:$0xff]
    %v206 = vld [vmem:[%s0 + $0x1b0] sm:$0xff]
    %v207 = vld [vmem:[%s0 + $0x1b8] sm:$0xff]
    %v208 = vld [vmem:[%s0 + $0x1c0] sm:$0xff]
    %v209 = vld [vmem:[%s0 + $0x1c8] sm:$0xff]
    %v210 = vld [vmem:[%s0 + $0x1d0] sm:$0xff]
    %v211 = vld [vmem:[%s0 + $0x1d8] sm:$0xff]
    %v212 = vld [vmem:[%s0 + $0x1e0] sm:$0xff]
    %v213 = vld [vmem:[%s0 + $0x1e8] sm:$0xff]
    %v214 = vld [vmem:[%s0 + $0x1f0] sm:$0xff]
    %v215 = vld [vmem:[%s0 + $0x1f8] sm:$0xff]
    %v216 = vld [vmem:[%s0 + $0x200] sm:$0xff]
    %v217 = vld [vmem:[%s0 + $0x208] sm:$0xff]
    %v218 = vld [vmem:[%s0 + $0x210] sm:$0xff]
    %v219 = vld [vmem:[%s0 + $0x218] sm:$0xff]
    %v220 = vld [vmem:[%s0 + $0x220] sm:$0xff]
    %v221 = vld [vmem:[%s0 + $0x228] sm:$0xff]
    %v222 = vld [vmem:[%s0 + $0x230] sm:$0xff]
    %v223 = vld [vmem:[%s0 + $0x238] sm:$0xff]
    %v224 = vld [vmem:[%s0 + $0x240] sm:$0xff]
    %v225 = vld [vmem:[%s0 + $0x248] sm:$0xff]
    %v226 = vld [vmem:[%s0 + $0x250] sm:$0xff]
    %v227 = vld [vmem:[%s0 + $0x258] sm:$0xff]
    %v228 = vld [vmem:[%s0 + $0x260] sm:$0xff]
    %v229 = vld [vmem:[%s0 + $0x268] sm:$0xff]
    %v230 = vld [vmem:[%s0 + $0x270] sm:$0xff]
    %v231 = vld [vmem:[%s0 + $0x278] sm:$0xff]
    %v232 = vld [vmem:[%s0 + $0x280] sm:$0xff]
    %v233 = vld [vmem:[%s0 + $0x288] sm:$0xff]
    %v234 = vld [vmem:[%s0 + $0x290] sm:$0xff]
    %v235 = vld [vmem:[%s0 + $0x298] sm:$0xff]
    %v236 = vld [vmem:[%s0 + $0x2a0] sm:$0xff]
    %v237 = vld [vmem:[%s0 + $0x2a8] sm:$0xff]
    %v238 = vld [vmem:[%s0 + $0x2b0] sm:$0xff]
    %v239 = vld [vmem:[%s0 + $0x2b8] sm:$0xff]
    %v240 = vld [vmem:[%s0 + $0x2c0] sm:$0xff]
    %v241 = vld [vmem:[%s0 + $0x2c8] sm:$0xff]
    %v242 = vld [vmem:[%s0 + $0x2d0] sm:$0xff]
    %v243 = vld [vmem:[%s0 + $0x2d8] sm:$0xff]
    %v244 = vld [vmem:[%s0 + $0x2e0] sm:$0xff]
    %v245 = vld [vmem:[%s0 + $0x2e8] sm:$0xff]
    %v246 = vld [vmem:[%s0 + $0x2f0] sm:$0xff]
    %v247 = vld [vmem:[%s0 + $0x2f8] sm:$0xff]
    %v248 = vld [vmem:[%s0 + $0x300] sm:$0xff]
    %v249 = vld [vmem:[%s0 + $0x308] sm:$0xff]
    %v250 = vld [vmem:[%s0 + $0x310] sm:$0xff]
    %v251 = vld [vmem:[%s0 + $0x318] sm:$0xff]
    %v252 = vld [vmem:[%s0 + $0x320] sm:$0xff]
    %v253 = vld [vmem:[%s0 + $0x328] sm:$0xff]
    %v254 = vld [vmem:[%s0 + $0x330] sm:$0xff]
    %v255 = vld [vmem:[%s0 + $0x338] sm:$0xff]
    %v256 = vld [vmem:[%s0 + $0x340] sm:$0xff]
    %v257 = vld [vmem:[%s0 + $0x348] sm:$0xff]
    %v258 = vld [vmem:[%s0 + $0x350] sm:$0xff]
    %v259 = vld [vmem:[%s0 + $0x358] sm:$0xff]
    %v260 = vld [vmem:[%s0 + $0x360] sm:$0xff]
    %v261 = vld [vmem:[%s0 + $0x368] sm:$0xff]
    %v262 = vld [vmem:[%s0 + $0x370] sm:$0xff]
    %v263 = vld [vmem:[%s0 + $0x378] sm:$0xff]
    %v264 = vpack.c.bf16 %v159, %v152
    %v265 = vpack.c.bf16 %v160, %v153
    %v266 = vpack.c.bf16 %v161, %v154
    %v267 = vpack.c.bf16 %v162, %v155
    %v268 = vpack.c.bf16 %v163, %v156
    %v269 = vpack.c.bf16 %v164, %v157
    %v270 = vpack.c.bf16 %v165, %v158
    %v271 = vpack.c.bf16 %v173, %v166
    %v272 = vpack.c.bf16 %v174, %v167
    %v273 = vpack.c.bf16 %v175, %v168
    %v274 = vpack.c.bf16 %v176, %v169
    %v275 = vpack.c.bf16 %v177, %v170
    %v276 = vpack.c.bf16 %v178, %v171
    %v277 = vpack.c.bf16 %v179, %v172
    %v278 = vpack.c.bf16 %v187, %v180
    %v279 = vpack.c.bf16 %v188, %v181
    %v280 = vpack.c.bf16 %v189, %v182
    %v281 = vpack.c.bf16 %v190, %v183
    %v282 = vpack.c.bf16 %v191, %v184
    %v283 = vpack.c.bf16 %v192, %v185
    %v284 = vpack.c.bf16 %v193, %v186
    %v285 = vpack.c.bf16 %v201, %v194
    %v286 = vpack.c.bf16 %v202, %v195
    %v287 = vpack.c.bf16 %v203, %v196
    %v288 = vpack.c.bf16 %v204, %v197
    %v289 = vpack.c.bf16 %v205, %v198
    %v290 = vpack.c.bf16 %v206, %v199
    %v291 = vpack.c.bf16 %v207, %v200
    %v292 = vpack.c.bf16 %v215, %v208
    %v293 = vpack.c.bf16 %v216, %v209
    %v294 = vpack.c.bf16 %v217, %v210
    %v295 = vpack.c.bf16 %v218, %v211
    %v296 = vpack.c.bf16 %v219, %v212
    %v297 = vpack.c.bf16 %v220, %v213
    %v298 = vpack.c.bf16 %v221, %v214
    %v299 = vpack.c.bf16 %v229, %v222
    %v300 = vpack.c.bf16 %v230, %v223
    %v301 = vpack.c.bf16 %v231, %v224
    %v302 = vpack.c.bf16 %v232, %v225
    %v303 = vpack.c.bf16 %v233, %v226
    %v304 = vpack.c.bf16 %v234, %v227
    %v305 = vpack.c.bf16 %v235, %v228
    %v306 = vpack.c.bf16 %v243, %v236
    %v307 = vpack.c.bf16 %v244, %v237
    %v308 = vpack.c.bf16 %v245, %v238
    %v309 = vpack.c.bf16 %v246, %v239
    %v310 = vpack.c.bf16 %v247, %v240
    %v311 = vpack.c.bf16 %v248, %v241
    %v312 = vpack.c.bf16 %v249, %v242
    %v313 = vpack.c.bf16 %v257, %v250
    %v314 = vpack.c.bf16 %v258, %v251
    %v315 = vpack.c.bf16 %v259, %v252
    %v316 = vpack.c.bf16 %v260, %v253
    %v317 = vpack.c.bf16 %v261, %v254
    %v318 = vpack.c.bf16 %v262, %v255
    %v319 = vpack.c.bf16 %v263, %v256
    %v320 = vld [vmem:[#allocation2] sm:$0xff]
    %v321 = vld [vmem:[#allocation2 + $0x8] sm:$0xff]
    %v322 = vld [vmem:[#allocation2 + $0x10] sm:$0xff]
    %v323 = vld [vmem:[#allocation2 + $0x18] sm:$0xff]
    %v324 = vld [vmem:[#allocation2 + $0x20] sm:$0xff]
    %v325 = vld [vmem:[#allocation2 + $0x28] sm:$0xff]
    %v326 = vld [vmem:[#allocation2 + $0x30] sm:$0xff]
    %v327 = vld [vmem:[#allocation2 + $0x38] sm:$0xff]
    %v328 = vld [vmem:[#allocation2 + $0x40] sm:$0xff]
    %v329 = vld [vmem:[#allocation2 + $0x48] sm:$0xff]
    %v330 = vld [vmem:[#allocation2 + $0x50] sm:$0xff]
    %v331 = vld [vmem:[#allocation2 + $0x58] sm:$0xff]
    %v332 = vld [vmem:[#allocation2 + $0x60] sm:$0xff]
    %v333 = vld [vmem:[#allocation2 + $0x68] sm:$0xff]
    %v334 = vld [vmem:[#allocation2 + $0x70] sm:$0xff]
    %v335 = vld [vmem:[#allocation2 + $0x78] sm:$0xff]
    %v336 = vld [vmem:[#allocation2 + $0x80] sm:$0xff]
    %v337 = vld [vmem:[#allocation2 + $0x88] sm:$0xff]
    %v338 = vld [vmem:[#allocation2 + $0x90] sm:$0xff]
    %v339 = vld [vmem:[#allocation2 + $0x98] sm:$0xff]
    %v340 = vld [vmem:[#allocation2 + $0xa0] sm:$0xff]
    %v341 = vld [vmem:[#allocation2 + $0xa8] sm:$0xff]
    %v342 = vld [vmem:[#allocation2 + $0xb0] sm:$0xff]
    %v343 = vld [vmem:[#allocation2 + $0xb8] sm:$0xff]
    %v344 = vld [vmem:[#allocation2 + $0xc0] sm:$0xff]
    %v345 = vld [vmem:[#allocation2 + $0xc8] sm:$0xff]
    %v346 = vld [vmem:[#allocation2 + $0xd0] sm:$0xff]
    %v347 = vld [vmem:[#allocation2 + $0xd8] sm:$0xff]
    %v348 = vld [vmem:[#allocation2 + $0xe0] sm:$0xff]
    %v349 = vld [vmem:[#allocation2 + $0xe8] sm:$0xff]
    %v350 = vld [vmem:[#allocation2 + $0xf0] sm:$0xff]
    %v351 = vld [vmem:[#allocation2 + $0xf8] sm:$0xff]
    %v352 = vld [vmem:[#allocation2 + $0x100] sm:$0xff]
    %v353 = vld [vmem:[#allocation2 + $0x108] sm:$0xff]
    %v354 = vld [vmem:[#allocation2 + $0x110] sm:$0xff]
    %v355 = vld [vmem:[#allocation2 + $0x118] sm:$0xff]
    %v356 = vld [vmem:[#allocation2 + $0x120] sm:$0xff]
    %v357 = vld [vmem:[#allocation2 + $0x128] sm:$0xff]
    %v358 = vld [vmem:[#allocation2 + $0x130] sm:$0xff]
    %v359 = vld [vmem:[#allocation2 + $0x138] sm:$0xff]
    %v360 = vld [vmem:[#allocation2 + $0x140] sm:$0xff]
    %v361 = vld [vmem:[#allocation2 + $0x148] sm:$0xff]
    %v362 = vld [vmem:[#allocation2 + $0x150] sm:$0xff]
    %v363 = vld [vmem:[#allocation2 + $0x158] sm:$0xff]
    %v364 = vld [vmem:[#allocation2 + $0x160] sm:$0xff]
    %v365 = vld [vmem:[#allocation2 + $0x168] sm:$0xff]
    %v366 = vld [vmem:[#allocation2 + $0x170] sm:$0xff]
    %v367 = vld [vmem:[#allocation2 + $0x178] sm:$0xff]
    %v368 = vld [vmem:[#allocation2 + $0x180] sm:$0xff]
    %v369 = vld [vmem:[#allocation2 + $0x188] sm:$0xff]
    %v370 = vld [vmem:[#allocation2 + $0x190] sm:$0xff]
    %v371 = vld [vmem:[#allocation2 + $0x198] sm:$0xff]
    %v372 = vld [vmem:[#allocation2 + $0x1a0] sm:$0xff]
    %v373 = vld [vmem:[#allocation2 + $0x1a8] sm:$0xff]
    %v374 = vld [vmem:[#allocation2 + $0x1b0] sm:$0xff]
    %v375 = vld [vmem:[#allocation2 + $0x1b8] sm:$0xff]
    %v376 = vld [vmem:[#allocation2 + $0x1c0] sm:$0xff]
    %v377 = vld [vmem:[#allocation2 + $0x1c8] sm:$0xff]
    %v378 = vld [vmem:[#allocation2 + $0x1d0] sm:$0xff]
    %v379 = vld [vmem:[#allocation2 + $0x1d8] sm:$0xff]
    %v380 = vld [vmem:[#allocation2 + $0x1e0] sm:$0xff]
    %v381 = vld [vmem:[#allocation2 + $0x1e8] sm:$0xff]
    %v382 = vld [vmem:[#allocation2 + $0x1f0] sm:$0xff]
    %v383 = vld [vmem:[#allocation2 + $0x1f8] sm:$0xff]
    %v384 = vld [vmem:[#allocation2 + $0x200] sm:$0xff]
    %v385 = vld [vmem:[#allocation2 + $0x208] sm:$0xff]
    %v386 = vld [vmem:[#allocation2 + $0x210] sm:$0xff]
    %v387 = vld [vmem:[#allocation2 + $0x218] sm:$0xff]
    %v388 = vld [vmem:[#allocation2 + $0x220] sm:$0xff]
    %v389 = vld [vmem:[#allocation2 + $0x228] sm:$0xff]
    %v390 = vld [vmem:[#allocation2 + $0x230] sm:$0xff]
    %v391 = vld [vmem:[#allocation2 + $0x238] sm:$0xff]
    %v392 = vld [vmem:[#allocation2 + $0x240] sm:$0xff]
    %v393 = vld [vmem:[#allocation2 + $0x248] sm:$0xff]
    %v394 = vld [vmem:[#allocation2 + $0x250] sm:$0xff]
    %v395 = vld [vmem:[#allocation2 + $0x258] sm:$0xff]
    %v396 = vld [vmem:[#allocation2 + $0x260] sm:$0xff]
    %v397 = vld [vmem:[#allocation2 + $0x268] sm:$0xff]
    %v398 = vld [vmem:[#allocation2 + $0x270] sm:$0xff]
    %v399 = vld [vmem:[#allocation2 + $0x278] sm:$0xff]
    %v400 = vld [vmem:[#allocation2 + $0x280] sm:$0xff]
    %v401 = vld [vmem:[#allocation2 + $0x288] sm:$0xff]
    %v402 = vld [vmem:[#allocation2 + $0x290] sm:$0xff]
    %v403 = vld [vmem:[#allocation2 + $0x298] sm:$0xff]
    %v404 = vld [vmem:[#allocation2 + $0x2a0] sm:$0xff]
    %v405 = vld [vmem:[#allocation2 + $0x2a8] sm:$0xff]
    %v406 = vld [vmem:[#allocation2 + $0x2b0] sm:$0xff]
    %v407 = vld [vmem:[#allocation2 + $0x2b8] sm:$0xff]
    %v408 = vld [vmem:[#allocation2 + $0x2c0] sm:$0xff]
    %v409 = vld [vmem:[#allocation2 + $0x2c8] sm:$0xff]
    %v410 = vld [vmem:[#allocation2 + $0x2d0] sm:$0xff]
    %v411 = vld [vmem:[#allocation2 + $0x2d8] sm:$0xff]
    %v412 = vld [vmem:[#allocation2 + $0x2e0] sm:$0xff]
    %v413 = vld [vmem:[#allocation2 + $0x2e8] sm:$0xff]
    %v414 = vld [vmem:[#allocation2 + $0x2f0] sm:$0xff]
    %v415 = vld [vmem:[#allocation2 + $0x2f8] sm:$0xff]
    %v416 = vld [vmem:[#allocation2 + $0x300] sm:$0xff]
    %v417 = vld [vmem:[#allocation2 + $0x308] sm:$0xff]
    %v418 = vld [vmem:[#allocation2 + $0x310] sm:$0xff]
    %v419 = vld [vmem:[#allocation2 + $0x318] sm:$0xff]
    %v420 = vld [vmem:[#allocation2 + $0x320] sm:$0xff]
    %v421 = vld [vmem:[#allocation2 + $0x328] sm:$0xff]
    %v422 = vld [vmem:[#allocation2 + $0x330] sm:$0xff]
    %v423 = vld [vmem:[#allocation2 + $0x338] sm:$0xff]
    %v424 = vld [vmem:[#allocation2 + $0x340] sm:$0xff]
    %v425 = vld [vmem:[#allocation2 + $0x348] sm:$0xff]
    %v426 = vld [vmem:[#allocation2 + $0x350] sm:$0xff]
    %v427 = vld [vmem:[#allocation2 + $0x358] sm:$0xff]
    %v428 = vld [vmem:[#allocation2 + $0x360] sm:$0xff]
    %v429 = vld [vmem:[#allocation2 + $0x368] sm:$0xff]
    %v430 = vld [vmem:[#allocation2 + $0x370] sm:$0xff]
    %v431 = vld [vmem:[#allocation2 + $0x378] sm:$0xff]
    %v432 = vld [vmem:[#allocation2 + $0x380] sm:$0xff]
    %v433 = vld [vmem:[#allocation2 + $0x388] sm:$0xff]
    %v434 = vld [vmem:[#allocation2 + $0x390] sm:$0xff]
    %v435 = vld [vmem:[#allocation2 + $0x398] sm:$0xff]
    %v436 = vld [vmem:[#allocation2 + $0x3a0] sm:$0xff]
    %v437 = vld [vmem:[#allocation2 + $0x3a8] sm:$0xff]
    %v438 = vld [vmem:[#allocation2 + $0x3b0] sm:$0xff]
    %v439 = vld [vmem:[#allocation2 + $0x3b8] sm:$0xff]
    %v440 = vld [vmem:[#allocation2 + $0x3c0] sm:$0xff]
    %v441 = vld [vmem:[#allocation2 + $0x3c8] sm:$0xff]
    %v442 = vld [vmem:[#allocation2 + $0x3d0] sm:$0xff]
    %v443 = vld [vmem:[#allocation2 + $0x3d8] sm:$0xff]
    %v444 = vld [vmem:[#allocation2 + $0x3e0] sm:$0xff]
    %v445 = vld [vmem:[#allocation2 + $0x3e8] sm:$0xff]
    %v446 = vld [vmem:[#allocation2 + $0x3f0] sm:$0xff]
    %v447 = vld [vmem:[#allocation2 + $0x3f8] sm:$0xff]
    %v448 = vld [vmem:[#allocation2 + $0x400] sm:$0xff]
    %v449 = vld [vmem:[#allocation2 + $0x408] sm:$0xff]
    %v450 = vld [vmem:[#allocation2 + $0x410] sm:$0xff]
    %v451 = vld [vmem:[#allocation2 + $0x418] sm:$0xff]
    %v452 = vld [vmem:[#allocation2 + $0x420] sm:$0xff]
    %v453 = vld [vmem:[#allocation2 + $0x428] sm:$0xff]
    %v454 = vld [vmem:[#allocation2 + $0x430] sm:$0xff]
    %v455 = vld [vmem:[#allocation2 + $0x438] sm:$0xff]
    %v456 = vld [vmem:[#allocation2 + $0x440] sm:$0xff]
    %v457 = vld [vmem:[#allocation2 + $0x448] sm:$0xff]
    %v458 = vld [vmem:[#allocation2 + $0x450] sm:$0xff]
    %v459 = vld [vmem:[#allocation2 + $0x458] sm:$0xff]
    %v460 = vld [vmem:[#allocation2 + $0x460] sm:$0xff]
    %v461 = vld [vmem:[#allocation2 + $0x468] sm:$0xff]
    %v462 = vld [vmem:[#allocation2 + $0x470] sm:$0xff]
    %v463 = vld [vmem:[#allocation2 + $0x478] sm:$0xff]
    %v464 = vld [vmem:[#allocation2 + $0x480] sm:$0xff]
    %v465 = vld [vmem:[#allocation2 + $0x488] sm:$0xff]
    %v466 = vld [vmem:[#allocation2 + $0x490] sm:$0xff]
    %v467 = vld [vmem:[#allocation2 + $0x498] sm:$0xff]
    %v468 = vld [vmem:[#allocation2 + $0x4a0] sm:$0xff]
    %v469 = vld [vmem:[#allocation2 + $0x4a8] sm:$0xff]
    %v470 = vld [vmem:[#allocation2 + $0x4b0] sm:$0xff]
    %v471 = vld [vmem:[#allocation2 + $0x4b8] sm:$0xff]
    %v472 = vld [vmem:[#allocation2 + $0x4c0] sm:$0xff]
    %v473 = vld [vmem:[#allocation2 + $0x4c8] sm:$0xff]
    %v474 = vld [vmem:[#allocation2 + $0x4d0] sm:$0xff]
    %v475 = vld [vmem:[#allocation2 + $0x4d8] sm:$0xff]
    %v476 = vld [vmem:[#allocation2 + $0x4e0] sm:$0xff]
    %v477 = vld [vmem:[#allocation2 + $0x4e8] sm:$0xff]
    %v478 = vld [vmem:[#allocation2 + $0x4f0] sm:$0xff]
    %v479 = vld [vmem:[#allocation2 + $0x4f8] sm:$0xff]
    %v480 = vld [vmem:[#allocation2 + $0x500] sm:$0xff]
    %v481 = vld [vmem:[#allocation2 + $0x508] sm:$0xff]
    %v482 = vld [vmem:[#allocation2 + $0x510] sm:$0xff]
    %v483 = vld [vmem:[#allocation2 + $0x518] sm:$0xff]
    %v484 = vld [vmem:[#allocation2 + $0x520] sm:$0xff]
    %v485 = vld [vmem:[#allocation2 + $0x528] sm:$0xff]
    %v486 = vld [vmem:[#allocation2 + $0x530] sm:$0xff]
    %v487 = vld [vmem:[#allocation2 + $0x538] sm:$0xff]
    %v488 = vld [vmem:[#allocation2 + $0x540] sm:$0xff]
    %v489 = vld [vmem:[#allocation2 + $0x548] sm:$0xff]
    %v490 = vld [vmem:[#allocation2 + $0x550] sm:$0xff]
    %v491 = vld [vmem:[#allocation2 + $0x558] sm:$0xff]
    %v492 = vld [vmem:[#allocation2 + $0x560] sm:$0xff]
    %v493 = vld [vmem:[#allocation2 + $0x568] sm:$0xff]
    %v494 = vld [vmem:[#allocation2 + $0x570] sm:$0xff]
    %v495 = vld [vmem:[#allocation2 + $0x578] sm:$0xff]
    %v496 = vld [vmem:[#allocation2 + $0x580] sm:$0xff]
    %v497 = vld [vmem:[#allocation2 + $0x588] sm:$0xff]
    %v498 = vld [vmem:[#allocation2 + $0x590] sm:$0xff]
    %v499 = vld [vmem:[#allocation2 + $0x598] sm:$0xff]
    %v500 = vld [vmem:[#allocation2 + $0x5a0] sm:$0xff]
    %v501 = vld [vmem:[#allocation2 + $0x5a8] sm:$0xff]
    %v502 = vld [vmem:[#allocation2 + $0x5b0] sm:$0xff]
    %v503 = vld [vmem:[#allocation2 + $0x5b8] sm:$0xff]
    %v504 = vld [vmem:[#allocation2 + $0x5c0] sm:$0xff]
    %v505 = vld [vmem:[#allocation2 + $0x5c8] sm:$0xff]
    %v506 = vld [vmem:[#allocation2 + $0x5d0] sm:$0xff]
    %v507 = vld [vmem:[#allocation2 + $0x5d8] sm:$0xff]
    %v508 = vld [vmem:[#allocation2 + $0x5e0] sm:$0xff]
    %v509 = vld [vmem:[#allocation2 + $0x5e8] sm:$0xff]
    %v510 = vld [vmem:[#allocation2 + $0x5f0] sm:$0xff]
    %v511 = vld [vmem:[#allocation2 + $0x5f8] sm:$0xff]
    %v512 = vld [vmem:[#allocation2 + $0x600] sm:$0xff]
    %v513 = vld [vmem:[#allocation2 + $0x608] sm:$0xff]
    %v514 = vld [vmem:[#allocation2 + $0x610] sm:$0xff]
    %v515 = vld [vmem:[#allocation2 + $0x618] sm:$0xff]
    %v516 = vld [vmem:[#allocation2 + $0x620] sm:$0xff]
    %v517 = vld [vmem:[#allocation2 + $0x628] sm:$0xff]
    %v518 = vld [vmem:[#allocation2 + $0x630] sm:$0xff]
    %v519 = vld [vmem:[#allocation2 + $0x638] sm:$0xff]
    %v520 = vld [vmem:[#allocation2 + $0x640] sm:$0xff]
    %v521 = vld [vmem:[#allocation2 + $0x648] sm:$0xff]
    %v522 = vld [vmem:[#allocation2 + $0x650] sm:$0xff]
    %v523 = vld [vmem:[#allocation2 + $0x658] sm:$0xff]
    %v524 = vld [vmem:[#allocation2 + $0x660] sm:$0xff]
    %v525 = vld [vmem:[#allocation2 + $0x668] sm:$0xff]
    %v526 = vld [vmem:[#allocation2 + $0x670] sm:$0xff]
    %v527 = vld [vmem:[#allocation2 + $0x678] sm:$0xff]
    %v528 = vld [vmem:[#allocation2 + $0x680] sm:$0xff]
    %v529 = vld [vmem:[#allocation2 + $0x688] sm:$0xff]
    %v530 = vld [vmem:[#allocation2 + $0x690] sm:$0xff]
    %v531 = vld [vmem:[#allocation2 + $0x698] sm:$0xff]
    %v532 = vld [vmem:[#allocation2 + $0x6a0] sm:$0xff]
    %v533 = vld [vmem:[#allocation2 + $0x6a8] sm:$0xff]
    %v534 = vld [vmem:[#allocation2 + $0x6b0] sm:$0xff]
    %v535 = vld [vmem:[#allocation2 + $0x6b8] sm:$0xff]
    %v536 = vld [vmem:[#allocation2 + $0x6c0] sm:$0xff]
    %v537 = vld [vmem:[#allocation2 + $0x6c8] sm:$0xff]
    %v538 = vld [vmem:[#allocation2 + $0x6d0] sm:$0xff]
    %v539 = vld [vmem:[#allocation2 + $0x6d8] sm:$0xff]
    %v540 = vld [vmem:[#allocation2 + $0x6e0] sm:$0xff]
    %v541 = vld [vmem:[#allocation2 + $0x6e8] sm:$0xff]
    %v542 = vld [vmem:[#allocation2 + $0x6f0] sm:$0xff]
    %v543 = vld [vmem:[#allocation2 + $0x6f8] sm:$0xff]
    %v544 = vld [vmem:[#allocation2 + $0x700] sm:$0xff]
    %v545 = vld [vmem:[#allocation2 + $0x708] sm:$0xff]
    %v546 = vld [vmem:[#allocation2 + $0x710] sm:$0xff]
    %v547 = vld [vmem:[#allocation2 + $0x718] sm:$0xff]
    %v548 = vld [vmem:[#allocation2 + $0x720] sm:$0xff]
    %v549 = vld [vmem:[#allocation2 + $0x728] sm:$0xff]
    %v550 = vld [vmem:[#allocation2 + $0x730] sm:$0xff]
    %v551 = vld [vmem:[#allocation2 + $0x738] sm:$0xff]
    %v552 = vld [vmem:[#allocation2 + $0x740] sm:$0xff]
    %v553 = vld [vmem:[#allocation2 + $0x748] sm:$0xff]
    %v554 = vld [vmem:[#allocation2 + $0x750] sm:$0xff]
    %v555 = vld [vmem:[#allocation2 + $0x758] sm:$0xff]
    %v556 = vld [vmem:[#allocation2 + $0x760] sm:$0xff]
    %v557 = vld [vmem:[#allocation2 + $0x768] sm:$0xff]
    %v558 = vld [vmem:[#allocation2 + $0x770] sm:$0xff]
    %v559 = vld [vmem:[#allocation2 + $0x778] sm:$0xff]
    %v560 = vld [vmem:[#allocation2 + $0x780] sm:$0xff]
    %v561 = vld [vmem:[#allocation2 + $0x788] sm:$0xff]
    %v562 = vld [vmem:[#allocation2 + $0x790] sm:$0xff]
    %v563 = vld [vmem:[#allocation2 + $0x798] sm:$0xff]
    %v564 = vld [vmem:[#allocation2 + $0x7a0] sm:$0xff]
    %v565 = vld [vmem:[#allocation2 + $0x7a8] sm:$0xff]
    %v566 = vld [vmem:[#allocation2 + $0x7b0] sm:$0xff]
    %v567 = vld [vmem:[#allocation2 + $0x7b8] sm:$0xff]
    %v568 = vld [vmem:[#allocation2 + $0x7c0] sm:$0xff]
    %v569 = vld [vmem:[#allocation2 + $0x7c8] sm:$0xff]
    %v570 = vld [vmem:[#allocation2 + $0x7d0] sm:$0xff]
    %v571 = vld [vmem:[#allocation2 + $0x7d8] sm:$0xff]
    %v572 = vld [vmem:[#allocation2 + $0x7e0] sm:$0xff]
    %v573 = vld [vmem:[#allocation2 + $0x7e8] sm:$0xff]
    %v574 = vld [vmem:[#allocation2 + $0x7f0] sm:$0xff]
    %v575 = vld [vmem:[#allocation2 + $0x7f8] sm:$0xff]
    %v576 = vld [vmem:[#allocation2 + $0x800] sm:$0xff]
    %v577 = vld [vmem:[#allocation2 + $0x808] sm:$0xff]
    %v578 = vld [vmem:[#allocation2 + $0x810] sm:$0xff]
    %v579 = vld [vmem:[#allocation2 + $0x818] sm:$0xff]
    %v580 = vld [vmem:[#allocation2 + $0x820] sm:$0xff]
    %v581 = vld [vmem:[#allocation2 + $0x828] sm:$0xff]
    %v582 = vld [vmem:[#allocation2 + $0x830] sm:$0xff]
    %v583 = vld [vmem:[#allocation2 + $0x838] sm:$0xff]
    %v584 = vld [vmem:[#allocation2 + $0x840] sm:$0xff]
    %v585 = vld [vmem:[#allocation2 + $0x848] sm:$0xff]
    %v586 = vld [vmem:[#allocation2 + $0x850] sm:$0xff]
    %v587 = vld [vmem:[#allocation2 + $0x858] sm:$0xff]
    %v588 = vld [vmem:[#allocation2 + $0x860] sm:$0xff]
    %v589 = vld [vmem:[#allocation2 + $0x868] sm:$0xff]
    %v590 = vld [vmem:[#allocation2 + $0x870] sm:$0xff]
    %v591 = vld [vmem:[#allocation2 + $0x878] sm:$0xff]
    %v592 = vld [vmem:[#allocation2 + $0x880] sm:$0xff]
    %v593 = vld [vmem:[#allocation2 + $0x888] sm:$0xff]
    %v594 = vld [vmem:[#allocation2 + $0x890] sm:$0xff]
    %v595 = vld [vmem:[#allocation2 + $0x898] sm:$0xff]
    %v596 = vld [vmem:[#allocation2 + $0x8a0] sm:$0xff]
    %v597 = vld [vmem:[#allocation2 + $0x8a8] sm:$0xff]
    %v598 = vld [vmem:[#allocation2 + $0x8b0] sm:$0xff]
    %v599 = vld [vmem:[#allocation2 + $0x8b8] sm:$0xff]
    %v600 = vld [vmem:[#allocation2 + $0x8c0] sm:$0xff]
    %v601 = vld [vmem:[#allocation2 + $0x8c8] sm:$0xff]
    %v602 = vld [vmem:[#allocation2 + $0x8d0] sm:$0xff]
    %v603 = vld [vmem:[#allocation2 + $0x8d8] sm:$0xff]
    %v604 = vld [vmem:[#allocation2 + $0x8e0] sm:$0xff]
    %v605 = vld [vmem:[#allocation2 + $0x8e8] sm:$0xff]
    %v606 = vld [vmem:[#allocation2 + $0x8f0] sm:$0xff]
    %v607 = vld [vmem:[#allocation2 + $0x8f8] sm:$0xff]
    %v608 = vld [vmem:[#allocation2 + $0x900] sm:$0xff]
    %v609 = vld [vmem:[#allocation2 + $0x908] sm:$0xff]
    %v610 = vld [vmem:[#allocation2 + $0x910] sm:$0xff]
    %v611 = vld [vmem:[#allocation2 + $0x918] sm:$0xff]
    %v612 = vld [vmem:[#allocation2 + $0x920] sm:$0xff]
    %v613 = vld [vmem:[#allocation2 + $0x928] sm:$0xff]
    %v614 = vld [vmem:[#allocation5] sm:$0x3f]
    %v616 = vlaneseq
    %v617 = vshrl.u32 %v616, 7
    %v618 = vsub.s32 0, %v617
    %v619 = vrot.slane %v614, %v618
    %v620 = vlaneseq
    %v621 = vshrl.u32 %v620, 7
    %v622 = vsub.s32 1, %v621
    %v623 = vrot.slane %v614, %v622
    %v624 = vlaneseq
    %v625 = vshrl.u32 %v624, 7
    %v626 = vsub.s32 2, %v625
    %v627 = vrot.slane %v614, %v626
    %v628 = vlaneseq
    %v629 = vshrl.u32 %v628, 7
    %v630 = vsub.s32 3, %v629
    %v631 = vrot.slane %v614, %v630
    %v632 = vlaneseq
    %v633 = vshrl.u32 %v632, 7
    %v634 = vsub.s32 4, %v633
    %v635 = vrot.slane %v614, %v634
    %v636 = vlaneseq
    %v637 = vshrl.u32 %v636, 7
    %v638 = vsub.s32 5, %v637
    %v639 = vrot.slane %v614, %v638
    %v940 = vunpack.c.l.b16 %v320
    %v941 = vunpack.c.h.b16 %v320
    %v942 = vunpack.c.l.b16 %v321
    %v943 = vunpack.c.h.b16 %v321
    %v944 = vunpack.c.l.b16 %v322
    %v945 = vunpack.c.h.b16 %v322
    %v946 = vunpack.c.l.b16 %v323
    %v947 = vunpack.c.h.b16 %v323
    %v948 = vunpack.c.l.b16 %v324
    %v949 = vunpack.c.h.b16 %v324
    %v950 = vunpack.c.l.b16 %v325
    %v951 = vunpack.c.h.b16 %v325
    %v952 = vunpack.c.l.b16 %v326
    %v953 = vunpack.c.h.b16 %v326
    %v954 = vunpack.c.l.b16 %v327
    %v955 = vunpack.c.h.b16 %v327
    %v956 = vunpack.c.l.b16 %v328
    %v957 = vunpack.c.h.b16 %v328
    %v958 = vunpack.c.l.b16 %v329
    %v959 = vunpack.c.h.b16 %v329
    %v960 = vunpack.c.l.b16 %v330
    %v961 = vunpack.c.h.b16 %v330
    %v962 = vunpack.c.l.b16 %v331
    %v963 = vunpack.c.h.b16 %v331
    %v964 = vunpack.c.l.b16 %v332
    %v965 = vunpack.c.h.b16 %v332
    %v966 = vunpack.c.l.b16 %v333
    %v967 = vunpack.c.h.b16 %v333
    %v968 = vunpack.c.l.b16 %v334
    %v969 = vunpack.c.h.b16 %v334
    %v970 = vunpack.c.l.b16 %v335
    %v971 = vunpack.c.h.b16 %v335
    %v972 = vunpack.c.l.b16 %v336
    %v973 = vunpack.c.h.b16 %v336
    %v974 = vunpack.c.l.b16 %v337
    %v975 = vunpack.c.h.b16 %v337
    %v976 = vunpack.c.l.b16 %v338
    %v977 = vunpack.c.h.b16 %v338
    %v978 = vunpack.c.l.b16 %v339
    %v979 = vunpack.c.h.b16 %v339
    %v980 = vunpack.c.l.b16 %v340
    %v981 = vunpack.c.h.b16 %v340
    %v982 = vunpack.c.l.b16 %v341
    %v983 = vunpack.c.h.b16 %v341
    %v984 = vunpack.c.l.b16 %v342
    %v985 = vunpack.c.h.b16 %v342
    %v986 = vunpack.c.l.b16 %v343
    %v987 = vunpack.c.h.b16 %v343
    %v988 = vunpack.c.l.b16 %v344
    %v989 = vunpack.c.h.b16 %v344
    %v990 = vunpack.c.l.b16 %v345
    %v991 = vunpack.c.h.b16 %v345
    %v992 = vunpack.c.l.b16 %v346
    %v993 = vunpack.c.h.b16 %v346
    %v994 = vunpack.c.l.b16 %v347
    %v995 = vunpack.c.h.b16 %v347
    %v996 = vunpack.c.l.b16 %v348
    %v997 = vunpack.c.h.b16 %v348
    %v998 = vunpack.c.l.b16 %v349
    %v999 = vunpack.c.h.b16 %v349
    %v1000 = vunpack.c.l.b16 %v350
    %v1001 = vunpack.c.h.b16 %v350
    %v1002 = vunpack.c.l.b16 %v351
    %v1003 = vunpack.c.h.b16 %v351
    %v1004 = vunpack.c.l.b16 %v352
    %v1005 = vunpack.c.h.b16 %v352
    %v1006 = vunpack.c.l.b16 %v353
    %v1007 = vunpack.c.h.b16 %v353
    %v1008 = vunpack.c.l.b16 %v354
    %v1009 = vunpack.c.h.b16 %v354
    %v1010 = vunpack.c.l.b16 %v355
    %v1011 = vunpack.c.h.b16 %v355
    %v1012 = vunpack.c.l.b16 %v356
    %v1013 = vunpack.c.h.b16 %v356
    %v1014 = vunpack.c.l.b16 %v357
    %v1015 = vunpack.c.h.b16 %v357
    %v1016 = vunpack.c.l.b16 %v358
    %v1017 = vunpack.c.h.b16 %v358
    %v1018 = vunpack.c.l.b16 %v359
    %v1019 = vunpack.c.h.b16 %v359
    %v1020 = vunpack.c.l.b16 %v360
    %v1021 = vunpack.c.h.b16 %v360
    %v1022 = vunpack.c.l.b16 %v361
    %v1023 = vunpack.c.h.b16 %v361
    %v1024 = vunpack.c.l.b16 %v362
    %v1025 = vunpack.c.h.b16 %v362
    %v1026 = vunpack.c.l.b16 %v363
    %v1027 = vunpack.c.h.b16 %v363
    %v1028 = vunpack.c.l.b16 %v364
    %v1029 = vunpack.c.h.b16 %v364
    %v1030 = vunpack.c.l.b16 %v365
    %v1031 = vunpack.c.h.b16 %v365
    %v1032 = vunpack.c.l.b16 %v366
    %v1033 = vunpack.c.h.b16 %v366
    %v1034 = vunpack.c.l.b16 %v367
    %v1035 = vunpack.c.h.b16 %v367
    %v1036 = vunpack.c.l.b16 %v368
    %v1037 = vunpack.c.h.b16 %v368
    %v1038 = vunpack.c.l.b16 %v369
    %v1039 = vunpack.c.h.b16 %v369
    %v1040 = vunpack.c.l.b16 %v370
    %v1041 = vunpack.c.h.b16 %v370
    %v1042 = vunpack.c.l.b16 %v371
    %v1043 = vunpack.c.h.b16 %v371
    %v1044 = vunpack.c.l.b16 %v372
    %v1045 = vunpack.c.h.b16 %v372
    %v1046 = vunpack.c.l.b16 %v373
    %v1047 = vunpack.c.h.b16 %v373
    %v1048 = vunpack.c.l.b16 %v374
    %v1049 = vunpack.c.h.b16 %v374
    %v1050 = vunpack.c.l.b16 %v375
    %v1051 = vunpack.c.h.b16 %v375
    %v1052 = vunpack.c.l.b16 %v376
    %v1053 = vunpack.c.h.b16 %v376
    %v1054 = vunpack.c.l.b16 %v377
    %v1055 = vunpack.c.h.b16 %v377
    %v1056 = vunpack.c.l.b16 %v378
    %v1057 = vunpack.c.h.b16 %v378
    %v1058 = vunpack.c.l.b16 %v379
    %v1059 = vunpack.c.h.b16 %v379
    %v1060 = vunpack.c.l.b16 %v380
    %v1061 = vunpack.c.h.b16 %v380
    %v1062 = vunpack.c.l.b16 %v381
    %v1063 = vunpack.c.h.b16 %v381
    %v1064 = vunpack.c.l.b16 %v382
    %v1065 = vunpack.c.h.b16 %v382
    %v1066 = vunpack.c.l.b16 %v383
    %v1067 = vunpack.c.h.b16 %v383
    %v1068 = vunpack.c.l.b16 %v384
    %v1069 = vunpack.c.h.b16 %v384
    %v1070 = vunpack.c.l.b16 %v385
    %v1071 = vunpack.c.h.b16 %v385
    %v1072 = vunpack.c.l.b16 %v386
    %v1073 = vunpack.c.h.b16 %v386
    %v1074 = vunpack.c.l.b16 %v387
    %v1075 = vunpack.c.h.b16 %v387
    %v1076 = vunpack.c.l.b16 %v388
    %v1077 = vunpack.c.h.b16 %v388
    %v1078 = vunpack.c.l.b16 %v389
    %v1079 = vunpack.c.h.b16 %v389
    %v1080 = vunpack.c.l.b16 %v390
    %v1081 = vunpack.c.h.b16 %v390
    %v1082 = vunpack.c.l.b16 %v391
    %v1083 = vunpack.c.h.b16 %v391
    %v1084 = vunpack.c.l.b16 %v392
    %v1085 = vunpack.c.h.b16 %v392
    %v1086 = vunpack.c.l.b16 %v393
    %v1087 = vunpack.c.h.b16 %v393
    %v1088 = vunpack.c.l.b16 %v394
    %v1089 = vunpack.c.h.b16 %v394
    %v1090 = vunpack.c.l.b16 %v395
    %v1091 = vunpack.c.h.b16 %v395
    %v1092 = vunpack.c.l.b16 %v396
    %v1093 = vunpack.c.h.b16 %v396
    %v1094 = vunpack.c.l.b16 %v397
    %v1095 = vunpack.c.h.b16 %v397
    %v1096 = vunpack.c.l.b16 %v398
    %v1097 = vunpack.c.h.b16 %v398
    %v1098 = vunpack.c.l.b16 %v399
    %v1099 = vunpack.c.h.b16 %v399
    %v1100 = vunpack.c.l.b16 %v400
    %v1101 = vunpack.c.h.b16 %v400
    %v1102 = vunpack.c.l.b16 %v401
    %v1103 = vunpack.c.h.b16 %v401
    %v1104 = vunpack.c.l.b16 %v402
    %v1105 = vunpack.c.h.b16 %v402
    %v1106 = vunpack.c.l.b16 %v403
    %v1107 = vunpack.c.h.b16 %v403
    %v1108 = vunpack.c.l.b16 %v404
    %v1109 = vunpack.c.h.b16 %v404
    %v1110 = vunpack.c.l.b16 %v405
    %v1111 = vunpack.c.h.b16 %v405
    %v1112 = vunpack.c.l.b16 %v406
    %v1113 = vunpack.c.h.b16 %v406
    %v1114 = vunpack.c.l.b16 %v407
    %v1115 = vunpack.c.h.b16 %v407
    %v1116 = vunpack.c.l.b16 %v408
    %v1117 = vunpack.c.h.b16 %v408
    %v1118 = vunpack.c.l.b16 %v409
    %v1119 = vunpack.c.h.b16 %v409
    %v1120 = vunpack.c.l.b16 %v410
    %v1121 = vunpack.c.h.b16 %v410
    %v1122 = vunpack.c.l.b16 %v411
    %v1123 = vunpack.c.h.b16 %v411
    %v1124 = vunpack.c.l.b16 %v412
    %v1125 = vunpack.c.h.b16 %v412
    %v1126 = vunpack.c.l.b16 %v413
    %v1127 = vunpack.c.h.b16 %v413
    %v1128 = vunpack.c.l.b16 %v414
    %v1129 = vunpack.c.h.b16 %v414
    %v1130 = vunpack.c.l.b16 %v415
    %v1131 = vunpack.c.h.b16 %v415
    %v1132 = vunpack.c.l.b16 %v416
    %v1133 = vunpack.c.h.b16 %v416
    %v1134 = vunpack.c.l.b16 %v417
    %v1135 = vunpack.c.h.b16 %v417
    %v1136 = vunpack.c.l.b16 %v418
    %v1137 = vunpack.c.h.b16 %v418
    %v1138 = vunpack.c.l.b16 %v419
    %v1139 = vunpack.c.h.b16 %v419
    %v1140 = vunpack.c.l.b16 %v420
    %v1141 = vunpack.c.h.b16 %v420
    %v1142 = vunpack.c.l.b16 %v421
    %v1143 = vunpack.c.h.b16 %v421
    %v1144 = vunpack.c.l.b16 %v422
    %v1145 = vunpack.c.h.b16 %v422
    %v1146 = vunpack.c.l.b16 %v423
    %v1147 = vunpack.c.h.b16 %v423
    %v1148 = vunpack.c.l.b16 %v424
    %v1149 = vunpack.c.h.b16 %v424
    %v1150 = vunpack.c.l.b16 %v425
    %v1151 = vunpack.c.h.b16 %v425
    %v1152 = vunpack.c.l.b16 %v426
    %v1153 = vunpack.c.h.b16 %v426
    %v1154 = vunpack.c.l.b16 %v427
    %v1155 = vunpack.c.h.b16 %v427
    %v1156 = vunpack.c.l.b16 %v428
    %v1157 = vunpack.c.h.b16 %v428
    %v1158 = vunpack.c.l.b16 %v429
    %v1159 = vunpack.c.h.b16 %v429
    %v1160 = vunpack.c.l.b16 %v430
    %v1161 = vunpack.c.h.b16 %v430
    %v1162 = vunpack.c.l.b16 %v431
    %v1163 = vunpack.c.h.b16 %v431
    %v1164 = vunpack.c.l.b16 %v432
    %v1165 = vunpack.c.h.b16 %v432
    %v1166 = vunpack.c.l.b16 %v433
    %v1167 = vunpack.c.h.b16 %v433
    %v1168 = vunpack.c.l.b16 %v434
    %v1169 = vunpack.c.h.b16 %v434
    %v1170 = vunpack.c.l.b16 %v435
    %v1171 = vunpack.c.h.b16 %v435
    %v1172 = vunpack.c.l.b16 %v436
    %v1173 = vunpack.c.h.b16 %v436
    %v1174 = vunpack.c.l.b16 %v437
    %v1175 = vunpack.c.h.b16 %v437
    %v1176 = vunpack.c.l.b16 %v438
    %v1177 = vunpack.c.h.b16 %v438
    %v1178 = vunpack.c.l.b16 %v439
    %v1179 = vunpack.c.h.b16 %v439
    %v1180 = vunpack.c.l.b16 %v440
    %v1181 = vunpack.c.h.b16 %v440
    %v1182 = vunpack.c.l.b16 %v441
    %v1183 = vunpack.c.h.b16 %v441
    %v1184 = vunpack.c.l.b16 %v442
    %v1185 = vunpack.c.h.b16 %v442
    %v1186 = vunpack.c.l.b16 %v443
    %v1187 = vunpack.c.h.b16 %v443
    %v1188 = vunpack.c.l.b16 %v444
    %v1189 = vunpack.c.h.b16 %v444
    %v1190 = vunpack.c.l.b16 %v445
    %v1191 = vunpack.c.h.b16 %v445
    %v1192 = vunpack.c.l.b16 %v446
    %v1193 = vunpack.c.h.b16 %v446
    %v1194 = vunpack.c.l.b16 %v447
    %v1195 = vunpack.c.h.b16 %v447
    %v1196 = vunpack.c.l.b16 %v448
    %v1197 = vunpack.c.h.b16 %v448
    %v1198 = vunpack.c.l.b16 %v449
    %v1199 = vunpack.c.h.b16 %v449
    %v1200 = vunpack.c.l.b16 %v450
    %v1201 = vunpack.c.h.b16 %v450
    %v1202 = vunpack.c.l.b16 %v451
    %v1203 = vunpack.c.h.b16 %v451
    %v1204 = vunpack.c.l.b16 %v452
    %v1205 = vunpack.c.h.b16 %v452
    %v1206 = vunpack.c.l.b16 %v453
    %v1207 = vunpack.c.h.b16 %v453
    %v1208 = vunpack.c.l.b16 %v454
    %v1209 = vunpack.c.h.b16 %v454
    %v1210 = vunpack.c.l.b16 %v455
    %v1211 = vunpack.c.h.b16 %v455
    %v1212 = vunpack.c.l.b16 %v456
    %v1213 = vunpack.c.h.b16 %v456
    %v1214 = vunpack.c.l.b16 %v457
    %v1215 = vunpack.c.h.b16 %v457
    %v1216 = vunpack.c.l.b16 %v458
    %v1217 = vunpack.c.h.b16 %v458
    %v1218 = vunpack.c.l.b16 %v459
    %v1219 = vunpack.c.h.b16 %v459
    %v1220 = vunpack.c.l.b16 %v460
    %v1221 = vunpack.c.h.b16 %v460
    %v1222 = vunpack.c.l.b16 %v461
    %v1223 = vunpack.c.h.b16 %v461
    %v1224 = vunpack.c.l.b16 %v462
    %v1225 = vunpack.c.h.b16 %v462
    %v1226 = vunpack.c.l.b16 %v463
    %v1227 = vunpack.c.h.b16 %v463
    %v1228 = vunpack.c.l.b16 %v464
    %v1229 = vunpack.c.h.b16 %v464
    %v1230 = vunpack.c.l.b16 %v465
    %v1231 = vunpack.c.h.b16 %v465
    %v1232 = vunpack.c.l.b16 %v466
    %v1233 = vunpack.c.h.b16 %v466
    %v1234 = vunpack.c.l.b16 %v467
    %v1235 = vunpack.c.h.b16 %v467
    %v1236 = vunpack.c.l.b16 %v468
    %v1237 = vunpack.c.h.b16 %v468
    %v1238 = vunpack.c.l.b16 %v469
    %v1239 = vunpack.c.h.b16 %v469
    %v1240 = vunpack.c.l.b16 %v470
    %v1241 = vunpack.c.h.b16 %v470
    %v1242 = vunpack.c.l.b16 %v471
    %v1243 = vunpack.c.h.b16 %v471
    %v1244 = vunpack.c.l.b16 %v472
    %v1245 = vunpack.c.h.b16 %v472
    %v1246 = vunpack.c.l.b16 %v473
    %v1247 = vunpack.c.h.b16 %v473
    %v1248 = vunpack.c.l.b16 %v474
    %v1249 = vunpack.c.h.b16 %v474
    %v1250 = vunpack.c.l.b16 %v475
    %v1251 = vunpack.c.h.b16 %v475
    %v1252 = vunpack.c.l.b16 %v476
    %v1253 = vunpack.c.h.b16 %v476
    %v1254 = vunpack.c.l.b16 %v477
    %v1255 = vunpack.c.h.b16 %v477
    %v1256 = vunpack.c.l.b16 %v478
    %v1257 = vunpack.c.h.b16 %v478
    %v1258 = vunpack.c.l.b16 %v479
    %v1259 = vunpack.c.h.b16 %v479
    %v1260 = vunpack.c.l.b16 %v480
    %v1261 = vunpack.c.h.b16 %v480
    %v1262 = vunpack.c.l.b16 %v481
    %v1263 = vunpack.c.h.b16 %v481
    %v1264 = vunpack.c.l.b16 %v482
    %v1265 = vunpack.c.h.b16 %v482
    %v1266 = vunpack.c.l.b16 %v483
    %v1267 = vunpack.c.h.b16 %v483
    %v1268 = vunpack.c.l.b16 %v484
    %v1269 = vunpack.c.h.b16 %v484
    %v1270 = vunpack.c.l.b16 %v485
    %v1271 = vunpack.c.h.b16 %v485
    %v1272 = vunpack.c.l.b16 %v486
    %v1273 = vunpack.c.h.b16 %v486
    %v1274 = vunpack.c.l.b16 %v487
    %v1275 = vunpack.c.h.b16 %v487
    %v1276 = vunpack.c.l.b16 %v488
    %v1277 = vunpack.c.h.b16 %v488
    %v1278 = vunpack.c.l.b16 %v489
    %v1279 = vunpack.c.h.b16 %v489
    %v1280 = vunpack.c.l.b16 %v490
    %v1281 = vunpack.c.h.b16 %v490
    %v1282 = vunpack.c.l.b16 %v491
    %v1283 = vunpack.c.h.b16 %v491
    %v1284 = vunpack.c.l.b16 %v492
    %v1285 = vunpack.c.h.b16 %v492
    %v1286 = vunpack.c.l.b16 %v493
    %v1287 = vunpack.c.h.b16 %v493
    %v1288 = vunpack.c.l.b16 %v494
    %v1289 = vunpack.c.h.b16 %v494
    %v1290 = vunpack.c.l.b16 %v495
    %v1291 = vunpack.c.h.b16 %v495
    %v1292 = vunpack.c.l.b16 %v496
    %v1293 = vunpack.c.h.b16 %v496
    %v1294 = vunpack.c.l.b16 %v497
    %v1295 = vunpack.c.h.b16 %v497
    %v1296 = vunpack.c.l.b16 %v498
    %v1297 = vunpack.c.h.b16 %v498
    %v1298 = vunpack.c.l.b16 %v499
    %v1299 = vunpack.c.h.b16 %v499
    %v1300 = vunpack.c.l.b16 %v500
    %v1301 = vunpack.c.h.b16 %v500
    %v1302 = vunpack.c.l.b16 %v501
    %v1303 = vunpack.c.h.b16 %v501
    %v1304 = vunpack.c.l.b16 %v502
    %v1305 = vunpack.c.h.b16 %v502
    %v1306 = vunpack.c.l.b16 %v503
    %v1307 = vunpack.c.h.b16 %v503
    %v1308 = vunpack.c.l.b16 %v504
    %v1309 = vunpack.c.h.b16 %v504
    %v1310 = vunpack.c.l.b16 %v505
    %v1311 = vunpack.c.h.b16 %v505
    %v1312 = vunpack.c.l.b16 %v506
    %v1313 = vunpack.c.h.b16 %v506
    %v1314 = vunpack.c.l.b16 %v507
    %v1315 = vunpack.c.h.b16 %v507
    %v1316 = vunpack.c.l.b16 %v508
    %v1317 = vunpack.c.h.b16 %v508
    %v1318 = vunpack.c.l.b16 %v509
    %v1319 = vunpack.c.h.b16 %v509
    %v1320 = vunpack.c.l.b16 %v510
    %v1321 = vunpack.c.h.b16 %v510
    %v1322 = vunpack.c.l.b16 %v511
    %v1323 = vunpack.c.h.b16 %v511
    %v1324 = vunpack.c.l.b16 %v512
    %v1325 = vunpack.c.h.b16 %v512
    %v1326 = vunpack.c.l.b16 %v513
    %v1327 = vunpack.c.h.b16 %v513
    %v1328 = vunpack.c.l.b16 %v514
    %v1329 = vunpack.c.h.b16 %v514
    %v1330 = vunpack.c.l.b16 %v515
    %v1331 = vunpack.c.h.b16 %v515
    %v1332 = vunpack.c.l.b16 %v516
    %v1333 = vunpack.c.h.b16 %v516
    %v1334 = vunpack.c.l.b16 %v517
    %v1335 = vunpack.c.h.b16 %v517
    %v1336 = vunpack.c.l.b16 %v518
    %v1337 = vunpack.c.h.b16 %v518
    %v1338 = vunpack.c.l.b16 %v519
    %v1339 = vunpack.c.h.b16 %v519
    %v1340 = vunpack.c.l.b16 %v520
    %v1341 = vunpack.c.h.b16 %v520
    %v1342 = vunpack.c.l.b16 %v521
    %v1343 = vunpack.c.h.b16 %v521
    %v1344 = vunpack.c.l.b16 %v522
    %v1345 = vunpack.c.h.b16 %v522
    %v1346 = vunpack.c.l.b16 %v523
    %v1347 = vunpack.c.h.b16 %v523
    %v1348 = vunpack.c.l.b16 %v524
    %v1349 = vunpack.c.h.b16 %v524
    %v1350 = vunpack.c.l.b16 %v525
    %v1351 = vunpack.c.h.b16 %v525
    %v1352 = vunpack.c.l.b16 %v526
    %v1353 = vunpack.c.h.b16 %v526
    %v1354 = vunpack.c.l.b16 %v527
    %v1355 = vunpack.c.h.b16 %v527
    %v1356 = vunpack.c.l.b16 %v528
    %v1357 = vunpack.c.h.b16 %v528
    %v1358 = vunpack.c.l.b16 %v529
    %v1359 = vunpack.c.h.b16 %v529
    %v1360 = vunpack.c.l.b16 %v530
    %v1361 = vunpack.c.h.b16 %v530
    %v1362 = vunpack.c.l.b16 %v531
    %v1363 = vunpack.c.h.b16 %v531
    %v1364 = vunpack.c.l.b16 %v532
    %v1365 = vunpack.c.h.b16 %v532
    %v1366 = vunpack.c.l.b16 %v533
    %v1367 = vunpack.c.h.b16 %v533
    %v1368 = vunpack.c.l.b16 %v534
    %v1369 = vunpack.c.h.b16 %v534
    %v1370 = vunpack.c.l.b16 %v535
    %v1371 = vunpack.c.h.b16 %v535
    %v1372 = vunpack.c.l.b16 %v536
    %v1373 = vunpack.c.h.b16 %v536
    %v1374 = vunpack.c.l.b16 %v537
    %v1375 = vunpack.c.h.b16 %v537
    %v1376 = vunpack.c.l.b16 %v538
    %v1377 = vunpack.c.h.b16 %v538
    %v1378 = vunpack.c.l.b16 %v539
    %v1379 = vunpack.c.h.b16 %v539
    %v1380 = vunpack.c.l.b16 %v540
    %v1381 = vunpack.c.h.b16 %v540
    %v1382 = vunpack.c.l.b16 %v541
    %v1383 = vunpack.c.h.b16 %v541
    %v1384 = vunpack.c.l.b16 %v542
    %v1385 = vunpack.c.h.b16 %v542
    %v1386 = vunpack.c.l.b16 %v543
    %v1387 = vunpack.c.h.b16 %v543
    %v1388 = vunpack.c.l.b16 %v544
    %v1389 = vunpack.c.h.b16 %v544
    %v1390 = vunpack.c.l.b16 %v545
    %v1391 = vunpack.c.h.b16 %v545
    %v1392 = vunpack.c.l.b16 %v546
    %v1393 = vunpack.c.h.b16 %v546
    %v1394 = vunpack.c.l.b16 %v547
    %v1395 = vunpack.c.h.b16 %v547
    %v1396 = vunpack.c.l.b16 %v548
    %v1397 = vunpack.c.h.b16 %v548
    %v1398 = vunpack.c.l.b16 %v549
    %v1399 = vunpack.c.h.b16 %v549
    %v1400 = vunpack.c.l.b16 %v550
    %v1401 = vunpack.c.h.b16 %v550
    %v1402 = vunpack.c.l.b16 %v551
    %v1403 = vunpack.c.h.b16 %v551
    %v1404 = vunpack.c.l.b16 %v552
    %v1405 = vunpack.c.h.b16 %v552
    %v1406 = vunpack.c.l.b16 %v553
    %v1407 = vunpack.c.h.b16 %v553
    %v1408 = vunpack.c.l.b16 %v554
    %v1409 = vunpack.c.h.b16 %v554
    %v1410 = vunpack.c.l.b16 %v555
    %v1411 = vunpack.c.h.b16 %v555
    %v1412 = vunpack.c.l.b16 %v556
    %v1413 = vunpack.c.h.b16 %v556
    %v1414 = vunpack.c.l.b16 %v557
    %v1415 = vunpack.c.h.b16 %v557
    %v1416 = vunpack.c.l.b16 %v558
    %v1417 = vunpack.c.h.b16 %v558
    %v1418 = vunpack.c.l.b16 %v559
    %v1419 = vunpack.c.h.b16 %v559
    %v1420 = vunpack.c.l.b16 %v560
    %v1421 = vunpack.c.h.b16 %v560
    %v1422 = vunpack.c.l.b16 %v561
    %v1423 = vunpack.c.h.b16 %v561
    %v1424 = vunpack.c.l.b16 %v562
    %v1425 = vunpack.c.h.b16 %v562
    %v1426 = vunpack.c.l.b16 %v563
    %v1427 = vunpack.c.h.b16 %v563
    %v1428 = vunpack.c.l.b16 %v564
    %v1429 = vunpack.c.h.b16 %v564
    %v1430 = vunpack.c.l.b16 %v565
    %v1431 = vunpack.c.h.b16 %v565
    %v1432 = vunpack.c.l.b16 %v566
    %v1433 = vunpack.c.h.b16 %v566
    %v1434 = vunpack.c.l.b16 %v567
    %v1435 = vunpack.c.h.b16 %v567
    %v1436 = vunpack.c.l.b16 %v568
    %v1437 = vunpack.c.h.b16 %v568
    %v1438 = vunpack.c.l.b16 %v569
    %v1439 = vunpack.c.h.b16 %v569
    %v1440 = vunpack.c.l.b16 %v570
    %v1441 = vunpack.c.h.b16 %v570
    %v1442 = vunpack.c.l.b16 %v571
    %v1443 = vunpack.c.h.b16 %v571
    %v1444 = vunpack.c.l.b16 %v572
    %v1445 = vunpack.c.h.b16 %v572
    %v1446 = vunpack.c.l.b16 %v573
    %v1447 = vunpack.c.h.b16 %v573
    %v1448 = vunpack.c.l.b16 %v574
    %v1449 = vunpack.c.h.b16 %v574
    %v1450 = vunpack.c.l.b16 %v575
    %v1451 = vunpack.c.h.b16 %v575
    %v1452 = vunpack.c.l.b16 %v576
    %v1453 = vunpack.c.h.b16 %v576
    %v1454 = vunpack.c.l.b16 %v577
    %v1455 = vunpack.c.h.b16 %v577
    %v1456 = vunpack.c.l.b16 %v578
    %v1457 = vunpack.c.h.b16 %v578
    %v1458 = vunpack.c.l.b16 %v579
    %v1459 = vunpack.c.h.b16 %v579
    %v1460 = vunpack.c.l.b16 %v580
    %v1461 = vunpack.c.h.b16 %v580
    %v1462 = vunpack.c.l.b16 %v581
    %v1463 = vunpack.c.h.b16 %v581
    %v1464 = vunpack.c.l.b16 %v582
    %v1465 = vunpack.c.h.b16 %v582
    %v1466 = vunpack.c.l.b16 %v583
    %v1467 = vunpack.c.h.b16 %v583
    %v1468 = vunpack.c.l.b16 %v584
    %v1469 = vunpack.c.h.b16 %v584
    %v1470 = vunpack.c.l.b16 %v585
    %v1471 = vunpack.c.h.b16 %v585
    %v1472 = vunpack.c.l.b16 %v586
    %v1473 = vunpack.c.h.b16 %v586
    %v1474 = vunpack.c.l.b16 %v587
    %v1475 = vunpack.c.h.b16 %v587
    %v1476 = vunpack.c.l.b16 %v588
    %v1477 = vunpack.c.h.b16 %v588
    %v1478 = vunpack.c.l.b16 %v589
    %v1479 = vunpack.c.h.b16 %v589
    %v1480 = vunpack.c.l.b16 %v590
    %v1481 = vunpack.c.h.b16 %v590
    %v1482 = vunpack.c.l.b16 %v591
    %v1483 = vunpack.c.h.b16 %v591
    %v1484 = vunpack.c.l.b16 %v592
    %v1485 = vunpack.c.h.b16 %v592
    %v1486 = vunpack.c.l.b16 %v593
    %v1487 = vunpack.c.h.b16 %v593
    %v1488 = vunpack.c.l.b16 %v594
    %v1489 = vunpack.c.h.b16 %v594
    %v1490 = vunpack.c.l.b16 %v595
    %v1491 = vunpack.c.h.b16 %v595
    %v1492 = vunpack.c.l.b16 %v596
    %v1493 = vunpack.c.h.b16 %v596
    %v1494 = vunpack.c.l.b16 %v597
    %v1495 = vunpack.c.h.b16 %v597
    %v1496 = vunpack.c.l.b16 %v598
    %v1497 = vunpack.c.h.b16 %v598
    %v1498 = vunpack.c.l.b16 %v599
    %v1499 = vunpack.c.h.b16 %v599
    %v1500 = vunpack.c.l.b16 %v600
    %v1501 = vunpack.c.h.b16 %v600
    %v1502 = vunpack.c.l.b16 %v601
    %v1503 = vunpack.c.h.b16 %v601
    %v1504 = vunpack.c.l.b16 %v602
    %v1505 = vunpack.c.h.b16 %v602
    %v1506 = vunpack.c.l.b16 %v603
    %v1507 = vunpack.c.h.b16 %v603
    %v1508 = vunpack.c.l.b16 %v604
    %v1509 = vunpack.c.h.b16 %v604
    %v1510 = vunpack.c.l.b16 %v605
    %v1511 = vunpack.c.h.b16 %v605
    %v1512 = vunpack.c.l.b16 %v606
    %v1513 = vunpack.c.h.b16 %v606
    %v1514 = vunpack.c.l.b16 %v607
    %v1515 = vunpack.c.h.b16 %v607
    %v1516 = vunpack.c.l.b16 %v608
    %v1517 = vunpack.c.h.b16 %v608
    %v1518 = vunpack.c.l.b16 %v609
    %v1519 = vunpack.c.h.b16 %v609
    %v1520 = vunpack.c.l.b16 %v610
    %v1521 = vunpack.c.h.b16 %v610
    %v1522 = vunpack.c.l.b16 %v611
    %v1523 = vunpack.c.h.b16 %v611
    %v1524 = vunpack.c.l.b16 %v612
    %v1525 = vunpack.c.h.b16 %v612
    %v1526 = vunpack.c.l.b16 %v613
    %v1527 = vunpack.c.h.b16 %v613
    %v1528 = vpack.c.b16 %v946, %v940
    %v1529 = vpack.c.b16 %v947, %v941
    %v1530 = vpack.c.b16 %v948, %v942
    %v1531 = vpack.c.b16 %v949, %v943
    %v1532 = vpack.c.b16 %v950, %v944
    %v1533 = vpack.c.b16 %v951, %v945
    %v1534 = vpack.c.b16 %v958, %v952
    %v1535 = vpack.c.b16 %v959, %v953
    %v1536 = vpack.c.b16 %v960, %v954
    %v1537 = vpack.c.b16 %v961, %v955
    %v1538 = vpack.c.b16 %v962, %v956
    %v1539 = vpack.c.b16 %v963, %v957
    %v1540 = vpack.c.b16 %v970, %v964
    %v1541 = vpack.c.b16 %v971, %v965
    %v1542 = vpack.c.b16 %v972, %v966
    %v1543 = vpack.c.b16 %v973, %v967
    %v1544 = vpack.c.b16 %v974, %v968
    %v1545 = vpack.c.b16 %v975, %v969
    %v1546 = vpack.c.b16 %v982, %v976
    %v1547 = vpack.c.b16 %v983, %v977
    %v1548 = vpack.c.b16 %v984, %v978
    %v1549 = vpack.c.b16 %v985, %v979
    %v1550 = vpack.c.b16 %v986, %v980
    %v1551 = vpack.c.b16 %v987, %v981
    %v1552 = vpack.c.b16 %v994, %v988
    %v1553 = vpack.c.b16 %v995, %v989
    %v1554 = vpack.c.b16 %v996, %v990
    %v1555 = vpack.c.b16 %v997, %v991
    %v1556 = vpack.c.b16 %v998, %v992
    %v1557 = vpack.c.b16 %v999, %v993
    %v1558 = vpack.c.b16 %v1006, %v1000
    %v1559 = vpack.c.b16 %v1007, %v1001
    %v1560 = vpack.c.b16 %v1008, %v1002
    %v1561 = vpack.c.b16 %v1009, %v1003
    %v1562 = vpack.c.b16 %v1010, %v1004
    %v1563 = vpack.c.b16 %v1011, %v1005
    %v1564 = vpack.c.b16 %v1018, %v1012
    %v1565 = vpack.c.b16 %v1019, %v1013
    %v1566 = vpack.c.b16 %v1020, %v1014
    %v1567 = vpack.c.b16 %v1021, %v1015
    %v1568 = vpack.c.b16 %v1022, %v1016
    %v1569 = vpack.c.b16 %v1023, %v1017
    %v1570 = vpack.c.b16 %v1030, %v1024
    %v1571 = vpack.c.b16 %v1031, %v1025
    %v1572 = vpack.c.b16 %v1032, %v1026
    %v1573 = vpack.c.b16 %v1033, %v1027
    %v1574 = vpack.c.b16 %v1034, %v1028
    %v1575 = vpack.c.b16 %v1035, %v1029
    %v1576 = vpack.c.b16 %v1042, %v1036
    %v1577 = vpack.c.b16 %v1043, %v1037
    %v1578 = vpack.c.b16 %v1044, %v1038
    %v1579 = vpack.c.b16 %v1045, %v1039
    %v1580 = vpack.c.b16 %v1046, %v1040
    %v1581 = vpack.c.b16 %v1047, %v1041
    %v1582 = vpack.c.b16 %v1054, %v1048
    %v1583 = vpack.c.b16 %v1055, %v1049
    %v1584 = vpack.c.b16 %v1056, %v1050
    %v1585 = vpack.c.b16 %v1057, %v1051
    %v1586 = vpack.c.b16 %v1058, %v1052
    %v1587 = vpack.c.b16 %v1059, %v1053
    %v1588 = vpack.c.b16 %v1066, %v1060
    %v1589 = vpack.c.b16 %v1067, %v1061
    %v1590 = vpack.c.b16 %v1068, %v1062
    %v1591 = vpack.c.b16 %v1069, %v1063
    %v1592 = vpack.c.b16 %v1070, %v1064
    %v1593 = vpack.c.b16 %v1071, %v1065
    %v1594 = vpack.c.b16 %v1078, %v1072
    %v1595 = vpack.c.b16 %v1079, %v1073
    %v1596 = vpack.c.b16 %v1080, %v1074
    %v1597 = vpack.c.b16 %v1081, %v1075
    %v1598 = vpack.c.b16 %v1082, %v1076
    %v1599 = vpack.c.b16 %v1083, %v1077
    %v1600 = vpack.c.b16 %v1090, %v1084
    %v1601 = vpack.c.b16 %v1091, %v1085
    %v1602 = vpack.c.b16 %v1092, %v1086
    %v1603 = vpack.c.b16 %v1093, %v1087
    %v1604 = vpack.c.b16 %v1094, %v1088
    %v1605 = vpack.c.b16 %v1095, %v1089
    %v1606 = vpack.c.b16 %v1102, %v1096
    %v1607 = vpack.c.b16 %v1103, %v1097
    %v1608 = vpack.c.b16 %v1104, %v1098
    %v1609 = vpack.c.b16 %v1105, %v1099
    %v1610 = vpack.c.b16 %v1106, %v1100
    %v1611 = vpack.c.b16 %v1107, %v1101
    %v1612 = vpack.c.b16 %v1114, %v1108
    %v1613 = vpack.c.b16 %v1115, %v1109
    %v1614 = vpack.c.b16 %v1116, %v1110
    %v1615 = vpack.c.b16 %v1117, %v1111
    %v1616 = vpack.c.b16 %v1118, %v1112
    %v1617 = vpack.c.b16 %v1119, %v1113
    %v1618 = vpack.c.b16 %v1126, %v1120
    %v1619 = vpack.c.b16 %v1127, %v1121
    %v1620 = vpack.c.b16 %v1128, %v1122
    %v1621 = vpack.c.b16 %v1129, %v1123
    %v1622 = vpack.c.b16 %v1130, %v1124
    %v1623 = vpack.c.b16 %v1131, %v1125
    %v1624 = vpack.c.b16 %v1138, %v1132
    %v1625 = vpack.c.b16 %v1139, %v1133
    %v1626 = vpack.c.b16 %v1140, %v1134
    %v1627 = vpack.c.b16 %v1141, %v1135
    %v1628 = vpack.c.b16 %v1142, %v1136
    %v1629 = vpack.c.b16 %v1143, %v1137
    %v1630 = vpack.c.b16 %v1150, %v1144
    %v1631 = vpack.c.b16 %v1151, %v1145
    %v1632 = vpack.c.b16 %v1152, %v1146
    %v1633 = vpack.c.b16 %v1153, %v1147
    %v1634 = vpack.c.b16 %v1154, %v1148
    %v1635 = vpack.c.b16 %v1155, %v1149
    %v1636 = vpack.c.b16 %v1162, %v1156
    %v1637 = vpack.c.b16 %v1163, %v1157
    %v1638 = vpack.c.b16 %v1164, %v1158
    %v1639 = vpack.c.b16 %v1165, %v1159
    %v1640 = vpack.c.b16 %v1166, %v1160
    %v1641 = vpack.c.b16 %v1167, %v1161
    %v1642 = vpack.c.b16 %v1174, %v1168
    %v1643 = vpack.c.b16 %v1175, %v1169
    %v1644 = vpack.c.b16 %v1176, %v1170
    %v1645 = vpack.c.b16 %v1177, %v1171
    %v1646 = vpack.c.b16 %v1178, %v1172
    %v1647 = vpack.c.b16 %v1179, %v1173
    %v1648 = vpack.c.b16 %v1186, %v1180
    %v1649 = vpack.c.b16 %v1187, %v1181
    %v1650 = vpack.c.b16 %v1188, %v1182
    %v1651 = vpack.c.b16 %v1189, %v1183
    %v1652 = vpack.c.b16 %v1190, %v1184
    %v1653 = vpack.c.b16 %v1191, %v1185
    %v1654 = vpack.c.b16 %v1198, %v1192
    %v1655 = vpack.c.b16 %v1199, %v1193
    %v1656 = vpack.c.b16 %v1200, %v1194
    %v1657 = vpack.c.b16 %v1201, %v1195
    %v1658 = vpack.c.b16 %v1202, %v1196
    %v1659 = vpack.c.b16 %v1203, %v1197
    %v1660 = vpack.c.b16 %v1210, %v1204
    %v1661 = vpack.c.b16 %v1211, %v1205
    %v1662 = vpack.c.b16 %v1212, %v1206
    %v1663 = vpack.c.b16 %v1213, %v1207
    %v1664 = vpack.c.b16 %v1214, %v1208
    %v1665 = vpack.c.b16 %v1215, %v1209
    %v1666 = vpack.c.b16 %v1222, %v1216
    %v1667 = vpack.c.b16 %v1223, %v1217
    %v1668 = vpack.c.b16 %v1224, %v1218
    %v1669 = vpack.c.b16 %v1225, %v1219
    %v1670 = vpack.c.b16 %v1226, %v1220
    %v1671 = vpack.c.b16 %v1227, %v1221
    %v1672 = vpack.c.b16 %v1234, %v1228
    %v1673 = vpack.c.b16 %v1235, %v1229
    %v1674 = vpack.c.b16 %v1236, %v1230
    %v1675 = vpack.c.b16 %v1237, %v1231
    %v1676 = vpack.c.b16 %v1238, %v1232
    %v1677 = vpack.c.b16 %v1239, %v1233
    %v1678 = vpack.c.b16 %v1246, %v1240
    %v1679 = vpack.c.b16 %v1247, %v1241
    %v1680 = vpack.c.b16 %v1248, %v1242
    %v1681 = vpack.c.b16 %v1249, %v1243
    %v1682 = vpack.c.b16 %v1250, %v1244
    %v1683 = vpack.c.b16 %v1251, %v1245
    %v1684 = vpack.c.b16 %v1258, %v1252
    %v1685 = vpack.c.b16 %v1259, %v1253
    %v1686 = vpack.c.b16 %v1260, %v1254
    %v1687 = vpack.c.b16 %v1261, %v1255
    %v1688 = vpack.c.b16 %v1262, %v1256
    %v1689 = vpack.c.b16 %v1263, %v1257
    %v1690 = vpack.c.b16 %v1270, %v1264
    %v1691 = vpack.c.b16 %v1271, %v1265
    %v1692 = vpack.c.b16 %v1272, %v1266
    %v1693 = vpack.c.b16 %v1273, %v1267
    %v1694 = vpack.c.b16 %v1274, %v1268
    %v1695 = vpack.c.b16 %v1275, %v1269
    %v1696 = vpack.c.b16 %v1282, %v1276
    %v1697 = vpack.c.b16 %v1283, %v1277
    %v1698 = vpack.c.b16 %v1284, %v1278
    %v1699 = vpack.c.b16 %v1285, %v1279
    %v1700 = vpack.c.b16 %v1286, %v1280
    %v1701 = vpack.c.b16 %v1287, %v1281
    %v1702 = vpack.c.b16 %v1294, %v1288
    %v1703 = vpack.c.b16 %v1295, %v1289
    %v1704 = vpack.c.b16 %v1296, %v1290
    %v1705 = vpack.c.b16 %v1297, %v1291
    %v1706 = vpack.c.b16 %v1298, %v1292
    %v1707 = vpack.c.b16 %v1299, %v1293
    %v1708 = vpack.c.b16 %v1306, %v1300
    %v1709 = vpack.c.b16 %v1307, %v1301
    %v1710 = vpack.c.b16 %v1308, %v1302
    %v1711 = vpack.c.b16 %v1309, %v1303
    %v1712 = vpack.c.b16 %v1310, %v1304
    %v1713 = vpack.c.b16 %v1311, %v1305
    %v1714 = vpack.c.b16 %v1318, %v1312
    %v1715 = vpack.c.b16 %v1319, %v1313
    %v1716 = vpack.c.b16 %v1320, %v1314
    %v1717 = vpack.c.b16 %v1321, %v1315
    %v1718 = vpack.c.b16 %v1322, %v1316
    %v1719 = vpack.c.b16 %v1323, %v1317
    %v1720 = vpack.c.b16 %v1330, %v1324
    %v1721 = vpack.c.b16 %v1331, %v1325
    %v1722 = vpack.c.b16 %v1332, %v1326
    %v1723 = vpack.c.b16 %v1333, %v1327
    %v1724 = vpack.c.b16 %v1334, %v1328
    %v1725 = vpack.c.b16 %v1335, %v1329
    %v1726 = vpack.c.b16 %v1342, %v1336
    %v1727 = vpack.c.b16 %v1343, %v1337
    %v1728 = vpack.c.b16 %v1344, %v1338
    %v1729 = vpack.c.b16 %v1345, %v1339
    %v1730 = vpack.c.b16 %v1346, %v1340
    %v1731 = vpack.c.b16 %v1347, %v1341
    %v1732 = vpack.c.b16 %v1354, %v1348
    %v1733 = vpack.c.b16 %v1355, %v1349
    %v1734 = vpack.c.b16 %v1356, %v1350
    %v1735 = vpack.c.b16 %v1357, %v1351
    %v1736 = vpack.c.b16 %v1358, %v1352
    %v1737 = vpack.c.b16 %v1359, %v1353
    %v1738 = vpack.c.b16 %v1366, %v1360
    %v1739 = vpack.c.b16 %v1367, %v1361
    %v1740 = vpack.c.b16 %v1368, %v1362
    %v1741 = vpack.c.b16 %v1369, %v1363
    %v1742 = vpack.c.b16 %v1370, %v1364
    %v1743 = vpack.c.b16 %v1371, %v1365
    %v1744 = vpack.c.b16 %v1378, %v1372
    %v1745 = vpack.c.b16 %v1379, %v1373
    %v1746 = vpack.c.b16 %v1380, %v1374
    %v1747 = vpack.c.b16 %v1381, %v1375
    %v1748 = vpack.c.b16 %v1382, %v1376
    %v1749 = vpack.c.b16 %v1383, %v1377
    %v1750 = vpack.c.b16 %v1390, %v1384
    %v1751 = vpack.c.b16 %v1391, %v1385
    %v1752 = vpack.c.b16 %v1392, %v1386
    %v1753 = vpack.c.b16 %v1393, %v1387
    %v1754 = vpack.c.b16 %v1394, %v1388
    %v1755 = vpack.c.b16 %v1395, %v1389
    %v1756 = vpack.c.b16 %v1402, %v1396
    %v1757 = vpack.c.b16 %v1403, %v1397
    %v1758 = vpack.c.b16 %v1404, %v1398
    %v1759 = vpack.c.b16 %v1405, %v1399
    %v1760 = vpack.c.b16 %v1406, %v1400
    %v1761 = vpack.c.b16 %v1407, %v1401
    %v1762 = vpack.c.b16 %v1414, %v1408
    %v1763 = vpack.c.b16 %v1415, %v1409
    %v1764 = vpack.c.b16 %v1416, %v1410
    %v1765 = vpack.c.b16 %v1417, %v1411
    %v1766 = vpack.c.b16 %v1418, %v1412
    %v1767 = vpack.c.b16 %v1419, %v1413
    %v1768 = vpack.c.b16 %v1426, %v1420
    %v1769 = vpack.c.b16 %v1427, %v1421
    %v1770 = vpack.c.b16 %v1428, %v1422
    %v1771 = vpack.c.b16 %v1429, %v1423
    %v1772 = vpack.c.b16 %v1430, %v1424
    %v1773 = vpack.c.b16 %v1431, %v1425
    %v1774 = vpack.c.b16 %v1438, %v1432
    %v1775 = vpack.c.b16 %v1439, %v1433
    %v1776 = vpack.c.b16 %v1440, %v1434
    %v1777 = vpack.c.b16 %v1441, %v1435
    %v1778 = vpack.c.b16 %v1442, %v1436
    %v1779 = vpack.c.b16 %v1443, %v1437
    %v1780 = vpack.c.b16 %v1450, %v1444
    %v1781 = vpack.c.b16 %v1451, %v1445
    %v1782 = vpack.c.b16 %v1452, %v1446
    %v1783 = vpack.c.b16 %v1453, %v1447
    %v1784 = vpack.c.b16 %v1454, %v1448
    %v1785 = vpack.c.b16 %v1455, %v1449
    %v1786 = vpack.c.b16 %v1462, %v1456
    %v1787 = vpack.c.b16 %v1463, %v1457
    %v1788 = vpack.c.b16 %v1464, %v1458
    %v1789 = vpack.c.b16 %v1465, %v1459
    %v1790 = vpack.c.b16 %v1466, %v1460
    %v1791 = vpack.c.b16 %v1467, %v1461
    %v1792 = vpack.c.b16 %v1474, %v1468
    %v1793 = vpack.c.b16 %v1475, %v1469
    %v1794 = vpack.c.b16 %v1476, %v1470
    %v1795 = vpack.c.b16 %v1477, %v1471
    %v1796 = vpack.c.b16 %v1478, %v1472
    %v1797 = vpack.c.b16 %v1479, %v1473
    %v1798 = vpack.c.b16 %v1486, %v1480
    %v1799 = vpack.c.b16 %v1487, %v1481
    %v1800 = vpack.c.b16 %v1488, %v1482
    %v1801 = vpack.c.b16 %v1489, %v1483
    %v1802 = vpack.c.b16 %v1490, %v1484
    %v1803 = vpack.c.b16 %v1491, %v1485
    %v1804 = vpack.c.b16 %v1498, %v1492
    %v1805 = vpack.c.b16 %v1499, %v1493
    %v1806 = vpack.c.b16 %v1500, %v1494
    %v1807 = vpack.c.b16 %v1501, %v1495
    %v1808 = vpack.c.b16 %v1502, %v1496
    %v1809 = vpack.c.b16 %v1503, %v1497
    %v1810 = vpack.c.b16 %v1510, %v1504
    %v1811 = vpack.c.b16 %v1511, %v1505
    %v1812 = vpack.c.b16 %v1512, %v1506
    %v1813 = vpack.c.b16 %v1513, %v1507
    %v1814 = vpack.c.b16 %v1514, %v1508
    %v1815 = vpack.c.b16 %v1515, %v1509
    %v1816 = vpack.c.b16 %v1522, %v1516
    %v1817 = vpack.c.b16 %v1523, %v1517
    %v1818 = vpack.c.b16 %v1524, %v1518
    %v1819 = vpack.c.b16 %v1525, %v1519
    %v1820 = vpack.c.b16 %v1526, %v1520
    %v1821 = vpack.c.b16 %v1527, %v1521
    %vm2116 = vcmask 130048
    %v2118 = vsel %vm2116, %v270, 0
    %v2121 = vsel %vm2116, %v277, 0
    %v2124 = vsel %vm2116, %v284, 0
    %v2127 = vsel %vm2116, %v291, 0
    %v2130 = vsel %vm2116, %v298, 0
    %v2133 = vsel %vm2116, %v305, 0
    %v2136 = vsel %vm2116, %v312, 0
    %v2139 = vsel %vm2116, %v319, 0
    %2141 = vmatprep.subr.bf16.mxu0 %v1529
    %2142 = vmatpush1.bf16.msra.mxu0 %v1528
    %2143 = vmatprep.subr.bf16.mxu0 %v1535
    %2144 = vmatpush1.bf16.msra.mxu0 %v1534
    %2145 = vmatprep.subr.bf16.mxu0 %v1541
    %2146 = vmatpush1.bf16.msra.mxu0 %v1540
    %2147 = vmatprep.subr.bf16.mxu0 %v1547
    %2148 = vmatpush1.bf16.msra.mxu0 %v1546
    %2149 = vmatprep.subr.bf16.mxu0 %v1553
    %2150 = vmatpush1.bf16.msra.mxu0 %v1552
    %2151 = vmatprep.subr.bf16.mxu0 %v1559
    %2152 = vmatpush1.bf16.msra.mxu0 %v1558
    %2153 = vmatprep.subr.bf16.mxu0 %v1565
    %2154 = vmatpush1.bf16.msra.mxu0 %v1564
    %2155 = vmatprep.subr.bf16.mxu0 %v1571
    %2156 = vmatpush1.bf16.msra.mxu0 %v1570
    %2157 = vmatprep.subr.bf16.mxu0 %v1577
    %2158 = vmatpush1.bf16.msra.mxu0 %v1576
    %2159 = vmatprep.subr.bf16.mxu0 %v1583
    %2160 = vmatpush1.bf16.msra.mxu0 %v1582
    %2161 = vmatprep.subr.bf16.mxu0 %v1589
    %2162 = vmatpush1.bf16.msra.mxu0 %v1588
    %2163 = vmatprep.subr.bf16.mxu0 %v1595
    %2164 = vmatpush1.bf16.msra.mxu0 %v1594
    %2165 = vmatprep.subr.bf16.mxu0 %v1601
    %2166 = vmatpush1.bf16.msra.mxu0 %v1600
    %2167 = vmatprep.subr.bf16.mxu0 %v1607
    %2168 = vmatpush1.bf16.msra.mxu0 %v1606
    %2169 = vmatprep.subr.bf16.mxu0 %v1613
    %2170 = vmatpush1.bf16.msra.mxu0 %v1612
    %2171 = vmatprep.subr.bf16.mxu0 %v1619
    %2172 = vmatpush1.bf16.msra.mxu0 %v1618
    %2173 = vmatprep.mubr.bf16.mxu0 %v265
    %2174 = vmatmul.mubr.bf16.gmra.mrb[0].mxu0 %v264
    %v2175 = vpop.f32.mrb[0].mxu0
    %v2176 = vadd.f32 %v619, %v2175
    %v2177 = vpop.f32.mrb[0].mxu0
    %v2178 = vadd.f32 %v623, %v2177
    %v2179 = vpop.f32.mrb[0].mxu0
    %v2180 = vadd.f32 %v619, %v2179
    %v2181 = vpop.f32.mrb[0].mxu0
    %v2182 = vadd.f32 %v623, %v2181
    %2183 = vmatprep.mubr.bf16.mxu0 %v272
    %2184 = vmatmul.mubr.bf16.gmra.mrb[0].mxu0 %v271
    %v2185 = vpop.f32.mrb[0].mxu0
    %v2186 = vadd.f32 %v619, %v2185
    %v2187 = vpop.f32.mrb[0].mxu0
    %v2188 = vadd.f32 %v623, %v2187
    %v2189 = vpop.f32.mrb[0].mxu0
    %v2190 = vadd.f32 %v619, %v2189
    %v2191 = vpop.f32.mrb[0].mxu0
    %v2192 = vadd.f32 %v623, %v2191
    %2193 = vmatprep.mubr.bf16.mxu0 %v279
    %2194 = vmatmul.mubr.bf16.gmra.mrb[0].mxu0 %v278
    %v2195 = vpop.f32.mrb[0].mxu0
    %v2196 = vadd.f32 %v619, %v2195
    %v2197 = vpop.f32.mrb[0].mxu0
    %v2198 = vadd.f32 %v623, %v2197
    %v2199 = vpop.f32.mrb[0].mxu0
    %v2200 = vadd.f32 %v619, %v2199
    %v2201 = vpop.f32.mrb[0].mxu0
    %v2202 = vadd.f32 %v623, %v2201
    %2203 = vmatprep.mubr.bf16.mxu0 %v286
    %2204 = vmatmul.mubr.bf16.gmra.mrb[0].mxu0 %v285
    %v2205 = vpop.f32.mrb[0].mxu0
    %v2206 = vadd.f32 %v619, %v2205
    %v2207 = vpop.f32.mrb[0].mxu0
    %v2208 = vadd.f32 %v623, %v2207
    %v2209 = vpop.f32.mrb[0].mxu0
    %v2210 = vadd.f32 %v619, %v2209
    %v2211 = vpop.f32.mrb[0].mxu0
    %v2212 = vadd.f32 %v623, %v2211
    %2213 = vmatprep.mubr.bf16.mxu0 %v293
    %2214 = vmatmul.mubr.bf16.gmra.mrb[0].mxu0 %v292
    %v2215 = vpop.f32.mrb[0].mxu0
    %v2216 = vadd.f32 %v619, %v2215
    %v2217 = vpop.f32.mrb[0].mxu0
    %v2218 = vadd.f32 %v623, %v2217
    %v2219 = vpop.f32.mrb[0].mxu0
    %v2220 = vadd.f32 %v619, %v2219
    %v2221 = vpop.f32.mrb[0].mxu0
    %v2222 = vadd.f32 %v623, %v2221
    %2223 = vmatprep.mubr.bf16.mxu0 %v300
    %2224 = vmatmul.mubr.bf16.gmra.mrb[0].mxu0 %v299
    %v2225 = vpop.f32.mrb[0].mxu0
    %v2226 = vadd.f32 %v619, %v2225
    %v2227 = vpop.f32.mrb[0].mxu0
    %v2228 = vadd.f32 %v623, %v2227
    %v2229 = vpop.f32.mrb[0].mxu0
    %v2230 = vadd.f32 %v619, %v2229
    %v2231 = vpop.f32.mrb[0].mxu0
    %v2232 = vadd.f32 %v623, %v2231
    %2233 = vmatprep.mubr.bf16.mxu0 %v307
    %2234 = vmatmul.mubr.bf16.gmra.mrb[0].mxu0 %v306
    %v2235 = vpop.f32.mrb[0].mxu0
    %v2236 = vadd.f32 %v619, %v2235
    %v2237 = vpop.f32.mrb[0].mxu0
    %v2238 = vadd.f32 %v623, %v2237
    %v2239 = vpop.f32.mrb[0].mxu0
    %v2240 = vadd.f32 %v619, %v2239
    %v2241 = vpop.f32.mrb[0].mxu0
    %v2242 = vadd.f32 %v623, %v2241
    %2243 = vmatprep.mubr.bf16.mxu0 %v314
    %2244 = vmatmul.mubr.bf16.gmra.mrb[0].mxu0 %v313
    %v2245 = vpop.f32.mrb[0].mxu0
    %v2246 = vadd.f32 %v619, %v2245
    %v2247 = vpop.f32.mrb[0].mxu0
    %v2248 = vadd.f32 %v623, %v2247
    %v2249 = vpop.f32.mrb[0].mxu0
    %v2250 = vadd.f32 %v619, %v2249
    %v2251 = vpop.f32.mrb[0].mxu0
    %v2252 = vadd.f32 %v623, %v2251
    %2253 = vdwg.mxu0
    %2254 = vmatprep.subr.bf16.mxu0 %v1625
    %2255 = vmatpush1.bf16.msra.mxu0 %v1624
    %2256 = vmatprep.subr.bf16.mxu0 %v1631
    %2257 = vmatpush1.bf16.msra.mxu0 %v1630
    %2258 = vmatprep.subr.bf16.mxu0 %v1637
    %2259 = vmatpush1.bf16.msra.mxu0 %v1636
    %2260 = vmatprep.subr.bf16.mxu0 %v1643
    %2261 = vmatpush1.bf16.msra.mxu0 %v1642
    %2262 = vmatprep.subr.bf16.mxu0 %v1649
    %2263 = vmatpush1.bf16.msra.mxu0 %v1648
    %2264 = vmatprep.subr.bf16.mxu0 %v1655
    %2265 = vmatpush1.bf16.msra.mxu0 %v1654
    %2266 = vmatprep.subr.bf16.mxu0 %v1661
    %2267 = vmatpush1.bf16.msra.mxu0 %v1660
    %2268 = vmatprep.subr.bf16.mxu0 %v1667
    %2269 = vmatpush1.bf16.msra.mxu0 %v1666
    %2270 = vmatprep.subr.bf16.mxu0 %v1673
    %2271 = vmatpush1.bf16.msra.mxu0 %v1672
    %2272 = vmatprep.subr.bf16.mxu0 %v1679
    %2273 = vmatpush1.bf16.msra.mxu0 %v1678
    %2274 = vmatprep.subr.bf16.mxu0 %v1685
    %2275 = vmatpush1.bf16.msra.mxu0 %v1684
    %2276 = vmatprep.subr.bf16.mxu0 %v1691
    %2277 = vmatpush1.bf16.msra.mxu0 %v1690
    %2278 = vmatprep.subr.bf16.mxu0 %v1697
    %2279 = vmatpush1.bf16.msra.mxu0 %v1696
    %2280 = vmatprep.subr.bf16.mxu0 %v1703
    %2281 = vmatpush1.bf16.msra.mxu0 %v1702
    %2282 = vmatprep.subr.bf16.mxu0 %v1709
    %2283 = vmatpush1.bf16.msra.mxu0 %v1708
    %2284 = vmatprep.subr.bf16.mxu0 %v1715
    %2285 = vmatpush1.bf16.msra.mxu0 %v1714
    %2286 = vmatprep.mubr.bf16.mxu0 %v267
    %2287 = vmatmul.mubr.bf16.gmra.mrb[0].mxu0 %v266
    %v2288 = vpop.f32.mrb[0].mxu0
    %v2289 = vadd.f32 %v2176, %v2288
    %v2290 = vpop.f32.mrb[0].mxu0
    %v2291 = vadd.f32 %v2178, %v2290
    %v2292 = vpop.f32.mrb[0].mxu0
    %v2293 = vadd.f32 %v2180, %v2292
    %v2294 = vpop.f32.mrb[0].mxu0
    %v2295 = vadd.f32 %v2182, %v2294
    %2296 = vmatprep.mubr.bf16.mxu0 %v274
    %2297 = vmatmul.mubr.bf16.gmra.mrb[0].mxu0 %v273
    %v2298 = vpop.f32.mrb[0].mxu0
    %v2299 = vadd.f32 %v2186, %v2298
    %v2300 = vpop.f32.mrb[0].mxu0
    %v2301 = vadd.f32 %v2188, %v2300
    %v2302 = vpop.f32.mrb[0].mxu0
    %v2303 = vadd.f32 %v2190, %v2302
    %v2304 = vpop.f32.mrb[0].mxu0
    %v2305 = vadd.f32 %v2192, %v2304
    %2306 = vmatprep.mubr.bf16.mxu0 %v281
    %2307 = vmatmul.mubr.bf16.gmra.mrb[0].mxu0 %v280
    %v2308 = vpop.f32.mrb[0].mxu0
    %v2309 = vadd.f32 %v2196, %v2308
    %v2310 = vpop.f32.mrb[0].mxu0
    %v2311 = vadd.f32 %v2198, %v2310
    %v2312 = vpop.f32.mrb[0].mxu0
    %v2313 = vadd.f32 %v2200, %v2312
    %v2314 = vpop.f32.mrb[0].mxu0
    %v2315 = vadd.f32 %v2202, %v2314
    %2316 = vmatprep.mubr.bf16.mxu0 %v288
    %2317 = vmatmul.mubr.bf16.gmra.mrb[0].mxu0 %v287
    %v2318 = vpop.f32.mrb[0].mxu0
    %v2319 = vadd.f32 %v2206, %v2318
    %v2320 = vpop.f32.mrb[0].mxu0
    %v2321 = vadd.f32 %v2208, %v2320
    %v2322 = vpop.f32.mrb[0].mxu0
    %v2323 = vadd.f32 %v2210, %v2322
    %v2324 = vpop.f32.mrb[0].mxu0
    %v2325 = vadd.f32 %v2212, %v2324
    %2326 = vmatprep.mubr.bf16.mxu0 %v295
    %2327 = vmatmul.mubr.bf16.gmra.mrb[0].mxu0 %v294
    %v2328 = vpop.f32.mrb[0].mxu0
    %v2329 = vadd.f32 %v2216, %v2328
    %v2330 = vpop.f32.mrb[0].mxu0
    %v2331 = vadd.f32 %v2218, %v2330
    %v2332 = vpop.f32.mrb[0].mxu0
    %v2333 = vadd.f32 %v2220, %v2332
    %v2334 = vpop.f32.mrb[0].mxu0
    %v2335 = vadd.f32 %v2222, %v2334
    %2336 = vmatprep.mubr.bf16.mxu0 %v302
    %2337 = vmatmul.mubr.bf16.gmra.mrb[0].mxu0 %v301
    %v2338 = vpop.f32.mrb[0].mxu0
    %v2339 = vadd.f32 %v2226, %v2338
    %v2340 = vpop.f32.mrb[0].mxu0
    %v2341 = vadd.f32 %v2228, %v2340
    %v2342 = vpop.f32.mrb[0].mxu0
    %v2343 = vadd.f32 %v2230, %v2342
    %v2344 = vpop.f32.mrb[0].mxu0
    %v2345 = vadd.f32 %v2232, %v2344
    %2346 = vmatprep.mubr.bf16.mxu0 %v309
    %2347 = vmatmul.mubr.bf16.gmra.mrb[0].mxu0 %v308
    %v2348 = vpop.f32.mrb[0].mxu0
    %v2349 = vadd.f32 %v2236, %v2348
    %v2350 = vpop.f32.mrb[0].mxu0
    %v2351 = vadd.f32 %v2238, %v2350
    %v2352 = vpop.f32.mrb[0].mxu0
    %v2353 = vadd.f32 %v2240, %v2352
    %v2354 = vpop.f32.mrb[0].mxu0
    %v2355 = vadd.f32 %v2242, %v2354
    %2356 = vmatprep.mubr.bf16.mxu0 %v316
    %2357 = vmatmul.mubr.bf16.gmra.mrb[0].mxu0 %v315
    %v2358 = vpop.f32.mrb[0].mxu0
    %v2359 = vadd.f32 %v2246, %v2358
    %v2360 = vpop.f32.mrb[0].mxu0
    %v2361 = vadd.f32 %v2248, %v2360
    %v2362 = vpop.f32.mrb[0].mxu0
    %v2363 = vadd.f32 %v2250, %v2362
    %v2364 = vpop.f32.mrb[0].mxu0
    %v2365 = vadd.f32 %v2252, %v2364
    %2366 = vdwg.mxu0
    %2367 = vmatprep.subr.bf16.mxu0 %v1721
    %2368 = vmatpush1.bf16.msra.mxu0 %v1720
    %2369 = vmatprep.subr.bf16.mxu0 %v1727
    %2370 = vmatpush1.bf16.msra.mxu0 %v1726
    %2371 = vmatprep.subr.bf16.mxu0 %v1733
    %2372 = vmatpush1.bf16.msra.mxu0 %v1732
    %2373 = vmatprep.subr.bf16.mxu0 %v1739
    %2374 = vmatpush1.bf16.msra.mxu0 %v1738
    %2375 = vmatprep.subr.bf16.mxu0 %v1745
    %2376 = vmatpush1.bf16.msra.mxu0 %v1744
    %2377 = vmatprep.subr.bf16.mxu0 %v1751
    %2378 = vmatpush1.bf16.msra.mxu0 %v1750
    %2379 = vmatprep.subr.bf16.mxu0 %v1757
    %2380 = vmatpush1.bf16.msra.mxu0 %v1756
    %2381 = vmatprep.subr.bf16.mxu0 %v1763
    %2382 = vmatpush1.bf16.msra.mxu0 %v1762
    %2383 = vmatprep.subr.bf16.mxu0 %v1769
    %2384 = vmatpush1.bf16.msra.mxu0 %v1768
    %2385 = vmatprep.subr.bf16.mxu0 %v1775
    %2386 = vmatpush1.bf16.msra.mxu0 %v1774
    %2387 = vmatprep.subr.bf16.mxu0 %v1781
    %2388 = vmatpush1.bf16.msra.mxu0 %v1780
    %2389 = vmatprep.subr.bf16.mxu0 %v1787
    %2390 = vmatpush1.bf16.msra.mxu0 %v1786
    %2391 = vmatprep.subr.bf16.mxu0 %v1793
    %2392 = vmatpush1.bf16.msra.mxu0 %v1792
    %2393 = vmatprep.subr.bf16.mxu0 %v1799
    %2394 = vmatpush1.bf16.msra.mxu0 %v1798
    %2395 = vmatprep.subr.bf16.mxu0 %v1805
    %2396 = vmatpush1.bf16.msra.mxu0 %v1804
    %2397 = vmatprep.subr.bf16.mxu0 %v1811
    %2398 = vmatpush1.bf16.msra.mxu0 %v1810
    %2399 = vmatprep.mubr.bf16.mxu0 %v269
    %2400 = vmatmul.mubr.bf16.gmra.mrb[0].mxu0 %v268
    %v2401 = vpop.f32.mrb[0].mxu0
    %v2402 = vadd.f32 %v2289, %v2401
    %v2403 = vpop.f32.mrb[0].mxu0
    %v2404 = vadd.f32 %v2291, %v2403
    %v2405 = vpop.f32.mrb[0].mxu0
    %v2406 = vadd.f32 %v2293, %v2405
    %v2407 = vpop.f32.mrb[0].mxu0
    %v2408 = vadd.f32 %v2295, %v2407
    %2409 = vmatprep.mubr.bf16.mxu0 %v276
    %2410 = vmatmul.mubr.bf16.gmra.mrb[0].mxu0 %v275
    %v2411 = vpop.f32.mrb[0].mxu0
    %v2412 = vadd.f32 %v2299, %v2411
    %v2413 = vpop.f32.mrb[0].mxu0
    %v2414 = vadd.f32 %v2301, %v2413
    %v2415 = vpop.f32.mrb[0].mxu0
    %v2416 = vadd.f32 %v2303, %v2415
    %v2417 = vpop.f32.mrb[0].mxu0
    %v2418 = vadd.f32 %v2305, %v2417
    %2419 = vmatprep.mubr.bf16.mxu0 %v283
    %2420 = vmatmul.mubr.bf16.gmra.mrb[0].mxu0 %v282
    %v2421 = vpop.f32.mrb[0].mxu0
    %v2422 = vadd.f32 %v2309, %v2421
    %v2423 = vpop.f32.mrb[0].mxu0
    %v2424 = vadd.f32 %v2311, %v2423
    %v2425 = vpop.f32.mrb[0].mxu0
    %v2426 = vadd.f32 %v2313, %v2425
    %v2427 = vpop.f32.mrb[0].mxu0
    %v2428 = vadd.f32 %v2315, %v2427
    %2429 = vmatprep.mubr.bf16.mxu0 %v290
    %2430 = vmatmul.mubr.bf16.gmra.mrb[0].mxu0 %v289
    %v2431 = vpop.f32.mrb[0].mxu0
    %v2432 = vadd.f32 %v2319, %v2431
    %v2433 = vpop.f32.mrb[0].mxu0
    %v2434 = vadd.f32 %v2321, %v2433
    %v2435 = vpop.f32.mrb[0].mxu0
    %v2436 = vadd.f32 %v2323, %v2435
    %v2437 = vpop.f32.mrb[0].mxu0
    %v2438 = vadd.f32 %v2325, %v2437
    %2439 = vmatprep.mubr.bf16.mxu0 %v297
    %2440 = vmatmul.mubr.bf16.gmra.mrb[0].mxu0 %v296
    %v2441 = vpop.f32.mrb[0].mxu0
    %v2442 = vadd.f32 %v2329, %v2441
    %v2443 = vpop.f32.mrb[0].mxu0
    %v2444 = vadd.f32 %v2331, %v2443
    %v2445 = vpop.f32.mrb[0].mxu0
    %v2446 = vadd.f32 %v2333, %v2445
    %v2447 = vpop.f32.mrb[0].mxu0
    %v2448 = vadd.f32 %v2335, %v2447
    %2449 = vmatprep.mubr.bf16.mxu0 %v304
    %2450 = vmatmul.mubr.bf16.gmra.mrb[0].mxu0 %v303
    %v2451 = vpop.f32.mrb[0].mxu0
    %v2452 = vadd.f32 %v2339, %v2451
    %v2453 = vpop.f32.mrb[0].mxu0
    %v2454 = vadd.f32 %v2341, %v2453
    %v2455 = vpop.f32.mrb[0].mxu0
    %v2456 = vadd.f32 %v2343, %v2455
    %v2457 = vpop.f32.mrb[0].mxu0
    %v2458 = vadd.f32 %v2345, %v2457
    %2459 = vmatprep.mubr.bf16.mxu0 %v311
    %2460 = vmatmul.mubr.bf16.gmra.mrb[0].mxu0 %v310
    %v2461 = vpop.f32.mrb[0].mxu0
    %v2462 = vadd.f32 %v2349, %v2461
    %v2463 = vpop.f32.mrb[0].mxu0
    %v2464 = vadd.f32 %v2351, %v2463
    %v2465 = vpop.f32.mrb[0].mxu0
    %v2466 = vadd.f32 %v2353, %v2465
    %v2467 = vpop.f32.mrb[0].mxu0
    %v2468 = vadd.f32 %v2355, %v2467
    %2469 = vmatprep.mubr.bf16.mxu0 %v318
    %2470 = vmatmul.mubr.bf16.gmra.mrb[0].mxu0 %v317
    %v2471 = vpop.f32.mrb[0].mxu0
    %v2472 = vadd.f32 %v2359, %v2471
    %v2473 = vpop.f32.mrb[0].mxu0
    %v2474 = vadd.f32 %v2361, %v2473
    %v2475 = vpop.f32.mrb[0].mxu0
    %v2476 = vadd.f32 %v2363, %v2475
    %v2477 = vpop.f32.mrb[0].mxu0
    %v2478 = vadd.f32 %v2365, %v2477
    %2479 = vdwg.mxu0
    %2480 = vmatprep.subr.bf16.mxu0 %v1817
    %2481 = vmatpush1.bf16.msra.mxu0 %v1816
    %2482 = vmatprep.subr.bf16.mxu0 0
    %2483 = vmatpush1.bf16.msra.mxu0 0
    %2484 = vmatprep.subr.bf16.mxu0 0
    %2485 = vmatpush1.bf16.msra.mxu0 0
    %2486 = vmatprep.subr.bf16.mxu0 0
    %2487 = vmatpush1.bf16.msra.mxu0 0
    %2488 = vmatprep.subr.bf16.mxu0 0
    %2489 = vmatpush1.bf16.msra.mxu0 0
    %2490 = vmatprep.subr.bf16.mxu0 0
    %2491 = vmatpush1.bf16.msra.mxu0 0
    %2492 = vmatprep.subr.bf16.mxu0 0
    %2493 = vmatpush1.bf16.msra.mxu0 0
    %2494 = vmatprep.subr.bf16.mxu0 0
    %2495 = vmatpush1.bf16.msra.mxu0 0
    %2496 = vmatprep.subr.bf16.mxu0 0
    %2497 = vmatpush1.bf16.msra.mxu0 0
    %2498 = vmatprep.subr.bf16.mxu0 0
    %2499 = vmatpush1.bf16.msra.mxu0 0
    %2500 = vmatprep.subr.bf16.mxu0 0
    %2501 = vmatpush1.bf16.msra.mxu0 0
    %2502 = vmatprep.subr.bf16.mxu0 0
    %2503 = vmatpush1.bf16.msra.mxu0 0
    %2504 = vmatprep.subr.bf16.mxu0 0
    %2505 = vmatpush1.bf16.msra.mxu0 0
    %2506 = vmatprep.subr.bf16.mxu0 0
    %2507 = vmatpush1.bf16.msra.mxu0 0
    %2508 = vmatprep.subr.bf16.mxu0 0
    %2509 = vmatpush1.bf16.msra.mxu0 0
    %2510 = vmatprep.subr.bf16.mxu0 0
    %2511 = vmatpush1.bf16.msra.mxu0 0
    %2512 = vmatprep.mubr.bf16.mxu0 0
    %2513 = vmatmul.mubr.bf16.gmra.mrb[0].mxu0 %v2118
    %v2514 = vpop.f32.mrb[0].mxu0
    %v2515 = vadd.f32 %v2402, %v2514
    %v2516 = vpop.f32.mrb[0].mxu0
    %v2517 = vadd.f32 %v2404, %v2516
    %v2518 = vpop.f32.mrb[0].mxu0
    %v2519 = vadd.f32 %v2406, %v2518
    %v2520 = vpop.f32.mrb[0].mxu0
    %v2521 = vadd.f32 %v2408, %v2520
    %2522 = vmatprep.mubr.bf16.mxu0 0
    %2523 = vmatmul.mubr.bf16.gmra.mrb[0].mxu0 %v2121
    %v2524 = vpop.f32.mrb[0].mxu0
    %v2525 = vadd.f32 %v2412, %v2524
    %v2526 = vpop.f32.mrb[0].mxu0
    %v2527 = vadd.f32 %v2414, %v2526
    %v2528 = vpop.f32.mrb[0].mxu0
    %v2529 = vadd.f32 %v2416, %v2528
    %v2530 = vpop.f32.mrb[0].mxu0
    %v2531 = vadd.f32 %v2418, %v2530
    %2532 = vmatprep.mubr.bf16.mxu0 0
    %2533 = vmatmul.mubr.bf16.gmra.mrb[0].mxu0 %v2124
    %v2534 = vpop.f32.mrb[0].mxu0
    %v2535 = vadd.f32 %v2422, %v2534
    %v2536 = vpop.f32.mrb[0].mxu0
    %v2537 = vadd.f32 %v2424, %v2536
    %v2538 = vpop.f32.mrb[0].mxu0
    %v2539 = vadd.f32 %v2426, %v2538
    %v2540 = vpop.f32.mrb[0].mxu0
    %v2541 = vadd.f32 %v2428, %v2540
    %2542 = vmatprep.mubr.bf16.mxu0 0
    %2543 = vmatmul.mubr.bf16.gmra.mrb[0].mxu0 %v2127
    %v2544 = vpop.f32.mrb[0].mxu0
    %v2545 = vadd.f32 %v2432, %v2544
    %v2546 = vpop.f32.mrb[0].mxu0
    %v2547 = vadd.f32 %v2434, %v2546
    %v2548 = vpop.f32.mrb[0].mxu0
    %v2549 = vadd.f32 %v2436, %v2548
    %v2550 = vpop.f32.mrb[0].mxu0
    %v2551 = vadd.f32 %v2438, %v2550
    %2552 = vmatprep.mubr.bf16.mxu0 0
    %2553 = vmatmul.mubr.bf16.gmra.mrb[0].mxu0 %v2130
    %v2554 = vpop.f32.mrb[0].mxu0
    %v2555 = vadd.f32 %v2442, %v2554
    %v2556 = vpop.f32.mrb[0].mxu0
    %v2557 = vadd.f32 %v2444, %v2556
    %v2558 = vpop.f32.mrb[0].mxu0
    %v2559 = vadd.f32 %v2446, %v2558
    %v2560 = vpop.f32.mrb[0].mxu0
    %v2561 = vadd.f32 %v2448, %v2560
    %2562 = vmatprep.mubr.bf16.mxu0 0
    %2563 = vmatmul.mubr.bf16.gmra.mrb[0].mxu0 %v2133
    %v2564 = vpop.f32.mrb[0].mxu0
    %v2565 = vadd.f32 %v2452, %v2564
    %v2566 = vpop.f32.mrb[0].mxu0
    %v2567 = vadd.f32 %v2454, %v2566
    %v2568 = vpop.f32.mrb[0].mxu0
    %v2569 = vadd.f32 %v2456, %v2568
    %v2570 = vpop.f32.mrb[0].mxu0
    %v2571 = vadd.f32 %v2458, %v2570
    %2572 = vmatprep.mubr.bf16.mxu0 0
    %2573 = vmatmul.mubr.bf16.gmra.mrb[0].mxu0 %v2136
    %v2574 = vpop.f32.mrb[0].mxu0
    %v2575 = vadd.f32 %v2462, %v2574
    %v2576 = vpop.f32.mrb[0].mxu0
    %v2577 = vadd.f32 %v2464, %v2576
    %v2578 = vpop.f32.mrb[0].mxu0
    %v2579 = vadd.f32 %v2466, %v2578
    %v2580 = vpop.f32.mrb[0].mxu0
    %v2581 = vadd.f32 %v2468, %v2580
    %2582 = vmatprep.mubr.bf16.mxu0 0
    %2583 = vmatmul.mubr.bf16.gmra.mrb[0].mxu0 %v2139
    %v2584 = vpop.f32.mrb[0].mxu0
    %v2585 = vadd.f32 %v2472, %v2584
    %v2586 = vpop.f32.mrb[0].mxu0
    %v2587 = vadd.f32 %v2474, %v2586
    %v2588 = vpop.f32.mrb[0].mxu0
    %v2589 = vadd.f32 %v2476, %v2588
    %v2590 = vpop.f32.mrb[0].mxu0
    %v2591 = vadd.f32 %v2478, %v2590
    %2592 = vdwg.mxu0
    %2593 = vmatprep.subr.bf16.mxu0 %v1531
    %2594 = vmatpush1.bf16.msra.mxu0 %v1530
    %2595 = vmatprep.subr.bf16.mxu0 %v1537
    %2596 = vmatpush1.bf16.msra.mxu0 %v1536
    %2597 = vmatprep.subr.bf16.mxu0 %v1543
    %2598 = vmatpush1.bf16.msra.mxu0 %v1542
    %2599 = vmatprep.subr.bf16.mxu0 %v1549
    %2600 = vmatpush1.bf16.msra.mxu0 %v1548
    %2601 = vmatprep.subr.bf16.mxu0 %v1555
    %2602 = vmatpush1.bf16.msra.mxu0 %v1554
    %2603 = vmatprep.subr.bf16.mxu0 %v1561
    %2604 = vmatpush1.bf16.msra.mxu0 %v1560
    %2605 = vmatprep.subr.bf16.mxu0 %v1567
    %2606 = vmatpush1.bf16.msra.mxu0 %v1566
    %2607 = vmatprep.subr.bf16.mxu0 %v1573
    %2608 = vmatpush1.bf16.msra.mxu0 %v1572
    %2609 = vmatprep.subr.bf16.mxu0 %v1579
    %2610 = vmatpush1.bf16.msra.mxu0 %v1578
    %2611 = vmatprep.subr.bf16.mxu0 %v1585
    %2612 = vmatpush1.bf16.msra.mxu0 %v1584
    %2613 = vmatprep.subr.bf16.mxu0 %v1591
    %2614 = vmatpush1.bf16.msra.mxu0 %v1590
    %2615 = vmatprep.subr.bf16.mxu0 %v1597
    %2616 = vmatpush1.bf16.msra.mxu0 %v1596
    %2617 = vmatprep.subr.bf16.mxu0 %v1603
    %2618 = vmatpush1.bf16.msra.mxu0 %v1602
    %2619 = vmatprep.subr.bf16.mxu0 %v1609
    %2620 = vmatpush1.bf16.msra.mxu0 %v1608
    %2621 = vmatprep.subr.bf16.mxu0 %v1615
    %2622 = vmatpush1.bf16.msra.mxu0 %v1614
    %2623 = vmatprep.subr.bf16.mxu0 %v1621
    %2624 = vmatpush1.bf16.msra.mxu0 %v1620
    %2625 = vmatprep.mubr.bf16.mxu0 %v265
    %2626 = vmatmul.mubr.bf16.gmra.mrb[0].mxu0 %v264
    %v2627 = vpop.f32.mrb[0].mxu0
    %v2628 = vadd.f32 %v627, %v2627
    %v2629 = vpop.f32.mrb[0].mxu0
    %v2630 = vadd.f32 %v631, %v2629
    %v2631 = vpop.f32.mrb[0].mxu0
    %v2632 = vadd.f32 %v627, %v2631
    %v2633 = vpop.f32.mrb[0].mxu0
    %v2634 = vadd.f32 %v631, %v2633
    %2635 = vmatprep.mubr.bf16.mxu0 %v272
    %2636 = vmatmul.mubr.bf16.gmra.mrb[0].mxu0 %v271
    %v2637 = vpop.f32.mrb[0].mxu0
    %v2638 = vadd.f32 %v627, %v2637
    %v2639 = vpop.f32.mrb[0].mxu0
    %v2640 = vadd.f32 %v631, %v2639
    %v2641 = vpop.f32.mrb[0].mxu0
    %v2642 = vadd.f32 %v627, %v2641
    %v2643 = vpop.f32.mrb[0].mxu0
    %v2644 = vadd.f32 %v631, %v2643
    %2645 = vmatprep.mubr.bf16.mxu0 %v279
    %2646 = vmatmul.mubr.bf16.gmra.mrb[0].mxu0 %v278
    %v2647 = vpop.f32.mrb[0].mxu0
    %v2648 = vadd.f32 %v627, %v2647
    %v2649 = vpop.f32.mrb[0].mxu0
    %v2650 = vadd.f32 %v631, %v2649
    %v2651 = vpop.f32.mrb[0].mxu0
    %v2652 = vadd.f32 %v627, %v2651
    %v2653 = vpop.f32.mrb[0].mxu0
    %v2654 = vadd.f32 %v631, %v2653
    %2655 = vmatprep.mubr.bf16.mxu0 %v286
    %2656 = vmatmul.mubr.bf16.gmra.mrb[0].mxu0 %v285
    %v2657 = vpop.f32.mrb[0].mxu0
    %v2658 = vadd.f32 %v627, %v2657
    %v2659 = vpop.f32.mrb[0].mxu0
    %v2660 = vadd.f32 %v631, %v2659
    %v2661 = vpop.f32.mrb[0].mxu0
    %v2662 = vadd.f32 %v627, %v2661
    %v2663 = vpop.f32.mrb[0].mxu0
    %v2664 = vadd.f32 %v631, %v2663
    %2665 = vmatprep.mubr.bf16.mxu0 %v293
    %2666 = vmatmul.mubr.bf16.gmra.mrb[0].mxu0 %v292
    %v2667 = vpop.f32.mrb[0].mxu0
    %v2668 = vadd.f32 %v627, %v2667
    %v2669 = vpop.f32.mrb[0].mxu0
    %v2670 = vadd.f32 %v631, %v2669
    %v2671 = vpop.f32.mrb[0].mxu0
    %v2672 = vadd.f32 %v627, %v2671
    %v2673 = vpop.f32.mrb[0].mxu0
    %v2674 = vadd.f32 %v631, %v2673
    %2675 = vmatprep.mubr.bf16.mxu0 %v300
    %2676 = vmatmul.mubr.bf16.gmra.mrb[0].mxu0 %v299
    %v2677 = vpop.f32.mrb[0].mxu0
    %v2678 = vadd.f32 %v627, %v2677
    %v2679 = vpop.f32.mrb[0].mxu0
    %v2680 = vadd.f32 %v631, %v2679
    %v2681 = vpop.f32.mrb[0].mxu0
    %v2682 = vadd.f32 %v627, %v2681
    %v2683 = vpop.f32.mrb[0].mxu0
    %v2684 = vadd.f32 %v631, %v2683
    %2685 = vmatprep.mubr.bf16.mxu0 %v307
    %2686 = vmatmul.mubr.bf16.gmra.mrb[0].mxu0 %v306
    %v2687 = vpop.f32.mrb[0].mxu0
    %v2688 = vadd.f32 %v627, %v2687
    %v2689 = vpop.f32.mrb[0].mxu0
    %v2690 = vadd.f32 %v631, %v2689
    %v2691 = vpop.f32.mrb[0].mxu0
    %v2692 = vadd.f32 %v627, %v2691
    %v2693 = vpop.f32.mrb[0].mxu0
    %v2694 = vadd.f32 %v631, %v2693
    %2695 = vmatprep.mubr.bf16.mxu0 %v314
    %2696 = vmatmul.mubr.bf16.gmra.mrb[0].mxu0 %v313
    %v2697 = vpop.f32.mrb[0].mxu0
    %v2698 = vadd.f32 %v627, %v2697
    %v2699 = vpop.f32.mrb[0].mxu0
    %v2700 = vadd.f32 %v631, %v2699
    %v2701 = vpop.f32.mrb[0].mxu0
    %v2702 = vadd.f32 %v627, %v2701
    %v2703 = vpop.f32.mrb[0].mxu0
    %v2704 = vadd.f32 %v631, %v2703
    %2705 = vdwg.mxu0
    %2706 = vmatprep.subr.bf16.mxu0 %v1627
    %2707 = vmatpush1.bf16.msra.mxu0 %v1626
    %2708 = vmatprep.subr.bf16.mxu0 %v1633
    %2709 = vmatpush1.bf16.msra.mxu0 %v1632
    %2710 = vmatprep.subr.bf16.mxu0 %v1639
    %2711 = vmatpush1.bf16.msra.mxu0 %v1638
    %2712 = vmatprep.subr.bf16.mxu0 %v1645
    %2713 = vmatpush1.bf16.msra.mxu0 %v1644
    %2714 = vmatprep.subr.bf16.mxu0 %v1651
    %2715 = vmatpush1.bf16.msra.mxu0 %v1650
    %2716 = vmatprep.subr.bf16.mxu0 %v1657
    %2717 = vmatpush1.bf16.msra.mxu0 %v1656
    %2718 = vmatprep.subr.bf16.mxu0 %v1663
    %2719 = vmatpush1.bf16.msra.mxu0 %v1662
    %2720 = vmatprep.subr.bf16.mxu0 %v1669
    %2721 = vmatpush1.bf16.msra.mxu0 %v1668
    %2722 = vmatprep.subr.bf16.mxu0 %v1675
    %2723 = vmatpush1.bf16.msra.mxu0 %v1674
    %2724 = vmatprep.subr.bf16.mxu0 %v1681
    %2725 = vmatpush1.bf16.msra.mxu0 %v1680
    %2726 = vmatprep.subr.bf16.mxu0 %v1687
    %2727 = vmatpush1.bf16.msra.mxu0 %v1686
    %2728 = vmatprep.subr.bf16.mxu0 %v1693
    %2729 = vmatpush1.bf16.msra.mxu0 %v1692
    %2730 = vmatprep.subr.bf16.mxu0 %v1699
    %2731 = vmatpush1.bf16.msra.mxu0 %v1698
    %2732 = vmatprep.subr.bf16.mxu0 %v1705
    %2733 = vmatpush1.bf16.msra.mxu0 %v1704
    %2734 = vmatprep.subr.bf16.mxu0 %v1711
    %2735 = vmatpush1.bf16.msra.mxu0 %v1710
    %2736 = vmatprep.subr.bf16.mxu0 %v1717
    %2737 = vmatpush1.bf16.msra.mxu0 %v1716
    %2738 = vmatprep.mubr.bf16.mxu0 %v267
    %2739 = vmatmul.mubr.bf16.gmra.mrb[0].mxu0 %v266
    %v2740 = vpop.f32.mrb[0].mxu0
    %v2741 = vadd.f32 %v2628, %v2740
    %v2742 = vpop.f32.mrb[0].mxu0
    %v2743 = vadd.f32 %v2630, %v2742
    %v2744 = vpop.f32.mrb[0].mxu0
    %v2745 = vadd.f32 %v2632, %v2744
    %v2746 = vpop.f32.mrb[0].mxu0
    %v2747 = vadd.f32 %v2634, %v2746
    %2748 = vmatprep.mubr.bf16.mxu0 %v274
    %2749 = vmatmul.mubr.bf16.gmra.mrb[0].mxu0 %v273
    %v2750 = vpop.f32.mrb[0].mxu0
    %v2751 = vadd.f32 %v2638, %v2750
    %v2752 = vpop.f32.mrb[0].mxu0
    %v2753 = vadd.f32 %v2640, %v2752
    %v2754 = vpop.f32.mrb[0].mxu0
    %v2755 = vadd.f32 %v2642, %v2754
    %v2756 = vpop.f32.mrb[0].mxu0
    %v2757 = vadd.f32 %v2644, %v2756
    %2758 = vmatprep.mubr.bf16.mxu0 %v281
    %2759 = vmatmul.mubr.bf16.gmra.mrb[0].mxu0 %v280
    %v2760 = vpop.f32.mrb[0].mxu0
    %v2761 = vadd.f32 %v2648, %v2760
    %v2762 = vpop.f32.mrb[0].mxu0
    %v2763 = vadd.f32 %v2650, %v2762
    %v2764 = vpop.f32.mrb[0].mxu0
    %v2765 = vadd.f32 %v2652, %v2764
    %v2766 = vpop.f32.mrb[0].mxu0
    %v2767 = vadd.f32 %v2654, %v2766
    %2768 = vmatprep.mubr.bf16.mxu0 %v288
    %2769 = vmatmul.mubr.bf16.gmra.mrb[0].mxu0 %v287
    %v2770 = vpop.f32.mrb[0].mxu0
    %v2771 = vadd.f32 %v2658, %v2770
    %v2772 = vpop.f32.mrb[0].mxu0
    %v2773 = vadd.f32 %v2660, %v2772
    %v2774 = vpop.f32.mrb[0].mxu0
    %v2775 = vadd.f32 %v2662, %v2774
    %v2776 = vpop.f32.mrb[0].mxu0
    %v2777 = vadd.f32 %v2664, %v2776
    %2778 = vmatprep.mubr.bf16.mxu0 %v295
    %2779 = vmatmul.mubr.bf16.gmra.mrb[0].mxu0 %v294
    %v2780 = vpop.f32.mrb[0].mxu0
    %v2781 = vadd.f32 %v2668, %v2780
    %v2782 = vpop.f32.mrb[0].mxu0
    %v2783 = vadd.f32 %v2670, %v2782
    %v2784 = vpop.f32.mrb[0].mxu0
    %v2785 = vadd.f32 %v2672, %v2784
    %v2786 = vpop.f32.mrb[0].mxu0
    %v2787 = vadd.f32 %v2674, %v2786
    %2788 = vmatprep.mubr.bf16.mxu0 %v302
    %2789 = vmatmul.mubr.bf16.gmra.mrb[0].mxu0 %v301
    %v2790 = vpop.f32.mrb[0].mxu0
    %v2791 = vadd.f32 %v2678, %v2790
    %v2792 = vpop.f32.mrb[0].mxu0
    %v2793 = vadd.f32 %v2680, %v2792
    %v2794 = vpop.f32.mrb[0].mxu0
    %v2795 = vadd.f32 %v2682, %v2794
    %v2796 = vpop.f32.mrb[0].mxu0
    %v2797 = vadd.f32 %v2684, %v2796
    %2798 = vmatprep.mubr.bf16.mxu0 %v309
    %2799 = vmatmul.mubr.bf16.gmra.mrb[0].mxu0 %v308
    %v2800 = vpop.f32.mrb[0].mxu0
    %v2801 = vadd.f32 %v2688, %v2800
    %v2802 = vpop.f32.mrb[0].mxu0
    %v2803 = vadd.f32 %v2690, %v2802
    %v2804 = vpop.f32.mrb[0].mxu0
    %v2805 = vadd.f32 %v2692, %v2804
    %v2806 = vpop.f32.mrb[0].mxu0
    %v2807 = vadd.f32 %v2694, %v2806
    %2808 = vmatprep.mubr.bf16.mxu0 %v316
    %2809 = vmatmul.mubr.bf16.gmra.mrb[0].mxu0 %v315
    %v2810 = vpop.f32.mrb[0].mxu0
    %v2811 = vadd.f32 %v2698, %v2810
    %v2812 = vpop.f32.mrb[0].mxu0
    %v2813 = vadd.f32 %v2700, %v2812
    %v2814 = vpop.f32.mrb[0].mxu0
    %v2815 = vadd.f32 %v2702, %v2814
    %v2816 = vpop.f32.mrb[0].mxu0
    %v2817 = vadd.f32 %v2704, %v2816
    %2818 = vdwg.mxu0
    %2819 = vmatprep.subr.bf16.mxu0 %v1723
    %2820 = vmatpush1.bf16.msra.mxu0 %v1722
    %2821 = vmatprep.subr.bf16.mxu0 %v1729
    %2822 = vmatpush1.bf16.msra.mxu0 %v1728
    %2823 = vmatprep.subr.bf16.mxu0 %v1735
    %2824 = vmatpush1.bf16.msra.mxu0 %v1734
    %2825 = vmatprep.subr.bf16.mxu0 %v1741
    %2826 = vmatpush1.bf16.msra.mxu0 %v1740
    %2827 = vmatprep.subr.bf16.mxu0 %v1747
    %2828 = vmatpush1.bf16.msra.mxu0 %v1746
    %2829 = vmatprep.subr.bf16.mxu0 %v1753
    %2830 = vmatpush1.bf16.msra.mxu0 %v1752
    %2831 = vmatprep.subr.bf16.mxu0 %v1759
    %2832 = vmatpush1.bf16.msra.mxu0 %v1758
    %2833 = vmatprep.subr.bf16.mxu0 %v1765
    %2834 = vmatpush1.bf16.msra.mxu0 %v1764
    %2835 = vmatprep.subr.bf16.mxu0 %v1771
    %2836 = vmatpush1.bf16.msra.mxu0 %v1770
    %2837 = vmatprep.subr.bf16.mxu0 %v1777
    %2838 = vmatpush1.bf16.msra.mxu0 %v1776
    %2839 = vmatprep.subr.bf16.mxu0 %v1783
    %2840 = vmatpush1.bf16.msra.mxu0 %v1782
    %2841 = vmatprep.subr.bf16.mxu0 %v1789
    %2842 = vmatpush1.bf16.msra.mxu0 %v1788
    %2843 = vmatprep.subr.bf16.mxu0 %v1795
    %2844 = vmatpush1.bf16.msra.mxu0 %v1794
    %2845 = vmatprep.subr.bf16.mxu0 %v1801
    %2846 = vmatpush1.bf16.msra.mxu0 %v1800
    %2847 = vmatprep.subr.bf16.mxu0 %v1807
    %2848 = vmatpush1.bf16.msra.mxu0 %v1806
    %2849 = vmatprep.subr.bf16.mxu0 %v1813
    %2850 = vmatpush1.bf16.msra.mxu0 %v1812
    %2851 = vmatprep.mubr.bf16.mxu0 %v269
    %2852 = vmatmul.mubr.bf16.gmra.mrb[0].mxu0 %v268
    %v2853 = vpop.f32.mrb[0].mxu0
    %v2854 = vadd.f32 %v2741, %v2853
    %v2855 = vpop.f32.mrb[0].mxu0
    %v2856 = vadd.f32 %v2743, %v2855
    %v2857 = vpop.f32.mrb[0].mxu0
    %v2858 = vadd.f32 %v2745, %v2857
    %v2859 = vpop.f32.mrb[0].mxu0
    %v2860 = vadd.f32 %v2747, %v2859
    %2861 = vmatprep.mubr.bf16.mxu0 %v276
    %2862 = vmatmul.mubr.bf16.gmra.mrb[0].mxu0 %v275
    %v2863 = vpop.f32.mrb[0].mxu0
    %v2864 = vadd.f32 %v2751, %v2863
    %v2865 = vpop.f32.mrb[0].mxu0
    %v2866 = vadd.f32 %v2753, %v2865
    %v2867 = vpop.f32.mrb[0].mxu0
    %v2868 = vadd.f32 %v2755, %v2867
    %v2869 = vpop.f32.mrb[0].mxu0
    %v2870 = vadd.f32 %v2757, %v2869
    %2871 = vmatprep.mubr.bf16.mxu0 %v283
    %2872 = vmatmul.mubr.bf16.gmra.mrb[0].mxu0 %v282
    %v2873 = vpop.f32.mrb[0].mxu0
    %v2874 = vadd.f32 %v2761, %v2873
    %v2875 = vpop.f32.mrb[0].mxu0
    %v2876 = vadd.f32 %v2763, %v2875
    %v2877 = vpop.f32.mrb[0].mxu0
    %v2878 = vadd.f32 %v2765, %v2877
    %v2879 = vpop.f32.mrb[0].mxu0
    %v2880 = vadd.f32 %v2767, %v2879
    %2881 = vmatprep.mubr.bf16.mxu0 %v290
    %2882 = vmatmul.mubr.bf16.gmra.mrb[0].mxu0 %v289
    %v2883 = vpop.f32.mrb[0].mxu0
    %v2884 = vadd.f32 %v2771, %v2883
    %v2885 = vpop.f32.mrb[0].mxu0
    %v2886 = vadd.f32 %v2773, %v2885
    %v2887 = vpop.f32.mrb[0].mxu0
    %v2888 = vadd.f32 %v2775, %v2887
    %v2889 = vpop.f32.mrb[0].mxu0
    %v2890 = vadd.f32 %v2777, %v2889
    %2891 = vmatprep.mubr.bf16.mxu0 %v297
    %2892 = vmatmul.mubr.bf16.gmra.mrb[0].mxu0 %v296
    %v2893 = vpop.f32.mrb[0].mxu0
    %v2894 = vadd.f32 %v2781, %v2893
    %v2895 = vpop.f32.mrb[0].mxu0
    %v2896 = vadd.f32 %v2783, %v2895
    %v2897 = vpop.f32.mrb[0].mxu0
    %v2898 = vadd.f32 %v2785, %v2897
    %v2899 = vpop.f32.mrb[0].mxu0
    %v2900 = vadd.f32 %v2787, %v2899
    %2901 = vmatprep.mubr.bf16.mxu0 %v304
    %2902 = vmatmul.mubr.bf16.gmra.mrb[0].mxu0 %v303
    %v2903 = vpop.f32.mrb[0].mxu0
    %v2904 = vadd.f32 %v2791, %v2903
    %v2905 = vpop.f32.mrb[0].mxu0
    %v2906 = vadd.f32 %v2793, %v2905
    %v2907 = vpop.f32.mrb[0].mxu0
    %v2908 = vadd.f32 %v2795, %v2907
    %v2909 = vpop.f32.mrb[0].mxu0
    %v2910 = vadd.f32 %v2797, %v2909
    %2911 = vmatprep.mubr.bf16.mxu0 %v311
    %2912 = vmatmul.mubr.bf16.gmra.mrb[0].mxu0 %v310
    %v2913 = vpop.f32.mrb[0].mxu0
    %v2914 = vadd.f32 %v2801, %v2913
    %v2915 = vpop.f32.mrb[0].mxu0
    %v2916 = vadd.f32 %v2803, %v2915
    %v2917 = vpop.f32.mrb[0].mxu0
    %v2918 = vadd.f32 %v2805, %v2917
    %v2919 = vpop.f32.mrb[0].mxu0
    %v2920 = vadd.f32 %v2807, %v2919
    %2921 = vmatprep.mubr.bf16.mxu0 %v318
    %2922 = vmatmul.mubr.bf16.gmra.mrb[0].mxu0 %v317
    %v2923 = vpop.f32.mrb[0].mxu0
    %v2924 = vadd.f32 %v2811, %v2923
    %v2925 = vpop.f32.mrb[0].mxu0
    %v2926 = vadd.f32 %v2813, %v2925
    %v2927 = vpop.f32.mrb[0].mxu0
    %v2928 = vadd.f32 %v2815, %v2927
    %v2929 = vpop.f32.mrb[0].mxu0
    %v2930 = vadd.f32 %v2817, %v2929
    %2931 = vdwg.mxu0
    %2932 = vmatprep.subr.bf16.mxu0 %v1819
    %2933 = vmatpush1.bf16.msra.mxu0 %v1818
    %2934 = vmatprep.subr.bf16.mxu0 0
    %2935 = vmatpush1.bf16.msra.mxu0 0
    %2936 = vmatprep.subr.bf16.mxu0 0
    %2937 = vmatpush1.bf16.msra.mxu0 0
    %2938 = vmatprep.subr.bf16.mxu0 0
    %2939 = vmatpush1.bf16.msra.mxu0 0
    %2940 = vmatprep.subr.bf16.mxu0 0
    %2941 = vmatpush1.bf16.msra.mxu0 0
    %2942 = vmatprep.subr.bf16.mxu0 0
    %2943 = vmatpush1.bf16.msra.mxu0 0
    %2944 = vmatprep.subr.bf16.mxu0 0
    %2945 = vmatpush1.bf16.msra.mxu0 0
    %2946 = vmatprep.subr.bf16.mxu0 0
    %2947 = vmatpush1.bf16.msra.mxu0 0
    %2948 = vmatprep.subr.bf16.mxu0 0
    %2949 = vmatpush1.bf16.msra.mxu0 0
    %2950 = vmatprep.subr.bf16.mxu0 0
    %2951 = vmatpush1.bf16.msra.mxu0 0
    %2952 = vmatprep.subr.bf16.mxu0 0
    %2953 = vmatpush1.bf16.msra.mxu0 0
    %2954 = vmatprep.subr.bf16.mxu0 0
    %2955 = vmatpush1.bf16.msra.mxu0 0
    %2956 = vmatprep.subr.bf16.mxu0 0
    %2957 = vmatpush1.bf16.msra.mxu0 0
    %2958 = vmatprep.subr.bf16.mxu0 0
    %2959 = vmatpush1.bf16.msra.mxu0 0
    %2960 = vmatprep.subr.bf16.mxu0 0
    %2961 = vmatpush1.bf16.msra.mxu0 0
    %2962 = vmatprep.subr.bf16.mxu0 0
    %2963 = vmatpush1.bf16.msra.mxu0 0
    %2964 = vmatprep.mubr.bf16.mxu0 0
    %2965 = vmatmul.mubr.bf16.gmra.mrb[0].mxu0 %v2118
    %v2966 = vpop.f32.mrb[0].mxu0
    %v2967 = vadd.f32 %v2854, %v2966
    %v2968 = vpop.f32.mrb[0].mxu0
    %v2969 = vadd.f32 %v2856, %v2968
    %v2970 = vpop.f32.mrb[0].mxu0
    %v2971 = vadd.f32 %v2858, %v2970
    %v2972 = vpop.f32.mrb[0].mxu0
    %v2973 = vadd.f32 %v2860, %v2972
    %2974 = vmatprep.mubr.bf16.mxu0 0
    %2975 = vmatmul.mubr.bf16.gmra.mrb[0].mxu0 %v2121
    %v2976 = vpop.f32.mrb[0].mxu0
    %v2977 = vadd.f32 %v2864, %v2976
    %v2978 = vpop.f32.mrb[0].mxu0
    %v2979 = vadd.f32 %v2866, %v2978
    %v2980 = vpop.f32.mrb[0].mxu0
    %v2981 = vadd.f32 %v2868, %v2980
    %v2982 = vpop.f32.mrb[0].mxu0
    %v2983 = vadd.f32 %v2870, %v2982
    %2984 = vmatprep.mubr.bf16.mxu0 0
    %2985 = vmatmul.mubr.bf16.gmra.mrb[0].mxu0 %v2124
    %v2986 = vpop.f32.mrb[0].mxu0
    %v2987 = vadd.f32 %v2874, %v2986
    %v2988 = vpop.f32.mrb[0].mxu0
    %v2989 = vadd.f32 %v2876, %v2988
    %v2990 = vpop.f32.mrb[0].mxu0
    %v2991 = vadd.f32 %v2878, %v2990
    %v2992 = vpop.f32.mrb[0].mxu0
    %v2993 = vadd.f32 %v2880, %v2992
    %2994 = vmatprep.mubr.bf16.mxu0 0
    %2995 = vmatmul.mubr.bf16.gmra.mrb[0].mxu0 %v2127
    %v2996 = vpop.f32.mrb[0].mxu0
    %v2997 = vadd.f32 %v2884, %v2996
    %v2998 = vpop.f32.mrb[0].mxu0
    %v2999 = vadd.f32 %v2886, %v2998
    %v3000 = vpop.f32.mrb[0].mxu0
    %v3001 = vadd.f32 %v2888, %v3000
    %v3002 = vpop.f32.mrb[0].mxu0
    %v3003 = vadd.f32 %v2890, %v3002
    %3004 = vmatprep.mubr.bf16.mxu0 0
    %3005 = vmatmul.mubr.bf16.gmra.mrb[0].mxu0 %v2130
    %v3006 = vpop.f32.mrb[0].mxu0
    %v3007 = vadd.f32 %v2894, %v3006
    %v3008 = vpop.f32.mrb[0].mxu0
    %v3009 = vadd.f32 %v2896, %v3008
    %v3010 = vpop.f32.mrb[0].mxu0
    %v3011 = vadd.f32 %v2898, %v3010
    %v3012 = vpop.f32.mrb[0].mxu0
    %v3013 = vadd.f32 %v2900, %v3012
    %3014 = vmatprep.mubr.bf16.mxu0 0
    %3015 = vmatmul.mubr.bf16.gmra.mrb[0].mxu0 %v2133
    %v3016 = vpop.f32.mrb[0].mxu0
    %v3017 = vadd.f32 %v2904, %v3016
    %v3018 = vpop.f32.mrb[0].mxu0
    %v3019 = vadd.f32 %v2906, %v3018
    %v3020 = vpop.f32.mrb[0].mxu0
    %v3021 = vadd.f32 %v2908, %v3020
    %v3022 = vpop.f32.mrb[0].mxu0
    %v3023 = vadd.f32 %v2910, %v3022
    %3024 = vmatprep.mubr.bf16.mxu0 0
    %3025 = vmatmul.mubr.bf16.gmra.mrb[0].mxu0 %v2136
    %v3026 = vpop.f32.mrb[0].mxu0
    %v3027 = vadd.f32 %v2914, %v3026
    %v3028 = vpop.f32.mrb[0].mxu0
    %v3029 = vadd.f32 %v2916, %v3028
    %v3030 = vpop.f32.mrb[0].mxu0
    %v3031 = vadd.f32 %v2918, %v3030
    %v3032 = vpop.f32.mrb[0].mxu0
    %v3033 = vadd.f32 %v2920, %v3032
    %3034 = vmatprep.mubr.bf16.mxu0 0
    %3035 = vmatmul.mubr.bf16.gmra.mrb[0].mxu0 %v2139
    %v3036 = vpop.f32.mrb[0].mxu0
    %v3037 = vadd.f32 %v2924, %v3036
    %v3038 = vpop.f32.mrb[0].mxu0
    %v3039 = vadd.f32 %v2926, %v3038
    %v3040 = vpop.f32.mrb[0].mxu0
    %v3041 = vadd.f32 %v2928, %v3040
    %v3042 = vpop.f32.mrb[0].mxu0
    %v3043 = vadd.f32 %v2930, %v3042
    %3044 = vdwg.mxu0
    %3045 = vmatprep.subr.bf16.mxu0 %v1533
    %3046 = vmatpush1.bf16.msra.mxu0 %v1532
    %3047 = vmatprep.subr.bf16.mxu0 %v1539
    %3048 = vmatpush1.bf16.msra.mxu0 %v1538
    %3049 = vmatprep.subr.bf16.mxu0 %v1545
    %3050 = vmatpush1.bf16.msra.mxu0 %v1544
    %3051 = vmatprep.subr.bf16.mxu0 %v1551
    %3052 = vmatpush1.bf16.msra.mxu0 %v1550
    %3053 = vmatprep.subr.bf16.mxu0 %v1557
    %3054 = vmatpush1.bf16.msra.mxu0 %v1556
    %3055 = vmatprep.subr.bf16.mxu0 %v1563
    %3056 = vmatpush1.bf16.msra.mxu0 %v1562
    %3057 = vmatprep.subr.bf16.mxu0 %v1569
    %3058 = vmatpush1.bf16.msra.mxu0 %v1568
    %3059 = vmatprep.subr.bf16.mxu0 %v1575
    %3060 = vmatpush1.bf16.msra.mxu0 %v1574
    %3061 = vmatprep.subr.bf16.mxu0 %v1581
    %3062 = vmatpush1.bf16.msra.mxu0 %v1580
    %3063 = vmatprep.subr.bf16.mxu0 %v1587
    %3064 = vmatpush1.bf16.msra.mxu0 %v1586
    %3065 = vmatprep.subr.bf16.mxu0 %v1593
    %3066 = vmatpush1.bf16.msra.mxu0 %v1592
    %3067 = vmatprep.subr.bf16.mxu0 %v1599
    %3068 = vmatpush1.bf16.msra.mxu0 %v1598
    %3069 = vmatprep.subr.bf16.mxu0 %v1605
    %3070 = vmatpush1.bf16.msra.mxu0 %v1604
    %3071 = vmatprep.subr.bf16.mxu0 %v1611
    %3072 = vmatpush1.bf16.msra.mxu0 %v1610
    %3073 = vmatprep.subr.bf16.mxu0 %v1617
    %3074 = vmatpush1.bf16.msra.mxu0 %v1616
    %3075 = vmatprep.subr.bf16.mxu0 %v1623
    %3076 = vmatpush1.bf16.msra.mxu0 %v1622
    %3077 = vmatprep.mubr.bf16.mxu0 %v265
    %3078 = vmatmul.mubr.bf16.gmra.mrb[0].mxu0 %v264
    %v3079 = vpop.f32.mrb[0].mxu0
    %v3080 = vadd.f32 %v635, %v3079
    %v3081 = vpop.f32.mrb[0].mxu0
    %v3082 = vadd.f32 %v639, %v3081
    %v3083 = vpop.f32.mrb[0].mxu0
    %v3084 = vadd.f32 %v635, %v3083
    %v3085 = vpop.f32.mrb[0].mxu0
    %v3086 = vadd.f32 %v639, %v3085
    %3087 = vmatprep.mubr.bf16.mxu0 %v272
    %3088 = vmatmul.mubr.bf16.gmra.mrb[0].mxu0 %v271
    %v3089 = vpop.f32.mrb[0].mxu0
    %v3090 = vadd.f32 %v635, %v3089
    %v3091 = vpop.f32.mrb[0].mxu0
    %v3092 = vadd.f32 %v639, %v3091
    %v3093 = vpop.f32.mrb[0].mxu0
    %v3094 = vadd.f32 %v635, %v3093
    %v3095 = vpop.f32.mrb[0].mxu0
    %v3096 = vadd.f32 %v639, %v3095
    %3097 = vmatprep.mubr.bf16.mxu0 %v279
    %3098 = vmatmul.mubr.bf16.gmra.mrb[0].mxu0 %v278
    %v3099 = vpop.f32.mrb[0].mxu0
    %v3100 = vadd.f32 %v635, %v3099
    %v3101 = vpop.f32.mrb[0].mxu0
    %v3102 = vadd.f32 %v639, %v3101
    %v3103 = vpop.f32.mrb[0].mxu0
    %v3104 = vadd.f32 %v635, %v3103
    %v3105 = vpop.f32.mrb[0].mxu0
    %v3106 = vadd.f32 %v639, %v3105
    %3107 = vmatprep.mubr.bf16.mxu0 %v286
    %3108 = vmatmul.mubr.bf16.gmra.mrb[0].mxu0 %v285
    %v3109 = vpop.f32.mrb[0].mxu0
    %v3110 = vadd.f32 %v635, %v3109
    %v3111 = vpop.f32.mrb[0].mxu0
    %v3112 = vadd.f32 %v639, %v3111
    %v3113 = vpop.f32.mrb[0].mxu0
    %v3114 = vadd.f32 %v635, %v3113
    %v3115 = vpop.f32.mrb[0].mxu0
    %v3116 = vadd.f32 %v639, %v3115
    %3117 = vmatprep.mubr.bf16.mxu0 %v293
    %3118 = vmatmul.mubr.bf16.gmra.mrb[0].mxu0 %v292
    %v3119 = vpop.f32.mrb[0].mxu0
    %v3120 = vadd.f32 %v635, %v3119
    %v3121 = vpop.f32.mrb[0].mxu0
    %v3122 = vadd.f32 %v639, %v3121
    %v3123 = vpop.f32.mrb[0].mxu0
    %v3124 = vadd.f32 %v635, %v3123
    %v3125 = vpop.f32.mrb[0].mxu0
    %v3126 = vadd.f32 %v639, %v3125
    %3127 = vmatprep.mubr.bf16.mxu0 %v300
    %3128 = vmatmul.mubr.bf16.gmra.mrb[0].mxu0 %v299
    %v3129 = vpop.f32.mrb[0].mxu0
    %v3130 = vadd.f32 %v635, %v3129
    %v3131 = vpop.f32.mrb[0].mxu0
    %v3132 = vadd.f32 %v639, %v3131
    %v3133 = vpop.f32.mrb[0].mxu0
    %v3134 = vadd.f32 %v635, %v3133
    %v3135 = vpop.f32.mrb[0].mxu0
    %v3136 = vadd.f32 %v639, %v3135
    %3137 = vmatprep.mubr.bf16.mxu0 %v307
    %3138 = vmatmul.mubr.bf16.gmra.mrb[0].mxu0 %v306
    %v3139 = vpop.f32.mrb[0].mxu0
    %v3140 = vadd.f32 %v635, %v3139
    %v3141 = vpop.f32.mrb[0].mxu0
    %v3142 = vadd.f32 %v639, %v3141
    %v3143 = vpop.f32.mrb[0].mxu0
    %v3144 = vadd.f32 %v635, %v3143
    %v3145 = vpop.f32.mrb[0].mxu0
    %v3146 = vadd.f32 %v639, %v3145
    %3147 = vmatprep.mubr.bf16.mxu0 %v314
    %3148 = vmatmul.mubr.bf16.gmra.mrb[0].mxu0 %v313
    %v3149 = vpop.f32.mrb[0].mxu0
    %v3150 = vadd.f32 %v635, %v3149
    %v3151 = vpop.f32.mrb[0].mxu0
    %v3152 = vadd.f32 %v639, %v3151
    %v3153 = vpop.f32.mrb[0].mxu0
    %v3154 = vadd.f32 %v635, %v3153
    %v3155 = vpop.f32.mrb[0].mxu0
    %v3156 = vadd.f32 %v639, %v3155
    %3157 = vdwg.mxu0
    %3158 = vmatprep.subr.bf16.mxu0 %v1629
    %3159 = vmatpush1.bf16.msra.mxu0 %v1628
    %3160 = vmatprep.subr.bf16.mxu0 %v1635
    %3161 = vmatpush1.bf16.msra.mxu0 %v1634
    %3162 = vmatprep.subr.bf16.mxu0 %v1641
    %3163 = vmatpush1.bf16.msra.mxu0 %v1640
    %3164 = vmatprep.subr.bf16.mxu0 %v1647
    %3165 = vmatpush1.bf16.msra.mxu0 %v1646
    %3166 = vmatprep.subr.bf16.mxu0 %v1653
    %3167 = vmatpush1.bf16.msra.mxu0 %v1652
    %3168 = vmatprep.subr.bf16.mxu0 %v1659
    %3169 = vmatpush1.bf16.msra.mxu0 %v1658
    %3170 = vmatprep.subr.bf16.mxu0 %v1665
    %3171 = vmatpush1.bf16.msra.mxu0 %v1664
    %3172 = vmatprep.subr.bf16.mxu0 %v1671
    %3173 = vmatpush1.bf16.msra.mxu0 %v1670
    %3174 = vmatprep.subr.bf16.mxu0 %v1677
    %3175 = vmatpush1.bf16.msra.mxu0 %v1676
    %3176 = vmatprep.subr.bf16.mxu0 %v1683
    %3177 = vmatpush1.bf16.msra.mxu0 %v1682
    %3178 = vmatprep.subr.bf16.mxu0 %v1689
    %3179 = vmatpush1.bf16.msra.mxu0 %v1688
    %3180 = vmatprep.subr.bf16.mxu0 %v1695
    %3181 = vmatpush1.bf16.msra.mxu0 %v1694
    %3182 = vmatprep.subr.bf16.mxu0 %v1701
    %3183 = vmatpush1.bf16.msra.mxu0 %v1700
    %3184 = vmatprep.subr.bf16.mxu0 %v1707
    %3185 = vmatpush1.bf16.msra.mxu0 %v1706
    %3186 = vmatprep.subr.bf16.mxu0 %v1713
    %3187 = vmatpush1.bf16.msra.mxu0 %v1712
    %3188 = vmatprep.subr.bf16.mxu0 %v1719
    %3189 = vmatpush1.bf16.msra.mxu0 %v1718
    %3190 = vmatprep.mubr.bf16.mxu0 %v267
    %3191 = vmatmul.mubr.bf16.gmra.mrb[0].mxu0 %v266
    %v3192 = vpop.f32.mrb[0].mxu0
    %v3193 = vadd.f32 %v3080, %v3192
    %v3194 = vpop.f32.mrb[0].mxu0
    %v3195 = vadd.f32 %v3082, %v3194
    %v3196 = vpop.f32.mrb[0].mxu0
    %v3197 = vadd.f32 %v3084, %v3196
    %v3198 = vpop.f32.mrb[0].mxu0
    %v3199 = vadd.f32 %v3086, %v3198
    %3200 = vmatprep.mubr.bf16.mxu0 %v274
    %3201 = vmatmul.mubr.bf16.gmra.mrb[0].mxu0 %v273
    %v3202 = vpop.f32.mrb[0].mxu0
    %v3203 = vadd.f32 %v3090, %v3202
    %v3204 = vpop.f32.mrb[0].mxu0
    %v3205 = vadd.f32 %v3092, %v3204
    %v3206 = vpop.f32.mrb[0].mxu0
    %v3207 = vadd.f32 %v3094, %v3206
    %v3208 = vpop.f32.mrb[0].mxu0
    %v3209 = vadd.f32 %v3096, %v3208
    %3210 = vmatprep.mubr.bf16.mxu0 %v281
    %3211 = vmatmul.mubr.bf16.gmra.mrb[0].mxu0 %v280
    %v3212 = vpop.f32.mrb[0].mxu0
    %v3213 = vadd.f32 %v3100, %v3212
    %v3214 = vpop.f32.mrb[0].mxu0
    %v3215 = vadd.f32 %v3102, %v3214
    %v3216 = vpop.f32.mrb[0].mxu0
    %v3217 = vadd.f32 %v3104, %v3216
    %v3218 = vpop.f32.mrb[0].mxu0
    %v3219 = vadd.f32 %v3106, %v3218
    %3220 = vmatprep.mubr.bf16.mxu0 %v288
    %3221 = vmatmul.mubr.bf16.gmra.mrb[0].mxu0 %v287
    %v3222 = vpop.f32.mrb[0].mxu0
    %v3223 = vadd.f32 %v3110, %v3222
    %v3224 = vpop.f32.mrb[0].mxu0
    %v3225 = vadd.f32 %v3112, %v3224
    %v3226 = vpop.f32.mrb[0].mxu0
    %v3227 = vadd.f32 %v3114, %v3226
    %v3228 = vpop.f32.mrb[0].mxu0
    %v3229 = vadd.f32 %v3116, %v3228
    %3230 = vmatprep.mubr.bf16.mxu0 %v295
    %3231 = vmatmul.mubr.bf16.gmra.mrb[0].mxu0 %v294
    %v3232 = vpop.f32.mrb[0].mxu0
    %v3233 = vadd.f32 %v3120, %v3232
    %v3234 = vpop.f32.mrb[0].mxu0
    %v3235 = vadd.f32 %v3122, %v3234
    %v3236 = vpop.f32.mrb[0].mxu0
    %v3237 = vadd.f32 %v3124, %v3236
    %v3238 = vpop.f32.mrb[0].mxu0
    %v3239 = vadd.f32 %v3126, %v3238
    %3240 = vmatprep.mubr.bf16.mxu0 %v302
    %3241 = vmatmul.mubr.bf16.gmra.mrb[0].mxu0 %v301
    %v3242 = vpop.f32.mrb[0].mxu0
    %v3243 = vadd.f32 %v3130, %v3242
    %v3244 = vpop.f32.mrb[0].mxu0
    %v3245 = vadd.f32 %v3132, %v3244
    %v3246 = vpop.f32.mrb[0].mxu0
    %v3247 = vadd.f32 %v3134, %v3246
    %v3248 = vpop.f32.mrb[0].mxu0
    %v3249 = vadd.f32 %v3136, %v3248
    %3250 = vmatprep.mubr.bf16.mxu0 %v309
    %3251 = vmatmul.mubr.bf16.gmra.mrb[0].mxu0 %v308
    %v3252 = vpop.f32.mrb[0].mxu0
    %v3253 = vadd.f32 %v3140, %v3252
    %v3254 = vpop.f32.mrb[0].mxu0
    %v3255 = vadd.f32 %v3142, %v3254
    %v3256 = vpop.f32.mrb[0].mxu0
    %v3257 = vadd.f32 %v3144, %v3256
    %v3258 = vpop.f32.mrb[0].mxu0
    %v3259 = vadd.f32 %v3146, %v3258
    %3260 = vmatprep.mubr.bf16.mxu0 %v316
    %3261 = vmatmul.mubr.bf16.gmra.mrb[0].mxu0 %v315
    %v3262 = vpop.f32.mrb[0].mxu0
    %v3263 = vadd.f32 %v3150, %v3262
    %v3264 = vpop.f32.mrb[0].mxu0
    %v3265 = vadd.f32 %v3152, %v3264
    %v3266 = vpop.f32.mrb[0].mxu0
    %v3267 = vadd.f32 %v3154, %v3266
    %v3268 = vpop.f32.mrb[0].mxu0
    %v3269 = vadd.f32 %v3156, %v3268
    %3270 = vdwg.mxu0
    %3271 = vmatprep.subr.bf16.mxu0 %v1725
    %3272 = vmatpush1.bf16.msra.mxu0 %v1724
    %3273 = vmatprep.subr.bf16.mxu0 %v1731
    %3274 = vmatpush1.bf16.msra.mxu0 %v1730
    %3275 = vmatprep.subr.bf16.mxu0 %v1737
    %3276 = vmatpush1.bf16.msra.mxu0 %v1736
    %3277 = vmatprep.subr.bf16.mxu0 %v1743
    %3278 = vmatpush1.bf16.msra.mxu0 %v1742
    %3279 = vmatprep.subr.bf16.mxu0 %v1749
    %3280 = vmatpush1.bf16.msra.mxu0 %v1748
    %3281 = vmatprep.subr.bf16.mxu0 %v1755
    %3282 = vmatpush1.bf16.msra.mxu0 %v1754
    %3283 = vmatprep.subr.bf16.mxu0 %v1761
    %3284 = vmatpush1.bf16.msra.mxu0 %v1760
    %3285 = vmatprep.subr.bf16.mxu0 %v1767
    %3286 = vmatpush1.bf16.msra.mxu0 %v1766
    %3287 = vmatprep.subr.bf16.mxu0 %v1773
    %3288 = vmatpush1.bf16.msra.mxu0 %v1772
    %3289 = vmatprep.subr.bf16.mxu0 %v1779
    %3290 = vmatpush1.bf16.msra.mxu0 %v1778
    %3291 = vmatprep.subr.bf16.mxu0 %v1785
    %3292 = vmatpush1.bf16.msra.mxu0 %v1784
    %3293 = vmatprep.subr.bf16.mxu0 %v1791
    %3294 = vmatpush1.bf16.msra.mxu0 %v1790
    %3295 = vmatprep.subr.bf16.mxu0 %v1797
    %3296 = vmatpush1.bf16.msra.mxu0 %v1796
    %3297 = vmatprep.subr.bf16.mxu0 %v1803
    %3298 = vmatpush1.bf16.msra.mxu0 %v1802
    %3299 = vmatprep.subr.bf16.mxu0 %v1809
    %3300 = vmatpush1.bf16.msra.mxu0 %v1808
    %3301 = vmatprep.subr.bf16.mxu0 %v1815
    %3302 = vmatpush1.bf16.msra.mxu0 %v1814
    %3303 = vmatprep.mubr.bf16.mxu0 %v269
    %3304 = vmatmul.mubr.bf16.gmra.mrb[0].mxu0 %v268
    %v3305 = vpop.f32.mrb[0].mxu0
    %v3306 = vadd.f32 %v3193, %v3305
    %v3307 = vpop.f32.mrb[0].mxu0
    %v3308 = vadd.f32 %v3195, %v3307
    %v3309 = vpop.f32.mrb[0].mxu0
    %v3310 = vadd.f32 %v3197, %v3309
    %v3311 = vpop.f32.mrb[0].mxu0
    %v3312 = vadd.f32 %v3199, %v3311
    %3313 = vmatprep.mubr.bf16.mxu0 %v276
    %3314 = vmatmul.mubr.bf16.gmra.mrb[0].mxu0 %v275
    %v3315 = vpop.f32.mrb[0].mxu0
    %v3316 = vadd.f32 %v3203, %v3315
    %v3317 = vpop.f32.mrb[0].mxu0
    %v3318 = vadd.f32 %v3205, %v3317
    %v3319 = vpop.f32.mrb[0].mxu0
    %v3320 = vadd.f32 %v3207, %v3319
    %v3321 = vpop.f32.mrb[0].mxu0
    %v3322 = vadd.f32 %v3209, %v3321
    %3323 = vmatprep.mubr.bf16.mxu0 %v283
    %3324 = vmatmul.mubr.bf16.gmra.mrb[0].mxu0 %v282
    %v3325 = vpop.f32.mrb[0].mxu0
    %v3326 = vadd.f32 %v3213, %v3325
    %v3327 = vpop.f32.mrb[0].mxu0
    %v3328 = vadd.f32 %v3215, %v3327
    %v3329 = vpop.f32.mrb[0].mxu0
    %v3330 = vadd.f32 %v3217, %v3329
    %v3331 = vpop.f32.mrb[0].mxu0
    %v3332 = vadd.f32 %v3219, %v3331
    %3333 = vmatprep.mubr.bf16.mxu0 %v290
    %3334 = vmatmul.mubr.bf16.gmra.mrb[0].mxu0 %v289
    %v3335 = vpop.f32.mrb[0].mxu0
    %v3336 = vadd.f32 %v3223, %v3335
    %v3337 = vpop.f32.mrb[0].mxu0
    %v3338 = vadd.f32 %v3225, %v3337
    %v3339 = vpop.f32.mrb[0].mxu0
    %v3340 = vadd.f32 %v3227, %v3339
    %v3341 = vpop.f32.mrb[0].mxu0
    %v3342 = vadd.f32 %v3229, %v3341
    %3343 = vmatprep.mubr.bf16.mxu0 %v297
    %3344 = vmatmul.mubr.bf16.gmra.mrb[0].mxu0 %v296
    %v3345 = vpop.f32.mrb[0].mxu0
    %v3346 = vadd.f32 %v3233, %v3345
    %v3347 = vpop.f32.mrb[0].mxu0
    %v3348 = vadd.f32 %v3235, %v3347
    %v3349 = vpop.f32.mrb[0].mxu0
    %v3350 = vadd.f32 %v3237, %v3349
    %v3351 = vpop.f32.mrb[0].mxu0
    %v3352 = vadd.f32 %v3239, %v3351
    %3353 = vmatprep.mubr.bf16.mxu0 %v304
    %3354 = vmatmul.mubr.bf16.gmra.mrb[0].mxu0 %v303
    %v3355 = vpop.f32.mrb[0].mxu0
    %v3356 = vadd.f32 %v3243, %v3355
    %v3357 = vpop.f32.mrb[0].mxu0
    %v3358 = vadd.f32 %v3245, %v3357
    %v3359 = vpop.f32.mrb[0].mxu0
    %v3360 = vadd.f32 %v3247, %v3359
    %v3361 = vpop.f32.mrb[0].mxu0
    %v3362 = vadd.f32 %v3249, %v3361
    %3363 = vmatprep.mubr.bf16.mxu0 %v311
    %3364 = vmatmul.mubr.bf16.gmra.mrb[0].mxu0 %v310
    %v3365 = vpop.f32.mrb[0].mxu0
    %v3366 = vadd.f32 %v3253, %v3365
    %v3367 = vpop.f32.mrb[0].mxu0
    %v3368 = vadd.f32 %v3255, %v3367
    %v3369 = vpop.f32.mrb[0].mxu0
    %v3370 = vadd.f32 %v3257, %v3369
    %v3371 = vpop.f32.mrb[0].mxu0
    %v3372 = vadd.f32 %v3259, %v3371
    %3373 = vmatprep.mubr.bf16.mxu0 %v318
    %3374 = vmatmul.mubr.bf16.gmra.mrb[0].mxu0 %v317
    %v3375 = vpop.f32.mrb[0].mxu0
    %v3376 = vadd.f32 %v3263, %v3375
    %v3377 = vpop.f32.mrb[0].mxu0
    %v3378 = vadd.f32 %v3265, %v3377
    %v3379 = vpop.f32.mrb[0].mxu0
    %v3380 = vadd.f32 %v3267, %v3379
    %v3381 = vpop.f32.mrb[0].mxu0
    %v3382 = vadd.f32 %v3269, %v3381
    %3383 = vdwg.mxu0
    %3384 = vmatprep.subr.bf16.mxu0 %v1821
    %3385 = vmatpush1.bf16.msra.mxu0 %v1820
    %3386 = vmatprep.subr.bf16.mxu0 0
    %3387 = vmatpush1.bf16.msra.mxu0 0
    %3388 = vmatprep.subr.bf16.mxu0 0
    %3389 = vmatpush1.bf16.msra.mxu0 0
    %3390 = vmatprep.subr.bf16.mxu0 0
    %3391 = vmatpush1.bf16.msra.mxu0 0
    %3392 = vmatprep.subr.bf16.mxu0 0
    %3393 = vmatpush1.bf16.msra.mxu0 0
    %3394 = vmatprep.subr.bf16.mxu0 0
    %3395 = vmatpush1.bf16.msra.mxu0 0
    %3396 = vmatprep.subr.bf16.mxu0 0
    %3397 = vmatpush1.bf16.msra.mxu0 0
    %3398 = vmatprep.subr.bf16.mxu0 0
    %3399 = vmatpush1.bf16.msra.mxu0 0
    %3400 = vmatprep.subr.bf16.mxu0 0
    %3401 = vmatpush1.bf16.msra.mxu0 0
    %3402 = vmatprep.subr.bf16.mxu0 0
    %3403 = vmatpush1.bf16.msra.mxu0 0
    %3404 = vmatprep.subr.bf16.mxu0 0
    %3405 = vmatpush1.bf16.msra.mxu0 0
    %3406 = vmatprep.subr.bf16.mxu0 0
    %3407 = vmatpush1.bf16.msra.mxu0 0
    %3408 = vmatprep.subr.bf16.mxu0 0
    %3409 = vmatpush1.bf16.msra.mxu0 0
    %3410 = vmatprep.subr.bf16.mxu0 0
    %3411 = vmatpush1.bf16.msra.mxu0 0
    %3412 = vmatprep.subr.bf16.mxu0 0
    %3413 = vmatpush1.bf16.msra.mxu0 0
    %3414 = vmatprep.subr.bf16.mxu0 0
    %3415 = vmatpush1.bf16.msra.mxu0 0
    %3416 = vmatprep.mubr.bf16.mxu0 0
    %3417 = vmatmul.mubr.bf16.gmra.mrb[0].mxu0 %v2118
    %v3418 = vpop.f32.mrb[0].mxu0
    %v3419 = vadd.f32 %v3306, %v3418
    %v3420 = vpop.f32.mrb[0].mxu0
    %v3421 = vadd.f32 %v3308, %v3420
    %v3422 = vpop.f32.mrb[0].mxu0
    %v3423 = vadd.f32 %v3310, %v3422
    %v3424 = vpop.f32.mrb[0].mxu0
    %v3425 = vadd.f32 %v3312, %v3424
    %3426 = vmatprep.mubr.bf16.mxu0 0
    %3427 = vmatmul.mubr.bf16.gmra.mrb[0].mxu0 %v2121
    %v3428 = vpop.f32.mrb[0].mxu0
    %v3429 = vadd.f32 %v3316, %v3428
    %v3430 = vpop.f32.mrb[0].mxu0
    %v3431 = vadd.f32 %v3318, %v3430
    %v3432 = vpop.f32.mrb[0].mxu0
    %v3433 = vadd.f32 %v3320, %v3432
    %v3434 = vpop.f32.mrb[0].mxu0
    %v3435 = vadd.f32 %v3322, %v3434
    %3436 = vmatprep.mubr.bf16.mxu0 0
    %3437 = vmatmul.mubr.bf16.gmra.mrb[0].mxu0 %v2124
    %v3438 = vpop.f32.mrb[0].mxu0
    %v3439 = vadd.f32 %v3326, %v3438
    %v3440 = vpop.f32.mrb[0].mxu0
    %v3441 = vadd.f32 %v3328, %v3440
    %v3442 = vpop.f32.mrb[0].mxu0
    %v3443 = vadd.f32 %v3330, %v3442
    %v3444 = vpop.f32.mrb[0].mxu0
    %v3445 = vadd.f32 %v3332, %v3444
    %3446 = vmatprep.mubr.bf16.mxu0 0
    %3447 = vmatmul.mubr.bf16.gmra.mrb[0].mxu0 %v2127
    %v3448 = vpop.f32.mrb[0].mxu0
    %v3449 = vadd.f32 %v3336, %v3448
    %v3450 = vpop.f32.mrb[0].mxu0
    %v3451 = vadd.f32 %v3338, %v3450
    %v3452 = vpop.f32.mrb[0].mxu0
    %v3453 = vadd.f32 %v3340, %v3452
    %v3454 = vpop.f32.mrb[0].mxu0
    %v3455 = vadd.f32 %v3342, %v3454
    %3456 = vmatprep.mubr.bf16.mxu0 0
    %3457 = vmatmul.mubr.bf16.gmra.mrb[0].mxu0 %v2130
    %v3458 = vpop.f32.mrb[0].mxu0
    %v3459 = vadd.f32 %v3346, %v3458
    %v3460 = vpop.f32.mrb[0].mxu0
    %v3461 = vadd.f32 %v3348, %v3460
    %v3462 = vpop.f32.mrb[0].mxu0
    %v3463 = vadd.f32 %v3350, %v3462
    %v3464 = vpop.f32.mrb[0].mxu0
    %v3465 = vadd.f32 %v3352, %v3464
    %3466 = vmatprep.mubr.bf16.mxu0 0
    %3467 = vmatmul.mubr.bf16.gmra.mrb[0].mxu0 %v2133
    %v3468 = vpop.f32.mrb[0].mxu0
    %v3469 = vadd.f32 %v3356, %v3468
    %v3470 = vpop.f32.mrb[0].mxu0
    %v3471 = vadd.f32 %v3358, %v3470
    %v3472 = vpop.f32.mrb[0].mxu0
    %v3473 = vadd.f32 %v3360, %v3472
    %v3474 = vpop.f32.mrb[0].mxu0
    %v3475 = vadd.f32 %v3362, %v3474
    %3476 = vmatprep.mubr.bf16.mxu0 0
    %3477 = vmatmul.mubr.bf16.gmra.mrb[0].mxu0 %v2136
    %v3478 = vpop.f32.mrb[0].mxu0
    %v3479 = vadd.f32 %v3366, %v3478
    %v3480 = vpop.f32.mrb[0].mxu0
    %v3481 = vadd.f32 %v3368, %v3480
    %v3482 = vpop.f32.mrb[0].mxu0
    %v3483 = vadd.f32 %v3370, %v3482
    %v3484 = vpop.f32.mrb[0].mxu0
    %v3485 = vadd.f32 %v3372, %v3484
    %3486 = vmatprep.mubr.bf16.mxu0 0
    %3487 = vmatmul.mubr.bf16.gmra.mrb[0].mxu0 %v2139
    %v3488 = vpop.f32.mrb[0].mxu0
    %v3489 = vadd.f32 %v3376, %v3488
    %v3490 = vpop.f32.mrb[0].mxu0
    %v3491 = vadd.f32 %v3378, %v3490
    %v3492 = vpop.f32.mrb[0].mxu0
    %v3493 = vadd.f32 %v3380, %v3492
    %v3494 = vpop.f32.mrb[0].mxu0
    %v3495 = vadd.f32 %v3382, %v3494
    %3496 = vdwg.mxu0
    %v3497 = vmax.f32 %v2515, 0.0
    %v3498 = vmax.f32 %v2517, 0.0
    %v3499 = vmax.f32 %v2967, 0.0
    %v3500 = vmax.f32 %v2969, 0.0
    %v3501 = vmax.f32 %v3419, 0.0
    %v3502 = vmax.f32 %v3421, 0.0
    %v3503 = vmax.f32 %v2519, 0.0
    %v3504 = vmax.f32 %v2521, 0.0
    %v3505 = vmax.f32 %v2971, 0.0
    %v3506 = vmax.f32 %v2973, 0.0
    %v3507 = vmax.f32 %v3423, 0.0
    %v3508 = vmax.f32 %v3425, 0.0
    %v3509 = vmax.f32 %v2525, 0.0
    %v3510 = vmax.f32 %v2527, 0.0
    %v3511 = vmax.f32 %v2977, 0.0
    %v3512 = vmax.f32 %v2979, 0.0
    %v3513 = vmax.f32 %v3429, 0.0
    %v3514 = vmax.f32 %v3431, 0.0
    %v3515 = vmax.f32 %v2529, 0.0
    %v3516 = vmax.f32 %v2531, 0.0
    %v3517 = vmax.f32 %v2981, 0.0
    %v3518 = vmax.f32 %v2983, 0.0
    %v3519 = vmax.f32 %v3433, 0.0
    %v3520 = vmax.f32 %v3435, 0.0
    %v3521 = vmax.f32 %v2535, 0.0
    %v3522 = vmax.f32 %v2537, 0.0
    %v3523 = vmax.f32 %v2987, 0.0
    %v3524 = vmax.f32 %v2989, 0.0
    %v3525 = vmax.f32 %v3439, 0.0
    %v3526 = vmax.f32 %v3441, 0.0
    %v3527 = vmax.f32 %v2539, 0.0
    %v3528 = vmax.f32 %v2541, 0.0
    %v3529 = vmax.f32 %v2991, 0.0
    %v3530 = vmax.f32 %v2993, 0.0
    %v3531 = vmax.f32 %v3443, 0.0
    %v3532 = vmax.f32 %v3445, 0.0
    %v3533 = vmax.f32 %v2545, 0.0
    %v3534 = vmax.f32 %v2547, 0.0
    %v3535 = vmax.f32 %v2997, 0.0
    %v3536 = vmax.f32 %v2999, 0.0
    %v3537 = vmax.f32 %v3449, 0.0
    %v3538 = vmax.f32 %v3451, 0.0
    %v3539 = vmax.f32 %v2549, 0.0
    %v3540 = vmax.f32 %v2551, 0.0
    %v3541 = vmax.f32 %v3001, 0.0
    %v3542 = vmax.f32 %v3003, 0.0
    %v3543 = vmax.f32 %v3453, 0.0
    %v3544 = vmax.f32 %v3455, 0.0
    %v3545 = vmax.f32 %v2555, 0.0
    %v3546 = vmax.f32 %v2557, 0.0
    %v3547 = vmax.f32 %v3007, 0.0
    %v3548 = vmax.f32 %v3009, 0.0
    %v3549 = vmax.f32 %v3459, 0.0
    %v3550 = vmax.f32 %v3461, 0.0
    %v3551 = vmax.f32 %v2559, 0.0
    %v3552 = vmax.f32 %v2561, 0.0
    %v3553 = vmax.f32 %v3011, 0.0
    %v3554 = vmax.f32 %v3013, 0.0
    %v3555 = vmax.f32 %v3463, 0.0
    %v3556 = vmax.f32 %v3465, 0.0
    %v3557 = vmax.f32 %v2565, 0.0
    %v3558 = vmax.f32 %v2567, 0.0
    %v3559 = vmax.f32 %v3017, 0.0
    %v3560 = vmax.f32 %v3019, 0.0
    %v3561 = vmax.f32 %v3469, 0.0
    %v3562 = vmax.f32 %v3471, 0.0
    %v3563 = vmax.f32 %v2569, 0.0
    %v3564 = vmax.f32 %v2571, 0.0
    %v3565 = vmax.f32 %v3021, 0.0
    %v3566 = vmax.f32 %v3023, 0.0
    %v3567 = vmax.f32 %v3473, 0.0
    %v3568 = vmax.f32 %v3475, 0.0
    %v3569 = vmax.f32 %v2575, 0.0
    %v3570 = vmax.f32 %v2577, 0.0
    %v3571 = vmax.f32 %v3027, 0.0
    %v3572 = vmax.f32 %v3029, 0.0
    %v3573 = vmax.f32 %v3479, 0.0
    %v3574 = vmax.f32 %v3481, 0.0
    %v3575 = vmax.f32 %v2579, 0.0
    %v3576 = vmax.f32 %v2581, 0.0
    %v3577 = vmax.f32 %v3031, 0.0
    %v3578 = vmax.f32 %v3033, 0.0
    %v3579 = vmax.f32 %v3483, 0.0
    %v3580 = vmax.f32 %v3485, 0.0
    %v3581 = vmax.f32 %v2585, 0.0
    %v3582 = vmax.f32 %v2587, 0.0
    %v3583 = vmax.f32 %v3037, 0.0
    %v3584 = vmax.f32 %v3039, 0.0
    %v3585 = vmax.f32 %v3489, 0.0
    %v3586 = vmax.f32 %v3491, 0.0
    %v3587 = vmax.f32 %v2589, 0.0
    %v3588 = vmax.f32 %v2591, 0.0
    %v3589 = vmax.f32 %v3041, 0.0
    %v3590 = vmax.f32 %v3043, 0.0
    %v3591 = vmax.f32 %v3493, 0.0
    %v3592 = vmax.f32 %v3495, 0.0
    %v3593 = vpack.c.bf16 %v3503, %v3497
    %v3594 = vpack.c.bf16 %v3504, %v3498
    %v3595 = vpack.c.bf16 %v3505, %v3499
    %v3596 = vpack.c.bf16 %v3506, %v3500
    %v3597 = vpack.c.bf16 %v3507, %v3501
    %v3598 = vpack.c.bf16 %v3508, %v3502
    %v3599 = vpack.c.bf16 %v3515, %v3509
    %v3600 = vpack.c.bf16 %v3516, %v3510
    %v3601 = vpack.c.bf16 %v3517, %v3511
    %v3602 = vpack.c.bf16 %v3518, %v3512
    %v3603 = vpack.c.bf16 %v3519, %v3513
    %v3604 = vpack.c.bf16 %v3520, %v3514
    %v3605 = vpack.c.bf16 %v3527, %v3521
    %v3606 = vpack.c.bf16 %v3528, %v3522
    %v3607 = vpack.c.bf16 %v3529, %v3523
    %v3608 = vpack.c.bf16 %v3530, %v3524
    %v3609 = vpack.c.bf16 %v3531, %v3525
    %v3610 = vpack.c.bf16 %v3532, %v3526
    %v3611 = vpack.c.bf16 %v3539, %v3533
    %v3612 = vpack.c.bf16 %v3540, %v3534
    %v3613 = vpack.c.bf16 %v3541, %v3535
    %v3614 = vpack.c.bf16 %v3542, %v3536
    %v3615 = vpack.c.bf16 %v3543, %v3537
    %v3616 = vpack.c.bf16 %v3544, %v3538
    %v3617 = vpack.c.bf16 %v3551, %v3545
    %v3618 = vpack.c.bf16 %v3552, %v3546
    %v3619 = vpack.c.bf16 %v3553, %v3547
    %v3620 = vpack.c.bf16 %v3554, %v3548
    %v3621 = vpack.c.bf16 %v3555, %v3549
    %v3622 = vpack.c.bf16 %v3556, %v3550
    %v3623 = vpack.c.bf16 %v3563, %v3557
    %v3624 = vpack.c.bf16 %v3564, %v3558
    %v3625 = vpack.c.bf16 %v3565, %v3559
    %v3626 = vpack.c.bf16 %v3566, %v3560
    %v3627 = vpack.c.bf16 %v3567, %v3561
    %v3628 = vpack.c.bf16 %v3568, %v3562
    %v3629 = vpack.c.bf16 %v3575, %v3569
    %v3630 = vpack.c.bf16 %v3576, %v3570
    %v3631 = vpack.c.bf16 %v3577, %v3571
    %v3632 = vpack.c.bf16 %v3578, %v3572
    %v3633 = vpack.c.bf16 %v3579, %v3573
    %v3634 = vpack.c.bf16 %v3580, %v3574
    %v3635 = vpack.c.bf16 %v3587, %v3581
    %v3636 = vpack.c.bf16 %v3588, %v3582
    %v3637 = vpack.c.bf16 %v3589, %v3583
    %v3638 = vpack.c.bf16 %v3590, %v3584
    %v3639 = vpack.c.bf16 %v3591, %v3585
    %v3640 = vpack.c.bf16 %v3592, %v3586
    %v3641 = vld [vmem:[#allocation7] sm:$0xff]
    %v3642 = vld [vmem:[#allocation7 + $0x8] sm:$0xff]
    %v3643 = vld [vmem:[#allocation7 + $0x10] sm:$0xff]
    %v3644 = vld [vmem:[#allocation7 + $0x18] sm:$0xff]
    %v3645 = vld [vmem:[#allocation7 + $0x20] sm:$0xff]
    %v3646 = vld [vmem:[#allocation7 + $0x28] sm:$0xff]
    %v3647 = vld [vmem:[#allocation7 + $0x30] sm:$0xff]
    %v3648 = vld [vmem:[#allocation7 + $0x38] sm:$0xff]
    %v3649 = vld [vmem:[#allocation7 + $0x40] sm:$0xff]
    %v3650 = vld [vmem:[#allocation7 + $0x48] sm:$0xff]
    %v3651 = vld [vmem:[#allocation7 + $0x50] sm:$0xff]
    %v3652 = vld [vmem:[#allocation7 + $0x58] sm:$0xff]
    %v3653 = vld [vmem:[#allocation7 + $0x60] sm:$0xff]
    %v3654 = vld [vmem:[#allocation7 + $0x68] sm:$0xff]
    %v3655 = vld [vmem:[#allocation7 + $0x70] sm:$0xff]
    %v3656 = vld [vmem:[#allocation7 + $0x78] sm:$0xff]
    %v3657 = vld [vmem:[#allocation7 + $0x80] sm:$0xff]
    %v3658 = vld [vmem:[#allocation7 + $0x88] sm:$0xff]
    %v3659 = vld [vmem:[#allocation7 + $0x90] sm:$0xff]
    %v3660 = vld [vmem:[#allocation7 + $0x98] sm:$0xff]
    %v3661 = vld [vmem:[#allocation7 + $0xa0] sm:$0xff]
    %v3662 = vld [vmem:[#allocation7 + $0xa8] sm:$0xff]
    %v3663 = vld [vmem:[#allocation7 + $0xb0] sm:$0xff]
    %v3664 = vld [vmem:[#allocation7 + $0xb8] sm:$0xff]
    %v3665 = vld [vmem:[#allocation7 + $0xc0] sm:$0xff]
    %v3666 = vld [vmem:[#allocation7 + $0xc8] sm:$0xff]
    %v3667 = vld [vmem:[#allocation7 + $0xd0] sm:$0xff]
    %v3668 = vld [vmem:[#allocation7 + $0xd8] sm:$0xff]
    %v3669 = vld [vmem:[#allocation7 + $0xe0] sm:$0xff]
    %v3670 = vld [vmem:[#allocation7 + $0xe8] sm:$0xff]
    %v3671 = vld [vmem:[#allocation7 + $0xf0] sm:$0xff]
    %v3672 = vld [vmem:[#allocation7 + $0xf8] sm:$0xff]
    %v3673 = vld [vmem:[#allocation7 + $0x100] sm:$0xff]
    %v3674 = vld [vmem:[#allocation7 + $0x108] sm:$0xff]
    %v3675 = vld [vmem:[#allocation7 + $0x110] sm:$0xff]
    %v3676 = vld [vmem:[#allocation7 + $0x118] sm:$0xff]
    %v3677 = vld [vmem:[#allocation7 + $0x120] sm:$0xff]
    %v3678 = vld [vmem:[#allocation7 + $0x128] sm:$0xff]
    %v3679 = vld [vmem:[#allocation7 + $0x130] sm:$0xff]
    %v3680 = vld [vmem:[#allocation7 + $0x138] sm:$0xff]
    %v3681 = vld [vmem:[#allocation7 + $0x140] sm:$0xff]
    %v3682 = vld [vmem:[#allocation7 + $0x148] sm:$0xff]
    %v3683 = vld [vmem:[#allocation7 + $0x150] sm:$0xff]
    %v3684 = vld [vmem:[#allocation7 + $0x158] sm:$0xff]
    %v3685 = vld [vmem:[#allocation7 + $0x160] sm:$0xff]
    %v3686 = vld [vmem:[#allocation7 + $0x168] sm:$0xff]
    %v3687 = vld [vmem:[#allocation7 + $0x170] sm:$0xff]
    %v3688 = vld [vmem:[#allocation7 + $0x178] sm:$0xff]
    %v3689 = vld [vmem:[#allocation7 + $0x180] sm:$0xff]
    %v3690 = vld [vmem:[#allocation7 + $0x188] sm:$0xff]
    %v3691 = vld [vmem:[#allocation7 + $0x190] sm:$0xff]
    %v3692 = vld [vmem:[#allocation7 + $0x198] sm:$0xff]
    %v3693 = vld [vmem:[#allocation7 + $0x1a0] sm:$0xff]
    %v3694 = vld [vmem:[#allocation7 + $0x1a8] sm:$0xff]
    %v3695 = vld [vmem:[#allocation7 + $0x1b0] sm:$0xff]
    %v3696 = vld [vmem:[#allocation7 + $0x1b8] sm:$0xff]
    %v3697 = vld [vmem:[#allocation7 + $0x1c0] sm:$0xff]
    %v3698 = vld [vmem:[#allocation7 + $0x1c8] sm:$0xff]
    %v3699 = vld [vmem:[#allocation7 + $0x1d0] sm:$0xff]
    %v3700 = vld [vmem:[#allocation7 + $0x1d8] sm:$0xff]
    %v3701 = vld [vmem:[#allocation7 + $0x1e0] sm:$0xff]
    %v3702 = vld [vmem:[#allocation7 + $0x1e8] sm:$0xff]
    %v3703 = vld [vmem:[#allocation7 + $0x1f0] sm:$0xff]
    %v3704 = vld [vmem:[#allocation7 + $0x1f8] sm:$0xff]
    %v3705 = vld [vmem:[#allocation7 + $0x200] sm:$0xff]
    %v3706 = vld [vmem:[#allocation7 + $0x208] sm:$0xff]
    %v3707 = vld [vmem:[#allocation7 + $0x210] sm:$0xff]
    %v3708 = vld [vmem:[#allocation7 + $0x218] sm:$0xff]
    %v3709 = vld [vmem:[#allocation7 + $0x220] sm:$0xff]
    %v3710 = vld [vmem:[#allocation7 + $0x228] sm:$0xff]
    %v3711 = vld [vmem:[#allocation7 + $0x230] sm:$0xff]
    %v3712 = vld [vmem:[#allocation7 + $0x238] sm:$0xff]
    %v3713 = vld [vmem:[#allocation7 + $0x240] sm:$0xff]
    %v3714 = vld [vmem:[#allocation7 + $0x248] sm:$0xff]
    %v3715 = vld [vmem:[#allocation7 + $0x250] sm:$0xff]
    %v3716 = vld [vmem:[#allocation7 + $0x258] sm:$0xff]
    %v3717 = vld [vmem:[#allocation7 + $0x260] sm:$0xff]
    %v3718 = vld [vmem:[#allocation7 + $0x268] sm:$0xff]
    %v3719 = vld [vmem:[#allocation7 + $0x270] sm:$0xff]
    %v3720 = vld [vmem:[#allocation7 + $0x278] sm:$0xff]
    %v3721 = vld [vmem:[#allocation7 + $0x280] sm:$0xff]
    %v3722 = vld [vmem:[#allocation7 + $0x288] sm:$0xff]
    %v3723 = vld [vmem:[#allocation7 + $0x290] sm:$0xff]
    %v3724 = vld [vmem:[#allocation7 + $0x298] sm:$0xff]
    %v3725 = vld [vmem:[#allocation7 + $0x2a0] sm:$0xff]
    %v3726 = vld [vmem:[#allocation7 + $0x2a8] sm:$0xff]
    %v3727 = vld [vmem:[#allocation7 + $0x2b0] sm:$0xff]
    %v3728 = vld [vmem:[#allocation7 + $0x2b8] sm:$0xff]
    %v3729 = vld [vmem:[#allocation7 + $0x2c0] sm:$0xff]
    %v3730 = vld [vmem:[#allocation7 + $0x2c8] sm:$0xff]
    %v3731 = vld [vmem:[#allocation7 + $0x2d0] sm:$0xff]
    %v3732 = vld [vmem:[#allocation7 + $0x2d8] sm:$0xff]
    %v3733 = vld [vmem:[#allocation7 + $0x2e0] sm:$0xff]
    %v3734 = vld [vmem:[#allocation7 + $0x2e8] sm:$0xff]
    %v3735 = vld [vmem:[#allocation7 + $0x2f0] sm:$0xff]
    %v3736 = vld [vmem:[#allocation7 + $0x2f8] sm:$0xff]
    %v3737 = vld [vmem:[#allocation7 + $0x300] sm:$0xff]
    %v3738 = vld [vmem:[#allocation7 + $0x308] sm:$0xff]
    %v3739 = vld [vmem:[#allocation7 + $0x310] sm:$0xff]
    %v3740 = vld [vmem:[#allocation7 + $0x318] sm:$0xff]
    %v3741 = vld [vmem:[#allocation7 + $0x320] sm:$0xff]
    %v3742 = vld [vmem:[#allocation7 + $0x328] sm:$0xff]
    %v3743 = vld [vmem:[#allocation7 + $0x330] sm:$0xff]
    %v3744 = vld [vmem:[#allocation7 + $0x338] sm:$0xff]
    %v3745 = vld [vmem:[#allocation7 + $0x340] sm:$0xff]
    %v3746 = vld [vmem:[#allocation7 + $0x348] sm:$0xff]
    %v3747 = vld [vmem:[#allocation7 + $0x350] sm:$0xff]
    %v3748 = vld [vmem:[#allocation7 + $0x358] sm:$0xff]
    %v3749 = vld [vmem:[#allocation7 + $0x360] sm:$0xff]
    %v3750 = vld [vmem:[#allocation7 + $0x368] sm:$0xff]
    %v3751 = vld [vmem:[#allocation7 + $0x370] sm:$0xff]
    %v3752 = vld [vmem:[#allocation7 + $0x378] sm:$0xff]
    %v3753 = vld [vmem:[#allocation7 + $0x380] sm:$0xff]
    %v3754 = vld [vmem:[#allocation7 + $0x388] sm:$0xff]
    %v3755 = vld [vmem:[#allocation7 + $0x390] sm:$0xff]
    %v3756 = vld [vmem:[#allocation7 + $0x398] sm:$0xff]
    %v3757 = vld [vmem:[#allocation7 + $0x3a0] sm:$0xff]
    %v3758 = vld [vmem:[#allocation7 + $0x3a8] sm:$0xff]
    %v3759 = vld [vmem:[#allocation7 + $0x3b0] sm:$0xff]
    %v3760 = vld [vmem:[#allocation7 + $0x3b8] sm:$0xff]
    %v3761 = vld [vmem:[#allocation7 + $0x3c0] sm:$0xff]
    %v3762 = vld [vmem:[#allocation7 + $0x3c8] sm:$0xff]
    %v3763 = vld [vmem:[#allocation7 + $0x3d0] sm:$0xff]
    %v3764 = vld [vmem:[#allocation7 + $0x3d8] sm:$0xff]
    %v3765 = vld [vmem:[#allocation7 + $0x3e0] sm:$0xff]
    %v3766 = vld [vmem:[#allocation7 + $0x3e8] sm:$0xff]
    %v3767 = vld [vmem:[#allocation7 + $0x3f0] sm:$0xff]
    %v3768 = vld [vmem:[#allocation7 + $0x3f8] sm:$0xff]
    %v3769 = vld [vmem:[#allocation7 + $0x400] sm:$0xff]
    %v3770 = vld [vmem:[#allocation7 + $0x408] sm:$0xff]
    %v3771 = vld [vmem:[#allocation7 + $0x410] sm:$0xff]
    %v3772 = vld [vmem:[#allocation7 + $0x418] sm:$0xff]
    %v3773 = vld [vmem:[#allocation7 + $0x420] sm:$0xff]
    %v3774 = vld [vmem:[#allocation7 + $0x428] sm:$0xff]
    %v3775 = vld [vmem:[#allocation7 + $0x430] sm:$0xff]
    %v3776 = vld [vmem:[#allocation7 + $0x438] sm:$0xff]
    %v3777 = vld [vmem:[#allocation7 + $0x440] sm:$0xff]
    %v3778 = vld [vmem:[#allocation7 + $0x448] sm:$0xff]
    %v3779 = vld [vmem:[#allocation7 + $0x450] sm:$0xff]
    %v3780 = vld [vmem:[#allocation7 + $0x458] sm:$0xff]
    %v3781 = vld [vmem:[#allocation7 + $0x460] sm:$0xff]
    %v3782 = vld [vmem:[#allocation7 + $0x468] sm:$0xff]
    %v3783 = vld [vmem:[#allocation7 + $0x470] sm:$0xff]
    %v3784 = vld [vmem:[#allocation7 + $0x478] sm:$0xff]
    %v3785 = vld [vmem:[#allocation7 + $0x480] sm:$0xff]
    %v3786 = vld [vmem:[#allocation7 + $0x488] sm:$0xff]
    %v3787 = vld [vmem:[#allocation7 + $0x490] sm:$0xff]
    %v3788 = vld [vmem:[#allocation7 + $0x498] sm:$0xff]
    %v3789 = vld [vmem:[#allocation7 + $0x4a0] sm:$0xff]
    %v3790 = vld [vmem:[#allocation7 + $0x4a8] sm:$0xff]
    %v3791 = vld [vmem:[#allocation7 + $0x4b0] sm:$0xff]
    %v3792 = vld [vmem:[#allocation7 + $0x4b8] sm:$0xff]
    %v3793 = vld [vmem:[#allocation7 + $0x4c0] sm:$0xff]
    %v3794 = vld [vmem:[#allocation7 + $0x4c8] sm:$0xff]
    %v3795 = vld [vmem:[#allocation7 + $0x4d0] sm:$0xff]
    %v3796 = vld [vmem:[#allocation7 + $0x4d8] sm:$0xff]
    %v3797 = vld [vmem:[#allocation7 + $0x4e0] sm:$0xff]
    %v3798 = vld [vmem:[#allocation7 + $0x4e8] sm:$0xff]
    %v3799 = vld [vmem:[#allocation7 + $0x4f0] sm:$0xff]
    %v3800 = vld [vmem:[#allocation7 + $0x4f8] sm:$0xff]
    %v3801 = vld [vmem:[#allocation7 + $0x500] sm:$0xff]
    %v3802 = vld [vmem:[#allocation7 + $0x508] sm:$0xff]
    %v3803 = vld [vmem:[#allocation7 + $0x510] sm:$0xff]
    %v3804 = vld [vmem:[#allocation7 + $0x518] sm:$0xff]
    %v3805 = vld [vmem:[#allocation7 + $0x520] sm:$0xff]
    %v3806 = vld [vmem:[#allocation7 + $0x528] sm:$0xff]
    %v3807 = vld [vmem:[#allocation7 + $0x530] sm:$0xff]
    %v3808 = vld [vmem:[#allocation7 + $0x538] sm:$0xff]
    %v3809 = vld [vmem:[#allocation7 + $0x540] sm:$0xff]
    %v3810 = vld [vmem:[#allocation7 + $0x548] sm:$0xff]
    %v3811 = vld [vmem:[#allocation7 + $0x550] sm:$0xff]
    %v3812 = vld [vmem:[#allocation7 + $0x558] sm:$0xff]
    %v3813 = vld [vmem:[#allocation7 + $0x560] sm:$0xff]
    %v3814 = vld [vmem:[#allocation7 + $0x568] sm:$0xff]
    %v3815 = vld [vmem:[#allocation7 + $0x570] sm:$0xff]
    %v3816 = vld [vmem:[#allocation7 + $0x578] sm:$0xff]
    %v3817 = vld [vmem:[#allocation7 + $0x580] sm:$0xff]
    %v3818 = vld [vmem:[#allocation7 + $0x588] sm:$0xff]
    %v3819 = vld [vmem:[#allocation7 + $0x590] sm:$0xff]
    %v3820 = vld [vmem:[#allocation7 + $0x598] sm:$0xff]
    %v3821 = vld [vmem:[#allocation7 + $0x5a0] sm:$0xff]
    %v3822 = vld [vmem:[#allocation7 + $0x5a8] sm:$0xff]
    %v3823 = vld [vmem:[#allocation7 + $0x5b0] sm:$0xff]
    %v3824 = vld [vmem:[#allocation7 + $0x5b8] sm:$0xff]
    %v3825 = vld [vmem:[#allocation7 + $0x5c0] sm:$0xff]
    %v3826 = vld [vmem:[#allocation7 + $0x5c8] sm:$0xff]
    %v3827 = vld [vmem:[#allocation7 + $0x5d0] sm:$0xff]
    %v3828 = vld [vmem:[#allocation7 + $0x5d8] sm:$0xff]
    %v3829 = vld [vmem:[#allocation7 + $0x5e0] sm:$0xff]
    %v3830 = vld [vmem:[#allocation7 + $0x5e8] sm:$0xff]
    %v3831 = vld [vmem:[#allocation7 + $0x5f0] sm:$0xff]
    %v3832 = vld [vmem:[#allocation7 + $0x5f8] sm:$0xff]
    %v3833 = vld [vmem:[#allocation7 + $0x600] sm:$0xff]
    %v3834 = vld [vmem:[#allocation7 + $0x608] sm:$0xff]
    %v3835 = vld [vmem:[#allocation7 + $0x610] sm:$0xff]
    %v3836 = vld [vmem:[#allocation7 + $0x618] sm:$0xff]
    %v3837 = vld [vmem:[#allocation7 + $0x620] sm:$0xff]
    %v3838 = vld [vmem:[#allocation7 + $0x628] sm:$0xff]
    %v3839 = vld [vmem:[#allocation7 + $0x630] sm:$0xff]
    %v3840 = vld [vmem:[#allocation7 + $0x638] sm:$0xff]
    %v3841 = vld [vmem:[#allocation7 + $0x640] sm:$0xff]
    %v3842 = vld [vmem:[#allocation7 + $0x648] sm:$0xff]
    %v3843 = vld [vmem:[#allocation7 + $0x650] sm:$0xff]
    %v3844 = vld [vmem:[#allocation7 + $0x658] sm:$0xff]
    %v3845 = vld [vmem:[#allocation7 + $0x660] sm:$0xff]
    %v3846 = vld [vmem:[#allocation7 + $0x668] sm:$0xff]
    %v3847 = vld [vmem:[#allocation7 + $0x670] sm:$0xff]
    %v3848 = vld [vmem:[#allocation7 + $0x678] sm:$0xff]
    %v3849 = vld [vmem:[#allocation7 + $0x680] sm:$0xff]
    %v3850 = vld [vmem:[#allocation7 + $0x688] sm:$0xff]
    %v3851 = vld [vmem:[#allocation7 + $0x690] sm:$0xff]
    %v3852 = vld [vmem:[#allocation7 + $0x698] sm:$0xff]
    %v3853 = vld [vmem:[#allocation7 + $0x6a0] sm:$0xff]
    %v3854 = vld [vmem:[#allocation7 + $0x6a8] sm:$0xff]
    %v3855 = vld [vmem:[#allocation7 + $0x6b0] sm:$0xff]
    %v3856 = vld [vmem:[#allocation7 + $0x6b8] sm:$0xff]
    %v3857 = vld [vmem:[#allocation7 + $0x6c0] sm:$0xff]
    %v3858 = vld [vmem:[#allocation7 + $0x6c8] sm:$0xff]
    %v3859 = vld [vmem:[#allocation7 + $0x6d0] sm:$0xff]
    %v3860 = vld [vmem:[#allocation7 + $0x6d8] sm:$0xff]
    %v3861 = vld [vmem:[#allocation7 + $0x6e0] sm:$0xff]
    %v3862 = vld [vmem:[#allocation7 + $0x6e8] sm:$0xff]
    %v3863 = vld [vmem:[#allocation7 + $0x6f0] sm:$0xff]
    %v3864 = vld [vmem:[#allocation7 + $0x6f8] sm:$0xff]
    %v3865 = vld [vmem:[#allocation7 + $0x700] sm:$0xff]
    %v3866 = vld [vmem:[#allocation7 + $0x708] sm:$0xff]
    %v3867 = vld [vmem:[#allocation7 + $0x710] sm:$0xff]
    %v3868 = vld [vmem:[#allocation7 + $0x718] sm:$0xff]
    %v3869 = vld [vmem:[#allocation7 + $0x720] sm:$0xff]
    %v3870 = vld [vmem:[#allocation7 + $0x728] sm:$0xff]
    %v3871 = vld [vmem:[#allocation7 + $0x730] sm:$0xff]
    %v3872 = vld [vmem:[#allocation7 + $0x738] sm:$0xff]
    %v3873 = vld [vmem:[#allocation7 + $0x740] sm:$0xff]
    %v3874 = vld [vmem:[#allocation7 + $0x748] sm:$0xff]
    %v3875 = vld [vmem:[#allocation7 + $0x750] sm:$0xff]
    %v3876 = vld [vmem:[#allocation7 + $0x758] sm:$0xff]
    %v3877 = vld [vmem:[#allocation7 + $0x760] sm:$0xff]
    %v3878 = vld [vmem:[#allocation7 + $0x768] sm:$0xff]
    %v3879 = vld [vmem:[#allocation7 + $0x770] sm:$0xff]
    %v3880 = vld [vmem:[#allocation7 + $0x778] sm:$0xff]
    %v3881 = vld [vmem:[#allocation7 + $0x780] sm:$0xff]
    %v3882 = vld [vmem:[#allocation7 + $0x788] sm:$0xff]
    %v3883 = vld [vmem:[#allocation7 + $0x790] sm:$0xff]
    %v3884 = vld [vmem:[#allocation7 + $0x798] sm:$0xff]
    %v3885 = vld [vmem:[#allocation7 + $0x7a0] sm:$0xff]
    %v3886 = vld [vmem:[#allocation7 + $0x7a8] sm:$0xff]
    %v3887 = vld [vmem:[#allocation7 + $0x7b0] sm:$0xff]
    %v3888 = vld [vmem:[#allocation7 + $0x7b8] sm:$0xff]
    %v3889 = vld [vmem:[#allocation7 + $0x7c0] sm:$0xff]
    %v3890 = vld [vmem:[#allocation7 + $0x7c8] sm:$0xff]
    %v3891 = vld [vmem:[#allocation7 + $0x7d0] sm:$0xff]
    %v3892 = vld [vmem:[#allocation7 + $0x7d8] sm:$0xff]
    %v3893 = vld [vmem:[#allocation7 + $0x7e0] sm:$0xff]
    %v3894 = vld [vmem:[#allocation7 + $0x7e8] sm:$0xff]
    %v3895 = vld [vmem:[#allocation7 + $0x7f0] sm:$0xff]
    %v3896 = vld [vmem:[#allocation7 + $0x7f8] sm:$0xff]
    %v3897 = vld [vmem:[#allocation7 + $0x800] sm:$0xff]
    %v3898 = vld [vmem:[#allocation7 + $0x808] sm:$0xff]
    %v3899 = vld [vmem:[#allocation7 + $0x810] sm:$0xff]
    %v3900 = vld [vmem:[#allocation7 + $0x818] sm:$0xff]
    %v3901 = vld [vmem:[#allocation7 + $0x820] sm:$0xff]
    %v3902 = vld [vmem:[#allocation7 + $0x828] sm:$0xff]
    %v3903 = vld [vmem:[#allocation7 + $0x830] sm:$0xff]
    %v3904 = vld [vmem:[#allocation7 + $0x838] sm:$0xff]
    %v3905 = vld [vmem:[#allocation7 + $0x840] sm:$0xff]
    %v3906 = vld [vmem:[#allocation7 + $0x848] sm:$0xff]
    %v3907 = vld [vmem:[#allocation7 + $0x850] sm:$0xff]
    %v3908 = vld [vmem:[#allocation7 + $0x858] sm:$0xff]
    %v3909 = vld [vmem:[#allocation7 + $0x860] sm:$0xff]
    %v3910 = vld [vmem:[#allocation7 + $0x868] sm:$0xff]
    %v3911 = vld [vmem:[#allocation7 + $0x870] sm:$0xff]
    %v3912 = vld [vmem:[#allocation7 + $0x878] sm:$0xff]
    %v3913 = vld [vmem:[#allocation7 + $0x880] sm:$0xff]
    %v3914 = vld [vmem:[#allocation7 + $0x888] sm:$0xff]
    %v3915 = vld [vmem:[#allocation7 + $0x890] sm:$0xff]
    %v3916 = vld [vmem:[#allocation7 + $0x898] sm:$0xff]
    %v3917 = vld [vmem:[#allocation7 + $0x8a0] sm:$0xff]
    %v3918 = vld [vmem:[#allocation7 + $0x8a8] sm:$0xff]
    %v3919 = vld [vmem:[#allocation7 + $0x8b0] sm:$0xff]
    %v3920 = vld [vmem:[#allocation7 + $0x8b8] sm:$0xff]
    %v3921 = vld [vmem:[#allocation7 + $0x8c0] sm:$0xff]
    %v3922 = vld [vmem:[#allocation7 + $0x8c8] sm:$0xff]
    %v3923 = vld [vmem:[#allocation7 + $0x8d0] sm:$0xff]
    %v3924 = vld [vmem:[#allocation7 + $0x8d8] sm:$0xff]
    %v3925 = vld [vmem:[#allocation7 + $0x8e0] sm:$0xff]
    %v3926 = vld [vmem:[#allocation7 + $0x8e8] sm:$0xff]
    %v3927 = vld [vmem:[#allocation7 + $0x8f0] sm:$0xff]
    %v3928 = vld [vmem:[#allocation7 + $0x8f8] sm:$0xff]
    %v3929 = vld [vmem:[#allocation8] sm:$0x3f]
    %v3931 = vlaneseq
    %v3932 = vshrl.u32 %v3931, 7
    %v3933 = vsub.s32 0, %v3932
    %v3934 = vrot.slane %v3929, %v3933
    %v3935 = vlaneseq
    %v3936 = vshrl.u32 %v3935, 7
    %v3937 = vsub.s32 1, %v3936
    %v3938 = vrot.slane %v3929, %v3937
    %v3939 = vlaneseq
    %v3940 = vshrl.u32 %v3939, 7
    %v3941 = vsub.s32 2, %v3940
    %v3942 = vrot.slane %v3929, %v3941
    %v3943 = vlaneseq
    %v3944 = vshrl.u32 %v3943, 7
    %v3945 = vsub.s32 3, %v3944
    %v3946 = vrot.slane %v3929, %v3945
    %v3947 = vlaneseq
    %v3948 = vshrl.u32 %v3947, 7
    %v3949 = vsub.s32 4, %v3948
    %v3950 = vrot.slane %v3929, %v3949
    %v3951 = vlaneseq
    %v3952 = vshrl.u32 %v3951, 7
    %v3953 = vsub.s32 5, %v3952
    %v3954 = vrot.slane %v3929, %v3953
    %v4249 = vunpack.c.l.b16 %v3641
    %v4250 = vunpack.c.h.b16 %v3641
    %v4251 = vunpack.c.l.b16 %v3642
    %v4252 = vunpack.c.h.b16 %v3642
    %v4253 = vunpack.c.l.b16 %v3643
    %v4254 = vunpack.c.h.b16 %v3643
    %v4255 = vunpack.c.l.b16 %v3644
    %v4256 = vunpack.c.h.b16 %v3644
    %v4257 = vunpack.c.l.b16 %v3645
    %v4258 = vunpack.c.h.b16 %v3645
    %v4259 = vunpack.c.l.b16 %v3646
    %v4260 = vunpack.c.h.b16 %v3646
    %v4261 = vunpack.c.l.b16 %v3647
    %v4262 = vunpack.c.h.b16 %v3647
    %v4263 = vunpack.c.l.b16 %v3648
    %v4264 = vunpack.c.h.b16 %v3648
    %v4265 = vunpack.c.l.b16 %v3649
    %v4266 = vunpack.c.h.b16 %v3649
    %v4267 = vunpack.c.l.b16 %v3650
    %v4268 = vunpack.c.h.b16 %v3650
    %v4269 = vunpack.c.l.b16 %v3651
    %v4270 = vunpack.c.h.b16 %v3651
    %v4271 = vunpack.c.l.b16 %v3652
    %v4272 = vunpack.c.h.b16 %v3652
    %v4273 = vunpack.c.l.b16 %v3653
    %v4274 = vunpack.c.h.b16 %v3653
    %v4275 = vunpack.c.l.b16 %v3654
    %v4276 = vunpack.c.h.b16 %v3654
    %v4277 = vunpack.c.l.b16 %v3655
    %v4278 = vunpack.c.h.b16 %v3655
    %v4279 = vunpack.c.l.b16 %v3656
    %v4280 = vunpack.c.h.b16 %v3656
    %v4281 = vunpack.c.l.b16 %v3657
    %v4282 = vunpack.c.h.b16 %v3657
    %v4283 = vunpack.c.l.b16 %v3658
    %v4284 = vunpack.c.h.b16 %v3658
    %v4285 = vunpack.c.l.b16 %v3659
    %v4286 = vunpack.c.h.b16 %v3659
    %v4287 = vunpack.c.l.b16 %v3660
    %v4288 = vunpack.c.h.b16 %v3660
    %v4289 = vunpack.c.l.b16 %v3661
    %v4290 = vunpack.c.h.b16 %v3661
    %v4291 = vunpack.c.l.b16 %v3662
    %v4292 = vunpack.c.h.b16 %v3662
    %v4293 = vunpack.c.l.b16 %v3663
    %v4294 = vunpack.c.h.b16 %v3663
    %v4295 = vunpack.c.l.b16 %v3664
    %v4296 = vunpack.c.h.b16 %v3664
    %v4297 = vunpack.c.l.b16 %v3665
    %v4298 = vunpack.c.h.b16 %v3665
    %v4299 = vunpack.c.l.b16 %v3666
    %v4300 = vunpack.c.h.b16 %v3666
    %v4301 = vunpack.c.l.b16 %v3667
    %v4302 = vunpack.c.h.b16 %v3667
    %v4303 = vunpack.c.l.b16 %v3668
    %v4304 = vunpack.c.h.b16 %v3668
    %v4305 = vunpack.c.l.b16 %v3669
    %v4306 = vunpack.c.h.b16 %v3669
    %v4307 = vunpack.c.l.b16 %v3670
    %v4308 = vunpack.c.h.b16 %v3670
    %v4309 = vunpack.c.l.b16 %v3671
    %v4310 = vunpack.c.h.b16 %v3671
    %v4311 = vunpack.c.l.b16 %v3672
    %v4312 = vunpack.c.h.b16 %v3672
    %v4313 = vunpack.c.l.b16 %v3673
    %v4314 = vunpack.c.h.b16 %v3673
    %v4315 = vunpack.c.l.b16 %v3674
    %v4316 = vunpack.c.h.b16 %v3674
    %v4317 = vunpack.c.l.b16 %v3675
    %v4318 = vunpack.c.h.b16 %v3675
    %v4319 = vunpack.c.l.b16 %v3676
    %v4320 = vunpack.c.h.b16 %v3676
    %v4321 = vunpack.c.l.b16 %v3677
    %v4322 = vunpack.c.h.b16 %v3677
    %v4323 = vunpack.c.l.b16 %v3678
    %v4324 = vunpack.c.h.b16 %v3678
    %v4325 = vunpack.c.l.b16 %v3679
    %v4326 = vunpack.c.h.b16 %v3679
    %v4327 = vunpack.c.l.b16 %v3680
    %v4328 = vunpack.c.h.b16 %v3680
    %v4329 = vunpack.c.l.b16 %v3681
    %v4330 = vunpack.c.h.b16 %v3681
    %v4331 = vunpack.c.l.b16 %v3682
    %v4332 = vunpack.c.h.b16 %v3682
    %v4333 = vunpack.c.l.b16 %v3683
    %v4334 = vunpack.c.h.b16 %v3683
    %v4335 = vunpack.c.l.b16 %v3684
    %v4336 = vunpack.c.h.b16 %v3684
    %v4337 = vunpack.c.l.b16 %v3685
    %v4338 = vunpack.c.h.b16 %v3685
    %v4339 = vunpack.c.l.b16 %v3686
    %v4340 = vunpack.c.h.b16 %v3686
    %v4341 = vunpack.c.l.b16 %v3687
    %v4342 = vunpack.c.h.b16 %v3687
    %v4343 = vunpack.c.l.b16 %v3688
    %v4344 = vunpack.c.h.b16 %v3688
    %v4345 = vunpack.c.l.b16 %v3689
    %v4346 = vunpack.c.h.b16 %v3689
    %v4347 = vunpack.c.l.b16 %v3690
    %v4348 = vunpack.c.h.b16 %v3690
    %v4349 = vunpack.c.l.b16 %v3691
    %v4350 = vunpack.c.h.b16 %v3691
    %v4351 = vunpack.c.l.b16 %v3692
    %v4352 = vunpack.c.h.b16 %v3692
    %v4353 = vunpack.c.l.b16 %v3693
    %v4354 = vunpack.c.h.b16 %v3693
    %v4355 = vunpack.c.l.b16 %v3694
    %v4356 = vunpack.c.h.b16 %v3694
    %v4357 = vunpack.c.l.b16 %v3695
    %v4358 = vunpack.c.h.b16 %v3695
    %v4359 = vunpack.c.l.b16 %v3696
    %v4360 = vunpack.c.h.b16 %v3696
    %v4361 = vunpack.c.l.b16 %v3697
    %v4362 = vunpack.c.h.b16 %v3697
    %v4363 = vunpack.c.l.b16 %v3698
    %v4364 = vunpack.c.h.b16 %v3698
    %v4365 = vunpack.c.l.b16 %v3699
    %v4366 = vunpack.c.h.b16 %v3699
    %v4367 = vunpack.c.l.b16 %v3700
    %v4368 = vunpack.c.h.b16 %v3700
    %v4369 = vunpack.c.l.b16 %v3701
    %v4370 = vunpack.c.h.b16 %v3701
    %v4371 = vunpack.c.l.b16 %v3702
    %v4372 = vunpack.c.h.b16 %v3702
    %v4373 = vunpack.c.l.b16 %v3703
    %v4374 = vunpack.c.h.b16 %v3703
    %v4375 = vunpack.c.l.b16 %v3704
    %v4376 = vunpack.c.h.b16 %v3704
    %v4377 = vunpack.c.l.b16 %v3705
    %v4378 = vunpack.c.h.b16 %v3705
    %v4379 = vunpack.c.l.b16 %v3706
    %v4380 = vunpack.c.h.b16 %v3706
    %v4381 = vunpack.c.l.b16 %v3707
    %v4382 = vunpack.c.h.b16 %v3707
    %v4383 = vunpack.c.l.b16 %v3708
    %v4384 = vunpack.c.h.b16 %v3708
    %v4385 = vunpack.c.l.b16 %v3709
    %v4386 = vunpack.c.h.b16 %v3709
    %v4387 = vunpack.c.l.b16 %v3710
    %v4388 = vunpack.c.h.b16 %v3710
    %v4389 = vunpack.c.l.b16 %v3711
    %v4390 = vunpack.c.h.b16 %v3711
    %v4391 = vunpack.c.l.b16 %v3712
    %v4392 = vunpack.c.h.b16 %v3712
    %v4393 = vunpack.c.l.b16 %v3713
    %v4394 = vunpack.c.h.b16 %v3713
    %v4395 = vunpack.c.l.b16 %v3714
    %v4396 = vunpack.c.h.b16 %v3714
    %v4397 = vunpack.c.l.b16 %v3715
    %v4398 = vunpack.c.h.b16 %v3715
    %v4399 = vunpack.c.l.b16 %v3716
    %v4400 = vunpack.c.h.b16 %v3716
    %v4401 = vunpack.c.l.b16 %v3717
    %v4402 = vunpack.c.h.b16 %v3717
    %v4403 = vunpack.c.l.b16 %v3718
    %v4404 = vunpack.c.h.b16 %v3718
    %v4405 = vunpack.c.l.b16 %v3719
    %v4406 = vunpack.c.h.b16 %v3719
    %v4407 = vunpack.c.l.b16 %v3720
    %v4408 = vunpack.c.h.b16 %v3720
    %v4409 = vunpack.c.l.b16 %v3721
    %v4410 = vunpack.c.h.b16 %v3721
    %v4411 = vunpack.c.l.b16 %v3722
    %v4412 = vunpack.c.h.b16 %v3722
    %v4413 = vunpack.c.l.b16 %v3723
    %v4414 = vunpack.c.h.b16 %v3723
    %v4415 = vunpack.c.l.b16 %v3724
    %v4416 = vunpack.c.h.b16 %v3724
    %v4417 = vunpack.c.l.b16 %v3725
    %v4418 = vunpack.c.h.b16 %v3725
    %v4419 = vunpack.c.l.b16 %v3726
    %v4420 = vunpack.c.h.b16 %v3726
    %v4421 = vunpack.c.l.b16 %v3727
    %v4422 = vunpack.c.h.b16 %v3727
    %v4423 = vunpack.c.l.b16 %v3728
    %v4424 = vunpack.c.h.b16 %v3728
    %v4425 = vunpack.c.l.b16 %v3729
    %v4426 = vunpack.c.h.b16 %v3729
    %v4427 = vunpack.c.l.b16 %v3730
    %v4428 = vunpack.c.h.b16 %v3730
    %v4429 = vunpack.c.l.b16 %v3731
    %v4430 = vunpack.c.h.b16 %v3731
    %v4431 = vunpack.c.l.b16 %v3732
    %v4432 = vunpack.c.h.b16 %v3732
    %v4433 = vunpack.c.l.b16 %v3733
    %v4434 = vunpack.c.h.b16 %v3733
    %v4435 = vunpack.c.l.b16 %v3734
    %v4436 = vunpack.c.h.b16 %v3734
    %v4437 = vunpack.c.l.b16 %v3735
    %v4438 = vunpack.c.h.b16 %v3735
    %v4439 = vunpack.c.l.b16 %v3736
    %v4440 = vunpack.c.h.b16 %v3736
    %v4441 = vunpack.c.l.b16 %v3737
    %v4442 = vunpack.c.h.b16 %v3737
    %v4443 = vunpack.c.l.b16 %v3738
    %v4444 = vunpack.c.h.b16 %v3738
    %v4445 = vunpack.c.l.b16 %v3739
    %v4446 = vunpack.c.h.b16 %v3739
    %v4447 = vunpack.c.l.b16 %v3740
    %v4448 = vunpack.c.h.b16 %v3740
    %v4449 = vunpack.c.l.b16 %v3741
    %v4450 = vunpack.c.h.b16 %v3741
    %v4451 = vunpack.c.l.b16 %v3742
    %v4452 = vunpack.c.h.b16 %v3742
    %v4453 = vunpack.c.l.b16 %v3743
    %v4454 = vunpack.c.h.b16 %v3743
    %v4455 = vunpack.c.l.b16 %v3744
    %v4456 = vunpack.c.h.b16 %v3744
    %v4457 = vunpack.c.l.b16 %v3745
    %v4458 = vunpack.c.h.b16 %v3745
    %v4459 = vunpack.c.l.b16 %v3746
    %v4460 = vunpack.c.h.b16 %v3746
    %v4461 = vunpack.c.l.b16 %v3747
    %v4462 = vunpack.c.h.b16 %v3747
    %v4463 = vunpack.c.l.b16 %v3748
    %v4464 = vunpack.c.h.b16 %v3748
    %v4465 = vunpack.c.l.b16 %v3749
    %v4466 = vunpack.c.h.b16 %v3749
    %v4467 = vunpack.c.l.b16 %v3750
    %v4468 = vunpack.c.h.b16 %v3750
    %v4469 = vunpack.c.l.b16 %v3751
    %v4470 = vunpack.c.h.b16 %v3751
    %v4471 = vunpack.c.l.b16 %v3752
    %v4472 = vunpack.c.h.b16 %v3752
    %v4473 = vunpack.c.l.b16 %v3753
    %v4474 = vunpack.c.h.b16 %v3753
    %v4475 = vunpack.c.l.b16 %v3754
    %v4476 = vunpack.c.h.b16 %v3754
    %v4477 = vunpack.c.l.b16 %v3755
    %v4478 = vunpack.c.h.b16 %v3755
    %v4479 = vunpack.c.l.b16 %v3756
    %v4480 = vunpack.c.h.b16 %v3756
    %v4481 = vunpack.c.l.b16 %v3757
    %v4482 = vunpack.c.h.b16 %v3757
    %v4483 = vunpack.c.l.b16 %v3758
    %v4484 = vunpack.c.h.b16 %v3758
    %v4485 = vunpack.c.l.b16 %v3759
    %v4486 = vunpack.c.h.b16 %v3759
    %v4487 = vunpack.c.l.b16 %v3760
    %v4488 = vunpack.c.h.b16 %v3760
    %v4489 = vunpack.c.l.b16 %v3761
    %v4490 = vunpack.c.h.b16 %v3761
    %v4491 = vunpack.c.l.b16 %v3762
    %v4492 = vunpack.c.h.b16 %v3762
    %v4493 = vunpack.c.l.b16 %v3763
    %v4494 = vunpack.c.h.b16 %v3763
    %v4495 = vunpack.c.l.b16 %v3764
    %v4496 = vunpack.c.h.b16 %v3764
    %v4497 = vunpack.c.l.b16 %v3765
    %v4498 = vunpack.c.h.b16 %v3765
    %v4499 = vunpack.c.l.b16 %v3766
    %v4500 = vunpack.c.h.b16 %v3766
    %v4501 = vunpack.c.l.b16 %v3767
    %v4502 = vunpack.c.h.b16 %v3767
    %v4503 = vunpack.c.l.b16 %v3768
    %v4504 = vunpack.c.h.b16 %v3768
    %v4505 = vunpack.c.l.b16 %v3769
    %v4506 = vunpack.c.h.b16 %v3769
    %v4507 = vunpack.c.l.b16 %v3770
    %v4508 = vunpack.c.h.b16 %v3770
    %v4509 = vunpack.c.l.b16 %v3771
    %v4510 = vunpack.c.h.b16 %v3771
    %v4511 = vunpack.c.l.b16 %v3772
    %v4512 = vunpack.c.h.b16 %v3772
    %v4513 = vunpack.c.l.b16 %v3773
    %v4514 = vunpack.c.h.b16 %v3773
    %v4515 = vunpack.c.l.b16 %v3774
    %v4516 = vunpack.c.h.b16 %v3774
    %v4517 = vunpack.c.l.b16 %v3775
    %v4518 = vunpack.c.h.b16 %v3775
    %v4519 = vunpack.c.l.b16 %v3776
    %v4520 = vunpack.c.h.b16 %v3776
    %v4521 = vunpack.c.l.b16 %v3777
    %v4522 = vunpack.c.h.b16 %v3777
    %v4523 = vunpack.c.l.b16 %v3778
    %v4524 = vunpack.c.h.b16 %v3778
    %v4525 = vunpack.c.l.b16 %v3779
    %v4526 = vunpack.c.h.b16 %v3779
    %v4527 = vunpack.c.l.b16 %v3780
    %v4528 = vunpack.c.h.b16 %v3780
    %v4529 = vunpack.c.l.b16 %v3781
    %v4530 = vunpack.c.h.b16 %v3781
    %v4531 = vunpack.c.l.b16 %v3782
    %v4532 = vunpack.c.h.b16 %v3782
    %v4533 = vunpack.c.l.b16 %v3783
    %v4534 = vunpack.c.h.b16 %v3783
    %v4535 = vunpack.c.l.b16 %v3784
    %v4536 = vunpack.c.h.b16 %v3784
    %v4537 = vunpack.c.l.b16 %v3785
    %v4538 = vunpack.c.h.b16 %v3785
    %v4539 = vunpack.c.l.b16 %v3786
    %v4540 = vunpack.c.h.b16 %v3786
    %v4541 = vunpack.c.l.b16 %v3787
    %v4542 = vunpack.c.h.b16 %v3787
    %v4543 = vunpack.c.l.b16 %v3788
    %v4544 = vunpack.c.h.b16 %v3788
    %v4545 = vunpack.c.l.b16 %v3789
    %v4546 = vunpack.c.h.b16 %v3789
    %v4547 = vunpack.c.l.b16 %v3790
    %v4548 = vunpack.c.h.b16 %v3790
    %v4549 = vunpack.c.l.b16 %v3791
    %v4550 = vunpack.c.h.b16 %v3791
    %v4551 = vunpack.c.l.b16 %v3792
    %v4552 = vunpack.c.h.b16 %v3792
    %v4553 = vunpack.c.l.b16 %v3793
    %v4554 = vunpack.c.h.b16 %v3793
    %v4555 = vunpack.c.l.b16 %v3794
    %v4556 = vunpack.c.h.b16 %v3794
    %v4557 = vunpack.c.l.b16 %v3795
    %v4558 = vunpack.c.h.b16 %v3795
    %v4559 = vunpack.c.l.b16 %v3796
    %v4560 = vunpack.c.h.b16 %v3796
    %v4561 = vunpack.c.l.b16 %v3797
    %v4562 = vunpack.c.h.b16 %v3797
    %v4563 = vunpack.c.l.b16 %v3798
    %v4564 = vunpack.c.h.b16 %v3798
    %v4565 = vunpack.c.l.b16 %v3799
    %v4566 = vunpack.c.h.b16 %v3799
    %v4567 = vunpack.c.l.b16 %v3800
    %v4568 = vunpack.c.h.b16 %v3800
    %v4569 = vunpack.c.l.b16 %v3801
    %v4570 = vunpack.c.h.b16 %v3801
    %v4571 = vunpack.c.l.b16 %v3802
    %v4572 = vunpack.c.h.b16 %v3802
    %v4573 = vunpack.c.l.b16 %v3803
    %v4574 = vunpack.c.h.b16 %v3803
    %v4575 = vunpack.c.l.b16 %v3804
    %v4576 = vunpack.c.h.b16 %v3804
    %v4577 = vunpack.c.l.b16 %v3805
    %v4578 = vunpack.c.h.b16 %v3805
    %v4579 = vunpack.c.l.b16 %v3806
    %v4580 = vunpack.c.h.b16 %v3806
    %v4581 = vunpack.c.l.b16 %v3807
    %v4582 = vunpack.c.h.b16 %v3807
    %v4583 = vunpack.c.l.b16 %v3808
    %v4584 = vunpack.c.h.b16 %v3808
    %v4585 = vunpack.c.l.b16 %v3809
    %v4586 = vunpack.c.h.b16 %v3809
    %v4587 = vunpack.c.l.b16 %v3810
    %v4588 = vunpack.c.h.b16 %v3810
    %v4589 = vunpack.c.l.b16 %v3811
    %v4590 = vunpack.c.h.b16 %v3811
    %v4591 = vunpack.c.l.b16 %v3812
    %v4592 = vunpack.c.h.b16 %v3812
    %v4593 = vunpack.c.l.b16 %v3813
    %v4594 = vunpack.c.h.b16 %v3813
    %v4595 = vunpack.c.l.b16 %v3814
    %v4596 = vunpack.c.h.b16 %v3814
    %v4597 = vunpack.c.l.b16 %v3815
    %v4598 = vunpack.c.h.b16 %v3815
    %v4599 = vunpack.c.l.b16 %v3816
    %v4600 = vunpack.c.h.b16 %v3816
    %v4601 = vunpack.c.l.b16 %v3817
    %v4602 = vunpack.c.h.b16 %v3817
    %v4603 = vunpack.c.l.b16 %v3818
    %v4604 = vunpack.c.h.b16 %v3818
    %v4605 = vunpack.c.l.b16 %v3819
    %v4606 = vunpack.c.h.b16 %v3819
    %v4607 = vunpack.c.l.b16 %v3820
    %v4608 = vunpack.c.h.b16 %v3820
    %v4609 = vunpack.c.l.b16 %v3821
    %v4610 = vunpack.c.h.b16 %v3821
    %v4611 = vunpack.c.l.b16 %v3822
    %v4612 = vunpack.c.h.b16 %v3822
    %v4613 = vunpack.c.l.b16 %v3823
    %v4614 = vunpack.c.h.b16 %v3823
    %v4615 = vunpack.c.l.b16 %v3824
    %v4616 = vunpack.c.h.b16 %v3824
    %v4617 = vunpack.c.l.b16 %v3825
    %v4618 = vunpack.c.h.b16 %v3825
    %v4619 = vunpack.c.l.b16 %v3826
    %v4620 = vunpack.c.h.b16 %v3826
    %v4621 = vunpack.c.l.b16 %v3827
    %v4622 = vunpack.c.h.b16 %v3827
    %v4623 = vunpack.c.l.b16 %v3828
    %v4624 = vunpack.c.h.b16 %v3828
    %v4625 = vunpack.c.l.b16 %v3829
    %v4626 = vunpack.c.h.b16 %v3829
    %v4627 = vunpack.c.l.b16 %v3830
    %v4628 = vunpack.c.h.b16 %v3830
    %v4629 = vunpack.c.l.b16 %v3831
    %v4630 = vunpack.c.h.b16 %v3831
    %v4631 = vunpack.c.l.b16 %v3832
    %v4632 = vunpack.c.h.b16 %v3832
    %v4633 = vunpack.c.l.b16 %v3833
    %v4634 = vunpack.c.h.b16 %v3833
    %v4635 = vunpack.c.l.b16 %v3834
    %v4636 = vunpack.c.h.b16 %v3834
    %v4637 = vunpack.c.l.b16 %v3835
    %v4638 = vunpack.c.h.b16 %v3835
    %v4639 = vunpack.c.l.b16 %v3836
    %v4640 = vunpack.c.h.b16 %v3836
    %v4641 = vunpack.c.l.b16 %v3837
    %v4642 = vunpack.c.h.b16 %v3837
    %v4643 = vunpack.c.l.b16 %v3838
    %v4644 = vunpack.c.h.b16 %v3838
    %v4645 = vunpack.c.l.b16 %v3839
    %v4646 = vunpack.c.h.b16 %v3839
    %v4647 = vunpack.c.l.b16 %v3840
    %v4648 = vunpack.c.h.b16 %v3840
    %v4649 = vunpack.c.l.b16 %v3841
    %v4650 = vunpack.c.h.b16 %v3841
    %v4651 = vunpack.c.l.b16 %v3842
    %v4652 = vunpack.c.h.b16 %v3842
    %v4653 = vunpack.c.l.b16 %v3843
    %v4654 = vunpack.c.h.b16 %v3843
    %v4655 = vunpack.c.l.b16 %v3844
    %v4656 = vunpack.c.h.b16 %v3844
    %v4657 = vunpack.c.l.b16 %v3845
    %v4658 = vunpack.c.h.b16 %v3845
    %v4659 = vunpack.c.l.b16 %v3846
    %v4660 = vunpack.c.h.b16 %v3846
    %v4661 = vunpack.c.l.b16 %v3847
    %v4662 = vunpack.c.h.b16 %v3847
    %v4663 = vunpack.c.l.b16 %v3848
    %v4664 = vunpack.c.h.b16 %v3848
    %v4665 = vunpack.c.l.b16 %v3849
    %v4666 = vunpack.c.h.b16 %v3849
    %v4667 = vunpack.c.l.b16 %v3850
    %v4668 = vunpack.c.h.b16 %v3850
    %v4669 = vunpack.c.l.b16 %v3851
    %v4670 = vunpack.c.h.b16 %v3851
    %v4671 = vunpack.c.l.b16 %v3852
    %v4672 = vunpack.c.h.b16 %v3852
    %v4673 = vunpack.c.l.b16 %v3853
    %v4674 = vunpack.c.h.b16 %v3853
    %v4675 = vunpack.c.l.b16 %v3854
    %v4676 = vunpack.c.h.b16 %v3854
    %v4677 = vunpack.c.l.b16 %v3855
    %v4678 = vunpack.c.h.b16 %v3855
    %v4679 = vunpack.c.l.b16 %v3856
    %v4680 = vunpack.c.h.b16 %v3856
    %v4681 = vunpack.c.l.b16 %v3857
    %v4682 = vunpack.c.h.b16 %v3857
    %v4683 = vunpack.c.l.b16 %v3858
    %v4684 = vunpack.c.h.b16 %v3858
    %v4685 = vunpack.c.l.b16 %v3859
    %v4686 = vunpack.c.h.b16 %v3859
    %v4687 = vunpack.c.l.b16 %v3860
    %v4688 = vunpack.c.h.b16 %v3860
    %v4689 = vunpack.c.l.b16 %v3861
    %v4690 = vunpack.c.h.b16 %v3861
    %v4691 = vunpack.c.l.b16 %v3862
    %v4692 = vunpack.c.h.b16 %v3862
    %v4693 = vunpack.c.l.b16 %v3863
    %v4694 = vunpack.c.h.b16 %v3863
    %v4695 = vunpack.c.l.b16 %v3864
    %v4696 = vunpack.c.h.b16 %v3864
    %v4697 = vunpack.c.l.b16 %v3865
    %v4698 = vunpack.c.h.b16 %v3865
    %v4699 = vunpack.c.l.b16 %v3866
    %v4700 = vunpack.c.h.b16 %v3866
    %v4701 = vunpack.c.l.b16 %v3867
    %v4702 = vunpack.c.h.b16 %v3867
    %v4703 = vunpack.c.l.b16 %v3868
    %v4704 = vunpack.c.h.b16 %v3868
    %v4705 = vunpack.c.l.b16 %v3869
    %v4706 = vunpack.c.h.b16 %v3869
    %v4707 = vunpack.c.l.b16 %v3870
    %v4708 = vunpack.c.h.b16 %v3870
    %v4709 = vunpack.c.l.b16 %v3871
    %v4710 = vunpack.c.h.b16 %v3871
    %v4711 = vunpack.c.l.b16 %v3872
    %v4712 = vunpack.c.h.b16 %v3872
    %v4713 = vunpack.c.l.b16 %v3873
    %v4714 = vunpack.c.h.b16 %v3873
    %v4715 = vunpack.c.l.b16 %v3874
    %v4716 = vunpack.c.h.b16 %v3874
    %v4717 = vunpack.c.l.b16 %v3875
    %v4718 = vunpack.c.h.b16 %v3875
    %v4719 = vunpack.c.l.b16 %v3876
    %v4720 = vunpack.c.h.b16 %v3876
    %v4721 = vunpack.c.l.b16 %v3877
    %v4722 = vunpack.c.h.b16 %v3877
    %v4723 = vunpack.c.l.b16 %v3878
    %v4724 = vunpack.c.h.b16 %v3878
    %v4725 = vunpack.c.l.b16 %v3879
    %v4726 = vunpack.c.h.b16 %v3879
    %v4727 = vunpack.c.l.b16 %v3880
    %v4728 = vunpack.c.h.b16 %v3880
    %v4729 = vunpack.c.l.b16 %v3881
    %v4730 = vunpack.c.h.b16 %v3881
    %v4731 = vunpack.c.l.b16 %v3882
    %v4732 = vunpack.c.h.b16 %v3882
    %v4733 = vunpack.c.l.b16 %v3883
    %v4734 = vunpack.c.h.b16 %v3883
    %v4735 = vunpack.c.l.b16 %v3884
    %v4736 = vunpack.c.h.b16 %v3884
    %v4737 = vunpack.c.l.b16 %v3885
    %v4738 = vunpack.c.h.b16 %v3885
    %v4739 = vunpack.c.l.b16 %v3886
    %v4740 = vunpack.c.h.b16 %v3886
    %v4741 = vunpack.c.l.b16 %v3887
    %v4742 = vunpack.c.h.b16 %v3887
    %v4743 = vunpack.c.l.b16 %v3888
    %v4744 = vunpack.c.h.b16 %v3888
    %v4745 = vunpack.c.l.b16 %v3889
    %v4746 = vunpack.c.h.b16 %v3889
    %v4747 = vunpack.c.l.b16 %v3890
    %v4748 = vunpack.c.h.b16 %v3890
    %v4749 = vunpack.c.l.b16 %v3891
    %v4750 = vunpack.c.h.b16 %v3891
    %v4751 = vunpack.c.l.b16 %v3892
    %v4752 = vunpack.c.h.b16 %v3892
    %v4753 = vunpack.c.l.b16 %v3893
    %v4754 = vunpack.c.h.b16 %v3893
    %v4755 = vunpack.c.l.b16 %v3894
    %v4756 = vunpack.c.h.b16 %v3894
    %v4757 = vunpack.c.l.b16 %v3895
    %v4758 = vunpack.c.h.b16 %v3895
    %v4759 = vunpack.c.l.b16 %v3896
    %v4760 = vunpack.c.h.b16 %v3896
    %v4761 = vunpack.c.l.b16 %v3897
    %v4762 = vunpack.c.h.b16 %v3897
    %v4763 = vunpack.c.l.b16 %v3898
    %v4764 = vunpack.c.h.b16 %v3898
    %v4765 = vunpack.c.l.b16 %v3899
    %v4766 = vunpack.c.h.b16 %v3899
    %v4767 = vunpack.c.l.b16 %v3900
    %v4768 = vunpack.c.h.b16 %v3900
    %v4769 = vunpack.c.l.b16 %v3901
    %v4770 = vunpack.c.h.b16 %v3901
    %v4771 = vunpack.c.l.b16 %v3902
    %v4772 = vunpack.c.h.b16 %v3902
    %v4773 = vunpack.c.l.b16 %v3903
    %v4774 = vunpack.c.h.b16 %v3903
    %v4775 = vunpack.c.l.b16 %v3904
    %v4776 = vunpack.c.h.b16 %v3904
    %v4777 = vunpack.c.l.b16 %v3905
    %v4778 = vunpack.c.h.b16 %v3905
    %v4779 = vunpack.c.l.b16 %v3906
    %v4780 = vunpack.c.h.b16 %v3906
    %v4781 = vunpack.c.l.b16 %v3907
    %v4782 = vunpack.c.h.b16 %v3907
    %v4783 = vunpack.c.l.b16 %v3908
    %v4784 = vunpack.c.h.b16 %v3908
    %v4785 = vunpack.c.l.b16 %v3909
    %v4786 = vunpack.c.h.b16 %v3909
    %v4787 = vunpack.c.l.b16 %v3910
    %v4788 = vunpack.c.h.b16 %v3910
    %v4789 = vunpack.c.l.b16 %v3911
    %v4790 = vunpack.c.h.b16 %v3911
    %v4791 = vunpack.c.l.b16 %v3912
    %v4792 = vunpack.c.h.b16 %v3912
    %v4793 = vunpack.c.l.b16 %v3913
    %v4794 = vunpack.c.h.b16 %v3913
    %v4795 = vunpack.c.l.b16 %v3914
    %v4796 = vunpack.c.h.b16 %v3914
    %v4797 = vunpack.c.l.b16 %v3915
    %v4798 = vunpack.c.h.b16 %v3915
    %v4799 = vunpack.c.l.b16 %v3916
    %v4800 = vunpack.c.h.b16 %v3916
    %v4801 = vunpack.c.l.b16 %v3917
    %v4802 = vunpack.c.h.b16 %v3917
    %v4803 = vunpack.c.l.b16 %v3918
    %v4804 = vunpack.c.h.b16 %v3918
    %v4805 = vunpack.c.l.b16 %v3919
    %v4806 = vunpack.c.h.b16 %v3919
    %v4807 = vunpack.c.l.b16 %v3920
    %v4808 = vunpack.c.h.b16 %v3920
    %v4809 = vunpack.c.l.b16 %v3921
    %v4810 = vunpack.c.h.b16 %v3921
    %v4811 = vunpack.c.l.b16 %v3922
    %v4812 = vunpack.c.h.b16 %v3922
    %v4813 = vunpack.c.l.b16 %v3923
    %v4814 = vunpack.c.h.b16 %v3923
    %v4815 = vunpack.c.l.b16 %v3924
    %v4816 = vunpack.c.h.b16 %v3924
    %v4817 = vunpack.c.l.b16 %v3925
    %v4818 = vunpack.c.h.b16 %v3925
    %v4819 = vunpack.c.l.b16 %v3926
    %v4820 = vunpack.c.h.b16 %v3926
    %v4821 = vunpack.c.l.b16 %v3927
    %v4822 = vunpack.c.h.b16 %v3927
    %v4823 = vunpack.c.l.b16 %v3928
    %v4824 = vunpack.c.h.b16 %v3928
    %v4825 = vpack.c.b16 %v4255, %v4249
    %v4826 = vpack.c.b16 %v4256, %v4250
    %v4827 = vpack.c.b16 %v4257, %v4251
    %v4828 = vpack.c.b16 %v4258, %v4252
    %v4829 = vpack.c.b16 %v4259, %v4253
    %v4830 = vpack.c.b16 %v4260, %v4254
    %v4831 = vpack.c.b16 %v4267, %v4261
    %v4832 = vpack.c.b16 %v4268, %v4262
    %v4833 = vpack.c.b16 %v4269, %v4263
    %v4834 = vpack.c.b16 %v4270, %v4264
    %v4835 = vpack.c.b16 %v4271, %v4265
    %v4836 = vpack.c.b16 %v4272, %v4266
    %v4837 = vpack.c.b16 %v4279, %v4273
    %v4838 = vpack.c.b16 %v4280, %v4274
    %v4839 = vpack.c.b16 %v4281, %v4275
    %v4840 = vpack.c.b16 %v4282, %v4276
    %v4841 = vpack.c.b16 %v4283, %v4277
    %v4842 = vpack.c.b16 %v4284, %v4278
    %v4843 = vpack.c.b16 %v4291, %v4285
    %v4844 = vpack.c.b16 %v4292, %v4286
    %v4845 = vpack.c.b16 %v4293, %v4287
    %v4846 = vpack.c.b16 %v4294, %v4288
    %v4847 = vpack.c.b16 %v4295, %v4289
    %v4848 = vpack.c.b16 %v4296, %v4290
    %v4849 = vpack.c.b16 %v4303, %v4297
    %v4850 = vpack.c.b16 %v4304, %v4298
    %v4851 = vpack.c.b16 %v4305, %v4299
    %v4852 = vpack.c.b16 %v4306, %v4300
    %v4853 = vpack.c.b16 %v4307, %v4301
    %v4854 = vpack.c.b16 %v4308, %v4302
    %v4855 = vpack.c.b16 %v4315, %v4309
    %v4856 = vpack.c.b16 %v4316, %v4310
    %v4857 = vpack.c.b16 %v4317, %v4311
    %v4858 = vpack.c.b16 %v4318, %v4312
    %v4859 = vpack.c.b16 %v4319, %v4313
    %v4860 = vpack.c.b16 %v4320, %v4314
    %v4861 = vpack.c.b16 %v4327, %v4321
    %v4862 = vpack.c.b16 %v4328, %v4322
    %v4863 = vpack.c.b16 %v4329, %v4323
    %v4864 = vpack.c.b16 %v4330, %v4324
    %v4865 = vpack.c.b16 %v4331, %v4325
    %v4866 = vpack.c.b16 %v4332, %v4326
    %v4867 = vpack.c.b16 %v4339, %v4333
    %v4868 = vpack.c.b16 %v4340, %v4334
    %v4869 = vpack.c.b16 %v4341, %v4335
    %v4870 = vpack.c.b16 %v4342, %v4336
    %v4871 = vpack.c.b16 %v4343, %v4337
    %v4872 = vpack.c.b16 %v4344, %v4338
    %v4873 = vpack.c.b16 %v4351, %v4345
    %v4874 = vpack.c.b16 %v4352, %v4346
    %v4875 = vpack.c.b16 %v4353, %v4347
    %v4876 = vpack.c.b16 %v4354, %v4348
    %v4877 = vpack.c.b16 %v4355, %v4349
    %v4878 = vpack.c.b16 %v4356, %v4350
    %v4879 = vpack.c.b16 %v4363, %v4357
    %v4880 = vpack.c.b16 %v4364, %v4358
    %v4881 = vpack.c.b16 %v4365, %v4359
    %v4882 = vpack.c.b16 %v4366, %v4360
    %v4883 = vpack.c.b16 %v4367, %v4361
    %v4884 = vpack.c.b16 %v4368, %v4362
    %v4885 = vpack.c.b16 %v4375, %v4369
    %v4886 = vpack.c.b16 %v4376, %v4370
    %v4887 = vpack.c.b16 %v4377, %v4371
    %v4888 = vpack.c.b16 %v4378, %v4372
    %v4889 = vpack.c.b16 %v4379, %v4373
    %v4890 = vpack.c.b16 %v4380, %v4374
    %v4891 = vpack.c.b16 %v4387, %v4381
    %v4892 = vpack.c.b16 %v4388, %v4382
    %v4893 = vpack.c.b16 %v4389, %v4383
    %v4894 = vpack.c.b16 %v4390, %v4384
    %v4895 = vpack.c.b16 %v4391, %v4385
    %v4896 = vpack.c.b16 %v4392, %v4386
    %v4897 = vpack.c.b16 %v4399, %v4393
    %v4898 = vpack.c.b16 %v4400, %v4394
    %v4899 = vpack.c.b16 %v4401, %v4395
    %v4900 = vpack.c.b16 %v4402, %v4396
    %v4901 = vpack.c.b16 %v4403, %v4397
    %v4902 = vpack.c.b16 %v4404, %v4398
    %v4903 = vpack.c.b16 %v4411, %v4405
    %v4904 = vpack.c.b16 %v4412, %v4406
    %v4905 = vpack.c.b16 %v4413, %v4407
    %v4906 = vpack.c.b16 %v4414, %v4408
    %v4907 = vpack.c.b16 %v4415, %v4409
    %v4908 = vpack.c.b16 %v4416, %v4410
    %v4909 = vpack.c.b16 %v4423, %v4417
    %v4910 = vpack.c.b16 %v4424, %v4418
    %v4911 = vpack.c.b16 %v4425, %v4419
    %v4912 = vpack.c.b16 %v4426, %v4420
    %v4913 = vpack.c.b16 %v4427, %v4421
    %v4914 = vpack.c.b16 %v4428, %v4422
    %v4915 = vpack.c.b16 %v4435, %v4429
    %v4916 = vpack.c.b16 %v4436, %v4430
    %v4917 = vpack.c.b16 %v4437, %v4431
    %v4918 = vpack.c.b16 %v4438, %v4432
    %v4919 = vpack.c.b16 %v4439, %v4433
    %v4920 = vpack.c.b16 %v4440, %v4434
    %v4921 = vpack.c.b16 %v4447, %v4441
    %v4922 = vpack.c.b16 %v4448, %v4442
    %v4923 = vpack.c.b16 %v4449, %v4443
    %v4924 = vpack.c.b16 %v4450, %v4444
    %v4925 = vpack.c.b16 %v4451, %v4445
    %v4926 = vpack.c.b16 %v4452, %v4446
    %v4927 = vpack.c.b16 %v4459, %v4453
    %v4928 = vpack.c.b16 %v4460, %v4454
    %v4929 = vpack.c.b16 %v4461, %v4455
    %v4930 = vpack.c.b16 %v4462, %v4456
    %v4931 = vpack.c.b16 %v4463, %v4457
    %v4932 = vpack.c.b16 %v4464, %v4458
    %v4933 = vpack.c.b16 %v4471, %v4465
    %v4934 = vpack.c.b16 %v4472, %v4466
    %v4935 = vpack.c.b16 %v4473, %v4467
    %v4936 = vpack.c.b16 %v4474, %v4468
    %v4937 = vpack.c.b16 %v4475, %v4469
    %v4938 = vpack.c.b16 %v4476, %v4470
    %v4939 = vpack.c.b16 %v4483, %v4477
    %v4940 = vpack.c.b16 %v4484, %v4478
    %v4941 = vpack.c.b16 %v4485, %v4479
    %v4942 = vpack.c.b16 %v4486, %v4480
    %v4943 = vpack.c.b16 %v4487, %v4481
    %v4944 = vpack.c.b16 %v4488, %v4482
    %v4945 = vpack.c.b16 %v4495, %v4489
    %v4946 = vpack.c.b16 %v4496, %v4490
    %v4947 = vpack.c.b16 %v4497, %v4491
    %v4948 = vpack.c.b16 %v4498, %v4492
    %v4949 = vpack.c.b16 %v4499, %v4493
    %v4950 = vpack.c.b16 %v4500, %v4494
    %v4951 = vpack.c.b16 %v4507, %v4501
    %v4952 = vpack.c.b16 %v4508, %v4502
    %v4953 = vpack.c.b16 %v4509, %v4503
    %v4954 = vpack.c.b16 %v4510, %v4504
    %v4955 = vpack.c.b16 %v4511, %v4505
    %v4956 = vpack.c.b16 %v4512, %v4506
    %v4957 = vpack.c.b16 %v4519, %v4513
    %v4958 = vpack.c.b16 %v4520, %v4514
    %v4959 = vpack.c.b16 %v4521, %v4515
    %v4960 = vpack.c.b16 %v4522, %v4516
    %v4961 = vpack.c.b16 %v4523, %v4517
    %v4962 = vpack.c.b16 %v4524, %v4518
    %v4963 = vpack.c.b16 %v4531, %v4525
    %v4964 = vpack.c.b16 %v4532, %v4526
    %v4965 = vpack.c.b16 %v4533, %v4527
    %v4966 = vpack.c.b16 %v4534, %v4528
    %v4967 = vpack.c.b16 %v4535, %v4529
    %v4968 = vpack.c.b16 %v4536, %v4530
    %v4969 = vpack.c.b16 %v4543, %v4537
    %v4970 = vpack.c.b16 %v4544, %v4538
    %v4971 = vpack.c.b16 %v4545, %v4539
    %v4972 = vpack.c.b16 %v4546, %v4540
    %v4973 = vpack.c.b16 %v4547, %v4541
    %v4974 = vpack.c.b16 %v4548, %v4542
    %v4975 = vpack.c.b16 %v4555, %v4549
    %v4976 = vpack.c.b16 %v4556, %v4550
    %v4977 = vpack.c.b16 %v4557, %v4551
    %v4978 = vpack.c.b16 %v4558, %v4552
    %v4979 = vpack.c.b16 %v4559, %v4553
    %v4980 = vpack.c.b16 %v4560, %v4554
    %v4981 = vpack.c.b16 %v4567, %v4561
    %v4982 = vpack.c.b16 %v4568, %v4562
    %v4983 = vpack.c.b16 %v4569, %v4563
    %v4984 = vpack.c.b16 %v4570, %v4564
    %v4985 = vpack.c.b16 %v4571, %v4565
    %v4986 = vpack.c.b16 %v4572, %v4566
    %v4987 = vpack.c.b16 %v4579, %v4573
    %v4988 = vpack.c.b16 %v4580, %v4574
    %v4989 = vpack.c.b16 %v4581, %v4575
    %v4990 = vpack.c.b16 %v4582, %v4576
    %v4991 = vpack.c.b16 %v4583, %v4577
    %v4992 = vpack.c.b16 %v4584, %v4578
    %v4993 = vpack.c.b16 %v4591, %v4585
    %v4994 = vpack.c.b16 %v4592, %v4586
    %v4995 = vpack.c.b16 %v4593, %v4587
    %v4996 = vpack.c.b16 %v4594, %v4588
    %v4997 = vpack.c.b16 %v4595, %v4589
    %v4998 = vpack.c.b16 %v4596, %v4590
    %v4999 = vpack.c.b16 %v4603, %v4597
    %v5000 = vpack.c.b16 %v4604, %v4598
    %v5001 = vpack.c.b16 %v4605, %v4599
    %v5002 = vpack.c.b16 %v4606, %v4600
    %v5003 = vpack.c.b16 %v4607, %v4601
    %v5004 = vpack.c.b16 %v4608, %v4602
    %v5005 = vpack.c.b16 %v4615, %v4609
    %v5006 = vpack.c.b16 %v4616, %v4610
    %v5007 = vpack.c.b16 %v4617, %v4611
    %v5008 = vpack.c.b16 %v4618, %v4612
    %v5009 = vpack.c.b16 %v4619, %v4613
    %v5010 = vpack.c.b16 %v4620, %v4614
    %v5011 = vpack.c.b16 %v4627, %v4621
    %v5012 = vpack.c.b16 %v4628, %v4622
    %v5013 = vpack.c.b16 %v4629, %v4623
    %v5014 = vpack.c.b16 %v4630, %v4624
    %v5015 = vpack.c.b16 %v4631, %v4625
    %v5016 = vpack.c.b16 %v4632, %v4626
    %v5017 = vpack.c.b16 %v4639, %v4633
    %v5018 = vpack.c.b16 %v4640, %v4634
    %v5019 = vpack.c.b16 %v4641, %v4635
    %v5020 = vpack.c.b16 %v4642, %v4636
    %v5021 = vpack.c.b16 %v4643, %v4637
    %v5022 = vpack.c.b16 %v4644, %v4638
    %v5023 = vpack.c.b16 %v4651, %v4645
    %v5024 = vpack.c.b16 %v4652, %v4646
    %v5025 = vpack.c.b16 %v4653, %v4647
    %v5026 = vpack.c.b16 %v4654, %v4648
    %v5027 = vpack.c.b16 %v4655, %v4649
    %v5028 = vpack.c.b16 %v4656, %v4650
    %v5029 = vpack.c.b16 %v4663, %v4657
    %v5030 = vpack.c.b16 %v4664, %v4658
    %v5031 = vpack.c.b16 %v4665, %v4659
    %v5032 = vpack.c.b16 %v4666, %v4660
    %v5033 = vpack.c.b16 %v4667, %v4661
    %v5034 = vpack.c.b16 %v4668, %v4662
    %v5035 = vpack.c.b16 %v4675, %v4669
    %v5036 = vpack.c.b16 %v4676, %v4670
    %v5037 = vpack.c.b16 %v4677, %v4671
    %v5038 = vpack.c.b16 %v4678, %v4672
    %v5039 = vpack.c.b16 %v4679, %v4673
    %v5040 = vpack.c.b16 %v4680, %v4674
    %v5041 = vpack.c.b16 %v4687, %v4681
    %v5042 = vpack.c.b16 %v4688, %v4682
    %v5043 = vpack.c.b16 %v4689, %v4683
    %v5044 = vpack.c.b16 %v4690, %v4684
    %v5045 = vpack.c.b16 %v4691, %v4685
    %v5046 = vpack.c.b16 %v4692, %v4686
    %v5047 = vpack.c.b16 %v4699, %v4693
    %v5048 = vpack.c.b16 %v4700, %v4694
    %v5049 = vpack.c.b16 %v4701, %v4695
    %v5050 = vpack.c.b16 %v4702, %v4696
    %v5051 = vpack.c.b16 %v4703, %v4697
    %v5052 = vpack.c.b16 %v4704, %v4698
    %v5053 = vpack.c.b16 %v4711, %v4705
    %v5054 = vpack.c.b16 %v4712, %v4706
    %v5055 = vpack.c.b16 %v4713, %v4707
    %v5056 = vpack.c.b16 %v4714, %v4708
    %v5057 = vpack.c.b16 %v4715, %v4709
    %v5058 = vpack.c.b16 %v4716, %v4710
    %v5059 = vpack.c.b16 %v4723, %v4717
    %v5060 = vpack.c.b16 %v4724, %v4718
    %v5061 = vpack.c.b16 %v4725, %v4719
    %v5062 = vpack.c.b16 %v4726, %v4720
    %v5063 = vpack.c.b16 %v4727, %v4721
    %v5064 = vpack.c.b16 %v4728, %v4722
    %v5065 = vpack.c.b16 %v4735, %v4729
    %v5066 = vpack.c.b16 %v4736, %v4730
    %v5067 = vpack.c.b16 %v4737, %v4731
    %v5068 = vpack.c.b16 %v4738, %v4732
    %v5069 = vpack.c.b16 %v4739, %v4733
    %v5070 = vpack.c.b16 %v4740, %v4734
    %v5071 = vpack.c.b16 %v4747, %v4741
    %v5072 = vpack.c.b16 %v4748, %v4742
    %v5073 = vpack.c.b16 %v4749, %v4743
    %v5074 = vpack.c.b16 %v4750, %v4744
    %v5075 = vpack.c.b16 %v4751, %v4745
    %v5076 = vpack.c.b16 %v4752, %v4746
    %v5077 = vpack.c.b16 %v4759, %v4753
    %v5078 = vpack.c.b16 %v4760, %v4754
    %v5079 = vpack.c.b16 %v4761, %v4755
    %v5080 = vpack.c.b16 %v4762, %v4756
    %v5081 = vpack.c.b16 %v4763, %v4757
    %v5082 = vpack.c.b16 %v4764, %v4758
    %v5083 = vpack.c.b16 %v4771, %v4765
    %v5084 = vpack.c.b16 %v4772, %v4766
    %v5085 = vpack.c.b16 %v4773, %v4767
    %v5086 = vpack.c.b16 %v4774, %v4768
    %v5087 = vpack.c.b16 %v4775, %v4769
    %v5088 = vpack.c.b16 %v4776, %v4770
    %v5089 = vpack.c.b16 %v4783, %v4777
    %v5090 = vpack.c.b16 %v4784, %v4778
    %v5091 = vpack.c.b16 %v4785, %v4779
    %v5092 = vpack.c.b16 %v4786, %v4780
    %v5093 = vpack.c.b16 %v4787, %v4781
    %v5094 = vpack.c.b16 %v4788, %v4782
    %v5095 = vpack.c.b16 %v4795, %v4789
    %v5096 = vpack.c.b16 %v4796, %v4790
    %v5097 = vpack.c.b16 %v4797, %v4791
    %v5098 = vpack.c.b16 %v4798, %v4792
    %v5099 = vpack.c.b16 %v4799, %v4793
    %v5100 = vpack.c.b16 %v4800, %v4794
    %v5101 = vpack.c.b16 %v4807, %v4801
    %v5102 = vpack.c.b16 %v4808, %v4802
    %v5103 = vpack.c.b16 %v4809, %v4803
    %v5104 = vpack.c.b16 %v4810, %v4804
    %v5105 = vpack.c.b16 %v4811, %v4805
    %v5106 = vpack.c.b16 %v4812, %v4806
    %v5107 = vpack.c.b16 %v4819, %v4813
    %v5108 = vpack.c.b16 %v4820, %v4814
    %v5109 = vpack.c.b16 %v4821, %v4815
    %v5110 = vpack.c.b16 %v4822, %v4816
    %v5111 = vpack.c.b16 %v4823, %v4817
    %v5112 = vpack.c.b16 %v4824, %v4818
    %5401 = vmatprep.subr.bf16.mxu0 %v4826
    %5402 = vmatpush1.bf16.msra.mxu0 %v4825
    %5403 = vmatprep.subr.bf16.mxu0 %v4832
    %5404 = vmatpush1.bf16.msra.mxu0 %v4831
    %5405 = vmatprep.subr.bf16.mxu0 %v4838
    %5406 = vmatpush1.bf16.msra.mxu0 %v4837
    %5407 = vmatprep.subr.bf16.mxu0 %v4844
    %5408 = vmatpush1.bf16.msra.mxu0 %v4843
    %5409 = vmatprep.subr.bf16.mxu0 %v4850
    %5410 = vmatpush1.bf16.msra.mxu0 %v4849
    %5411 = vmatprep.subr.bf16.mxu0 %v4856
    %5412 = vmatpush1.bf16.msra.mxu0 %v4855
    %5413 = vmatprep.subr.bf16.mxu0 %v4862
    %5414 = vmatpush1.bf16.msra.mxu0 %v4861
    %5415 = vmatprep.subr.bf16.mxu0 %v4868
    %5416 = vmatpush1.bf16.msra.mxu0 %v4867
    %5417 = vmatprep.subr.bf16.mxu0 %v4874
    %5418 = vmatpush1.bf16.msra.mxu0 %v4873
    %5419 = vmatprep.subr.bf16.mxu0 %v4880
    %5420 = vmatpush1.bf16.msra.mxu0 %v4879
    %5421 = vmatprep.subr.bf16.mxu0 %v4886
    %5422 = vmatpush1.bf16.msra.mxu0 %v4885
    %5423 = vmatprep.subr.bf16.mxu0 %v4892
    %5424 = vmatpush1.bf16.msra.mxu0 %v4891
    %5425 = vmatprep.subr.bf16.mxu0 %v4898
    %5426 = vmatpush1.bf16.msra.mxu0 %v4897
    %5427 = vmatprep.subr.bf16.mxu0 %v4904
    %5428 = vmatpush1.bf16.msra.mxu0 %v4903
    %5429 = vmatprep.subr.bf16.mxu0 %v4910
    %5430 = vmatpush1.bf16.msra.mxu0 %v4909
    %5431 = vmatprep.subr.bf16.mxu0 %v4916
    %5432 = vmatpush1.bf16.msra.mxu0 %v4915
    %5433 = vmatprep.mubr.bf16.mxu0 %v3594
    %5434 = vmatmul.mubr.bf16.gmra.mrb[0].mxu0 %v3593
    %v5435 = vpop.f32.mrb[0].mxu0
    %v5436 = vadd.f32 %v3934, %v5435
    %v5437 = vpop.f32.mrb[0].mxu0
    %v5438 = vadd.f32 %v3938, %v5437
    %v5439 = vpop.f32.mrb[0].mxu0
    %v5440 = vadd.f32 %v3934, %v5439
    %v5441 = vpop.f32.mrb[0].mxu0
    %v5442 = vadd.f32 %v3938, %v5441
    %5443 = vmatprep.mubr.bf16.mxu0 %v3600
    %5444 = vmatmul.mubr.bf16.gmra.mrb[0].mxu0 %v3599
    %v5445 = vpop.f32.mrb[0].mxu0
    %v5446 = vadd.f32 %v3934, %v5445
    %v5447 = vpop.f32.mrb[0].mxu0
    %v5448 = vadd.f32 %v3938, %v5447
    %v5449 = vpop.f32.mrb[0].mxu0
    %v5450 = vadd.f32 %v3934, %v5449
    %v5451 = vpop.f32.mrb[0].mxu0
    %v5452 = vadd.f32 %v3938, %v5451
    %5453 = vmatprep.mubr.bf16.mxu0 %v3606
    %5454 = vmatmul.mubr.bf16.gmra.mrb[0].mxu0 %v3605
    %v5455 = vpop.f32.mrb[0].mxu0
    %v5456 = vadd.f32 %v3934, %v5455
    %v5457 = vpop.f32.mrb[0].mxu0
    %v5458 = vadd.f32 %v3938, %v5457
    %v5459 = vpop.f32.mrb[0].mxu0
    %v5460 = vadd.f32 %v3934, %v5459
    %v5461 = vpop.f32.mrb[0].mxu0
    %v5462 = vadd.f32 %v3938, %v5461
    %5463 = vmatprep.mubr.bf16.mxu0 %v3612
    %5464 = vmatmul.mubr.bf16.gmra.mrb[0].mxu0 %v3611
    %v5465 = vpop.f32.mrb[0].mxu0
    %v5466 = vadd.f32 %v3934, %v5465
    %v5467 = vpop.f32.mrb[0].mxu0
    %v5468 = vadd.f32 %v3938, %v5467
    %v5469 = vpop.f32.mrb[0].mxu0
    %v5470 = vadd.f32 %v3934, %v5469
    %v5471 = vpop.f32.mrb[0].mxu0
    %v5472 = vadd.f32 %v3938, %v5471
    %5473 = vmatprep.mubr.bf16.mxu0 %v3618
    %5474 = vmatmul.mubr.bf16.gmra.mrb[0].mxu0 %v3617
    %v5475 = vpop.f32.mrb[0].mxu0
    %v5476 = vadd.f32 %v3934, %v5475
    %v5477 = vpop.f32.mrb[0].mxu0
    %v5478 = vadd.f32 %v3938, %v5477
    %v5479 = vpop.f32.mrb[0].mxu0
    %v5480 = vadd.f32 %v3934, %v5479
    %v5481 = vpop.f32.mrb[0].mxu0
    %v5482 = vadd.f32 %v3938, %v5481
    %5483 = vmatprep.mubr.bf16.mxu0 %v3624
    %5484 = vmatmul.mubr.bf16.gmra.mrb[0].mxu0 %v3623
    %v5485 = vpop.f32.mrb[0].mxu0
    %v5486 = vadd.f32 %v3934, %v5485
    %v5487 = vpop.f32.mrb[0].mxu0
    %v5488 = vadd.f32 %v3938, %v5487
    %v5489 = vpop.f32.mrb[0].mxu0
    %v5490 = vadd.f32 %v3934, %v5489
    %v5491 = vpop.f32.mrb[0].mxu0
    %v5492 = vadd.f32 %v3938, %v5491
    %5493 = vmatprep.mubr.bf16.mxu0 %v3630
    %5494 = vmatmul.mubr.bf16.gmra.mrb[0].mxu0 %v3629
    %v5495 = vpop.f32.mrb[0].mxu0
    %v5496 = vadd.f32 %v3934, %v5495
    %v5497 = vpop.f32.mrb[0].mxu0
    %v5498 = vadd.f32 %v3938, %v5497
    %v5499 = vpop.f32.mrb[0].mxu0
    %v5500 = vadd.f32 %v3934, %v5499
    %v5501 = vpop.f32.mrb[0].mxu0
    %v5502 = vadd.f32 %v3938, %v5501
    %5503 = vmatprep.mubr.bf16.mxu0 %v3636
    %5504 = vmatmul.mubr.bf16.gmra.mrb[0].mxu0 %v3635
    %v5505 = vpop.f32.mrb[0].mxu0
    %v5506 = vadd.f32 %v3934, %v5505
    %v5507 = vpop.f32.mrb[0].mxu0
    %v5508 = vadd.f32 %v3938, %v5507
    %v5509 = vpop.f32.mrb[0].mxu0
    %v5510 = vadd.f32 %v3934, %v5509
    %v5511 = vpop.f32.mrb[0].mxu0
    %v5512 = vadd.f32 %v3938, %v5511
    %5513 = vdwg.mxu0
    %5514 = vmatprep.subr.bf16.mxu0 %v4922
    %5515 = vmatpush1.bf16.msra.mxu0 %v4921
    %5516 = vmatprep.subr.bf16.mxu0 %v4928
    %5517 = vmatpush1.bf16.msra.mxu0 %v4927
    %5518 = vmatprep.subr.bf16.mxu0 %v4934
    %5519 = vmatpush1.bf16.msra.mxu0 %v4933
    %5520 = vmatprep.subr.bf16.mxu0 %v4940
    %5521 = vmatpush1.bf16.msra.mxu0 %v4939
    %5522 = vmatprep.subr.bf16.mxu0 %v4946
    %5523 = vmatpush1.bf16.msra.mxu0 %v4945
    %5524 = vmatprep.subr.bf16.mxu0 %v4952
    %5525 = vmatpush1.bf16.msra.mxu0 %v4951
    %5526 = vmatprep.subr.bf16.mxu0 %v4958
    %5527 = vmatpush1.bf16.msra.mxu0 %v4957
    %5528 = vmatprep.subr.bf16.mxu0 %v4964
    %5529 = vmatpush1.bf16.msra.mxu0 %v4963
    %5530 = vmatprep.subr.bf16.mxu0 %v4970
    %5531 = vmatpush1.bf16.msra.mxu0 %v4969
    %5532 = vmatprep.subr.bf16.mxu0 %v4976
    %5533 = vmatpush1.bf16.msra.mxu0 %v4975
    %5534 = vmatprep.subr.bf16.mxu0 %v4982
    %5535 = vmatpush1.bf16.msra.mxu0 %v4981
    %5536 = vmatprep.subr.bf16.mxu0 %v4988
    %5537 = vmatpush1.bf16.msra.mxu0 %v4987
    %5538 = vmatprep.subr.bf16.mxu0 %v4994
    %5539 = vmatpush1.bf16.msra.mxu0 %v4993
    %5540 = vmatprep.subr.bf16.mxu0 %v5000
    %5541 = vmatpush1.bf16.msra.mxu0 %v4999
    %5542 = vmatprep.subr.bf16.mxu0 %v5006
    %5543 = vmatpush1.bf16.msra.mxu0 %v5005
    %5544 = vmatprep.subr.bf16.mxu0 %v5012
    %5545 = vmatpush1.bf16.msra.mxu0 %v5011
    %5546 = vmatprep.mubr.bf16.mxu0 %v3596
    %5547 = vmatmul.mubr.bf16.gmra.mrb[0].mxu0 %v3595
    %v5548 = vpop.f32.mrb[0].mxu0
    %v5549 = vadd.f32 %v5436, %v5548
    %v5550 = vpop.f32.mrb[0].mxu0
    %v5551 = vadd.f32 %v5438, %v5550
    %v5552 = vpop.f32.mrb[0].mxu0
    %v5553 = vadd.f32 %v5440, %v5552
    %v5554 = vpop.f32.mrb[0].mxu0
    %v5555 = vadd.f32 %v5442, %v5554
    %5556 = vmatprep.mubr.bf16.mxu0 %v3602
    %5557 = vmatmul.mubr.bf16.gmra.mrb[0].mxu0 %v3601
    %v5558 = vpop.f32.mrb[0].mxu0
    %v5559 = vadd.f32 %v5446, %v5558
    %v5560 = vpop.f32.mrb[0].mxu0
    %v5561 = vadd.f32 %v5448, %v5560
    %v5562 = vpop.f32.mrb[0].mxu0
    %v5563 = vadd.f32 %v5450, %v5562
    %v5564 = vpop.f32.mrb[0].mxu0
    %v5565 = vadd.f32 %v5452, %v5564
    %5566 = vmatprep.mubr.bf16.mxu0 %v3608
    %5567 = vmatmul.mubr.bf16.gmra.mrb[0].mxu0 %v3607
    %v5568 = vpop.f32.mrb[0].mxu0
    %v5569 = vadd.f32 %v5456, %v5568
    %v5570 = vpop.f32.mrb[0].mxu0
    %v5571 = vadd.f32 %v5458, %v5570
    %v5572 = vpop.f32.mrb[0].mxu0
    %v5573 = vadd.f32 %v5460, %v5572
    %v5574 = vpop.f32.mrb[0].mxu0
    %v5575 = vadd.f32 %v5462, %v5574
    %5576 = vmatprep.mubr.bf16.mxu0 %v3614
    %5577 = vmatmul.mubr.bf16.gmra.mrb[0].mxu0 %v3613
    %v5578 = vpop.f32.mrb[0].mxu0
    %v5579 = vadd.f32 %v5466, %v5578
    %v5580 = vpop.f32.mrb[0].mxu0
    %v5581 = vadd.f32 %v5468, %v5580
    %v5582 = vpop.f32.mrb[0].mxu0
    %v5583 = vadd.f32 %v5470, %v5582
    %v5584 = vpop.f32.mrb[0].mxu0
    %v5585 = vadd.f32 %v5472, %v5584
    %5586 = vmatprep.mubr.bf16.mxu0 %v3620
    %5587 = vmatmul.mubr.bf16.gmra.mrb[0].mxu0 %v3619
    %v5588 = vpop.f32.mrb[0].mxu0
    %v5589 = vadd.f32 %v5476, %v5588
    %v5590 = vpop.f32.mrb[0].mxu0
    %v5591 = vadd.f32 %v5478, %v5590
    %v5592 = vpop.f32.mrb[0].mxu0
    %v5593 = vadd.f32 %v5480, %v5592
    %v5594 = vpop.f32.mrb[0].mxu0
    %v5595 = vadd.f32 %v5482, %v5594
    %5596 = vmatprep.mubr.bf16.mxu0 %v3626
    %5597 = vmatmul.mubr.bf16.gmra.mrb[0].mxu0 %v3625
    %v5598 = vpop.f32.mrb[0].mxu0
    %v5599 = vadd.f32 %v5486, %v5598
    %v5600 = vpop.f32.mrb[0].mxu0
    %v5601 = vadd.f32 %v5488, %v5600
    %v5602 = vpop.f32.mrb[0].mxu0
    %v5603 = vadd.f32 %v5490, %v5602
    %v5604 = vpop.f32.mrb[0].mxu0
    %v5605 = vadd.f32 %v5492, %v5604
    %5606 = vmatprep.mubr.bf16.mxu0 %v3632
    %5607 = vmatmul.mubr.bf16.gmra.mrb[0].mxu0 %v3631
    %v5608 = vpop.f32.mrb[0].mxu0
    %v5609 = vadd.f32 %v5496, %v5608
    %v5610 = vpop.f32.mrb[0].mxu0
    %v5611 = vadd.f32 %v5498, %v5610
    %v5612 = vpop.f32.mrb[0].mxu0
    %v5613 = vadd.f32 %v5500, %v5612
    %v5614 = vpop.f32.mrb[0].mxu0
    %v5615 = vadd.f32 %v5502, %v5614
    %5616 = vmatprep.mubr.bf16.mxu0 %v3638
    %5617 = vmatmul.mubr.bf16.gmra.mrb[0].mxu0 %v3637
    %v5618 = vpop.f32.mrb[0].mxu0
    %v5619 = vadd.f32 %v5506, %v5618
    %v5620 = vpop.f32.mrb[0].mxu0
    %v5621 = vadd.f32 %v5508, %v5620
    %v5622 = vpop.f32.mrb[0].mxu0
    %v5623 = vadd.f32 %v5510, %v5622
    %v5624 = vpop.f32.mrb[0].mxu0
    %v5625 = vadd.f32 %v5512, %v5624
    %5626 = vdwg.mxu0
    %5627 = vmatprep.subr.bf16.mxu0 %v5018
    %5628 = vmatpush1.bf16.msra.mxu0 %v5017
    %5629 = vmatprep.subr.bf16.mxu0 %v5024
    %5630 = vmatpush1.bf16.msra.mxu0 %v5023
    %5631 = vmatprep.subr.bf16.mxu0 %v5030
    %5632 = vmatpush1.bf16.msra.mxu0 %v5029
    %5633 = vmatprep.subr.bf16.mxu0 %v5036
    %5634 = vmatpush1.bf16.msra.mxu0 %v5035
    %5635 = vmatprep.subr.bf16.mxu0 %v5042
    %5636 = vmatpush1.bf16.msra.mxu0 %v5041
    %5637 = vmatprep.subr.bf16.mxu0 %v5048
    %5638 = vmatpush1.bf16.msra.mxu0 %v5047
    %5639 = vmatprep.subr.bf16.mxu0 %v5054
    %5640 = vmatpush1.bf16.msra.mxu0 %v5053
    %5641 = vmatprep.subr.bf16.mxu0 %v5060
    %5642 = vmatpush1.bf16.msra.mxu0 %v5059
    %5643 = vmatprep.subr.bf16.mxu0 %v5066
    %5644 = vmatpush1.bf16.msra.mxu0 %v5065
    %5645 = vmatprep.subr.bf16.mxu0 %v5072
    %5646 = vmatpush1.bf16.msra.mxu0 %v5071
    %5647 = vmatprep.subr.bf16.mxu0 %v5078
    %5648 = vmatpush1.bf16.msra.mxu0 %v5077
    %5649 = vmatprep.subr.bf16.mxu0 %v5084
    %5650 = vmatpush1.bf16.msra.mxu0 %v5083
    %5651 = vmatprep.subr.bf16.mxu0 %v5090
    %5652 = vmatpush1.bf16.msra.mxu0 %v5089
    %5653 = vmatprep.subr.bf16.mxu0 %v5096
    %5654 = vmatpush1.bf16.msra.mxu0 %v5095
    %5655 = vmatprep.subr.bf16.mxu0 %v5102
    %5656 = vmatpush1.bf16.msra.mxu0 %v5101
    %5657 = vmatprep.subr.bf16.mxu0 %v5108
    %5658 = vmatpush1.bf16.msra.mxu0 %v5107
    %5659 = vmatprep.mubr.bf16.mxu0 %v3598
    %5660 = vmatmul.mubr.bf16.gmra.mrb[0].mxu0 %v3597
    %v5661 = vpop.f32.mrb[0].mxu0
    %v5662 = vadd.f32 %v5549, %v5661
    %v5663 = vpop.f32.mrb[0].mxu0
    %v5664 = vadd.f32 %v5551, %v5663
    %v5665 = vpop.f32.mrb[0].mxu0
    %v5666 = vadd.f32 %v5553, %v5665
    %v5667 = vpop.f32.mrb[0].mxu0
    %v5668 = vadd.f32 %v5555, %v5667
    %5669 = vmatprep.mubr.bf16.mxu0 %v3604
    %5670 = vmatmul.mubr.bf16.gmra.mrb[0].mxu0 %v3603
    %v5671 = vpop.f32.mrb[0].mxu0
    %v5672 = vadd.f32 %v5559, %v5671
    %v5673 = vpop.f32.mrb[0].mxu0
    %v5674 = vadd.f32 %v5561, %v5673
    %v5675 = vpop.f32.mrb[0].mxu0
    %v5676 = vadd.f32 %v5563, %v5675
    %v5677 = vpop.f32.mrb[0].mxu0
    %v5678 = vadd.f32 %v5565, %v5677
    %5679 = vmatprep.mubr.bf16.mxu0 %v3610
    %5680 = vmatmul.mubr.bf16.gmra.mrb[0].mxu0 %v3609
    %v5681 = vpop.f32.mrb[0].mxu0
    %v5682 = vadd.f32 %v5569, %v5681
    %v5683 = vpop.f32.mrb[0].mxu0
    %v5684 = vadd.f32 %v5571, %v5683
    %v5685 = vpop.f32.mrb[0].mxu0
    %v5686 = vadd.f32 %v5573, %v5685
    %v5687 = vpop.f32.mrb[0].mxu0
    %v5688 = vadd.f32 %v5575, %v5687
    %5689 = vmatprep.mubr.bf16.mxu0 %v3616
    %5690 = vmatmul.mubr.bf16.gmra.mrb[0].mxu0 %v3615
    %v5691 = vpop.f32.mrb[0].mxu0
    %v5692 = vadd.f32 %v5579, %v5691
    %v5693 = vpop.f32.mrb[0].mxu0
    %v5694 = vadd.f32 %v5581, %v5693
    %v5695 = vpop.f32.mrb[0].mxu0
    %v5696 = vadd.f32 %v5583, %v5695
    %v5697 = vpop.f32.mrb[0].mxu0
    %v5698 = vadd.f32 %v5585, %v5697
    %5699 = vmatprep.mubr.bf16.mxu0 %v3622
    %5700 = vmatmul.mubr.bf16.gmra.mrb[0].mxu0 %v3621
    %v5701 = vpop.f32.mrb[0].mxu0
    %v5702 = vadd.f32 %v5589, %v5701
    %v5703 = vpop.f32.mrb[0].mxu0
    %v5704 = vadd.f32 %v5591, %v5703
    %v5705 = vpop.f32.mrb[0].mxu0
    %v5706 = vadd.f32 %v5593, %v5705
    %v5707 = vpop.f32.mrb[0].mxu0
    %v5708 = vadd.f32 %v5595, %v5707
    %5709 = vmatprep.mubr.bf16.mxu0 %v3628
    %5710 = vmatmul.mubr.bf16.gmra.mrb[0].mxu0 %v3627
    %v5711 = vpop.f32.mrb[0].mxu0
    %v5712 = vadd.f32 %v5599, %v5711
    %v5713 = vpop.f32.mrb[0].mxu0
    %v5714 = vadd.f32 %v5601, %v5713
    %v5715 = vpop.f32.mrb[0].mxu0
    %v5716 = vadd.f32 %v5603, %v5715
    %v5717 = vpop.f32.mrb[0].mxu0
    %v5718 = vadd.f32 %v5605, %v5717
    %5719 = vmatprep.mubr.bf16.mxu0 %v3634
    %5720 = vmatmul.mubr.bf16.gmra.mrb[0].mxu0 %v3633
    %v5721 = vpop.f32.mrb[0].mxu0
    %v5722 = vadd.f32 %v5609, %v5721
    %v5723 = vpop.f32.mrb[0].mxu0
    %v5724 = vadd.f32 %v5611, %v5723
    %v5725 = vpop.f32.mrb[0].mxu0
    %v5726 = vadd.f32 %v5613, %v5725
    %v5727 = vpop.f32.mrb[0].mxu0
    %v5728 = vadd.f32 %v5615, %v5727
    %5729 = vmatprep.mubr.bf16.mxu0 %v3640
    %5730 = vmatmul.mubr.bf16.gmra.mrb[0].mxu0 %v3639
    %v5731 = vpop.f32.mrb[0].mxu0
    %v5732 = vadd.f32 %v5619, %v5731
    %v5733 = vpop.f32.mrb[0].mxu0
    %v5734 = vadd.f32 %v5621, %v5733
    %v5735 = vpop.f32.mrb[0].mxu0
    %v5736 = vadd.f32 %v5623, %v5735
    %v5737 = vpop.f32.mrb[0].mxu0
    %v5738 = vadd.f32 %v5625, %v5737
    %5739 = vdwg.mxu0
    %5740 = vmatprep.subr.bf16.mxu0 %v4828
    %5741 = vmatpush1.bf16.msra.mxu0 %v4827
    %5742 = vmatprep.subr.bf16.mxu0 %v4834
    %5743 = vmatpush1.bf16.msra.mxu0 %v4833
    %5744 = vmatprep.subr.bf16.mxu0 %v4840
    %5745 = vmatpush1.bf16.msra.mxu0 %v4839
    %5746 = vmatprep.subr.bf16.mxu0 %v4846
    %5747 = vmatpush1.bf16.msra.mxu0 %v4845
    %5748 = vmatprep.subr.bf16.mxu0 %v4852
    %5749 = vmatpush1.bf16.msra.mxu0 %v4851
    %5750 = vmatprep.subr.bf16.mxu0 %v4858
    %5751 = vmatpush1.bf16.msra.mxu0 %v4857
    %5752 = vmatprep.subr.bf16.mxu0 %v4864
    %5753 = vmatpush1.bf16.msra.mxu0 %v4863
    %5754 = vmatprep.subr.bf16.mxu0 %v4870
    %5755 = vmatpush1.bf16.msra.mxu0 %v4869
    %5756 = vmatprep.subr.bf16.mxu0 %v4876
    %5757 = vmatpush1.bf16.msra.mxu0 %v4875
    %5758 = vmatprep.subr.bf16.mxu0 %v4882
    %5759 = vmatpush1.bf16.msra.mxu0 %v4881
    %5760 = vmatprep.subr.bf16.mxu0 %v4888
    %5761 = vmatpush1.bf16.msra.mxu0 %v4887
    %5762 = vmatprep.subr.bf16.mxu0 %v4894
    %5763 = vmatpush1.bf16.msra.mxu0 %v4893
    %5764 = vmatprep.subr.bf16.mxu0 %v4900
    %5765 = vmatpush1.bf16.msra.mxu0 %v4899
    %5766 = vmatprep.subr.bf16.mxu0 %v4906
    %5767 = vmatpush1.bf16.msra.mxu0 %v4905
    %5768 = vmatprep.subr.bf16.mxu0 %v4912
    %5769 = vmatpush1.bf16.msra.mxu0 %v4911
    %5770 = vmatprep.subr.bf16.mxu0 %v4918
    %5771 = vmatpush1.bf16.msra.mxu0 %v4917
    %5772 = vmatprep.mubr.bf16.mxu0 %v3594
    %5773 = vmatmul.mubr.bf16.gmra.mrb[0].mxu0 %v3593
    %v5774 = vpop.f32.mrb[0].mxu0
    %v5775 = vadd.f32 %v3942, %v5774
    %v5776 = vpop.f32.mrb[0].mxu0
    %v5777 = vadd.f32 %v3946, %v5776
    %v5778 = vpop.f32.mrb[0].mxu0
    %v5779 = vadd.f32 %v3942, %v5778
    %v5780 = vpop.f32.mrb[0].mxu0
    %v5781 = vadd.f32 %v3946, %v5780
    %5782 = vmatprep.mubr.bf16.mxu0 %v3600
    %5783 = vmatmul.mubr.bf16.gmra.mrb[0].mxu0 %v3599
    %v5784 = vpop.f32.mrb[0].mxu0
    %v5785 = vadd.f32 %v3942, %v5784
    %v5786 = vpop.f32.mrb[0].mxu0
    %v5787 = vadd.f32 %v3946, %v5786
    %v5788 = vpop.f32.mrb[0].mxu0
    %v5789 = vadd.f32 %v3942, %v5788
    %v5790 = vpop.f32.mrb[0].mxu0
    %v5791 = vadd.f32 %v3946, %v5790
    %5792 = vmatprep.mubr.bf16.mxu0 %v3606
    %5793 = vmatmul.mubr.bf16.gmra.mrb[0].mxu0 %v3605
    %v5794 = vpop.f32.mrb[0].mxu0
    %v5795 = vadd.f32 %v3942, %v5794
    %v5796 = vpop.f32.mrb[0].mxu0
    %v5797 = vadd.f32 %v3946, %v5796
    %v5798 = vpop.f32.mrb[0].mxu0
    %v5799 = vadd.f32 %v3942, %v5798
    %v5800 = vpop.f32.mrb[0].mxu0
    %v5801 = vadd.f32 %v3946, %v5800
    %5802 = vmatprep.mubr.bf16.mxu0 %v3612
    %5803 = vmatmul.mubr.bf16.gmra.mrb[0].mxu0 %v3611
    %v5804 = vpop.f32.mrb[0].mxu0
    %v5805 = vadd.f32 %v3942, %v5804
    %v5806 = vpop.f32.mrb[0].mxu0
    %v5807 = vadd.f32 %v3946, %v5806
    %v5808 = vpop.f32.mrb[0].mxu0
    %v5809 = vadd.f32 %v3942, %v5808
    %v5810 = vpop.f32.mrb[0].mxu0
    %v5811 = vadd.f32 %v3946, %v5810
    %5812 = vmatprep.mubr.bf16.mxu0 %v3618
    %5813 = vmatmul.mubr.bf16.gmra.mrb[0].mxu0 %v3617
    %v5814 = vpop.f32.mrb[0].mxu0
    %v5815 = vadd.f32 %v3942, %v5814
    %v5816 = vpop.f32.mrb[0].mxu0
    %v5817 = vadd.f32 %v3946, %v5816
    %v5818 = vpop.f32.mrb[0].mxu0
    %v5819 = vadd.f32 %v3942, %v5818
    %v5820 = vpop.f32.mrb[0].mxu0
    %v5821 = vadd.f32 %v3946, %v5820
    %5822 = vmatprep.mubr.bf16.mxu0 %v3624
    %5823 = vmatmul.mubr.bf16.gmra.mrb[0].mxu0 %v3623
    %v5824 = vpop.f32.mrb[0].mxu0
    %v5825 = vadd.f32 %v3942, %v5824
    %v5826 = vpop.f32.mrb[0].mxu0
    %v5827 = vadd.f32 %v3946, %v5826
    %v5828 = vpop.f32.mrb[0].mxu0
    %v5829 = vadd.f32 %v3942, %v5828
    %v5830 = vpop.f32.mrb[0].mxu0
    %v5831 = vadd.f32 %v3946, %v5830
    %5832 = vmatprep.mubr.bf16.mxu0 %v3630
    %5833 = vmatmul.mubr.bf16.gmra.mrb[0].mxu0 %v3629
    %v5834 = vpop.f32.mrb[0].mxu0
    %v5835 = vadd.f32 %v3942, %v5834
    %v5836 = vpop.f32.mrb[0].mxu0
    %v5837 = vadd.f32 %v3946, %v5836
    %v5838 = vpop.f32.mrb[0].mxu0
    %v5839 = vadd.f32 %v3942, %v5838
    %v5840 = vpop.f32.mrb[0].mxu0
    %v5841 = vadd.f32 %v3946, %v5840
    %5842 = vmatprep.mubr.bf16.mxu0 %v3636
    %5843 = vmatmul.mubr.bf16.gmra.mrb[0].mxu0 %v3635
    %v5844 = vpop.f32.mrb[0].mxu0
    %v5845 = vadd.f32 %v3942, %v5844
    %v5846 = vpop.f32.mrb[0].mxu0
    %v5847 = vadd.f32 %v3946, %v5846
    %v5848 = vpop.f32.mrb[0].mxu0
    %v5849 = vadd.f32 %v3942, %v5848
    %v5850 = vpop.f32.mrb[0].mxu0
    %v5851 = vadd.f32 %v3946, %v5850
    %5852 = vdwg.mxu0
    %5853 = vmatprep.subr.bf16.mxu0 %v4924
    %5854 = vmatpush1.bf16.msra.mxu0 %v4923
    %5855 = vmatprep.subr.bf16.mxu0 %v4930
    %5856 = vmatpush1.bf16.msra.mxu0 %v4929
    %5857 = vmatprep.subr.bf16.mxu0 %v4936
    %5858 = vmatpush1.bf16.msra.mxu0 %v4935
    %5859 = vmatprep.subr.bf16.mxu0 %v4942
    %5860 = vmatpush1.bf16.msra.mxu0 %v4941
    %5861 = vmatprep.subr.bf16.mxu0 %v4948
    %5862 = vmatpush1.bf16.msra.mxu0 %v4947
    %5863 = vmatprep.subr.bf16.mxu0 %v4954
    %5864 = vmatpush1.bf16.msra.mxu0 %v4953
    %5865 = vmatprep.subr.bf16.mxu0 %v4960
    %5866 = vmatpush1.bf16.msra.mxu0 %v4959
    %5867 = vmatprep.subr.bf16.mxu0 %v4966
    %5868 = vmatpush1.bf16.msra.mxu0 %v4965
    %5869 = vmatprep.subr.bf16.mxu0 %v4972
    %5870 = vmatpush1.bf16.msra.mxu0 %v4971
    %5871 = vmatprep.subr.bf16.mxu0 %v4978
    %5872 = vmatpush1.bf16.msra.mxu0 %v4977
    %5873 = vmatprep.subr.bf16.mxu0 %v4984
    %5874 = vmatpush1.bf16.msra.mxu0 %v4983
    %5875 = vmatprep.subr.bf16.mxu0 %v4990
    %5876 = vmatpush1.bf16.msra.mxu0 %v4989
    %5877 = vmatprep.subr.bf16.mxu0 %v4996
    %5878 = vmatpush1.bf16.msra.mxu0 %v4995
    %5879 = vmatprep.subr.bf16.mxu0 %v5002
    %5880 = vmatpush1.bf16.msra.mxu0 %v5001
    %5881 = vmatprep.subr.bf16.mxu0 %v5008
    %5882 = vmatpush1.bf16.msra.mxu0 %v5007
    %5883 = vmatprep.subr.bf16.mxu0 %v5014
    %5884 = vmatpush1.bf16.msra.mxu0 %v5013
    %5885 = vmatprep.mubr.bf16.mxu0 %v3596
    %5886 = vmatmul.mubr.bf16.gmra.mrb[0].mxu0 %v3595
    %v5887 = vpop.f32.mrb[0].mxu0
    %v5888 = vadd.f32 %v5775, %v5887
    %v5889 = vpop.f32.mrb[0].mxu0
    %v5890 = vadd.f32 %v5777, %v5889
    %v5891 = vpop.f32.mrb[0].mxu0
    %v5892 = vadd.f32 %v5779, %v5891
    %v5893 = vpop.f32.mrb[0].mxu0
    %v5894 = vadd.f32 %v5781, %v5893
    %5895 = vmatprep.mubr.bf16.mxu0 %v3602
    %5896 = vmatmul.mubr.bf16.gmra.mrb[0].mxu0 %v3601
    %v5897 = vpop.f32.mrb[0].mxu0
    %v5898 = vadd.f32 %v5785, %v5897
    %v5899 = vpop.f32.mrb[0].mxu0
    %v5900 = vadd.f32 %v5787, %v5899
    %v5901 = vpop.f32.mrb[0].mxu0
    %v5902 = vadd.f32 %v5789, %v5901
    %v5903 = vpop.f32.mrb[0].mxu0
    %v5904 = vadd.f32 %v5791, %v5903
    %5905 = vmatprep.mubr.bf16.mxu0 %v3608
    %5906 = vmatmul.mubr.bf16.gmra.mrb[0].mxu0 %v3607
    %v5907 = vpop.f32.mrb[0].mxu0
    %v5908 = vadd.f32 %v5795, %v5907
    %v5909 = vpop.f32.mrb[0].mxu0
    %v5910 = vadd.f32 %v5797, %v5909
    %v5911 = vpop.f32.mrb[0].mxu0
    %v5912 = vadd.f32 %v5799, %v5911
    %v5913 = vpop.f32.mrb[0].mxu0
    %v5914 = vadd.f32 %v5801, %v5913
    %5915 = vmatprep.mubr.bf16.mxu0 %v3614
    %5916 = vmatmul.mubr.bf16.gmra.mrb[0].mxu0 %v3613
    %v5917 = vpop.f32.mrb[0].mxu0
    %v5918 = vadd.f32 %v5805, %v5917
    %v5919 = vpop.f32.mrb[0].mxu0
    %v5920 = vadd.f32 %v5807, %v5919
    %v5921 = vpop.f32.mrb[0].mxu0
    %v5922 = vadd.f32 %v5809, %v5921
    %v5923 = vpop.f32.mrb[0].mxu0
    %v5924 = vadd.f32 %v5811, %v5923
    %5925 = vmatprep.mubr.bf16.mxu0 %v3620
    %5926 = vmatmul.mubr.bf16.gmra.mrb[0].mxu0 %v3619
    %v5927 = vpop.f32.mrb[0].mxu0
    %v5928 = vadd.f32 %v5815, %v5927
    %v5929 = vpop.f32.mrb[0].mxu0
    %v5930 = vadd.f32 %v5817, %v5929
    %v5931 = vpop.f32.mrb[0].mxu0
    %v5932 = vadd.f32 %v5819, %v5931
    %v5933 = vpop.f32.mrb[0].mxu0
    %v5934 = vadd.f32 %v5821, %v5933
    %5935 = vmatprep.mubr.bf16.mxu0 %v3626
    %5936 = vmatmul.mubr.bf16.gmra.mrb[0].mxu0 %v3625
    %v5937 = vpop.f32.mrb[0].mxu0
    %v5938 = vadd.f32 %v5825, %v5937
    %v5939 = vpop.f32.mrb[0].mxu0
    %v5940 = vadd.f32 %v5827, %v5939
    %v5941 = vpop.f32.mrb[0].mxu0
    %v5942 = vadd.f32 %v5829, %v5941
    %v5943 = vpop.f32.mrb[0].mxu0
    %v5944 = vadd.f32 %v5831, %v5943
    %5945 = vmatprep.mubr.bf16.mxu0 %v3632
    %5946 = vmatmul.mubr.bf16.gmra.mrb[0].mxu0 %v3631
    %v5947 = vpop.f32.mrb[0].mxu0
    %v5948 = vadd.f32 %v5835, %v5947
    %v5949 = vpop.f32.mrb[0].mxu0
    %v5950 = vadd.f32 %v5837, %v5949
    %v5951 = vpop.f32.mrb[0].mxu0
    %v5952 = vadd.f32 %v5839, %v5951
    %v5953 = vpop.f32.mrb[0].mxu0
    %v5954 = vadd.f32 %v5841, %v5953
    %5955 = vmatprep.mubr.bf16.mxu0 %v3638
    %5956 = vmatmul.mubr.bf16.gmra.mrb[0].mxu0 %v3637
    %v5957 = vpop.f32.mrb[0].mxu0
    %v5958 = vadd.f32 %v5845, %v5957
    %v5959 = vpop.f32.mrb[0].mxu0
    %v5960 = vadd.f32 %v5847, %v5959
    %v5961 = vpop.f32.mrb[0].mxu0
    %v5962 = vadd.f32 %v5849, %v5961
    %v5963 = vpop.f32.mrb[0].mxu0
    %v5964 = vadd.f32 %v5851, %v5963
    %5965 = vdwg.mxu0
    %5966 = vmatprep.subr.bf16.mxu0 %v5020
    %5967 = vmatpush1.bf16.msra.mxu0 %v5019
    %5968 = vmatprep.subr.bf16.mxu0 %v5026
    %5969 = vmatpush1.bf16.msra.mxu0 %v5025
    %5970 = vmatprep.subr.bf16.mxu0 %v5032
    %5971 = vmatpush1.bf16.msra.mxu0 %v5031
    %5972 = vmatprep.subr.bf16.mxu0 %v5038
    %5973 = vmatpush1.bf16.msra.mxu0 %v5037
    %5974 = vmatprep.subr.bf16.mxu0 %v5044
    %5975 = vmatpush1.bf16.msra.mxu0 %v5043
    %5976 = vmatprep.subr.bf16.mxu0 %v5050
    %5977 = vmatpush1.bf16.msra.mxu0 %v5049
    %5978 = vmatprep.subr.bf16.mxu0 %v5056
    %5979 = vmatpush1.bf16.msra.mxu0 %v5055
    %5980 = vmatprep.subr.bf16.mxu0 %v5062
    %5981 = vmatpush1.bf16.msra.mxu0 %v5061
    %5982 = vmatprep.subr.bf16.mxu0 %v5068
    %5983 = vmatpush1.bf16.msra.mxu0 %v5067
    %5984 = vmatprep.subr.bf16.mxu0 %v5074
    %5985 = vmatpush1.bf16.msra.mxu0 %v5073
    %5986 = vmatprep.subr.bf16.mxu0 %v5080
    %5987 = vmatpush1.bf16.msra.mxu0 %v5079
    %5988 = vmatprep.subr.bf16.mxu0 %v5086
    %5989 = vmatpush1.bf16.msra.mxu0 %v5085
    %5990 = vmatprep.subr.bf16.mxu0 %v5092
    %5991 = vmatpush1.bf16.msra.mxu0 %v5091
    %5992 = vmatprep.subr.bf16.mxu0 %v5098
    %5993 = vmatpush1.bf16.msra.mxu0 %v5097
    %5994 = vmatprep.subr.bf16.mxu0 %v5104
    %5995 = vmatpush1.bf16.msra.mxu0 %v5103
    %5996 = vmatprep.subr.bf16.mxu0 %v5110
    %5997 = vmatpush1.bf16.msra.mxu0 %v5109
    %5998 = vmatprep.mubr.bf16.mxu0 %v3598
    %5999 = vmatmul.mubr.bf16.gmra.mrb[0].mxu0 %v3597
    %v6000 = vpop.f32.mrb[0].mxu0
    %v6001 = vadd.f32 %v5888, %v6000
    %v6002 = vpop.f32.mrb[0].mxu0
    %v6003 = vadd.f32 %v5890, %v6002
    %v6004 = vpop.f32.mrb[0].mxu0
    %v6005 = vadd.f32 %v5892, %v6004
    %v6006 = vpop.f32.mrb[0].mxu0
    %v6007 = vadd.f32 %v5894, %v6006
    %6008 = vmatprep.mubr.bf16.mxu0 %v3604
    %6009 = vmatmul.mubr.bf16.gmra.mrb[0].mxu0 %v3603
    %v6010 = vpop.f32.mrb[0].mxu0
    %v6011 = vadd.f32 %v5898, %v6010
    %v6012 = vpop.f32.mrb[0].mxu0
    %v6013 = vadd.f32 %v5900, %v6012
    %v6014 = vpop.f32.mrb[0].mxu0
    %v6015 = vadd.f32 %v5902, %v6014
    %v6016 = vpop.f32.mrb[0].mxu0
    %v6017 = vadd.f32 %v5904, %v6016
    %6018 = vmatprep.mubr.bf16.mxu0 %v3610
    %6019 = vmatmul.mubr.bf16.gmra.mrb[0].mxu0 %v3609
    %v6020 = vpop.f32.mrb[0].mxu0
    %v6021 = vadd.f32 %v5908, %v6020
    %v6022 = vpop.f32.mrb[0].mxu0
    %v6023 = vadd.f32 %v5910, %v6022
    %v6024 = vpop.f32.mrb[0].mxu0
    %v6025 = vadd.f32 %v5912, %v6024
    %v6026 = vpop.f32.mrb[0].mxu0
    %v6027 = vadd.f32 %v5914, %v6026
    %6028 = vmatprep.mubr.bf16.mxu0 %v3616
    %6029 = vmatmul.mubr.bf16.gmra.mrb[0].mxu0 %v3615
    %v6030 = vpop.f32.mrb[0].mxu0
    %v6031 = vadd.f32 %v5918, %v6030
    %v6032 = vpop.f32.mrb[0].mxu0
    %v6033 = vadd.f32 %v5920, %v6032
    %v6034 = vpop.f32.mrb[0].mxu0
    %v6035 = vadd.f32 %v5922, %v6034
    %v6036 = vpop.f32.mrb[0].mxu0
    %v6037 = vadd.f32 %v5924, %v6036
    %6038 = vmatprep.mubr.bf16.mxu0 %v3622
    %6039 = vmatmul.mubr.bf16.gmra.mrb[0].mxu0 %v3621
    %v6040 = vpop.f32.mrb[0].mxu0
    %v6041 = vadd.f32 %v5928, %v6040
    %v6042 = vpop.f32.mrb[0].mxu0
    %v6043 = vadd.f32 %v5930, %v6042
    %v6044 = vpop.f32.mrb[0].mxu0
    %v6045 = vadd.f32 %v5932, %v6044
    %v6046 = vpop.f32.mrb[0].mxu0
    %v6047 = vadd.f32 %v5934, %v6046
    %6048 = vmatprep.mubr.bf16.mxu0 %v3628
    %6049 = vmatmul.mubr.bf16.gmra.mrb[0].mxu0 %v3627
    %v6050 = vpop.f32.mrb[0].mxu0
    %v6051 = vadd.f32 %v5938, %v6050
    %v6052 = vpop.f32.mrb[0].mxu0
    %v6053 = vadd.f32 %v5940, %v6052
    %v6054 = vpop.f32.mrb[0].mxu0
    %v6055 = vadd.f32 %v5942, %v6054
    %v6056 = vpop.f32.mrb[0].mxu0
    %v6057 = vadd.f32 %v5944, %v6056
    %6058 = vmatprep.mubr.bf16.mxu0 %v3634
    %6059 = vmatmul.mubr.bf16.gmra.mrb[0].mxu0 %v3633
    %v6060 = vpop.f32.mrb[0].mxu0
    %v6061 = vadd.f32 %v5948, %v6060
    %v6062 = vpop.f32.mrb[0].mxu0
    %v6063 = vadd.f32 %v5950, %v6062
    %v6064 = vpop.f32.mrb[0].mxu0
    %v6065 = vadd.f32 %v5952, %v6064
    %v6066 = vpop.f32.mrb[0].mxu0
    %v6067 = vadd.f32 %v5954, %v6066
    %6068 = vmatprep.mubr.bf16.mxu0 %v3640
    %6069 = vmatmul.mubr.bf16.gmra.mrb[0].mxu0 %v3639
    %v6070 = vpop.f32.mrb[0].mxu0
    %v6071 = vadd.f32 %v5958, %v6070
    %v6072 = vpop.f32.mrb[0].mxu0
    %v6073 = vadd.f32 %v5960, %v6072
    %v6074 = vpop.f32.mrb[0].mxu0
    %v6075 = vadd.f32 %v5962, %v6074
    %v6076 = vpop.f32.mrb[0].mxu0
    %v6077 = vadd.f32 %v5964, %v6076
    %6078 = vdwg.mxu0
    %6079 = vmatprep.subr.bf16.mxu0 %v4830
    %6080 = vmatpush1.bf16.msra.mxu0 %v4829
    %6081 = vmatprep.subr.bf16.mxu0 %v4836
    %6082 = vmatpush1.bf16.msra.mxu0 %v4835
    %6083 = vmatprep.subr.bf16.mxu0 %v4842
    %6084 = vmatpush1.bf16.msra.mxu0 %v4841
    %6085 = vmatprep.subr.bf16.mxu0 %v4848
    %6086 = vmatpush1.bf16.msra.mxu0 %v4847
    %6087 = vmatprep.subr.bf16.mxu0 %v4854
    %6088 = vmatpush1.bf16.msra.mxu0 %v4853
    %6089 = vmatprep.subr.bf16.mxu0 %v4860
    %6090 = vmatpush1.bf16.msra.mxu0 %v4859
    %6091 = vmatprep.subr.bf16.mxu0 %v4866
    %6092 = vmatpush1.bf16.msra.mxu0 %v4865
    %6093 = vmatprep.subr.bf16.mxu0 %v4872
    %6094 = vmatpush1.bf16.msra.mxu0 %v4871
    %6095 = vmatprep.subr.bf16.mxu0 %v4878
    %6096 = vmatpush1.bf16.msra.mxu0 %v4877
    %6097 = vmatprep.subr.bf16.mxu0 %v4884
    %6098 = vmatpush1.bf16.msra.mxu0 %v4883
    %6099 = vmatprep.subr.bf16.mxu0 %v4890
    %6100 = vmatpush1.bf16.msra.mxu0 %v4889
    %6101 = vmatprep.subr.bf16.mxu0 %v4896
    %6102 = vmatpush1.bf16.msra.mxu0 %v4895
    %6103 = vmatprep.subr.bf16.mxu0 %v4902
    %6104 = vmatpush1.bf16.msra.mxu0 %v4901
    %6105 = vmatprep.subr.bf16.mxu0 %v4908
    %6106 = vmatpush1.bf16.msra.mxu0 %v4907
    %6107 = vmatprep.subr.bf16.mxu0 %v4914
    %6108 = vmatpush1.bf16.msra.mxu0 %v4913
    %6109 = vmatprep.subr.bf16.mxu0 %v4920
    %6110 = vmatpush1.bf16.msra.mxu0 %v4919
    %6111 = vmatprep.mubr.bf16.mxu0 %v3594
    %6112 = vmatmul.mubr.bf16.gmra.mrb[0].mxu0 %v3593
    %v6113 = vpop.f32.mrb[0].mxu0
    %v6114 = vadd.f32 %v3950, %v6113
    %v6115 = vpop.f32.mrb[0].mxu0
    %v6116 = vadd.f32 %v3954, %v6115
    %v6117 = vpop.f32.mrb[0].mxu0
    %v6118 = vadd.f32 %v3950, %v6117
    %v6119 = vpop.f32.mrb[0].mxu0
    %v6120 = vadd.f32 %v3954, %v6119
    %6121 = vmatprep.mubr.bf16.mxu0 %v3600
    %6122 = vmatmul.mubr.bf16.gmra.mrb[0].mxu0 %v3599
    %v6123 = vpop.f32.mrb[0].mxu0
    %v6124 = vadd.f32 %v3950, %v6123
    %v6125 = vpop.f32.mrb[0].mxu0
    %v6126 = vadd.f32 %v3954, %v6125
    %v6127 = vpop.f32.mrb[0].mxu0
    %v6128 = vadd.f32 %v3950, %v6127
    %v6129 = vpop.f32.mrb[0].mxu0
    %v6130 = vadd.f32 %v3954, %v6129
    %6131 = vmatprep.mubr.bf16.mxu0 %v3606
    %6132 = vmatmul.mubr.bf16.gmra.mrb[0].mxu0 %v3605
    %v6133 = vpop.f32.mrb[0].mxu0
    %v6134 = vadd.f32 %v3950, %v6133
    %v6135 = vpop.f32.mrb[0].mxu0
    %v6136 = vadd.f32 %v3954, %v6135
    %v6137 = vpop.f32.mrb[0].mxu0
    %v6138 = vadd.f32 %v3950, %v6137
    %v6139 = vpop.f32.mrb[0].mxu0
    %v6140 = vadd.f32 %v3954, %v6139
    %6141 = vmatprep.mubr.bf16.mxu0 %v3612
    %6142 = vmatmul.mubr.bf16.gmra.mrb[0].mxu0 %v3611
    %v6143 = vpop.f32.mrb[0].mxu0
    %v6144 = vadd.f32 %v3950, %v6143
    %v6145 = vpop.f32.mrb[0].mxu0
    %v6146 = vadd.f32 %v3954, %v6145
    %v6147 = vpop.f32.mrb[0].mxu0
    %v6148 = vadd.f32 %v3950, %v6147
    %v6149 = vpop.f32.mrb[0].mxu0
    %v6150 = vadd.f32 %v3954, %v6149
    %6151 = vmatprep.mubr.bf16.mxu0 %v3618
    %6152 = vmatmul.mubr.bf16.gmra.mrb[0].mxu0 %v3617
    %v6153 = vpop.f32.mrb[0].mxu0
    %v6154 = vadd.f32 %v3950, %v6153
    %v6155 = vpop.f32.mrb[0].mxu0
    %v6156 = vadd.f32 %v3954, %v6155
    %v6157 = vpop.f32.mrb[0].mxu0
    %v6158 = vadd.f32 %v3950, %v6157
    %v6159 = vpop.f32.mrb[0].mxu0
    %v6160 = vadd.f32 %v3954, %v6159
    %6161 = vmatprep.mubr.bf16.mxu0 %v3624
    %6162 = vmatmul.mubr.bf16.gmra.mrb[0].mxu0 %v3623
    %v6163 = vpop.f32.mrb[0].mxu0
    %v6164 = vadd.f32 %v3950, %v6163
    %v6165 = vpop.f32.mrb[0].mxu0
    %v6166 = vadd.f32 %v3954, %v6165
    %v6167 = vpop.f32.mrb[0].mxu0
    %v6168 = vadd.f32 %v3950, %v6167
    %v6169 = vpop.f32.mrb[0].mxu0
    %v6170 = vadd.f32 %v3954, %v6169
    %6171 = vmatprep.mubr.bf16.mxu0 %v3630
    %6172 = vmatmul.mubr.bf16.gmra.mrb[0].mxu0 %v3629
    %v6173 = vpop.f32.mrb[0].mxu0
    %v6174 = vadd.f32 %v3950, %v6173
    %v6175 = vpop.f32.mrb[0].mxu0
    %v6176 = vadd.f32 %v3954, %v6175
    %v6177 = vpop.f32.mrb[0].mxu0
    %v6178 = vadd.f32 %v3950, %v6177
    %v6179 = vpop.f32.mrb[0].mxu0
    %v6180 = vadd.f32 %v3954, %v6179
    %6181 = vmatprep.mubr.bf16.mxu0 %v3636
    %6182 = vmatmul.mubr.bf16.gmra.mrb[0].mxu0 %v3635
    %v6183 = vpop.f32.mrb[0].mxu0
    %v6184 = vadd.f32 %v3950, %v6183
    %v6185 = vpop.f32.mrb[0].mxu0
    %v6186 = vadd.f32 %v3954, %v6185
    %v6187 = vpop.f32.mrb[0].mxu0
    %v6188 = vadd.f32 %v3950, %v6187
    %v6189 = vpop.f32.mrb[0].mxu0
    %v6190 = vadd.f32 %v3954, %v6189
    %6191 = vdwg.mxu0
    %6192 = vmatprep.subr.bf16.mxu0 %v4926
    %6193 = vmatpush1.bf16.msra.mxu0 %v4925
    %6194 = vmatprep.subr.bf16.mxu0 %v4932
    %6195 = vmatpush1.bf16.msra.mxu0 %v4931
    %6196 = vmatprep.subr.bf16.mxu0 %v4938
    %6197 = vmatpush1.bf16.msra.mxu0 %v4937
    %6198 = vmatprep.subr.bf16.mxu0 %v4944
    %6199 = vmatpush1.bf16.msra.mxu0 %v4943
    %6200 = vmatprep.subr.bf16.mxu0 %v4950
    %6201 = vmatpush1.bf16.msra.mxu0 %v4949
    %6202 = vmatprep.subr.bf16.mxu0 %v4956
    %6203 = vmatpush1.bf16.msra.mxu0 %v4955
    %6204 = vmatprep.subr.bf16.mxu0 %v4962
    %6205 = vmatpush1.bf16.msra.mxu0 %v4961
    %6206 = vmatprep.subr.bf16.mxu0 %v4968
    %6207 = vmatpush1.bf16.msra.mxu0 %v4967
    %6208 = vmatprep.subr.bf16.mxu0 %v4974
    %6209 = vmatpush1.bf16.msra.mxu0 %v4973
    %6210 = vmatprep.subr.bf16.mxu0 %v4980
    %6211 = vmatpush1.bf16.msra.mxu0 %v4979
    %6212 = vmatprep.subr.bf16.mxu0 %v4986
    %6213 = vmatpush1.bf16.msra.mxu0 %v4985
    %6214 = vmatprep.subr.bf16.mxu0 %v4992
    %6215 = vmatpush1.bf16.msra.mxu0 %v4991
    %6216 = vmatprep.subr.bf16.mxu0 %v4998
    %6217 = vmatpush1.bf16.msra.mxu0 %v4997
    %6218 = vmatprep.subr.bf16.mxu0 %v5004
    %6219 = vmatpush1.bf16.msra.mxu0 %v5003
    %6220 = vmatprep.subr.bf16.mxu0 %v5010
    %6221 = vmatpush1.bf16.msra.mxu0 %v5009
    %6222 = vmatprep.subr.bf16.mxu0 %v5016
    %6223 = vmatpush1.bf16.msra.mxu0 %v5015
    %6224 = vmatprep.mubr.bf16.mxu0 %v3596
    %6225 = vmatmul.mubr.bf16.gmra.mrb[0].mxu0 %v3595
    %v6226 = vpop.f32.mrb[0].mxu0
    %v6227 = vadd.f32 %v6114, %v6226
    %v6228 = vpop.f32.mrb[0].mxu0
    %v6229 = vadd.f32 %v6116, %v6228
    %v6230 = vpop.f32.mrb[0].mxu0
    %v6231 = vadd.f32 %v6118, %v6230
    %v6232 = vpop.f32.mrb[0].mxu0
    %v6233 = vadd.f32 %v6120, %v6232
    %6234 = vmatprep.mubr.bf16.mxu0 %v3602
    %6235 = vmatmul.mubr.bf16.gmra.mrb[0].mxu0 %v3601
    %v6236 = vpop.f32.mrb[0].mxu0
    %v6237 = vadd.f32 %v6124, %v6236
    %v6238 = vpop.f32.mrb[0].mxu0
    %v6239 = vadd.f32 %v6126, %v6238
    %v6240 = vpop.f32.mrb[0].mxu0
    %v6241 = vadd.f32 %v6128, %v6240
    %v6242 = vpop.f32.mrb[0].mxu0
    %v6243 = vadd.f32 %v6130, %v6242
    %6244 = vmatprep.mubr.bf16.mxu0 %v3608
    %6245 = vmatmul.mubr.bf16.gmra.mrb[0].mxu0 %v3607
    %v6246 = vpop.f32.mrb[0].mxu0
    %v6247 = vadd.f32 %v6134, %v6246
    %v6248 = vpop.f32.mrb[0].mxu0
    %v6249 = vadd.f32 %v6136, %v6248
    %v6250 = vpop.f32.mrb[0].mxu0
    %v6251 = vadd.f32 %v6138, %v6250
    %v6252 = vpop.f32.mrb[0].mxu0
    %v6253 = vadd.f32 %v6140, %v6252
    %6254 = vmatprep.mubr.bf16.mxu0 %v3614
    %6255 = vmatmul.mubr.bf16.gmra.mrb[0].mxu0 %v3613
    %v6256 = vpop.f32.mrb[0].mxu0
    %v6257 = vadd.f32 %v6144, %v6256
    %v6258 = vpop.f32.mrb[0].mxu0
    %v6259 = vadd.f32 %v6146, %v6258
    %v6260 = vpop.f32.mrb[0].mxu0
    %v6261 = vadd.f32 %v6148, %v6260
    %v6262 = vpop.f32.mrb[0].mxu0
    %v6263 = vadd.f32 %v6150, %v6262
    %6264 = vmatprep.mubr.bf16.mxu0 %v3620
    %6265 = vmatmul.mubr.bf16.gmra.mrb[0].mxu0 %v3619
    %v6266 = vpop.f32.mrb[0].mxu0
    %v6267 = vadd.f32 %v6154, %v6266
    %v6268 = vpop.f32.mrb[0].mxu0
    %v6269 = vadd.f32 %v6156, %v6268
    %v6270 = vpop.f32.mrb[0].mxu0
    %v6271 = vadd.f32 %v6158, %v6270
    %v6272 = vpop.f32.mrb[0].mxu0
    %v6273 = vadd.f32 %v6160, %v6272
    %6274 = vmatprep.mubr.bf16.mxu0 %v3626
    %6275 = vmatmul.mubr.bf16.gmra.mrb[0].mxu0 %v3625
    %v6276 = vpop.f32.mrb[0].mxu0
    %v6277 = vadd.f32 %v6164, %v6276
    %v6278 = vpop.f32.mrb[0].mxu0
    %v6279 = vadd.f32 %v6166, %v6278
    %v6280 = vpop.f32.mrb[0].mxu0
    %v6281 = vadd.f32 %v6168, %v6280
    %v6282 = vpop.f32.mrb[0].mxu0
    %v6283 = vadd.f32 %v6170, %v6282
    %6284 = vmatprep.mubr.bf16.mxu0 %v3632
    %6285 = vmatmul.mubr.bf16.gmra.mrb[0].mxu0 %v3631
    %v6286 = vpop.f32.mrb[0].mxu0
    %v6287 = vadd.f32 %v6174, %v6286
    %v6288 = vpop.f32.mrb[0].mxu0
    %v6289 = vadd.f32 %v6176, %v6288
    %v6290 = vpop.f32.mrb[0].mxu0
    %v6291 = vadd.f32 %v6178, %v6290
    %v6292 = vpop.f32.mrb[0].mxu0
    %v6293 = vadd.f32 %v6180, %v6292
    %6294 = vmatprep.mubr.bf16.mxu0 %v3638
    %6295 = vmatmul.mubr.bf16.gmra.mrb[0].mxu0 %v3637
    %v6296 = vpop.f32.mrb[0].mxu0
    %v6297 = vadd.f32 %v6184, %v6296
    %v6298 = vpop.f32.mrb[0].mxu0
    %v6299 = vadd.f32 %v6186, %v6298
    %v6300 = vpop.f32.mrb[0].mxu0
    %v6301 = vadd.f32 %v6188, %v6300
    %v6302 = vpop.f32.mrb[0].mxu0
    %v6303 = vadd.f32 %v6190, %v6302
    %6304 = vdwg.mxu0
    %6305 = vmatprep.subr.bf16.mxu0 %v5022
    %6306 = vmatpush1.bf16.msra.mxu0 %v5021
    %6307 = vmatprep.subr.bf16.mxu0 %v5028
    %6308 = vmatpush1.bf16.msra.mxu0 %v5027
    %6309 = vmatprep.subr.bf16.mxu0 %v5034
    %6310 = vmatpush1.bf16.msra.mxu0 %v5033
    %6311 = vmatprep.subr.bf16.mxu0 %v5040
    %6312 = vmatpush1.bf16.msra.mxu0 %v5039
    %6313 = vmatprep.subr.bf16.mxu0 %v5046
    %6314 = vmatpush1.bf16.msra.mxu0 %v5045
    %6315 = vmatprep.subr.bf16.mxu0 %v5052
    %6316 = vmatpush1.bf16.msra.mxu0 %v5051
    %6317 = vmatprep.subr.bf16.mxu0 %v5058
    %6318 = vmatpush1.bf16.msra.mxu0 %v5057
    %6319 = vmatprep.subr.bf16.mxu0 %v5064
    %6320 = vmatpush1.bf16.msra.mxu0 %v5063
    %6321 = vmatprep.subr.bf16.mxu0 %v5070
    %6322 = vmatpush1.bf16.msra.mxu0 %v5069
    %6323 = vmatprep.subr.bf16.mxu0 %v5076
    %6324 = vmatpush1.bf16.msra.mxu0 %v5075
    %6325 = vmatprep.subr.bf16.mxu0 %v5082
    %6326 = vmatpush1.bf16.msra.mxu0 %v5081
    %6327 = vmatprep.subr.bf16.mxu0 %v5088
    %6328 = vmatpush1.bf16.msra.mxu0 %v5087
    %6329 = vmatprep.subr.bf16.mxu0 %v5094
    %6330 = vmatpush1.bf16.msra.mxu0 %v5093
    %6331 = vmatprep.subr.bf16.mxu0 %v5100
    %6332 = vmatpush1.bf16.msra.mxu0 %v5099
    %6333 = vmatprep.subr.bf16.mxu0 %v5106
    %6334 = vmatpush1.bf16.msra.mxu0 %v5105
    %6335 = vmatprep.subr.bf16.mxu0 %v5112
    %6336 = vmatpush1.bf16.msra.mxu0 %v5111
    %6337 = vmatprep.mubr.bf16.mxu0 %v3598
    %6338 = vmatmul.mubr.bf16.gmra.mrb[0].mxu0 %v3597
    %v6339 = vpop.f32.mrb[0].mxu0
    %v6340 = vadd.f32 %v6227, %v6339
    %v6341 = vpop.f32.mrb[0].mxu0
    %v6342 = vadd.f32 %v6229, %v6341
    %v6343 = vpop.f32.mrb[0].mxu0
    %v6344 = vadd.f32 %v6231, %v6343
    %v6345 = vpop.f32.mrb[0].mxu0
    %v6346 = vadd.f32 %v6233, %v6345
    %6347 = vmatprep.mubr.bf16.mxu0 %v3604
    %6348 = vmatmul.mubr.bf16.gmra.mrb[0].mxu0 %v3603
    %v6349 = vpop.f32.mrb[0].mxu0
    %v6350 = vadd.f32 %v6237, %v6349
    %v6351 = vpop.f32.mrb[0].mxu0
    %v6352 = vadd.f32 %v6239, %v6351
    %v6353 = vpop.f32.mrb[0].mxu0
    %v6354 = vadd.f32 %v6241, %v6353
    %v6355 = vpop.f32.mrb[0].mxu0
    %v6356 = vadd.f32 %v6243, %v6355
    %6357 = vmatprep.mubr.bf16.mxu0 %v3610
    %6358 = vmatmul.mubr.bf16.gmra.mrb[0].mxu0 %v3609
    %v6359 = vpop.f32.mrb[0].mxu0
    %v6360 = vadd.f32 %v6247, %v6359
    %v6361 = vpop.f32.mrb[0].mxu0
    %v6362 = vadd.f32 %v6249, %v6361
    %v6363 = vpop.f32.mrb[0].mxu0
    %v6364 = vadd.f32 %v6251, %v6363
    %v6365 = vpop.f32.mrb[0].mxu0
    %v6366 = vadd.f32 %v6253, %v6365
    %6367 = vmatprep.mubr.bf16.mxu0 %v3616
    %6368 = vmatmul.mubr.bf16.gmra.mrb[0].mxu0 %v3615
    %v6369 = vpop.f32.mrb[0].mxu0
    %v6370 = vadd.f32 %v6257, %v6369
    %v6371 = vpop.f32.mrb[0].mxu0
    %v6372 = vadd.f32 %v6259, %v6371
    %v6373 = vpop.f32.mrb[0].mxu0
    %v6374 = vadd.f32 %v6261, %v6373
    %v6375 = vpop.f32.mrb[0].mxu0
    %v6376 = vadd.f32 %v6263, %v6375
    %6377 = vmatprep.mubr.bf16.mxu0 %v3622
    %6378 = vmatmul.mubr.bf16.gmra.mrb[0].mxu0 %v3621
    %v6379 = vpop.f32.mrb[0].mxu0
    %v6380 = vadd.f32 %v6267, %v6379
    %v6381 = vpop.f32.mrb[0].mxu0
    %v6382 = vadd.f32 %v6269, %v6381
    %v6383 = vpop.f32.mrb[0].mxu0
    %v6384 = vadd.f32 %v6271, %v6383
    %v6385 = vpop.f32.mrb[0].mxu0
    %v6386 = vadd.f32 %v6273, %v6385
    %6387 = vmatprep.mubr.bf16.mxu0 %v3628
    %6388 = vmatmul.mubr.bf16.gmra.mrb[0].mxu0 %v3627
    %v6389 = vpop.f32.mrb[0].mxu0
    %v6390 = vadd.f32 %v6277, %v6389
    %v6391 = vpop.f32.mrb[0].mxu0
    %v6392 = vadd.f32 %v6279, %v6391
    %v6393 = vpop.f32.mrb[0].mxu0
    %v6394 = vadd.f32 %v6281, %v6393
    %v6395 = vpop.f32.mrb[0].mxu0
    %v6396 = vadd.f32 %v6283, %v6395
    %6397 = vmatprep.mubr.bf16.mxu0 %v3634
    %6398 = vmatmul.mubr.bf16.gmra.mrb[0].mxu0 %v3633
    %v6399 = vpop.f32.mrb[0].mxu0
    %v6400 = vadd.f32 %v6287, %v6399
    %v6401 = vpop.f32.mrb[0].mxu0
    %v6402 = vadd.f32 %v6289, %v6401
    %v6403 = vpop.f32.mrb[0].mxu0
    %v6404 = vadd.f32 %v6291, %v6403
    %v6405 = vpop.f32.mrb[0].mxu0
    %v6406 = vadd.f32 %v6293, %v6405
    %6407 = vmatprep.mubr.bf16.mxu0 %v3640
    %6408 = vmatmul.mubr.bf16.gmra.mrb[0].mxu0 %v3639
    %v6409 = vpop.f32.mrb[0].mxu0
    %v6410 = vadd.f32 %v6297, %v6409
    %v6411 = vpop.f32.mrb[0].mxu0
    %v6412 = vadd.f32 %v6299, %v6411
    %v6413 = vpop.f32.mrb[0].mxu0
    %v6414 = vadd.f32 %v6301, %v6413
    %v6415 = vpop.f32.mrb[0].mxu0
    %v6416 = vadd.f32 %v6303, %v6415
    %6417 = vdwg.mxu0
    %v6418 = vmax.f32 %v5662, 0.0
    %v6419 = vmax.f32 %v5664, 0.0
    %v6420 = vmax.f32 %v6001, 0.0
    %v6421 = vmax.f32 %v6003, 0.0
    %v6422 = vmax.f32 %v6340, 0.0
    %v6423 = vmax.f32 %v6342, 0.0
    %v6424 = vmax.f32 %v5666, 0.0
    %v6425 = vmax.f32 %v5668, 0.0
    %v6426 = vmax.f32 %v6005, 0.0
    %v6427 = vmax.f32 %v6007, 0.0
    %v6428 = vmax.f32 %v6344, 0.0
    %v6429 = vmax.f32 %v6346, 0.0
    %v6430 = vmax.f32 %v5672, 0.0
    %v6431 = vmax.f32 %v5674, 0.0
    %v6432 = vmax.f32 %v6011, 0.0
    %v6433 = vmax.f32 %v6013, 0.0
    %v6434 = vmax.f32 %v6350, 0.0
    %v6435 = vmax.f32 %v6352, 0.0
    %v6436 = vmax.f32 %v5676, 0.0
    %v6437 = vmax.f32 %v5678, 0.0
    %v6438 = vmax.f32 %v6015, 0.0
    %v6439 = vmax.f32 %v6017, 0.0
    %v6440 = vmax.f32 %v6354, 0.0
    %v6441 = vmax.f32 %v6356, 0.0
    %v6442 = vmax.f32 %v5682, 0.0
    %v6443 = vmax.f32 %v5684, 0.0
    %v6444 = vmax.f32 %v6021, 0.0
    %v6445 = vmax.f32 %v6023, 0.0
    %v6446 = vmax.f32 %v6360, 0.0
    %v6447 = vmax.f32 %v6362, 0.0
    %v6448 = vmax.f32 %v5686, 0.0
    %v6449 = vmax.f32 %v5688, 0.0
    %v6450 = vmax.f32 %v6025, 0.0
    %v6451 = vmax.f32 %v6027, 0.0
    %v6452 = vmax.f32 %v6364, 0.0
    %v6453 = vmax.f32 %v6366, 0.0
    %v6454 = vmax.f32 %v5692, 0.0
    %v6455 = vmax.f32 %v5694, 0.0
    %v6456 = vmax.f32 %v6031, 0.0
    %v6457 = vmax.f32 %v6033, 0.0
    %v6458 = vmax.f32 %v6370, 0.0
    %v6459 = vmax.f32 %v6372, 0.0
    %v6460 = vmax.f32 %v5696, 0.0
    %v6461 = vmax.f32 %v5698, 0.0
    %v6462 = vmax.f32 %v6035, 0.0
    %v6463 = vmax.f32 %v6037, 0.0
    %v6464 = vmax.f32 %v6374, 0.0
    %v6465 = vmax.f32 %v6376, 0.0
    %v6466 = vmax.f32 %v5702, 0.0
    %v6467 = vmax.f32 %v5704, 0.0
    %v6468 = vmax.f32 %v6041, 0.0
    %v6469 = vmax.f32 %v6043, 0.0
    %v6470 = vmax.f32 %v6380, 0.0
    %v6471 = vmax.f32 %v6382, 0.0
    %v6472 = vmax.f32 %v5706, 0.0
    %v6473 = vmax.f32 %v5708, 0.0
    %v6474 = vmax.f32 %v6045, 0.0
    %v6475 = vmax.f32 %v6047, 0.0
    %v6476 = vmax.f32 %v6384, 0.0
    %v6477 = vmax.f32 %v6386, 0.0
    %v6478 = vmax.f32 %v5712, 0.0
    %v6479 = vmax.f32 %v5714, 0.0
    %v6480 = vmax.f32 %v6051, 0.0
    %v6481 = vmax.f32 %v6053, 0.0
    %v6482 = vmax.f32 %v6390, 0.0
    %v6483 = vmax.f32 %v6392, 0.0
    %v6484 = vmax.f32 %v5716, 0.0
    %v6485 = vmax.f32 %v5718, 0.0
    %v6486 = vmax.f32 %v6055, 0.0
    %v6487 = vmax.f32 %v6057, 0.0
    %v6488 = vmax.f32 %v6394, 0.0
    %v6489 = vmax.f32 %v6396, 0.0
    %v6490 = vmax.f32 %v5722, 0.0
    %v6491 = vmax.f32 %v5724, 0.0
    %v6492 = vmax.f32 %v6061, 0.0
    %v6493 = vmax.f32 %v6063, 0.0
    %v6494 = vmax.f32 %v6400, 0.0
    %v6495 = vmax.f32 %v6402, 0.0
    %v6496 = vmax.f32 %v5726, 0.0
    %v6497 = vmax.f32 %v5728, 0.0
    %v6498 = vmax.f32 %v6065, 0.0
    %v6499 = vmax.f32 %v6067, 0.0
    %v6500 = vmax.f32 %v6404, 0.0
    %v6501 = vmax.f32 %v6406, 0.0
    %v6502 = vmax.f32 %v5732, 0.0
    %v6503 = vmax.f32 %v5734, 0.0
    %v6504 = vmax.f32 %v6071, 0.0
    %v6505 = vmax.f32 %v6073, 0.0
    %v6506 = vmax.f32 %v6410, 0.0
    %v6507 = vmax.f32 %v6412, 0.0
    %v6508 = vmax.f32 %v5736, 0.0
    %v6509 = vmax.f32 %v5738, 0.0
    %v6510 = vmax.f32 %v6075, 0.0
    %v6511 = vmax.f32 %v6077, 0.0
    %v6512 = vmax.f32 %v6414, 0.0
    %v6513 = vmax.f32 %v6416, 0.0
    %v6514 = vpack.c.bf16 %v6424, %v6418
    %v6515 = vpack.c.bf16 %v6425, %v6419
    %v6516 = vpack.c.bf16 %v6426, %v6420
    %v6517 = vpack.c.bf16 %v6427, %v6421
    %v6518 = vpack.c.bf16 %v6428, %v6422
    %v6519 = vpack.c.bf16 %v6429, %v6423
    %v6520 = vpack.c.bf16 %v6436, %v6430
    %v6521 = vpack.c.bf16 %v6437, %v6431
    %v6522 = vpack.c.bf16 %v6438, %v6432
    %v6523 = vpack.c.bf16 %v6439, %v6433
    %v6524 = vpack.c.bf16 %v6440, %v6434
    %v6525 = vpack.c.bf16 %v6441, %v6435
    %v6526 = vpack.c.bf16 %v6448, %v6442
    %v6527 = vpack.c.bf16 %v6449, %v6443
    %v6528 = vpack.c.bf16 %v6450, %v6444
    %v6529 = vpack.c.bf16 %v6451, %v6445
    %v6530 = vpack.c.bf16 %v6452, %v6446
    %v6531 = vpack.c.bf16 %v6453, %v6447
    %v6532 = vpack.c.bf16 %v6460, %v6454
    %v6533 = vpack.c.bf16 %v6461, %v6455
    %v6534 = vpack.c.bf16 %v6462, %v6456
    %v6535 = vpack.c.bf16 %v6463, %v6457
    %v6536 = vpack.c.bf16 %v6464, %v6458
    %v6537 = vpack.c.bf16 %v6465, %v6459
    %v6538 = vpack.c.bf16 %v6472, %v6466
    %v6539 = vpack.c.bf16 %v6473, %v6467
    %v6540 = vpack.c.bf16 %v6474, %v6468
    %v6541 = vpack.c.bf16 %v6475, %v6469
    %v6542 = vpack.c.bf16 %v6476, %v6470
    %v6543 = vpack.c.bf16 %v6477, %v6471
    %v6544 = vpack.c.bf16 %v6484, %v6478
    %v6545 = vpack.c.bf16 %v6485, %v6479
    %v6546 = vpack.c.bf16 %v6486, %v6480
    %v6547 = vpack.c.bf16 %v6487, %v6481
    %v6548 = vpack.c.bf16 %v6488, %v6482
    %v6549 = vpack.c.bf16 %v6489, %v6483
    %v6550 = vpack.c.bf16 %v6496, %v6490
    %v6551 = vpack.c.bf16 %v6497, %v6491
    %v6552 = vpack.c.bf16 %v6498, %v6492
    %v6553 = vpack.c.bf16 %v6499, %v6493
    %v6554 = vpack.c.bf16 %v6500, %v6494
    %v6555 = vpack.c.bf16 %v6501, %v6495
    %v6556 = vpack.c.bf16 %v6508, %v6502
    %v6557 = vpack.c.bf16 %v6509, %v6503
    %v6558 = vpack.c.bf16 %v6510, %v6504
    %v6559 = vpack.c.bf16 %v6511, %v6505
    %v6560 = vpack.c.bf16 %v6512, %v6506
    %v6561 = vpack.c.bf16 %v6513, %v6507
    %v6562 = vld [vmem:[%s5] sm:$0xff]
    %v6563 = vld [vmem:[%s5 + $0x8] sm:$0xff]
    %v6564 = vld [vmem:[%s5 + $0x10] sm:$0xff]
    %v6565 = vld [vmem:[%s5 + $0x18] sm:$0xff]
    %v6566 = vld [vmem:[%s5 + $0x20] sm:$0xff]
    %v6567 = vld [vmem:[%s5 + $0x28] sm:$0xff]
    %v6568 = vld [vmem:[%s5 + $0x30] sm:$0xff]
    %v6569 = vld [vmem:[%s5 + $0x38] sm:$0xff]
    %v6570 = vld [vmem:[%s5 + $0x40] sm:$0xff]
    %v6571 = vld [vmem:[%s5 + $0x48] sm:$0xff]
    %v6572 = vld [vmem:[%s5 + $0x50] sm:$0xff]
    %v6573 = vld [vmem:[%s5 + $0x58] sm:$0xff]
    %v6574 = vld [vmem:[%s5 + $0x60] sm:$0xff]
    %v6575 = vld [vmem:[%s5 + $0x68] sm:$0xff]
    %v6576 = vld [vmem:[%s5 + $0x70] sm:$0xff]
    %v6577 = vld [vmem:[%s5 + $0x78] sm:$0xff]
    %v6578 = vld [vmem:[%s5 + $0x80] sm:$0xff]
    %v6579 = vld [vmem:[%s5 + $0x88] sm:$0xff]
    %v6580 = vld [vmem:[%s5 + $0x90] sm:$0xff]
    %v6581 = vld [vmem:[%s5 + $0x98] sm:$0xff]
    %v6582 = vld [vmem:[%s5 + $0xa0] sm:$0xff]
    %v6583 = vld [vmem:[%s5 + $0xa8] sm:$0xff]
    %v6584 = vld [vmem:[%s5 + $0xb0] sm:$0xff]
    %v6585 = vld [vmem:[%s5 + $0xb8] sm:$0xff]
    %v6586 = vld [vmem:[%s5 + $0xc0] sm:$0xff]
    %v6587 = vld [vmem:[%s5 + $0xc8] sm:$0xff]
    %v6588 = vld [vmem:[%s5 + $0xd0] sm:$0xff]
    %v6589 = vld [vmem:[%s5 + $0xd8] sm:$0xff]
    %v6590 = vld [vmem:[%s5 + $0xe0] sm:$0xff]
    %v6591 = vld [vmem:[%s5 + $0xe8] sm:$0xff]
    %v6592 = vld [vmem:[%s5 + $0xf0] sm:$0xff]
    %v6593 = vld [vmem:[%s5 + $0xf8] sm:$0xff]
    %v6594 = vld [vmem:[%s5 + $0x100] sm:$0xff]
    %v6595 = vld [vmem:[%s5 + $0x108] sm:$0xff]
    %v6596 = vld [vmem:[%s5 + $0x110] sm:$0xff]
    %v6597 = vld [vmem:[%s5 + $0x118] sm:$0xff]
    %v6598 = vld [vmem:[%s5 + $0x120] sm:$0xff]
    %v6599 = vld [vmem:[%s5 + $0x128] sm:$0xff]
    %v6600 = vld [vmem:[%s5 + $0x130] sm:$0xff]
    %v6601 = vld [vmem:[%s5 + $0x138] sm:$0xff]
    %v6602 = vld [vmem:[%s5 + $0x140] sm:$0xff]
    %v6603 = vld [vmem:[%s5 + $0x148] sm:$0xff]
    %v6604 = vld [vmem:[%s5 + $0x150] sm:$0xff]
    %v6605 = vld [vmem:[%s5 + $0x158] sm:$0xff]
    %v6606 = vld [vmem:[%s5 + $0x160] sm:$0xff]
    %v6607 = vld [vmem:[%s5 + $0x168] sm:$0xff]
    %v6608 = vld [vmem:[%s5 + $0x170] sm:$0xff]
    %v6609 = vld [vmem:[%s5 + $0x178] sm:$0xff]
    %v6610 = vld [vmem:[%s5 + $0x180] sm:$0xff]
    %v6611 = vld [vmem:[%s5 + $0x188] sm:$0xff]
    %v6612 = vld [vmem:[%s5 + $0x190] sm:$0xff]
    %v6613 = vld [vmem:[%s5 + $0x198] sm:$0xff]
    %v6614 = vld [vmem:[%s5 + $0x1a0] sm:$0xff]
    %v6615 = vld [vmem:[%s5 + $0x1a8] sm:$0xff]
    %v6616 = vld [vmem:[%s5 + $0x1b0] sm:$0xff]
    %v6617 = vld [vmem:[%s5 + $0x1b8] sm:$0xff]
    %v6618 = vld [vmem:[%s5 + $0x1c0] sm:$0xff]
    %v6619 = vld [vmem:[%s5 + $0x1c8] sm:$0xff]
    %v6620 = vld [vmem:[%s5 + $0x1d0] sm:$0xff]
    %v6621 = vld [vmem:[%s5 + $0x1d8] sm:$0xff]
    %v6622 = vld [vmem:[%s5 + $0x1e0] sm:$0xff]
    %v6623 = vld [vmem:[%s5 + $0x1e8] sm:$0xff]
    %v6624 = vld [vmem:[%s5 + $0x1f0] sm:$0xff]
    %v6625 = vld [vmem:[%s5 + $0x1f8] sm:$0xff]
    %v6626 = vld [vmem:[%s5 + $0x200] sm:$0xff]
    %v6627 = vld [vmem:[%s5 + $0x208] sm:$0xff]
    %v6628 = vld [vmem:[%s5 + $0x210] sm:$0xff]
    %v6629 = vld [vmem:[%s5 + $0x218] sm:$0xff]
    %v6630 = vld [vmem:[%s5 + $0x220] sm:$0xff]
    %v6631 = vld [vmem:[%s5 + $0x228] sm:$0xff]
    %v6632 = vld [vmem:[%s5 + $0x230] sm:$0xff]
    %v6633 = vld [vmem:[%s5 + $0x238] sm:$0xff]
    %v6634 = vld [vmem:[%s5 + $0x240] sm:$0xff]
    %v6635 = vld [vmem:[%s5 + $0x248] sm:$0xff]
    %v6636 = vld [vmem:[%s5 + $0x250] sm:$0xff]
    %v6637 = vld [vmem:[%s5 + $0x258] sm:$0xff]
    %v6638 = vld [vmem:[%s5 + $0x260] sm:$0xff]
    %v6639 = vld [vmem:[%s5 + $0x268] sm:$0xff]
    %v6640 = vld [vmem:[%s5 + $0x270] sm:$0xff]
    %v6641 = vld [vmem:[%s5 + $0x278] sm:$0xff]
    %v6642 = vld [vmem:[%s5 + $0x280] sm:$0xff]
    %v6643 = vld [vmem:[%s5 + $0x288] sm:$0xff]
    %v6644 = vld [vmem:[%s5 + $0x290] sm:$0xff]
    %v6645 = vld [vmem:[%s5 + $0x298] sm:$0xff]
    %v6646 = vld [vmem:[%s5 + $0x2a0] sm:$0xff]
    %v6647 = vld [vmem:[%s5 + $0x2a8] sm:$0xff]
    %v6648 = vld [vmem:[%s5 + $0x2b0] sm:$0xff]
    %v6649 = vld [vmem:[%s5 + $0x2b8] sm:$0xff]
    %v6650 = vld [vmem:[%s5 + $0x2c0] sm:$0xff]
    %v6651 = vld [vmem:[%s5 + $0x2c8] sm:$0xff]
    %v6652 = vld [vmem:[%s5 + $0x2d0] sm:$0xff]
    %v6653 = vld [vmem:[%s5 + $0x2d8] sm:$0xff]
    %v6654 = vld [vmem:[%s5 + $0x2e0] sm:$0xff]
    %v6655 = vld [vmem:[%s5 + $0x2e8] sm:$0xff]
    %v6656 = vld [vmem:[%s5 + $0x2f0] sm:$0xff]
    %v6657 = vld [vmem:[%s5 + $0x2f8] sm:$0xff]
    %v6658 = vld [vmem:[%s5 + $0x300] sm:$0xff]
    %v6659 = vld [vmem:[%s5 + $0x308] sm:$0xff]
    %v6660 = vld [vmem:[%s5 + $0x310] sm:$0xff]
    %v6661 = vld [vmem:[%s5 + $0x318] sm:$0xff]
    %v6662 = vld [vmem:[%s5 + $0x320] sm:$0xff]
    %v6663 = vld [vmem:[%s5 + $0x328] sm:$0xff]
    %v6664 = vld [vmem:[%s5 + $0x330] sm:$0xff]
    %v6665 = vld [vmem:[%s5 + $0x338] sm:$0xff]
    %v6666 = vld [vmem:[%s5 + $0x340] sm:$0xff]
    %v6667 = vld [vmem:[%s5 + $0x348] sm:$0xff]
    %v6668 = vld [vmem:[%s5 + $0x350] sm:$0xff]
    %v6669 = vld [vmem:[%s5 + $0x358] sm:$0xff]
    %v6670 = vld [vmem:[%s5 + $0x360] sm:$0xff]
    %v6671 = vld [vmem:[%s5 + $0x368] sm:$0xff]
    %v6672 = vld [vmem:[%s5 + $0x370] sm:$0xff]
    %v6673 = vld [vmem:[%s5 + $0x378] sm:$0xff]
    %v6674 = vld [vmem:[%s5 + $0x380] sm:$0xff]
    %v6675 = vld [vmem:[%s5 + $0x388] sm:$0xff]
    %v6676 = vld [vmem:[%s5 + $0x390] sm:$0xff]
    %v6677 = vld [vmem:[%s5 + $0x398] sm:$0xff]
    %v6678 = vld [vmem:[%s5 + $0x3a0] sm:$0xff]
    %v6679 = vld [vmem:[%s5 + $0x3a8] sm:$0xff]
    %v6680 = vld [vmem:[%s5 + $0x3b0] sm:$0xff]
    %v6681 = vld [vmem:[%s5 + $0x3b8] sm:$0xff]
    %v6682 = vld [vmem:[%s5 + $0x3c0] sm:$0xff]
    %v6683 = vld [vmem:[%s5 + $0x3c8] sm:$0xff]
    %v6684 = vld [vmem:[%s5 + $0x3d0] sm:$0xff]
    %v6685 = vld [vmem:[%s5 + $0x3d8] sm:$0xff]
    %v6686 = vld [vmem:[%s5 + $0x3e0] sm:$0xff]
    %v6687 = vld [vmem:[%s5 + $0x3e8] sm:$0xff]
    %v6688 = vld [vmem:[%s5 + $0x3f0] sm:$0xff]
    %v6689 = vld [vmem:[%s5 + $0x3f8] sm:$0xff]
    %v6690 = vld [vmem:[%s5 + $0x400] sm:$0xff]
    %v6691 = vld [vmem:[%s5 + $0x408] sm:$0xff]
    %v6692 = vld [vmem:[%s5 + $0x410] sm:$0xff]
    %v6693 = vld [vmem:[%s5 + $0x418] sm:$0xff]
    %v6694 = vld [vmem:[%s5 + $0x420] sm:$0xff]
    %v6695 = vld [vmem:[%s5 + $0x428] sm:$0xff]
    %v6696 = vld [vmem:[%s5 + $0x430] sm:$0xff]
    %v6697 = vld [vmem:[%s5 + $0x438] sm:$0xff]
    %v6698 = vld [vmem:[%s5 + $0x440] sm:$0xff]
    %v6699 = vld [vmem:[%s5 + $0x448] sm:$0xff]
    %v6700 = vld [vmem:[%s5 + $0x450] sm:$0xff]
    %v6701 = vld [vmem:[%s5 + $0x458] sm:$0xff]
    %v6702 = vld [vmem:[%s5 + $0x460] sm:$0xff]
    %v6703 = vld [vmem:[%s5 + $0x468] sm:$0xff]
    %v6704 = vld [vmem:[%s5 + $0x470] sm:$0xff]
    %v6705 = vld [vmem:[%s5 + $0x478] sm:$0xff]
    %v6706 = vld [vmem:[%s5 + $0x480] sm:$0xff]
    %v6707 = vld [vmem:[%s5 + $0x488] sm:$0xff]
    %v6708 = vld [vmem:[%s5 + $0x490] sm:$0xff]
    %v6709 = vld [vmem:[%s5 + $0x498] sm:$0xff]
    %v6710 = vld [vmem:[%s5 + $0x4a0] sm:$0xff]
    %v6711 = vld [vmem:[%s5 + $0x4a8] sm:$0xff]
    %v6712 = vld [vmem:[%s5 + $0x4b0] sm:$0xff]
    %v6713 = vld [vmem:[%s5 + $0x4b8] sm:$0xff]
    %v6714 = vld [vmem:[%s5 + $0x4c0] sm:$0xff]
    %v6715 = vld [vmem:[%s5 + $0x4c8] sm:$0xff]
    %v6716 = vld [vmem:[%s5 + $0x4d0] sm:$0xff]
    %v6717 = vld [vmem:[%s5 + $0x4d8] sm:$0xff]
    %v6718 = vld [vmem:[%s5 + $0x4e0] sm:$0xff]
    %v6719 = vld [vmem:[%s5 + $0x4e8] sm:$0xff]
    %v6720 = vld [vmem:[%s5 + $0x4f0] sm:$0xff]
    %v6721 = vld [vmem:[%s5 + $0x4f8] sm:$0xff]
    %v6722 = vld [vmem:[%s5 + $0x500] sm:$0xff]
    %v6723 = vld [vmem:[%s5 + $0x508] sm:$0xff]
    %v6724 = vld [vmem:[%s5 + $0x510] sm:$0xff]
    %v6725 = vld [vmem:[%s5 + $0x518] sm:$0xff]
    %v6726 = vld [vmem:[%s5 + $0x520] sm:$0xff]
    %v6727 = vld [vmem:[%s5 + $0x528] sm:$0xff]
    %v6728 = vld [vmem:[%s5 + $0x530] sm:$0xff]
    %v6729 = vld [vmem:[%s5 + $0x538] sm:$0xff]
    %v6730 = vld [vmem:[%s5 + $0x540] sm:$0xff]
    %v6731 = vld [vmem:[%s5 + $0x548] sm:$0xff]
    %v6732 = vld [vmem:[%s5 + $0x550] sm:$0xff]
    %v6733 = vld [vmem:[%s5 + $0x558] sm:$0xff]
    %v6734 = vld [vmem:[%s5 + $0x560] sm:$0xff]
    %v6735 = vld [vmem:[%s5 + $0x568] sm:$0xff]
    %v6736 = vld [vmem:[%s5 + $0x570] sm:$0xff]
    %v6737 = vld [vmem:[%s5 + $0x578] sm:$0xff]
    %v6738 = vld [vmem:[%s5 + $0x580] sm:$0xff]
    %v6739 = vld [vmem:[%s5 + $0x588] sm:$0xff]
    %v6740 = vld [vmem:[%s5 + $0x590] sm:$0xff]
    %v6741 = vld [vmem:[%s5 + $0x598] sm:$0xff]
    %v6742 = vld [vmem:[%s5 + $0x5a0] sm:$0xff]
    %v6743 = vld [vmem:[%s5 + $0x5a8] sm:$0xff]
    %v6744 = vld [vmem:[%s5 + $0x5b0] sm:$0xff]
    %v6745 = vld [vmem:[%s5 + $0x5b8] sm:$0xff]
    %v6746 = vld [vmem:[%s5 + $0x5c0] sm:$0xff]
    %v6747 = vld [vmem:[%s5 + $0x5c8] sm:$0xff]
    %v6748 = vld [vmem:[%s5 + $0x5d0] sm:$0xff]
    %v6749 = vld [vmem:[%s5 + $0x5d8] sm:$0xff]
    %v6750 = vld [vmem:[%s5 + $0x5e0] sm:$0xff]
    %v6751 = vld [vmem:[%s5 + $0x5e8] sm:$0xff]
    %v6752 = vld [vmem:[%s5 + $0x5f0] sm:$0xff]
    %v6753 = vld [vmem:[%s5 + $0x5f8] sm:$0xff]
    %v6754 = vld [vmem:[#allocation10] sm:$0xf]
    %v6756 = vlaneseq
    %v6757 = vshrl.u32 %v6756, 7
    %v6758 = vsub.s32 0, %v6757
    %v6759 = vrot.slane %v6754, %v6758
    %v6760 = vlaneseq
    %v6761 = vshrl.u32 %v6760, 7
    %v6762 = vsub.s32 1, %v6761
    %v6763 = vrot.slane %v6754, %v6762
    %v6764 = vlaneseq
    %v6765 = vshrl.u32 %v6764, 7
    %v6766 = vsub.s32 2, %v6765
    %v6767 = vrot.slane %v6754, %v6766
    %v6768 = vlaneseq
    %v6769 = vshrl.u32 %v6768, 7
    %v6770 = vsub.s32 3, %v6769
    %v6771 = vrot.slane %v6754, %v6770
    %v6968 = vunpack.c.l.b16 %v6562
    %v6969 = vunpack.c.h.b16 %v6562
    %v6970 = vunpack.c.l.b16 %v6563
    %v6971 = vunpack.c.h.b16 %v6563
    %v6972 = vunpack.c.l.b16 %v6564
    %v6973 = vunpack.c.h.b16 %v6564
    %v6974 = vunpack.c.l.b16 %v6565
    %v6975 = vunpack.c.h.b16 %v6565
    %v6976 = vunpack.c.l.b16 %v6566
    %v6977 = vunpack.c.h.b16 %v6566
    %v6978 = vunpack.c.l.b16 %v6567
    %v6979 = vunpack.c.h.b16 %v6567
    %v6980 = vunpack.c.l.b16 %v6568
    %v6981 = vunpack.c.h.b16 %v6568
    %v6982 = vunpack.c.l.b16 %v6569
    %v6983 = vunpack.c.h.b16 %v6569
    %v6984 = vunpack.c.l.b16 %v6570
    %v6985 = vunpack.c.h.b16 %v6570
    %v6986 = vunpack.c.l.b16 %v6571
    %v6987 = vunpack.c.h.b16 %v6571
    %v6988 = vunpack.c.l.b16 %v6572
    %v6989 = vunpack.c.h.b16 %v6572
    %v6990 = vunpack.c.l.b16 %v6573
    %v6991 = vunpack.c.h.b16 %v6573
    %v6992 = vunpack.c.l.b16 %v6574
    %v6993 = vunpack.c.h.b16 %v6574
    %v6994 = vunpack.c.l.b16 %v6575
    %v6995 = vunpack.c.h.b16 %v6575
    %v6996 = vunpack.c.l.b16 %v6576
    %v6997 = vunpack.c.h.b16 %v6576
    %v6998 = vunpack.c.l.b16 %v6577
    %v6999 = vunpack.c.h.b16 %v6577
    %v7000 = vunpack.c.l.b16 %v6578
    %v7001 = vunpack.c.h.b16 %v6578
    %v7002 = vunpack.c.l.b16 %v6579
    %v7003 = vunpack.c.h.b16 %v6579
    %v7004 = vunpack.c.l.b16 %v6580
    %v7005 = vunpack.c.h.b16 %v6580
    %v7006 = vunpack.c.l.b16 %v6581
    %v7007 = vunpack.c.h.b16 %v6581
    %v7008 = vunpack.c.l.b16 %v6582
    %v7009 = vunpack.c.h.b16 %v6582
    %v7010 = vunpack.c.l.b16 %v6583
    %v7011 = vunpack.c.h.b16 %v6583
    %v7012 = vunpack.c.l.b16 %v6584
    %v7013 = vunpack.c.h.b16 %v6584
    %v7014 = vunpack.c.l.b16 %v6585
    %v7015 = vunpack.c.h.b16 %v6585
    %v7016 = vunpack.c.l.b16 %v6586
    %v7017 = vunpack.c.h.b16 %v6586
    %v7018 = vunpack.c.l.b16 %v6587
    %v7019 = vunpack.c.h.b16 %v6587
    %v7020 = vunpack.c.l.b16 %v6588
    %v7021 = vunpack.c.h.b16 %v6588
    %v7022 = vunpack.c.l.b16 %v6589
    %v7023 = vunpack.c.h.b16 %v6589
    %v7024 = vunpack.c.l.b16 %v6590
    %v7025 = vunpack.c.h.b16 %v6590
    %v7026 = vunpack.c.l.b16 %v6591
    %v7027 = vunpack.c.h.b16 %v6591
    %v7028 = vunpack.c.l.b16 %v6592
    %v7029 = vunpack.c.h.b16 %v6592
    %v7030 = vunpack.c.l.b16 %v6593
    %v7031 = vunpack.c.h.b16 %v6593
    %v7032 = vunpack.c.l.b16 %v6594
    %v7033 = vunpack.c.h.b16 %v6594
    %v7034 = vunpack.c.l.b16 %v6595
    %v7035 = vunpack.c.h.b16 %v6595
    %v7036 = vunpack.c.l.b16 %v6596
    %v7037 = vunpack.c.h.b16 %v6596
    %v7038 = vunpack.c.l.b16 %v6597
    %v7039 = vunpack.c.h.b16 %v6597
    %v7040 = vunpack.c.l.b16 %v6598
    %v7041 = vunpack.c.h.b16 %v6598
    %v7042 = vunpack.c.l.b16 %v6599
    %v7043 = vunpack.c.h.b16 %v6599
    %v7044 = vunpack.c.l.b16 %v6600
    %v7045 = vunpack.c.h.b16 %v6600
    %v7046 = vunpack.c.l.b16 %v6601
    %v7047 = vunpack.c.h.b16 %v6601
    %v7048 = vunpack.c.l.b16 %v6602
    %v7049 = vunpack.c.h.b16 %v6602
    %v7050 = vunpack.c.l.b16 %v6603
    %v7051 = vunpack.c.h.b16 %v6603
    %v7052 = vunpack.c.l.b16 %v6604
    %v7053 = vunpack.c.h.b16 %v6604
    %v7054 = vunpack.c.l.b16 %v6605
    %v7055 = vunpack.c.h.b16 %v6605
    %v7056 = vunpack.c.l.b16 %v6606
    %v7057 = vunpack.c.h.b16 %v6606
    %v7058 = vunpack.c.l.b16 %v6607
    %v7059 = vunpack.c.h.b16 %v6607
    %v7060 = vunpack.c.l.b16 %v6608
    %v7061 = vunpack.c.h.b16 %v6608
    %v7062 = vunpack.c.l.b16 %v6609
    %v7063 = vunpack.c.h.b16 %v6609
    %v7064 = vunpack.c.l.b16 %v6610
    %v7065 = vunpack.c.h.b16 %v6610
    %v7066 = vunpack.c.l.b16 %v6611
    %v7067 = vunpack.c.h.b16 %v6611
    %v7068 = vunpack.c.l.b16 %v6612
    %v7069 = vunpack.c.h.b16 %v6612
    %v7070 = vunpack.c.l.b16 %v6613
    %v7071 = vunpack.c.h.b16 %v6613
    %v7072 = vunpack.c.l.b16 %v6614
    %v7073 = vunpack.c.h.b16 %v6614
    %v7074 = vunpack.c.l.b16 %v6615
    %v7075 = vunpack.c.h.b16 %v6615
    %v7076 = vunpack.c.l.b16 %v6616
    %v7077 = vunpack.c.h.b16 %v6616
    %v7078 = vunpack.c.l.b16 %v6617
    %v7079 = vunpack.c.h.b16 %v6617
    %v7080 = vunpack.c.l.b16 %v6618
    %v7081 = vunpack.c.h.b16 %v6618
    %v7082 = vunpack.c.l.b16 %v6619
    %v7083 = vunpack.c.h.b16 %v6619
    %v7084 = vunpack.c.l.b16 %v6620
    %v7085 = vunpack.c.h.b16 %v6620
    %v7086 = vunpack.c.l.b16 %v6621
    %v7087 = vunpack.c.h.b16 %v6621
    %v7088 = vunpack.c.l.b16 %v6622
    %v7089 = vunpack.c.h.b16 %v6622
    %v7090 = vunpack.c.l.b16 %v6623
    %v7091 = vunpack.c.h.b16 %v6623
    %v7092 = vunpack.c.l.b16 %v6624
    %v7093 = vunpack.c.h.b16 %v6624
    %v7094 = vunpack.c.l.b16 %v6625
    %v7095 = vunpack.c.h.b16 %v6625
    %v7096 = vunpack.c.l.b16 %v6626
    %v7097 = vunpack.c.h.b16 %v6626
    %v7098 = vunpack.c.l.b16 %v6627
    %v7099 = vunpack.c.h.b16 %v6627
    %v7100 = vunpack.c.l.b16 %v6628
    %v7101 = vunpack.c.h.b16 %v6628
    %v7102 = vunpack.c.l.b16 %v6629
    %v7103 = vunpack.c.h.b16 %v6629
    %v7104 = vunpack.c.l.b16 %v6630
    %v7105 = vunpack.c.h.b16 %v6630
    %v7106 = vunpack.c.l.b16 %v6631
    %v7107 = vunpack.c.h.b16 %v6631
    %v7108 = vunpack.c.l.b16 %v6632
    %v7109 = vunpack.c.h.b16 %v6632
    %v7110 = vunpack.c.l.b16 %v6633
    %v7111 = vunpack.c.h.b16 %v6633
    %v7112 = vunpack.c.l.b16 %v6634
    %v7113 = vunpack.c.h.b16 %v6634
    %v7114 = vunpack.c.l.b16 %v6635
    %v7115 = vunpack.c.h.b16 %v6635
    %v7116 = vunpack.c.l.b16 %v6636
    %v7117 = vunpack.c.h.b16 %v6636
    %v7118 = vunpack.c.l.b16 %v6637
    %v7119 = vunpack.c.h.b16 %v6637
    %v7120 = vunpack.c.l.b16 %v6638
    %v7121 = vunpack.c.h.b16 %v6638
    %v7122 = vunpack.c.l.b16 %v6639
    %v7123 = vunpack.c.h.b16 %v6639
    %v7124 = vunpack.c.l.b16 %v6640
    %v7125 = vunpack.c.h.b16 %v6640
    %v7126 = vunpack.c.l.b16 %v6641
    %v7127 = vunpack.c.h.b16 %v6641
    %v7128 = vunpack.c.l.b16 %v6642
    %v7129 = vunpack.c.h.b16 %v6642
    %v7130 = vunpack.c.l.b16 %v6643
    %v7131 = vunpack.c.h.b16 %v6643
    %v7132 = vunpack.c.l.b16 %v6644
    %v7133 = vunpack.c.h.b16 %v6644
    %v7134 = vunpack.c.l.b16 %v6645
    %v7135 = vunpack.c.h.b16 %v6645
    %v7136 = vunpack.c.l.b16 %v6646
    %v7137 = vunpack.c.h.b16 %v6646
    %v7138 = vunpack.c.l.b16 %v6647
    %v7139 = vunpack.c.h.b16 %v6647
    %v7140 = vunpack.c.l.b16 %v6648
    %v7141 = vunpack.c.h.b16 %v6648
    %v7142 = vunpack.c.l.b16 %v6649
    %v7143 = vunpack.c.h.b16 %v6649
    %v7144 = vunpack.c.l.b16 %v6650
    %v7145 = vunpack.c.h.b16 %v6650
    %v7146 = vunpack.c.l.b16 %v6651
    %v7147 = vunpack.c.h.b16 %v6651
    %v7148 = vunpack.c.l.b16 %v6652
    %v7149 = vunpack.c.h.b16 %v6652
    %v7150 = vunpack.c.l.b16 %v6653
    %v7151 = vunpack.c.h.b16 %v6653
    %v7152 = vunpack.c.l.b16 %v6654
    %v7153 = vunpack.c.h.b16 %v6654
    %v7154 = vunpack.c.l.b16 %v6655
    %v7155 = vunpack.c.h.b16 %v6655
    %v7156 = vunpack.c.l.b16 %v6656
    %v7157 = vunpack.c.h.b16 %v6656
    %v7158 = vunpack.c.l.b16 %v6657
    %v7159 = vunpack.c.h.b16 %v6657
    %v7160 = vunpack.c.l.b16 %v6658
    %v7161 = vunpack.c.h.b16 %v6658
    %v7162 = vunpack.c.l.b16 %v6659
    %v7163 = vunpack.c.h.b16 %v6659
    %v7164 = vunpack.c.l.b16 %v6660
    %v7165 = vunpack.c.h.b16 %v6660
    %v7166 = vunpack.c.l.b16 %v6661
    %v7167 = vunpack.c.h.b16 %v6661
    %v7168 = vunpack.c.l.b16 %v6662
    %v7169 = vunpack.c.h.b16 %v6662
    %v7170 = vunpack.c.l.b16 %v6663
    %v7171 = vunpack.c.h.b16 %v6663
    %v7172 = vunpack.c.l.b16 %v6664
    %v7173 = vunpack.c.h.b16 %v6664
    %v7174 = vunpack.c.l.b16 %v6665
    %v7175 = vunpack.c.h.b16 %v6665
    %v7176 = vunpack.c.l.b16 %v6666
    %v7177 = vunpack.c.h.b16 %v6666
    %v7178 = vunpack.c.l.b16 %v6667
    %v7179 = vunpack.c.h.b16 %v6667
    %v7180 = vunpack.c.l.b16 %v6668
    %v7181 = vunpack.c.h.b16 %v6668
    %v7182 = vunpack.c.l.b16 %v6669
    %v7183 = vunpack.c.h.b16 %v6669
    %v7184 = vunpack.c.l.b16 %v6670
    %v7185 = vunpack.c.h.b16 %v6670
    %v7186 = vunpack.c.l.b16 %v6671
    %v7187 = vunpack.c.h.b16 %v6671
    %v7188 = vunpack.c.l.b16 %v6672
    %v7189 = vunpack.c.h.b16 %v6672
    %v7190 = vunpack.c.l.b16 %v6673
    %v7191 = vunpack.c.h.b16 %v6673
    %v7192 = vunpack.c.l.b16 %v6674
    %v7193 = vunpack.c.h.b16 %v6674
    %v7194 = vunpack.c.l.b16 %v6675
    %v7195 = vunpack.c.h.b16 %v6675
    %v7196 = vunpack.c.l.b16 %v6676
    %v7197 = vunpack.c.h.b16 %v6676
    %v7198 = vunpack.c.l.b16 %v6677
    %v7199 = vunpack.c.h.b16 %v6677
    %v7200 = vunpack.c.l.b16 %v6678
    %v7201 = vunpack.c.h.b16 %v6678
    %v7202 = vunpack.c.l.b16 %v6679
    %v7203 = vunpack.c.h.b16 %v6679
    %v7204 = vunpack.c.l.b16 %v6680
    %v7205 = vunpack.c.h.b16 %v6680
    %v7206 = vunpack.c.l.b16 %v6681
    %v7207 = vunpack.c.h.b16 %v6681
    %v7208 = vunpack.c.l.b16 %v6682
    %v7209 = vunpack.c.h.b16 %v6682
    %v7210 = vunpack.c.l.b16 %v6683
    %v7211 = vunpack.c.h.b16 %v6683
    %v7212 = vunpack.c.l.b16 %v6684
    %v7213 = vunpack.c.h.b16 %v6684
    %v7214 = vunpack.c.l.b16 %v6685
    %v7215 = vunpack.c.h.b16 %v6685
    %v7216 = vunpack.c.l.b16 %v6686
    %v7217 = vunpack.c.h.b16 %v6686
    %v7218 = vunpack.c.l.b16 %v6687
    %v7219 = vunpack.c.h.b16 %v6687
    %v7220 = vunpack.c.l.b16 %v6688
    %v7221 = vunpack.c.h.b16 %v6688
    %v7222 = vunpack.c.l.b16 %v6689
    %v7223 = vunpack.c.h.b16 %v6689
    %v7224 = vunpack.c.l.b16 %v6690
    %v7225 = vunpack.c.h.b16 %v6690
    %v7226 = vunpack.c.l.b16 %v6691
    %v7227 = vunpack.c.h.b16 %v6691
    %v7228 = vunpack.c.l.b16 %v6692
    %v7229 = vunpack.c.h.b16 %v6692
    %v7230 = vunpack.c.l.b16 %v6693
    %v7231 = vunpack.c.h.b16 %v6693
    %v7232 = vunpack.c.l.b16 %v6694
    %v7233 = vunpack.c.h.b16 %v6694
    %v7234 = vunpack.c.l.b16 %v6695
    %v7235 = vunpack.c.h.b16 %v6695
    %v7236 = vunpack.c.l.b16 %v6696
    %v7237 = vunpack.c.h.b16 %v6696
    %v7238 = vunpack.c.l.b16 %v6697
    %v7239 = vunpack.c.h.b16 %v6697
    %v7240 = vunpack.c.l.b16 %v6698
    %v7241 = vunpack.c.h.b16 %v6698
    %v7242 = vunpack.c.l.b16 %v6699
    %v7243 = vunpack.c.h.b16 %v6699
    %v7244 = vunpack.c.l.b16 %v6700
    %v7245 = vunpack.c.h.b16 %v6700
    %v7246 = vunpack.c.l.b16 %v6701
    %v7247 = vunpack.c.h.b16 %v6701
    %v7248 = vunpack.c.l.b16 %v6702
    %v7249 = vunpack.c.h.b16 %v6702
    %v7250 = vunpack.c.l.b16 %v6703
    %v7251 = vunpack.c.h.b16 %v6703
    %v7252 = vunpack.c.l.b16 %v6704
    %v7253 = vunpack.c.h.b16 %v6704
    %v7254 = vunpack.c.l.b16 %v6705
    %v7255 = vunpack.c.h.b16 %v6705
    %v7256 = vunpack.c.l.b16 %v6706
    %v7257 = vunpack.c.h.b16 %v6706
    %v7258 = vunpack.c.l.b16 %v6707
    %v7259 = vunpack.c.h.b16 %v6707
    %v7260 = vunpack.c.l.b16 %v6708
    %v7261 = vunpack.c.h.b16 %v6708
    %v7262 = vunpack.c.l.b16 %v6709
    %v7263 = vunpack.c.h.b16 %v6709
    %v7264 = vunpack.c.l.b16 %v6710
    %v7265 = vunpack.c.h.b16 %v6710
    %v7266 = vunpack.c.l.b16 %v6711
    %v7267 = vunpack.c.h.b16 %v6711
    %v7268 = vunpack.c.l.b16 %v6712
    %v7269 = vunpack.c.h.b16 %v6712
    %v7270 = vunpack.c.l.b16 %v6713
    %v7271 = vunpack.c.h.b16 %v6713
    %v7272 = vunpack.c.l.b16 %v6714
    %v7273 = vunpack.c.h.b16 %v6714
    %v7274 = vunpack.c.l.b16 %v6715
    %v7275 = vunpack.c.h.b16 %v6715
    %v7276 = vunpack.c.l.b16 %v6716
    %v7277 = vunpack.c.h.b16 %v6716
    %v7278 = vunpack.c.l.b16 %v6717
    %v7279 = vunpack.c.h.b16 %v6717
    %v7280 = vunpack.c.l.b16 %v6718
    %v7281 = vunpack.c.h.b16 %v6718
    %v7282 = vunpack.c.l.b16 %v6719
    %v7283 = vunpack.c.h.b16 %v6719
    %v7284 = vunpack.c.l.b16 %v6720
    %v7285 = vunpack.c.h.b16 %v6720
    %v7286 = vunpack.c.l.b16 %v6721
    %v7287 = vunpack.c.h.b16 %v6721
    %v7288 = vunpack.c.l.b16 %v6722
    %v7289 = vunpack.c.h.b16 %v6722
    %v7290 = vunpack.c.l.b16 %v6723
    %v7291 = vunpack.c.h.b16 %v6723
    %v7292 = vunpack.c.l.b16 %v6724
    %v7293 = vunpack.c.h.b16 %v6724
    %v7294 = vunpack.c.l.b16 %v6725
    %v7295 = vunpack.c.h.b16 %v6725
    %v7296 = vunpack.c.l.b16 %v6726
    %v7297 = vunpack.c.h.b16 %v6726
    %v7298 = vunpack.c.l.b16 %v6727
    %v7299 = vunpack.c.h.b16 %v6727
    %v7300 = vunpack.c.l.b16 %v6728
    %v7301 = vunpack.c.h.b16 %v6728
    %v7302 = vunpack.c.l.b16 %v6729
    %v7303 = vunpack.c.h.b16 %v6729
    %v7304 = vunpack.c.l.b16 %v6730
    %v7305 = vunpack.c.h.b16 %v6730
    %v7306 = vunpack.c.l.b16 %v6731
    %v7307 = vunpack.c.h.b16 %v6731
    %v7308 = vunpack.c.l.b16 %v6732
    %v7309 = vunpack.c.h.b16 %v6732
    %v7310 = vunpack.c.l.b16 %v6733
    %v7311 = vunpack.c.h.b16 %v6733
    %v7312 = vunpack.c.l.b16 %v6734
    %v7313 = vunpack.c.h.b16 %v6734
    %v7314 = vunpack.c.l.b16 %v6735
    %v7315 = vunpack.c.h.b16 %v6735
    %v7316 = vunpack.c.l.b16 %v6736
    %v7317 = vunpack.c.h.b16 %v6736
    %v7318 = vunpack.c.l.b16 %v6737
    %v7319 = vunpack.c.h.b16 %v6737
    %v7320 = vunpack.c.l.b16 %v6738
    %v7321 = vunpack.c.h.b16 %v6738
    %v7322 = vunpack.c.l.b16 %v6739
    %v7323 = vunpack.c.h.b16 %v6739
    %v7324 = vunpack.c.l.b16 %v6740
    %v7325 = vunpack.c.h.b16 %v6740
    %v7326 = vunpack.c.l.b16 %v6741
    %v7327 = vunpack.c.h.b16 %v6741
    %v7328 = vunpack.c.l.b16 %v6742
    %v7329 = vunpack.c.h.b16 %v6742
    %v7330 = vunpack.c.l.b16 %v6743
    %v7331 = vunpack.c.h.b16 %v6743
    %v7332 = vunpack.c.l.b16 %v6744
    %v7333 = vunpack.c.h.b16 %v6744
    %v7334 = vunpack.c.l.b16 %v6745
    %v7335 = vunpack.c.h.b16 %v6745
    %v7336 = vunpack.c.l.b16 %v6746
    %v7337 = vunpack.c.h.b16 %v6746
    %v7338 = vunpack.c.l.b16 %v6747
    %v7339 = vunpack.c.h.b16 %v6747
    %v7340 = vunpack.c.l.b16 %v6748
    %v7341 = vunpack.c.h.b16 %v6748
    %v7342 = vunpack.c.l.b16 %v6749
    %v7343 = vunpack.c.h.b16 %v6749
    %v7344 = vunpack.c.l.b16 %v6750
    %v7345 = vunpack.c.h.b16 %v6750
    %v7346 = vunpack.c.l.b16 %v6751
    %v7347 = vunpack.c.h.b16 %v6751
    %v7348 = vunpack.c.l.b16 %v6752
    %v7349 = vunpack.c.h.b16 %v6752
    %v7350 = vunpack.c.l.b16 %v6753
    %v7351 = vunpack.c.h.b16 %v6753
    %v7352 = vpack.c.b16 %v6972, %v6968
    %v7353 = vpack.c.b16 %v6973, %v6969
    %v7354 = vpack.c.b16 %v6974, %v6970
    %v7355 = vpack.c.b16 %v6975, %v6971
    %v7356 = vpack.c.b16 %v6980, %v6976
    %v7357 = vpack.c.b16 %v6981, %v6977
    %v7358 = vpack.c.b16 %v6982, %v6978
    %v7359 = vpack.c.b16 %v6983, %v6979
    %v7360 = vpack.c.b16 %v6988, %v6984
    %v7361 = vpack.c.b16 %v6989, %v6985
    %v7362 = vpack.c.b16 %v6990, %v6986
    %v7363 = vpack.c.b16 %v6991, %v6987
    %v7364 = vpack.c.b16 %v6996, %v6992
    %v7365 = vpack.c.b16 %v6997, %v6993
    %v7366 = vpack.c.b16 %v6998, %v6994
    %v7367 = vpack.c.b16 %v6999, %v6995
    %v7368 = vpack.c.b16 %v7004, %v7000
    %v7369 = vpack.c.b16 %v7005, %v7001
    %v7370 = vpack.c.b16 %v7006, %v7002
    %v7371 = vpack.c.b16 %v7007, %v7003
    %v7372 = vpack.c.b16 %v7012, %v7008
    %v7373 = vpack.c.b16 %v7013, %v7009
    %v7374 = vpack.c.b16 %v7014, %v7010
    %v7375 = vpack.c.b16 %v7015, %v7011
    %v7376 = vpack.c.b16 %v7020, %v7016
    %v7377 = vpack.c.b16 %v7021, %v7017
    %v7378 = vpack.c.b16 %v7022, %v7018
    %v7379 = vpack.c.b16 %v7023, %v7019
    %v7380 = vpack.c.b16 %v7028, %v7024
    %v7381 = vpack.c.b16 %v7029, %v7025
    %v7382 = vpack.c.b16 %v7030, %v7026
    %v7383 = vpack.c.b16 %v7031, %v7027
    %v7384 = vpack.c.b16 %v7036, %v7032
    %v7385 = vpack.c.b16 %v7037, %v7033
    %v7386 = vpack.c.b16 %v7038, %v7034
    %v7387 = vpack.c.b16 %v7039, %v7035
    %v7388 = vpack.c.b16 %v7044, %v7040
    %v7389 = vpack.c.b16 %v7045, %v7041
    %v7390 = vpack.c.b16 %v7046, %v7042
    %v7391 = vpack.c.b16 %v7047, %v7043
    %v7392 = vpack.c.b16 %v7052, %v7048
    %v7393 = vpack.c.b16 %v7053, %v7049
    %v7394 = vpack.c.b16 %v7054, %v7050
    %v7395 = vpack.c.b16 %v7055, %v7051
    %v7396 = vpack.c.b16 %v7060, %v7056
    %v7397 = vpack.c.b16 %v7061, %v7057
    %v7398 = vpack.c.b16 %v7062, %v7058
    %v7399 = vpack.c.b16 %v7063, %v7059
    %v7400 = vpack.c.b16 %v7068, %v7064
    %v7401 = vpack.c.b16 %v7069, %v7065
    %v7402 = vpack.c.b16 %v7070, %v7066
    %v7403 = vpack.c.b16 %v7071, %v7067
    %v7404 = vpack.c.b16 %v7076, %v7072
    %v7405 = vpack.c.b16 %v7077, %v7073
    %v7406 = vpack.c.b16 %v7078, %v7074
    %v7407 = vpack.c.b16 %v7079, %v7075
    %v7408 = vpack.c.b16 %v7084, %v7080
    %v7409 = vpack.c.b16 %v7085, %v7081
    %v7410 = vpack.c.b16 %v7086, %v7082
    %v7411 = vpack.c.b16 %v7087, %v7083
    %v7412 = vpack.c.b16 %v7092, %v7088
    %v7413 = vpack.c.b16 %v7093, %v7089
    %v7414 = vpack.c.b16 %v7094, %v7090
    %v7415 = vpack.c.b16 %v7095, %v7091
    %v7416 = vpack.c.b16 %v7100, %v7096
    %v7417 = vpack.c.b16 %v7101, %v7097
    %v7418 = vpack.c.b16 %v7102, %v7098
    %v7419 = vpack.c.b16 %v7103, %v7099
    %v7420 = vpack.c.b16 %v7108, %v7104
    %v7421 = vpack.c.b16 %v7109, %v7105
    %v7422 = vpack.c.b16 %v7110, %v7106
    %v7423 = vpack.c.b16 %v7111, %v7107
    %v7424 = vpack.c.b16 %v7116, %v7112
    %v7425 = vpack.c.b16 %v7117, %v7113
    %v7426 = vpack.c.b16 %v7118, %v7114
    %v7427 = vpack.c.b16 %v7119, %v7115
    %v7428 = vpack.c.b16 %v7124, %v7120
    %v7429 = vpack.c.b16 %v7125, %v7121
    %v7430 = vpack.c.b16 %v7126, %v7122
    %v7431 = vpack.c.b16 %v7127, %v7123
    %v7432 = vpack.c.b16 %v7132, %v7128
    %v7433 = vpack.c.b16 %v7133, %v7129
    %v7434 = vpack.c.b16 %v7134, %v7130
    %v7435 = vpack.c.b16 %v7135, %v7131
    %v7436 = vpack.c.b16 %v7140, %v7136
    %v7437 = vpack.c.b16 %v7141, %v7137
    %v7438 = vpack.c.b16 %v7142, %v7138
    %v7439 = vpack.c.b16 %v7143, %v7139
    %v7440 = vpack.c.b16 %v7148, %v7144
    %v7441 = vpack.c.b16 %v7149, %v7145
    %v7442 = vpack.c.b16 %v7150, %v7146
    %v7443 = vpack.c.b16 %v7151, %v7147
    %v7444 = vpack.c.b16 %v7156, %v7152
    %v7445 = vpack.c.b16 %v7157, %v7153
    %v7446 = vpack.c.b16 %v7158, %v7154
    %v7447 = vpack.c.b16 %v7159, %v7155
    %v7448 = vpack.c.b16 %v7164, %v7160
    %v7449 = vpack.c.b16 %v7165, %v7161
    %v7450 = vpack.c.b16 %v7166, %v7162
    %v7451 = vpack.c.b16 %v7167, %v7163
    %v7452 = vpack.c.b16 %v7172, %v7168
    %v7453 = vpack.c.b16 %v7173, %v7169
    %v7454 = vpack.c.b16 %v7174, %v7170
    %v7455 = vpack.c.b16 %v7175, %v7171
    %v7456 = vpack.c.b16 %v7180, %v7176
    %v7457 = vpack.c.b16 %v7181, %v7177
    %v7458 = vpack.c.b16 %v7182, %v7178
    %v7459 = vpack.c.b16 %v7183, %v7179
    %v7460 = vpack.c.b16 %v7188, %v7184
    %v7461 = vpack.c.b16 %v7189, %v7185
    %v7462 = vpack.c.b16 %v7190, %v7186
    %v7463 = vpack.c.b16 %v7191, %v7187
    %v7464 = vpack.c.b16 %v7196, %v7192
    %v7465 = vpack.c.b16 %v7197, %v7193
    %v7466 = vpack.c.b16 %v7198, %v7194
    %v7467 = vpack.c.b16 %v7199, %v7195
    %v7468 = vpack.c.b16 %v7204, %v7200
    %v7469 = vpack.c.b16 %v7205, %v7201
    %v7470 = vpack.c.b16 %v7206, %v7202
    %v7471 = vpack.c.b16 %v7207, %v7203
    %v7472 = vpack.c.b16 %v7212, %v7208
    %v7473 = vpack.c.b16 %v7213, %v7209
    %v7474 = vpack.c.b16 %v7214, %v7210
    %v7475 = vpack.c.b16 %v7215, %v7211
    %v7476 = vpack.c.b16 %v7220, %v7216
    %v7477 = vpack.c.b16 %v7221, %v7217
    %v7478 = vpack.c.b16 %v7222, %v7218
    %v7479 = vpack.c.b16 %v7223, %v7219
    %v7480 = vpack.c.b16 %v7228, %v7224
    %v7481 = vpack.c.b16 %v7229, %v7225
    %v7482 = vpack.c.b16 %v7230, %v7226
    %v7483 = vpack.c.b16 %v7231, %v7227
    %v7484 = vpack.c.b16 %v7236, %v7232
    %v7485 = vpack.c.b16 %v7237, %v7233
    %v7486 = vpack.c.b16 %v7238, %v7234
    %v7487 = vpack.c.b16 %v7239, %v7235
    %v7488 = vpack.c.b16 %v7244, %v7240
    %v7489 = vpack.c.b16 %v7245, %v7241
    %v7490 = vpack.c.b16 %v7246, %v7242
    %v7491 = vpack.c.b16 %v7247, %v7243
    %v7492 = vpack.c.b16 %v7252, %v7248
    %v7493 = vpack.c.b16 %v7253, %v7249
    %v7494 = vpack.c.b16 %v7254, %v7250
    %v7495 = vpack.c.b16 %v7255, %v7251
    %v7496 = vpack.c.b16 %v7260, %v7256
    %v7497 = vpack.c.b16 %v7261, %v7257
    %v7498 = vpack.c.b16 %v7262, %v7258
    %v7499 = vpack.c.b16 %v7263, %v7259
    %v7500 = vpack.c.b16 %v7268, %v7264
    %v7501 = vpack.c.b16 %v7269, %v7265
    %v7502 = vpack.c.b16 %v7270, %v7266
    %v7503 = vpack.c.b16 %v7271, %v7267
    %v7504 = vpack.c.b16 %v7276, %v7272
    %v7505 = vpack.c.b16 %v7277, %v7273
    %v7506 = vpack.c.b16 %v7278, %v7274
    %v7507 = vpack.c.b16 %v7279, %v7275
    %v7508 = vpack.c.b16 %v7284, %v7280
    %v7509 = vpack.c.b16 %v7285, %v7281
    %v7510 = vpack.c.b16 %v7286, %v7282
    %v7511 = vpack.c.b16 %v7287, %v7283
    %v7512 = vpack.c.b16 %v7292, %v7288
    %v7513 = vpack.c.b16 %v7293, %v7289
    %v7514 = vpack.c.b16 %v7294, %v7290
    %v7515 = vpack.c.b16 %v7295, %v7291
    %v7516 = vpack.c.b16 %v7300, %v7296
    %v7517 = vpack.c.b16 %v7301, %v7297
    %v7518 = vpack.c.b16 %v7302, %v7298
    %v7519 = vpack.c.b16 %v7303, %v7299
    %v7520 = vpack.c.b16 %v7308, %v7304
    %v7521 = vpack.c.b16 %v7309, %v7305
    %v7522 = vpack.c.b16 %v7310, %v7306
    %v7523 = vpack.c.b16 %v7311, %v7307
    %v7524 = vpack.c.b16 %v7316, %v7312
    %v7525 = vpack.c.b16 %v7317, %v7313
    %v7526 = vpack.c.b16 %v7318, %v7314
    %v7527 = vpack.c.b16 %v7319, %v7315
    %v7528 = vpack.c.b16 %v7324, %v7320
    %v7529 = vpack.c.b16 %v7325, %v7321
    %v7530 = vpack.c.b16 %v7326, %v7322
    %v7531 = vpack.c.b16 %v7327, %v7323
    %v7532 = vpack.c.b16 %v7332, %v7328
    %v7533 = vpack.c.b16 %v7333, %v7329
    %v7534 = vpack.c.b16 %v7334, %v7330
    %v7535 = vpack.c.b16 %v7335, %v7331
    %v7536 = vpack.c.b16 %v7340, %v7336
    %v7537 = vpack.c.b16 %v7341, %v7337
    %v7538 = vpack.c.b16 %v7342, %v7338
    %v7539 = vpack.c.b16 %v7343, %v7339
    %v7540 = vpack.c.b16 %v7348, %v7344
    %v7541 = vpack.c.b16 %v7349, %v7345
    %v7542 = vpack.c.b16 %v7350, %v7346
    %v7543 = vpack.c.b16 %v7351, %v7347
    %7736 = vmatprep.subr.bf16.mxu0 %v7353
    %7737 = vmatpush1.bf16.msra.mxu0 %v7352
    %7738 = vmatprep.subr.bf16.mxu0 %v7357
    %7739 = vmatpush1.bf16.msra.mxu0 %v7356
    %7740 = vmatprep.subr.bf16.mxu0 %v7361
    %7741 = vmatpush1.bf16.msra.mxu0 %v7360
    %7742 = vmatprep.subr.bf16.mxu0 %v7365
    %7743 = vmatpush1.bf16.msra.mxu0 %v7364
    %7744 = vmatprep.subr.bf16.mxu0 %v7369
    %7745 = vmatpush1.bf16.msra.mxu0 %v7368
    %7746 = vmatprep.subr.bf16.mxu0 %v7373
    %7747 = vmatpush1.bf16.msra.mxu0 %v7372
    %7748 = vmatprep.subr.bf16.mxu0 %v7377
    %7749 = vmatpush1.bf16.msra.mxu0 %v7376
    %7750 = vmatprep.subr.bf16.mxu0 %v7381
    %7751 = vmatpush1.bf16.msra.mxu0 %v7380
    %7752 = vmatprep.subr.bf16.mxu0 %v7385
    %7753 = vmatpush1.bf16.msra.mxu0 %v7384
    %7754 = vmatprep.subr.bf16.mxu0 %v7389
    %7755 = vmatpush1.bf16.msra.mxu0 %v7388
    %7756 = vmatprep.subr.bf16.mxu0 %v7393
    %7757 = vmatpush1.bf16.msra.mxu0 %v7392
    %7758 = vmatprep.subr.bf16.mxu0 %v7397
    %7759 = vmatpush1.bf16.msra.mxu0 %v7396
    %7760 = vmatprep.subr.bf16.mxu0 %v7401
    %7761 = vmatpush1.bf16.msra.mxu0 %v7400
    %7762 = vmatprep.subr.bf16.mxu0 %v7405
    %7763 = vmatpush1.bf16.msra.mxu0 %v7404
    %7764 = vmatprep.subr.bf16.mxu0 %v7409
    %7765 = vmatpush1.bf16.msra.mxu0 %v7408
    %7766 = vmatprep.subr.bf16.mxu0 %v7413
    %7767 = vmatpush1.bf16.msra.mxu0 %v7412
    %7768 = vmatprep.mubr.bf16.mxu0 %v6515
    %7769 = vmatmul.mubr.bf16.gmra.mrb[0].mxu0 %v6514
    %v7770 = vpop.f32.mrb[0].mxu0
    %v7771 = vadd.f32 %v6759, %v7770
    %v7772 = vpop.f32.mrb[0].mxu0
    %v7773 = vadd.f32 %v6763, %v7772
    %v7774 = vpop.f32.mrb[0].mxu0
    %v7775 = vadd.f32 %v6759, %v7774
    %v7776 = vpop.f32.mrb[0].mxu0
    %v7777 = vadd.f32 %v6763, %v7776
    %7778 = vmatprep.mubr.bf16.mxu0 %v6521
    %7779 = vmatmul.mubr.bf16.gmra.mrb[0].mxu0 %v6520
    %v7780 = vpop.f32.mrb[0].mxu0
    %v7781 = vadd.f32 %v6759, %v7780
    %v7782 = vpop.f32.mrb[0].mxu0
    %v7783 = vadd.f32 %v6763, %v7782
    %v7784 = vpop.f32.mrb[0].mxu0
    %v7785 = vadd.f32 %v6759, %v7784
    %v7786 = vpop.f32.mrb[0].mxu0
    %v7787 = vadd.f32 %v6763, %v7786
    %7788 = vmatprep.mubr.bf16.mxu0 %v6527
    %7789 = vmatmul.mubr.bf16.gmra.mrb[0].mxu0 %v6526
    %v7790 = vpop.f32.mrb[0].mxu0
    %v7791 = vadd.f32 %v6759, %v7790
    %v7792 = vpop.f32.mrb[0].mxu0
    %v7793 = vadd.f32 %v6763, %v7792
    %v7794 = vpop.f32.mrb[0].mxu0
    %v7795 = vadd.f32 %v6759, %v7794
    %v7796 = vpop.f32.mrb[0].mxu0
    %v7797 = vadd.f32 %v6763, %v7796
    %7798 = vmatprep.mubr.bf16.mxu0 %v6533
    %7799 = vmatmul.mubr.bf16.gmra.mrb[0].mxu0 %v6532
    %v7800 = vpop.f32.mrb[0].mxu0
    %v7801 = vadd.f32 %v6759, %v7800
    %v7802 = vpop.f32.mrb[0].mxu0
    %v7803 = vadd.f32 %v6763, %v7802
    %v7804 = vpop.f32.mrb[0].mxu0
    %v7805 = vadd.f32 %v6759, %v7804
    %v7806 = vpop.f32.mrb[0].mxu0
    %v7807 = vadd.f32 %v6763, %v7806
    %7808 = vmatprep.mubr.bf16.mxu0 %v6539
    %7809 = vmatmul.mubr.bf16.gmra.mrb[0].mxu0 %v6538
    %v7810 = vpop.f32.mrb[0].mxu0
    %v7811 = vadd.f32 %v6759, %v7810
    %v7812 = vpop.f32.mrb[0].mxu0
    %v7813 = vadd.f32 %v6763, %v7812
    %v7814 = vpop.f32.mrb[0].mxu0
    %v7815 = vadd.f32 %v6759, %v7814
    %v7816 = vpop.f32.mrb[0].mxu0
    %v7817 = vadd.f32 %v6763, %v7816
    %7818 = vmatprep.mubr.bf16.mxu0 %v6545
    %7819 = vmatmul.mubr.bf16.gmra.mrb[0].mxu0 %v6544
    %v7820 = vpop.f32.mrb[0].mxu0
    %v7821 = vadd.f32 %v6759, %v7820
    %v7822 = vpop.f32.mrb[0].mxu0
    %v7823 = vadd.f32 %v6763, %v7822
    %v7824 = vpop.f32.mrb[0].mxu0
    %v7825 = vadd.f32 %v6759, %v7824
    %v7826 = vpop.f32.mrb[0].mxu0
    %v7827 = vadd.f32 %v6763, %v7826
    %7828 = vmatprep.mubr.bf16.mxu0 %v6551
    %7829 = vmatmul.mubr.bf16.gmra.mrb[0].mxu0 %v6550
    %v7830 = vpop.f32.mrb[0].mxu0
    %v7831 = vadd.f32 %v6759, %v7830
    %v7832 = vpop.f32.mrb[0].mxu0
    %v7833 = vadd.f32 %v6763, %v7832
    %v7834 = vpop.f32.mrb[0].mxu0
    %v7835 = vadd.f32 %v6759, %v7834
    %v7836 = vpop.f32.mrb[0].mxu0
    %v7837 = vadd.f32 %v6763, %v7836
    %7838 = vmatprep.mubr.bf16.mxu0 %v6557
    %7839 = vmatmul.mubr.bf16.gmra.mrb[0].mxu0 %v6556
    %v7840 = vpop.f32.mrb[0].mxu0
    %v7841 = vadd.f32 %v6759, %v7840
    %v7842 = vpop.f32.mrb[0].mxu0
    %v7843 = vadd.f32 %v6763, %v7842
    %v7844 = vpop.f32.mrb[0].mxu0
    %v7845 = vadd.f32 %v6759, %v7844
    %v7846 = vpop.f32.mrb[0].mxu0
    %v7847 = vadd.f32 %v6763, %v7846
    %7848 = vdwg.mxu0
    %7849 = vmatprep.subr.bf16.mxu0 %v7417
    %7850 = vmatpush1.bf16.msra.mxu0 %v7416
    %7851 = vmatprep.subr.bf16.mxu0 %v7421
    %7852 = vmatpush1.bf16.msra.mxu0 %v7420
    %7853 = vmatprep.subr.bf16.mxu0 %v7425
    %7854 = vmatpush1.bf16.msra.mxu0 %v7424
    %7855 = vmatprep.subr.bf16.mxu0 %v7429
    %7856 = vmatpush1.bf16.msra.mxu0 %v7428
    %7857 = vmatprep.subr.bf16.mxu0 %v7433
    %7858 = vmatpush1.bf16.msra.mxu0 %v7432
    %7859 = vmatprep.subr.bf16.mxu0 %v7437
    %7860 = vmatpush1.bf16.msra.mxu0 %v7436
    %7861 = vmatprep.subr.bf16.mxu0 %v7441
    %7862 = vmatpush1.bf16.msra.mxu0 %v7440
    %7863 = vmatprep.subr.bf16.mxu0 %v7445
    %7864 = vmatpush1.bf16.msra.mxu0 %v7444
    %7865 = vmatprep.subr.bf16.mxu0 %v7449
    %7866 = vmatpush1.bf16.msra.mxu0 %v7448
    %7867 = vmatprep.subr.bf16.mxu0 %v7453
    %7868 = vmatpush1.bf16.msra.mxu0 %v7452
    %7869 = vmatprep.subr.bf16.mxu0 %v7457
    %7870 = vmatpush1.bf16.msra.mxu0 %v7456
    %7871 = vmatprep.subr.bf16.mxu0 %v7461
    %7872 = vmatpush1.bf16.msra.mxu0 %v7460
    %7873 = vmatprep.subr.bf16.mxu0 %v7465
    %7874 = vmatpush1.bf16.msra.mxu0 %v7464
    %7875 = vmatprep.subr.bf16.mxu0 %v7469
    %7876 = vmatpush1.bf16.msra.mxu0 %v7468
    %7877 = vmatprep.subr.bf16.mxu0 %v7473
    %7878 = vmatpush1.bf16.msra.mxu0 %v7472
    %7879 = vmatprep.subr.bf16.mxu0 %v7477
    %7880 = vmatpush1.bf16.msra.mxu0 %v7476
    %7881 = vmatprep.mubr.bf16.mxu0 %v6517
    %7882 = vmatmul.mubr.bf16.gmra.mrb[0].mxu0 %v6516
    %v7883 = vpop.f32.mrb[0].mxu0
    %v7884 = vadd.f32 %v7771, %v7883
    %v7885 = vpop.f32.mrb[0].mxu0
    %v7886 = vadd.f32 %v7773, %v7885
    %v7887 = vpop.f32.mrb[0].mxu0
    %v7888 = vadd.f32 %v7775, %v7887
    %v7889 = vpop.f32.mrb[0].mxu0
    %v7890 = vadd.f32 %v7777, %v7889
    %7891 = vmatprep.mubr.bf16.mxu0 %v6523
    %7892 = vmatmul.mubr.bf16.gmra.mrb[0].mxu0 %v6522
    %v7893 = vpop.f32.mrb[0].mxu0
    %v7894 = vadd.f32 %v7781, %v7893
    %v7895 = vpop.f32.mrb[0].mxu0
    %v7896 = vadd.f32 %v7783, %v7895
    %v7897 = vpop.f32.mrb[0].mxu0
    %v7898 = vadd.f32 %v7785, %v7897
    %v7899 = vpop.f32.mrb[0].mxu0
    %v7900 = vadd.f32 %v7787, %v7899
    %7901 = vmatprep.mubr.bf16.mxu0 %v6529
    %7902 = vmatmul.mubr.bf16.gmra.mrb[0].mxu0 %v6528
    %v7903 = vpop.f32.mrb[0].mxu0
    %v7904 = vadd.f32 %v7791, %v7903
    %v7905 = vpop.f32.mrb[0].mxu0
    %v7906 = vadd.f32 %v7793, %v7905
    %v7907 = vpop.f32.mrb[0].mxu0
    %v7908 = vadd.f32 %v7795, %v7907
    %v7909 = vpop.f32.mrb[0].mxu0
    %v7910 = vadd.f32 %v7797, %v7909
    %7911 = vmatprep.mubr.bf16.mxu0 %v6535
    %7912 = vmatmul.mubr.bf16.gmra.mrb[0].mxu0 %v6534
    %v7913 = vpop.f32.mrb[0].mxu0
    %v7914 = vadd.f32 %v7801, %v7913
    %v7915 = vpop.f32.mrb[0].mxu0
    %v7916 = vadd.f32 %v7803, %v7915
    %v7917 = vpop.f32.mrb[0].mxu0
    %v7918 = vadd.f32 %v7805, %v7917
    %v7919 = vpop.f32.mrb[0].mxu0
    %v7920 = vadd.f32 %v7807, %v7919
    %7921 = vmatprep.mubr.bf16.mxu0 %v6541
    %7922 = vmatmul.mubr.bf16.gmra.mrb[0].mxu0 %v6540
    %v7923 = vpop.f32.mrb[0].mxu0
    %v7924 = vadd.f32 %v7811, %v7923
    %v7925 = vpop.f32.mrb[0].mxu0
    %v7926 = vadd.f32 %v7813, %v7925
    %v7927 = vpop.f32.mrb[0].mxu0
    %v7928 = vadd.f32 %v7815, %v7927
    %v7929 = vpop.f32.mrb[0].mxu0
    %v7930 = vadd.f32 %v7817, %v7929
    %7931 = vmatprep.mubr.bf16.mxu0 %v6547
    %7932 = vmatmul.mubr.bf16.gmra.mrb[0].mxu0 %v6546
    %v7933 = vpop.f32.mrb[0].mxu0
    %v7934 = vadd.f32 %v7821, %v7933
    %v7935 = vpop.f32.mrb[0].mxu0
    %v7936 = vadd.f32 %v7823, %v7935
    %v7937 = vpop.f32.mrb[0].mxu0
    %v7938 = vadd.f32 %v7825, %v7937
    %v7939 = vpop.f32.mrb[0].mxu0
    %v7940 = vadd.f32 %v7827, %v7939
    %7941 = vmatprep.mubr.bf16.mxu0 %v6553
    %7942 = vmatmul.mubr.bf16.gmra.mrb[0].mxu0 %v6552
    %v7943 = vpop.f32.mrb[0].mxu0
    %v7944 = vadd.f32 %v7831, %v7943
    %v7945 = vpop.f32.mrb[0].mxu0
    %v7946 = vadd.f32 %v7833, %v7945
    %v7947 = vpop.f32.mrb[0].mxu0
    %v7948 = vadd.f32 %v7835, %v7947
    %v7949 = vpop.f32.mrb[0].mxu0
    %v7950 = vadd.f32 %v7837, %v7949
    %7951 = vmatprep.mubr.bf16.mxu0 %v6559
    %7952 = vmatmul.mubr.bf16.gmra.mrb[0].mxu0 %v6558
    %v7953 = vpop.f32.mrb[0].mxu0
    %v7954 = vadd.f32 %v7841, %v7953
    %v7955 = vpop.f32.mrb[0].mxu0
    %v7956 = vadd.f32 %v7843, %v7955
    %v7957 = vpop.f32.mrb[0].mxu0
    %v7958 = vadd.f32 %v7845, %v7957
    %v7959 = vpop.f32.mrb[0].mxu0
    %v7960 = vadd.f32 %v7847, %v7959
    %7961 = vdwg.mxu0
    %7962 = vmatprep.subr.bf16.mxu0 %v7481
    %7963 = vmatpush1.bf16.msra.mxu0 %v7480
    %7964 = vmatprep.subr.bf16.mxu0 %v7485
    %7965 = vmatpush1.bf16.msra.mxu0 %v7484
    %7966 = vmatprep.subr.bf16.mxu0 %v7489
    %7967 = vmatpush1.bf16.msra.mxu0 %v7488
    %7968 = vmatprep.subr.bf16.mxu0 %v7493
    %7969 = vmatpush1.bf16.msra.mxu0 %v7492
    %7970 = vmatprep.subr.bf16.mxu0 %v7497
    %7971 = vmatpush1.bf16.msra.mxu0 %v7496
    %7972 = vmatprep.subr.bf16.mxu0 %v7501
    %7973 = vmatpush1.bf16.msra.mxu0 %v7500
    %7974 = vmatprep.subr.bf16.mxu0 %v7505
    %7975 = vmatpush1.bf16.msra.mxu0 %v7504
    %7976 = vmatprep.subr.bf16.mxu0 %v7509
    %7977 = vmatpush1.bf16.msra.mxu0 %v7508
    %7978 = vmatprep.subr.bf16.mxu0 %v7513
    %7979 = vmatpush1.bf16.msra.mxu0 %v7512
    %7980 = vmatprep.subr.bf16.mxu0 %v7517
    %7981 = vmatpush1.bf16.msra.mxu0 %v7516
    %7982 = vmatprep.subr.bf16.mxu0 %v7521
    %7983 = vmatpush1.bf16.msra.mxu0 %v7520
    %7984 = vmatprep.subr.bf16.mxu0 %v7525
    %7985 = vmatpush1.bf16.msra.mxu0 %v7524
    %7986 = vmatprep.subr.bf16.mxu0 %v7529
    %7987 = vmatpush1.bf16.msra.mxu0 %v7528
    %7988 = vmatprep.subr.bf16.mxu0 %v7533
    %7989 = vmatpush1.bf16.msra.mxu0 %v7532
    %7990 = vmatprep.subr.bf16.mxu0 %v7537
    %7991 = vmatpush1.bf16.msra.mxu0 %v7536
    %7992 = vmatprep.subr.bf16.mxu0 %v7541
    %7993 = vmatpush1.bf16.msra.mxu0 %v7540
    %7994 = vmatprep.mubr.bf16.mxu0 %v6519
    %7995 = vmatmul.mubr.bf16.gmra.mrb[0].mxu0 %v6518
    %v7996 = vpop.f32.mrb[0].mxu0
    %v7997 = vadd.f32 %v7884, %v7996
    %v7998 = vpop.f32.mrb[0].mxu0
    %v7999 = vadd.f32 %v7886, %v7998
    %v8000 = vpop.f32.mrb[0].mxu0
    %v8001 = vadd.f32 %v7888, %v8000
    %v8002 = vpop.f32.mrb[0].mxu0
    %v8003 = vadd.f32 %v7890, %v8002
    %8004 = vmatprep.mubr.bf16.mxu0 %v6525
    %8005 = vmatmul.mubr.bf16.gmra.mrb[0].mxu0 %v6524
    %v8006 = vpop.f32.mrb[0].mxu0
    %v8007 = vadd.f32 %v7894, %v8006
    %v8008 = vpop.f32.mrb[0].mxu0
    %v8009 = vadd.f32 %v7896, %v8008
    %v8010 = vpop.f32.mrb[0].mxu0
    %v8011 = vadd.f32 %v7898, %v8010
    %v8012 = vpop.f32.mrb[0].mxu0
    %v8013 = vadd.f32 %v7900, %v8012
    %8014 = vmatprep.mubr.bf16.mxu0 %v6531
    %8015 = vmatmul.mubr.bf16.gmra.mrb[0].mxu0 %v6530
    %v8016 = vpop.f32.mrb[0].mxu0
    %v8017 = vadd.f32 %v7904, %v8016
    %v8018 = vpop.f32.mrb[0].mxu0
    %v8019 = vadd.f32 %v7906, %v8018
    %v8020 = vpop.f32.mrb[0].mxu0
    %v8021 = vadd.f32 %v7908, %v8020
    %v8022 = vpop.f32.mrb[0].mxu0
    %v8023 = vadd.f32 %v7910, %v8022
    %8024 = vmatprep.mubr.bf16.mxu0 %v6537
    %8025 = vmatmul.mubr.bf16.gmra.mrb[0].mxu0 %v6536
    %v8026 = vpop.f32.mrb[0].mxu0
    %v8027 = vadd.f32 %v7914, %v8026
    %v8028 = vpop.f32.mrb[0].mxu0
    %v8029 = vadd.f32 %v7916, %v8028
    %v8030 = vpop.f32.mrb[0].mxu0
    %v8031 = vadd.f32 %v7918, %v8030
    %v8032 = vpop.f32.mrb[0].mxu0
    %v8033 = vadd.f32 %v7920, %v8032
    %8034 = vmatprep.mubr.bf16.mxu0 %v6543
    %8035 = vmatmul.mubr.bf16.gmra.mrb[0].mxu0 %v6542
    %v8036 = vpop.f32.mrb[0].mxu0
    %v8037 = vadd.f32 %v7924, %v8036
    %v8038 = vpop.f32.mrb[0].mxu0
    %v8039 = vadd.f32 %v7926, %v8038
    %v8040 = vpop.f32.mrb[0].mxu0
    %v8041 = vadd.f32 %v7928, %v8040
    %v8042 = vpop.f32.mrb[0].mxu0
    %v8043 = vadd.f32 %v7930, %v8042
    %8044 = vmatprep.mubr.bf16.mxu0 %v6549
    %8045 = vmatmul.mubr.bf16.gmra.mrb[0].mxu0 %v6548
    %v8046 = vpop.f32.mrb[0].mxu0
    %v8047 = vadd.f32 %v7934, %v8046
    %v8048 = vpop.f32.mrb[0].mxu0
    %v8049 = vadd.f32 %v7936, %v8048
    %v8050 = vpop.f32.mrb[0].mxu0
    %v8051 = vadd.f32 %v7938, %v8050
    %v8052 = vpop.f32.mrb[0].mxu0
    %v8053 = vadd.f32 %v7940, %v8052
    %8054 = vmatprep.mubr.bf16.mxu0 %v6555
    %8055 = vmatmul.mubr.bf16.gmra.mrb[0].mxu0 %v6554
    %v8056 = vpop.f32.mrb[0].mxu0
    %v8057 = vadd.f32 %v7944, %v8056
    %v8058 = vpop.f32.mrb[0].mxu0
    %v8059 = vadd.f32 %v7946, %v8058
    %v8060 = vpop.f32.mrb[0].mxu0
    %v8061 = vadd.f32 %v7948, %v8060
    %v8062 = vpop.f32.mrb[0].mxu0
    %v8063 = vadd.f32 %v7950, %v8062
    %8064 = vmatprep.mubr.bf16.mxu0 %v6561
    %8065 = vmatmul.mubr.bf16.gmra.mrb[0].mxu0 %v6560
    %v8066 = vpop.f32.mrb[0].mxu0
    %v8067 = vadd.f32 %v7954, %v8066
    %v8068 = vpop.f32.mrb[0].mxu0
    %v8069 = vadd.f32 %v7956, %v8068
    %v8070 = vpop.f32.mrb[0].mxu0
    %v8071 = vadd.f32 %v7958, %v8070
    %v8072 = vpop.f32.mrb[0].mxu0
    %v8073 = vadd.f32 %v7960, %v8072
    %8074 = vdwg.mxu0
    %8075 = vmatprep.subr.bf16.mxu0 %v7355
    %8076 = vmatpush1.bf16.msra.mxu0 %v7354
    %8077 = vmatprep.subr.bf16.mxu0 %v7359
    %8078 = vmatpush1.bf16.msra.mxu0 %v7358
    %8079 = vmatprep.subr.bf16.mxu0 %v7363
    %8080 = vmatpush1.bf16.msra.mxu0 %v7362
    %8081 = vmatprep.subr.bf16.mxu0 %v7367
    %8082 = vmatpush1.bf16.msra.mxu0 %v7366
    %8083 = vmatprep.subr.bf16.mxu0 %v7371
    %8084 = vmatpush1.bf16.msra.mxu0 %v7370
    %8085 = vmatprep.subr.bf16.mxu0 %v7375
    %8086 = vmatpush1.bf16.msra.mxu0 %v7374
    %8087 = vmatprep.subr.bf16.mxu0 %v7379
    %8088 = vmatpush1.bf16.msra.mxu0 %v7378
    %8089 = vmatprep.subr.bf16.mxu0 %v7383
    %8090 = vmatpush1.bf16.msra.mxu0 %v7382
    %8091 = vmatprep.subr.bf16.mxu0 %v7387
    %8092 = vmatpush1.bf16.msra.mxu0 %v7386
    %8093 = vmatprep.subr.bf16.mxu0 %v7391
    %8094 = vmatpush1.bf16.msra.mxu0 %v7390
    %8095 = vmatprep.subr.bf16.mxu0 %v7395
    %8096 = vmatpush1.bf16.msra.mxu0 %v7394
    %8097 = vmatprep.subr.bf16.mxu0 %v7399
    %8098 = vmatpush1.bf16.msra.mxu0 %v7398
    %8099 = vmatprep.subr.bf16.mxu0 %v7403
    %8100 = vmatpush1.bf16.msra.mxu0 %v7402
    %8101 = vmatprep.subr.bf16.mxu0 %v7407
    %8102 = vmatpush1.bf16.msra.mxu0 %v7406
    %8103 = vmatprep.subr.bf16.mxu0 %v7411
    %8104 = vmatpush1.bf16.msra.mxu0 %v7410
    %8105 = vmatprep.subr.bf16.mxu0 %v7415
    %8106 = vmatpush1.bf16.msra.mxu0 %v7414
    %8107 = vmatprep.mubr.bf16.mxu0 %v6515
    %8108 = vmatmul.mubr.bf16.gmra.mrb[0].mxu0 %v6514
    %v8109 = vpop.f32.mrb[0].mxu0
    %v8110 = vadd.f32 %v6767, %v8109
    %v8111 = vpop.f32.mrb[0].mxu0
    %v8112 = vadd.f32 %v6771, %v8111
    %v8113 = vpop.f32.mrb[0].mxu0
    %v8114 = vadd.f32 %v6767, %v8113
    %v8115 = vpop.f32.mrb[0].mxu0
    %v8116 = vadd.f32 %v6771, %v8115
    %8117 = vmatprep.mubr.bf16.mxu0 %v6521
    %8118 = vmatmul.mubr.bf16.gmra.mrb[0].mxu0 %v6520
    %v8119 = vpop.f32.mrb[0].mxu0
    %v8120 = vadd.f32 %v6767, %v8119
    %v8121 = vpop.f32.mrb[0].mxu0
    %v8122 = vadd.f32 %v6771, %v8121
    %v8123 = vpop.f32.mrb[0].mxu0
    %v8124 = vadd.f32 %v6767, %v8123
    %v8125 = vpop.f32.mrb[0].mxu0
    %v8126 = vadd.f32 %v6771, %v8125
    %8127 = vmatprep.mubr.bf16.mxu0 %v6527
    %8128 = vmatmul.mubr.bf16.gmra.mrb[0].mxu0 %v6526
    %v8129 = vpop.f32.mrb[0].mxu0
    %v8130 = vadd.f32 %v6767, %v8129
    %v8131 = vpop.f32.mrb[0].mxu0
    %v8132 = vadd.f32 %v6771, %v8131
    %v8133 = vpop.f32.mrb[0].mxu0
    %v8134 = vadd.f32 %v6767, %v8133
    %v8135 = vpop.f32.mrb[0].mxu0
    %v8136 = vadd.f32 %v6771, %v8135
    %8137 = vmatprep.mubr.bf16.mxu0 %v6533
    %8138 = vmatmul.mubr.bf16.gmra.mrb[0].mxu0 %v6532
    %v8139 = vpop.f32.mrb[0].mxu0
    %v8140 = vadd.f32 %v6767, %v8139
    %v8141 = vpop.f32.mrb[0].mxu0
    %v8142 = vadd.f32 %v6771, %v8141
    %v8143 = vpop.f32.mrb[0].mxu0
    %v8144 = vadd.f32 %v6767, %v8143
    %v8145 = vpop.f32.mrb[0].mxu0
    %v8146 = vadd.f32 %v6771, %v8145
    %8147 = vmatprep.mubr.bf16.mxu0 %v6539
    %8148 = vmatmul.mubr.bf16.gmra.mrb[0].mxu0 %v6538
    %v8149 = vpop.f32.mrb[0].mxu0
    %v8150 = vadd.f32 %v6767, %v8149
    %v8151 = vpop.f32.mrb[0].mxu0
    %v8152 = vadd.f32 %v6771, %v8151
    %v8153 = vpop.f32.mrb[0].mxu0
    %v8154 = vadd.f32 %v6767, %v8153
    %v8155 = vpop.f32.mrb[0].mxu0
    %v8156 = vadd.f32 %v6771, %v8155
    %8157 = vmatprep.mubr.bf16.mxu0 %v6545
    %8158 = vmatmul.mubr.bf16.gmra.mrb[0].mxu0 %v6544
    %v8159 = vpop.f32.mrb[0].mxu0
    %v8160 = vadd.f32 %v6767, %v8159
    %v8161 = vpop.f32.mrb[0].mxu0
    %v8162 = vadd.f32 %v6771, %v8161
    %v8163 = vpop.f32.mrb[0].mxu0
    %v8164 = vadd.f32 %v6767, %v8163
    %v8165 = vpop.f32.mrb[0].mxu0
    %v8166 = vadd.f32 %v6771, %v8165
    %8167 = vmatprep.mubr.bf16.mxu0 %v6551
    %8168 = vmatmul.mubr.bf16.gmra.mrb[0].mxu0 %v6550
    %v8169 = vpop.f32.mrb[0].mxu0
    %v8170 = vadd.f32 %v6767, %v8169
    %v8171 = vpop.f32.mrb[0].mxu0
    %v8172 = vadd.f32 %v6771, %v8171
    %v8173 = vpop.f32.mrb[0].mxu0
    %v8174 = vadd.f32 %v6767, %v8173
    %v8175 = vpop.f32.mrb[0].mxu0
    %v8176 = vadd.f32 %v6771, %v8175
    %8177 = vmatprep.mubr.bf16.mxu0 %v6557
    %8178 = vmatmul.mubr.bf16.gmra.mrb[0].mxu0 %v6556
    %v8179 = vpop.f32.mrb[0].mxu0
    %v8180 = vadd.f32 %v6767, %v8179
    %v8181 = vpop.f32.mrb[0].mxu0
    %v8182 = vadd.f32 %v6771, %v8181
    %v8183 = vpop.f32.mrb[0].mxu0
    %v8184 = vadd.f32 %v6767, %v8183
    %v8185 = vpop.f32.mrb[0].mxu0
    %v8186 = vadd.f32 %v6771, %v8185
    %8187 = vdwg.mxu0
    %8188 = vmatprep.subr.bf16.mxu0 %v7419
    %8189 = vmatpush1.bf16.msra.mxu0 %v7418
    %8190 = vmatprep.subr.bf16.mxu0 %v7423
    %8191 = vmatpush1.bf16.msra.mxu0 %v7422
    %8192 = vmatprep.subr.bf16.mxu0 %v7427
    %8193 = vmatpush1.bf16.msra.mxu0 %v7426
    %8194 = vmatprep.subr.bf16.mxu0 %v7431
    %8195 = vmatpush1.bf16.msra.mxu0 %v7430
    %8196 = vmatprep.subr.bf16.mxu0 %v7435
    %8197 = vmatpush1.bf16.msra.mxu0 %v7434
    %8198 = vmatprep.subr.bf16.mxu0 %v7439
    %8199 = vmatpush1.bf16.msra.mxu0 %v7438
    %8200 = vmatprep.subr.bf16.mxu0 %v7443
    %8201 = vmatpush1.bf16.msra.mxu0 %v7442
    %8202 = vmatprep.subr.bf16.mxu0 %v7447
    %8203 = vmatpush1.bf16.msra.mxu0 %v7446
    %8204 = vmatprep.subr.bf16.mxu0 %v7451
    %8205 = vmatpush1.bf16.msra.mxu0 %v7450
    %8206 = vmatprep.subr.bf16.mxu0 %v7455
    %8207 = vmatpush1.bf16.msra.mxu0 %v7454
    %8208 = vmatprep.subr.bf16.mxu0 %v7459
    %8209 = vmatpush1.bf16.msra.mxu0 %v7458
    %8210 = vmatprep.subr.bf16.mxu0 %v7463
    %8211 = vmatpush1.bf16.msra.mxu0 %v7462
    %8212 = vmatprep.subr.bf16.mxu0 %v7467
    %8213 = vmatpush1.bf16.msra.mxu0 %v7466
    %8214 = vmatprep.subr.bf16.mxu0 %v7471
    %8215 = vmatpush1.bf16.msra.mxu0 %v7470
    %8216 = vmatprep.subr.bf16.mxu0 %v7475
    %8217 = vmatpush1.bf16.msra.mxu0 %v7474
    %8218 = vmatprep.subr.bf16.mxu0 %v7479
    %8219 = vmatpush1.bf16.msra.mxu0 %v7478
    %8220 = vmatprep.mubr.bf16.mxu0 %v6517
    %8221 = vmatmul.mubr.bf16.gmra.mrb[0].mxu0 %v6516
    %v8222 = vpop.f32.mrb[0].mxu0
    %v8223 = vadd.f32 %v8110, %v8222
    %v8224 = vpop.f32.mrb[0].mxu0
    %v8225 = vadd.f32 %v8112, %v8224
    %v8226 = vpop.f32.mrb[0].mxu0
    %v8227 = vadd.f32 %v8114, %v8226
    %v8228 = vpop.f32.mrb[0].mxu0
    %v8229 = vadd.f32 %v8116, %v8228
    %8230 = vmatprep.mubr.bf16.mxu0 %v6523
    %8231 = vmatmul.mubr.bf16.gmra.mrb[0].mxu0 %v6522
    %v8232 = vpop.f32.mrb[0].mxu0
    %v8233 = vadd.f32 %v8120, %v8232
    %v8234 = vpop.f32.mrb[0].mxu0
    %v8235 = vadd.f32 %v8122, %v8234
    %v8236 = vpop.f32.mrb[0].mxu0
    %v8237 = vadd.f32 %v8124, %v8236
    %v8238 = vpop.f32.mrb[0].mxu0
    %v8239 = vadd.f32 %v8126, %v8238
    %8240 = vmatprep.mubr.bf16.mxu0 %v6529
    %8241 = vmatmul.mubr.bf16.gmra.mrb[0].mxu0 %v6528
    %v8242 = vpop.f32.mrb[0].mxu0
    %v8243 = vadd.f32 %v8130, %v8242
    %v8244 = vpop.f32.mrb[0].mxu0
    %v8245 = vadd.f32 %v8132, %v8244
    %v8246 = vpop.f32.mrb[0].mxu0
    %v8247 = vadd.f32 %v8134, %v8246
    %v8248 = vpop.f32.mrb[0].mxu0
    %v8249 = vadd.f32 %v8136, %v8248
    %8250 = vmatprep.mubr.bf16.mxu0 %v6535
    %8251 = vmatmul.mubr.bf16.gmra.mrb[0].mxu0 %v6534
    %v8252 = vpop.f32.mrb[0].mxu0
    %v8253 = vadd.f32 %v8140, %v8252
    %v8254 = vpop.f32.mrb[0].mxu0
    %v8255 = vadd.f32 %v8142, %v8254
    %v8256 = vpop.f32.mrb[0].mxu0
    %v8257 = vadd.f32 %v8144, %v8256
    %v8258 = vpop.f32.mrb[0].mxu0
    %v8259 = vadd.f32 %v8146, %v8258
    %8260 = vmatprep.mubr.bf16.mxu0 %v6541
    %8261 = vmatmul.mubr.bf16.gmra.mrb[0].mxu0 %v6540
    %v8262 = vpop.f32.mrb[0].mxu0
    %v8263 = vadd.f32 %v8150, %v8262
    %v8264 = vpop.f32.mrb[0].mxu0
    %v8265 = vadd.f32 %v8152, %v8264
    %v8266 = vpop.f32.mrb[0].mxu0
    %v8267 = vadd.f32 %v8154, %v8266
    %v8268 = vpop.f32.mrb[0].mxu0
    %v8269 = vadd.f32 %v8156, %v8268
    %8270 = vmatprep.mubr.bf16.mxu0 %v6547
    %8271 = vmatmul.mubr.bf16.gmra.mrb[0].mxu0 %v6546
    %v8272 = vpop.f32.mrb[0].mxu0
    %v8273 = vadd.f32 %v8160, %v8272
    %v8274 = vpop.f32.mrb[0].mxu0
    %v8275 = vadd.f32 %v8162, %v8274
    %v8276 = vpop.f32.mrb[0].mxu0
    %v8277 = vadd.f32 %v8164, %v8276
    %v8278 = vpop.f32.mrb[0].mxu0
    %v8279 = vadd.f32 %v8166, %v8278
    %8280 = vmatprep.mubr.bf16.mxu0 %v6553
    %8281 = vmatmul.mubr.bf16.gmra.mrb[0].mxu0 %v6552
    %v8282 = vpop.f32.mrb[0].mxu0
    %v8283 = vadd.f32 %v8170, %v8282
    %v8284 = vpop.f32.mrb[0].mxu0
    %v8285 = vadd.f32 %v8172, %v8284
    %v8286 = vpop.f32.mrb[0].mxu0
    %v8287 = vadd.f32 %v8174, %v8286
    %v8288 = vpop.f32.mrb[0].mxu0
    %v8289 = vadd.f32 %v8176, %v8288
    %8290 = vmatprep.mubr.bf16.mxu0 %v6559
    %8291 = vmatmul.mubr.bf16.gmra.mrb[0].mxu0 %v6558
    %v8292 = vpop.f32.mrb[0].mxu0
    %v8293 = vadd.f32 %v8180, %v8292
    %v8294 = vpop.f32.mrb[0].mxu0
    %v8295 = vadd.f32 %v8182, %v8294
    %v8296 = vpop.f32.mrb[0].mxu0
    %v8297 = vadd.f32 %v8184, %v8296
    %v8298 = vpop.f32.mrb[0].mxu0
    %v8299 = vadd.f32 %v8186, %v8298
    %8300 = vdwg.mxu0
    %8301 = vmatprep.subr.bf16.mxu0 %v7483
    %8302 = vmatpush1.bf16.msra.mxu0 %v7482
    %8303 = vmatprep.subr.bf16.mxu0 %v7487
    %8304 = vmatpush1.bf16.msra.mxu0 %v7486
    %8305 = vmatprep.subr.bf16.mxu0 %v7491
    %8306 = vmatpush1.bf16.msra.mxu0 %v7490
    %8307 = vmatprep.subr.bf16.mxu0 %v7495
    %8308 = vmatpush1.bf16.msra.mxu0 %v7494
    %8309 = vmatprep.subr.bf16.mxu0 %v7499
    %8310 = vmatpush1.bf16.msra.mxu0 %v7498
    %8311 = vmatprep.subr.bf16.mxu0 %v7503
    %8312 = vmatpush1.bf16.msra.mxu0 %v7502
    %8313 = vmatprep.subr.bf16.mxu0 %v7507
    %8314 = vmatpush1.bf16.msra.mxu0 %v7506
    %8315 = vmatprep.subr.bf16.mxu0 %v7511
    %8316 = vmatpush1.bf16.msra.mxu0 %v7510
    %8317 = vmatprep.subr.bf16.mxu0 %v7515
    %8318 = vmatpush1.bf16.msra.mxu0 %v7514
    %8319 = vmatprep.subr.bf16.mxu0 %v7519
    %8320 = vmatpush1.bf16.msra.mxu0 %v7518
    %8321 = vmatprep.subr.bf16.mxu0 %v7523
    %8322 = vmatpush1.bf16.msra.mxu0 %v7522
    %8323 = vmatprep.subr.bf16.mxu0 %v7527
    %8324 = vmatpush1.bf16.msra.mxu0 %v7526
    %8325 = vmatprep.subr.bf16.mxu0 %v7531
    %8326 = vmatpush1.bf16.msra.mxu0 %v7530
    %8327 = vmatprep.subr.bf16.mxu0 %v7535
    %8328 = vmatpush1.bf16.msra.mxu0 %v7534
    %8329 = vmatprep.subr.bf16.mxu0 %v7539
    %8330 = vmatpush1.bf16.msra.mxu0 %v7538
    %8331 = vmatprep.subr.bf16.mxu0 %v7543
    %8332 = vmatpush1.bf16.msra.mxu0 %v7542
    %8333 = vmatprep.mubr.bf16.mxu0 %v6519
    %8334 = vmatmul.mubr.bf16.gmra.mrb[0].mxu0 %v6518
    %v8335 = vpop.f32.mrb[0].mxu0
    %v8336 = vadd.f32 %v8223, %v8335
    %v8337 = vpop.f32.mrb[0].mxu0
    %v8338 = vadd.f32 %v8225, %v8337
    %v8339 = vpop.f32.mrb[0].mxu0
    %v8340 = vadd.f32 %v8227, %v8339
    %v8341 = vpop.f32.mrb[0].mxu0
    %v8342 = vadd.f32 %v8229, %v8341
    %8343 = vmatprep.mubr.bf16.mxu0 %v6525
    %8344 = vmatmul.mubr.bf16.gmra.mrb[0].mxu0 %v6524
    %v8345 = vpop.f32.mrb[0].mxu0
    %v8346 = vadd.f32 %v8233, %v8345
    %v8347 = vpop.f32.mrb[0].mxu0
    %v8348 = vadd.f32 %v8235, %v8347
    %v8349 = vpop.f32.mrb[0].mxu0
    %v8350 = vadd.f32 %v8237, %v8349
    %v8351 = vpop.f32.mrb[0].mxu0
    %v8352 = vadd.f32 %v8239, %v8351
    %8353 = vmatprep.mubr.bf16.mxu0 %v6531
    %8354 = vmatmul.mubr.bf16.gmra.mrb[0].mxu0 %v6530
    %v8355 = vpop.f32.mrb[0].mxu0
    %v8356 = vadd.f32 %v8243, %v8355
    %v8357 = vpop.f32.mrb[0].mxu0
    %v8358 = vadd.f32 %v8245, %v8357
    %v8359 = vpop.f32.mrb[0].mxu0
    %v8360 = vadd.f32 %v8247, %v8359
    %v8361 = vpop.f32.mrb[0].mxu0
    %v8362 = vadd.f32 %v8249, %v8361
    %8363 = vmatprep.mubr.bf16.mxu0 %v6537
    %8364 = vmatmul.mubr.bf16.gmra.mrb[0].mxu0 %v6536
    %v8365 = vpop.f32.mrb[0].mxu0
    %v8366 = vadd.f32 %v8253, %v8365
    %v8367 = vpop.f32.mrb[0].mxu0
    %v8368 = vadd.f32 %v8255, %v8367
    %v8369 = vpop.f32.mrb[0].mxu0
    %v8370 = vadd.f32 %v8257, %v8369
    %v8371 = vpop.f32.mrb[0].mxu0
    %v8372 = vadd.f32 %v8259, %v8371
    %8373 = vmatprep.mubr.bf16.mxu0 %v6543
    %8374 = vmatmul.mubr.bf16.gmra.mrb[0].mxu0 %v6542
    %v8375 = vpop.f32.mrb[0].mxu0
    %v8376 = vadd.f32 %v8263, %v8375
    %v8377 = vpop.f32.mrb[0].mxu0
    %v8378 = vadd.f32 %v8265, %v8377
    %v8379 = vpop.f32.mrb[0].mxu0
    %v8380 = vadd.f32 %v8267, %v8379
    %v8381 = vpop.f32.mrb[0].mxu0
    %v8382 = vadd.f32 %v8269, %v8381
    %8383 = vmatprep.mubr.bf16.mxu0 %v6549
    %8384 = vmatmul.mubr.bf16.gmra.mrb[0].mxu0 %v6548
    %v8385 = vpop.f32.mrb[0].mxu0
    %v8386 = vadd.f32 %v8273, %v8385
    %v8387 = vpop.f32.mrb[0].mxu0
    %v8388 = vadd.f32 %v8275, %v8387
    %v8389 = vpop.f32.mrb[0].mxu0
    %v8390 = vadd.f32 %v8277, %v8389
    %v8391 = vpop.f32.mrb[0].mxu0
    %v8392 = vadd.f32 %v8279, %v8391
    %8393 = vmatprep.mubr.bf16.mxu0 %v6555
    %8394 = vmatmul.mubr.bf16.gmra.mrb[0].mxu0 %v6554
    %v8395 = vpop.f32.mrb[0].mxu0
    %v8396 = vadd.f32 %v8283, %v8395
    %v8397 = vpop.f32.mrb[0].mxu0
    %v8398 = vadd.f32 %v8285, %v8397
    %v8399 = vpop.f32.mrb[0].mxu0
    %v8400 = vadd.f32 %v8287, %v8399
    %v8401 = vpop.f32.mrb[0].mxu0
    %v8402 = vadd.f32 %v8289, %v8401
    %8403 = vmatprep.mubr.bf16.mxu0 %v6561
    %8404 = vmatmul.mubr.bf16.gmra.mrb[0].mxu0 %v6560
    %v8405 = vpop.f32.mrb[0].mxu0
    %v8406 = vadd.f32 %v8293, %v8405
    %v8407 = vpop.f32.mrb[0].mxu0
    %v8408 = vadd.f32 %v8295, %v8407
    %v8409 = vpop.f32.mrb[0].mxu0
    %v8410 = vadd.f32 %v8297, %v8409
    %v8411 = vpop.f32.mrb[0].mxu0
    %v8412 = vadd.f32 %v8299, %v8411
    %8413 = vdwg.mxu0
    %v8414 = vmax.f32 %v7997, 0.0
    %v8415 = vmax.f32 %v7999, 0.0
    %v8416 = vmax.f32 %v8336, 0.0
    %v8417 = vmax.f32 %v8338, 0.0
    %v8418 = vmax.f32 %v8001, 0.0
    %v8419 = vmax.f32 %v8003, 0.0
    %v8420 = vmax.f32 %v8340, 0.0
    %v8421 = vmax.f32 %v8342, 0.0
    %v8422 = vmax.f32 %v8007, 0.0
    %v8423 = vmax.f32 %v8009, 0.0
    %v8424 = vmax.f32 %v8346, 0.0
    %v8425 = vmax.f32 %v8348, 0.0
    %v8426 = vmax.f32 %v8011, 0.0
    %v8427 = vmax.f32 %v8013, 0.0
    %v8428 = vmax.f32 %v8350, 0.0
    %v8429 = vmax.f32 %v8352, 0.0
    %v8430 = vmax.f32 %v8017, 0.0
    %v8431 = vmax.f32 %v8019, 0.0
    %v8432 = vmax.f32 %v8356, 0.0
    %v8433 = vmax.f32 %v8358, 0.0
    %v8434 = vmax.f32 %v8021, 0.0
    %v8435 = vmax.f32 %v8023, 0.0
    %v8436 = vmax.f32 %v8360, 0.0
    %v8437 = vmax.f32 %v8362, 0.0
    %v8438 = vmax.f32 %v8027, 0.0
    %v8439 = vmax.f32 %v8029, 0.0
    %v8440 = vmax.f32 %v8366, 0.0
    %v8441 = vmax.f32 %v8368, 0.0
    %v8442 = vmax.f32 %v8031, 0.0
    %v8443 = vmax.f32 %v8033, 0.0
    %v8444 = vmax.f32 %v8370, 0.0
    %v8445 = vmax.f32 %v8372, 0.0
    %v8446 = vmax.f32 %v8037, 0.0
    %v8447 = vmax.f32 %v8039, 0.0
    %v8448 = vmax.f32 %v8376, 0.0
    %v8449 = vmax.f32 %v8378, 0.0
    %v8450 = vmax.f32 %v8041, 0.0
    %v8451 = vmax.f32 %v8043, 0.0
    %v8452 = vmax.f32 %v8380, 0.0
    %v8453 = vmax.f32 %v8382, 0.0
    %v8454 = vmax.f32 %v8047, 0.0
    %v8455 = vmax.f32 %v8049, 0.0
    %v8456 = vmax.f32 %v8386, 0.0
    %v8457 = vmax.f32 %v8388, 0.0
    %v8458 = vmax.f32 %v8051, 0.0
    %v8459 = vmax.f32 %v8053, 0.0
    %v8460 = vmax.f32 %v8390, 0.0
    %v8461 = vmax.f32 %v8392, 0.0
    %v8462 = vmax.f32 %v8057, 0.0
    %v8463 = vmax.f32 %v8059, 0.0
    %v8464 = vmax.f32 %v8396, 0.0
    %v8465 = vmax.f32 %v8398, 0.0
    %v8466 = vmax.f32 %v8061, 0.0
    %v8467 = vmax.f32 %v8063, 0.0
    %v8468 = vmax.f32 %v8400, 0.0
    %v8469 = vmax.f32 %v8402, 0.0
    %v8470 = vmax.f32 %v8067, 0.0
    %v8471 = vmax.f32 %v8069, 0.0
    %v8472 = vmax.f32 %v8406, 0.0
    %v8473 = vmax.f32 %v8408, 0.0
    %v8474 = vmax.f32 %v8071, 0.0
    %v8475 = vmax.f32 %v8073, 0.0
    %v8476 = vmax.f32 %v8410, 0.0
    %v8477 = vmax.f32 %v8412, 0.0
    %v8478 = vpack.c.bf16 %v8418, %v8414
    %v8479 = vpack.c.bf16 %v8419, %v8415
    %v8480 = vpack.c.bf16 %v8420, %v8416
    %v8481 = vpack.c.bf16 %v8421, %v8417
    %v8482 = vpack.c.bf16 %v8426, %v8422
    %v8483 = vpack.c.bf16 %v8427, %v8423
    %v8484 = vpack.c.bf16 %v8428, %v8424
    %v8485 = vpack.c.bf16 %v8429, %v8425
    %v8486 = vpack.c.bf16 %v8434, %v8430
    %v8487 = vpack.c.bf16 %v8435, %v8431
    %v8488 = vpack.c.bf16 %v8436, %v8432
    %v8489 = vpack.c.bf16 %v8437, %v8433
    %v8490 = vpack.c.bf16 %v8442, %v8438
    %v8491 = vpack.c.bf16 %v8443, %v8439
    %v8492 = vpack.c.bf16 %v8444, %v8440
    %v8493 = vpack.c.bf16 %v8445, %v8441
    %v8494 = vpack.c.bf16 %v8450, %v8446
    %v8495 = vpack.c.bf16 %v8451, %v8447
    %v8496 = vpack.c.bf16 %v8452, %v8448
    %v8497 = vpack.c.bf16 %v8453, %v8449
    %v8498 = vpack.c.bf16 %v8458, %v8454
    %v8499 = vpack.c.bf16 %v8459, %v8455
    %v8500 = vpack.c.bf16 %v8460, %v8456
    %v8501 = vpack.c.bf16 %v8461, %v8457
    %v8502 = vpack.c.bf16 %v8466, %v8462
    %v8503 = vpack.c.bf16 %v8467, %v8463
    %v8504 = vpack.c.bf16 %v8468, %v8464
    %v8505 = vpack.c.bf16 %v8469, %v8465
    %v8506 = vpack.c.bf16 %v8474, %v8470
    %v8507 = vpack.c.bf16 %v8475, %v8471
    %v8508 = vpack.c.bf16 %v8476, %v8472
    %v8509 = vpack.c.bf16 %v8477, %v8473
    %v8510 = vld [vmem:[#allocation11] sm:$0xff]
    %v8511 = vld [vmem:[#allocation11 + $0x8] sm:$0xff]
    %v8512 = vld [vmem:[#allocation11 + $0x10] sm:$0xff]
    %v8513 = vld [vmem:[#allocation11 + $0x18] sm:$0xff]
    %v8514 = vld [vmem:[#allocation11 + $0x20] sm:$0xff]
    %v8515 = vld [vmem:[#allocation11 + $0x28] sm:$0xff]
    %v8516 = vld [vmem:[#allocation11 + $0x30] sm:$0xff]
    %v8517 = vld [vmem:[#allocation11 + $0x38] sm:$0xff]
    %v8518 = vld [vmem:[#allocation11 + $0x40] sm:$0xff]
    %v8519 = vld [vmem:[#allocation11 + $0x48] sm:$0xff]
    %v8520 = vld [vmem:[#allocation11 + $0x50] sm:$0xff]
    %v8521 = vld [vmem:[#allocation11 + $0x58] sm:$0xff]
    %v8522 = vld [vmem:[#allocation11 + $0x60] sm:$0xff]
    %v8523 = vld [vmem:[#allocation11 + $0x68] sm:$0xff]
    %v8524 = vld [vmem:[#allocation11 + $0x70] sm:$0xff]
    %v8525 = vld [vmem:[#allocation11 + $0x78] sm:$0xff]
    %v8526 = vld [vmem:[#allocation11 + $0x80] sm:$0xff]
    %v8527 = vld [vmem:[#allocation11 + $0x88] sm:$0xff]
    %v8528 = vld [vmem:[#allocation11 + $0x90] sm:$0xff]
    %v8529 = vld [vmem:[#allocation11 + $0x98] sm:$0xff]
    %v8530 = vld [vmem:[#allocation11 + $0xa0] sm:$0xff]
    %v8531 = vld [vmem:[#allocation11 + $0xa8] sm:$0xff]
    %v8532 = vld [vmem:[#allocation11 + $0xb0] sm:$0xff]
    %v8533 = vld [vmem:[#allocation11 + $0xb8] sm:$0xff]
    %v8534 = vld [vmem:[#allocation11 + $0xc0] sm:$0xff]
    %v8535 = vld [vmem:[#allocation11 + $0xc8] sm:$0xff]
    %v8536 = vld [vmem:[#allocation11 + $0xd0] sm:$0xff]
    %v8537 = vld [vmem:[#allocation11 + $0xd8] sm:$0xff]
    %v8538 = vld [vmem:[#allocation11 + $0xe0] sm:$0xff]
    %v8539 = vld [vmem:[#allocation11 + $0xe8] sm:$0xff]
    %v8540 = vld [vmem:[#allocation11 + $0xf0] sm:$0xff]
    %v8541 = vld [vmem:[#allocation11 + $0xf8] sm:$0xff]
    %v8542 = vld [vmem:[#allocation11 + $0x100] sm:$0xff]
    %v8543 = vld [vmem:[#allocation11 + $0x108] sm:$0xff]
    %v8544 = vld [vmem:[#allocation11 + $0x110] sm:$0xff]
    %v8545 = vld [vmem:[#allocation11 + $0x118] sm:$0xff]
    %v8546 = vld [vmem:[#allocation11 + $0x120] sm:$0xff]
    %v8547 = vld [vmem:[#allocation11 + $0x128] sm:$0xff]
    %v8548 = vld [vmem:[#allocation11 + $0x130] sm:$0xff]
    %v8549 = vld [vmem:[#allocation11 + $0x138] sm:$0xff]
    %v8550 = vld [vmem:[#allocation11 + $0x140] sm:$0xff]
    %v8551 = vld [vmem:[#allocation11 + $0x148] sm:$0xff]
    %v8552 = vld [vmem:[#allocation11 + $0x150] sm:$0xff]
    %v8553 = vld [vmem:[#allocation11 + $0x158] sm:$0xff]
    %v8554 = vld [vmem:[#allocation11 + $0x160] sm:$0xff]
    %v8555 = vld [vmem:[#allocation11 + $0x168] sm:$0xff]
    %v8556 = vld [vmem:[#allocation11 + $0x170] sm:$0xff]
    %v8557 = vld [vmem:[#allocation11 + $0x178] sm:$0xff]
    %v8558 = vld [vmem:[#allocation11 + $0x180] sm:$0xff]
    %v8559 = vld [vmem:[#allocation11 + $0x188] sm:$0xff]
    %v8560 = vld [vmem:[#allocation11 + $0x190] sm:$0xff]
    %v8561 = vld [vmem:[#allocation11 + $0x198] sm:$0xff]
    %v8562 = vld [vmem:[#allocation11 + $0x1a0] sm:$0xff]
    %v8563 = vld [vmem:[#allocation11 + $0x1a8] sm:$0xff]
    %v8564 = vld [vmem:[#allocation11 + $0x1b0] sm:$0xff]
    %v8565 = vld [vmem:[#allocation11 + $0x1b8] sm:$0xff]
    %v8566 = vld [vmem:[#allocation11 + $0x1c0] sm:$0xff]
    %v8567 = vld [vmem:[#allocation11 + $0x1c8] sm:$0xff]
    %v8568 = vld [vmem:[#allocation11 + $0x1d0] sm:$0xff]
    %v8569 = vld [vmem:[#allocation11 + $0x1d8] sm:$0xff]
    %v8570 = vld [vmem:[#allocation11 + $0x1e0] sm:$0xff]
    %v8571 = vld [vmem:[#allocation11 + $0x1e8] sm:$0xff]
    %v8572 = vld [vmem:[#allocation11 + $0x1f0] sm:$0xff]
    %v8573 = vld [vmem:[#allocation11 + $0x1f8] sm:$0xff]
    %v8574 = vld [vmem:[#allocation11 + $0x200] sm:$0xff]
    %v8575 = vld [vmem:[#allocation11 + $0x208] sm:$0xff]
    %v8576 = vld [vmem:[#allocation11 + $0x210] sm:$0xff]
    %v8577 = vld [vmem:[#allocation11 + $0x218] sm:$0xff]
    %v8578 = vld [vmem:[#allocation11 + $0x220] sm:$0xff]
    %v8579 = vld [vmem:[#allocation11 + $0x228] sm:$0xff]
    %v8580 = vld [vmem:[#allocation11 + $0x230] sm:$0xff]
    %v8581 = vld [vmem:[#allocation11 + $0x238] sm:$0xff]
    %v8582 = vld [vmem:[#allocation11 + $0x240] sm:$0xff]
    %v8583 = vld [vmem:[#allocation11 + $0x248] sm:$0xff]
    %v8584 = vld [vmem:[#allocation11 + $0x250] sm:$0xff]
    %v8585 = vld [vmem:[#allocation11 + $0x258] sm:$0xff]
    %v8586 = vld [vmem:[#allocation11 + $0x260] sm:$0xff]
    %v8587 = vld [vmem:[#allocation11 + $0x268] sm:$0xff]
    %v8588 = vld [vmem:[#allocation11 + $0x270] sm:$0xff]
    %v8589 = vld [vmem:[#allocation11 + $0x278] sm:$0xff]
    %v8590 = vld [vmem:[#allocation11 + $0x280] sm:$0xff]
    %v8591 = vld [vmem:[#allocation11 + $0x288] sm:$0xff]
    %v8592 = vld [vmem:[#allocation11 + $0x290] sm:$0xff]
    %v8593 = vld [vmem:[#allocation11 + $0x298] sm:$0xff]
    %v8594 = vld [vmem:[#allocation11 + $0x2a0] sm:$0xff]
    %v8595 = vld [vmem:[#allocation11 + $0x2a8] sm:$0xff]
    %v8596 = vld [vmem:[#allocation11 + $0x2b0] sm:$0xff]
    %v8597 = vld [vmem:[#allocation11 + $0x2b8] sm:$0xff]
    %v8598 = vld [vmem:[#allocation11 + $0x2c0] sm:$0xff]
    %v8599 = vld [vmem:[#allocation11 + $0x2c8] sm:$0xff]
    %v8600 = vld [vmem:[#allocation11 + $0x2d0] sm:$0xff]
    %v8601 = vld [vmem:[#allocation11 + $0x2d8] sm:$0xff]
    %v8602 = vld [vmem:[#allocation11 + $0x2e0] sm:$0xff]
    %v8603 = vld [vmem:[#allocation11 + $0x2e8] sm:$0xff]
    %v8604 = vld [vmem:[#allocation11 + $0x2f0] sm:$0xff]
    %v8605 = vld [vmem:[#allocation11 + $0x2f8] sm:$0xff]
    %v8606 = vld [vmem:[#allocation11 + $0x300] sm:$0xff]
    %v8607 = vld [vmem:[#allocation11 + $0x308] sm:$0xff]
    %v8608 = vld [vmem:[#allocation11 + $0x310] sm:$0xff]
    %v8609 = vld [vmem:[#allocation11 + $0x318] sm:$0xff]
    %v8610 = vld [vmem:[#allocation11 + $0x320] sm:$0xff]
    %v8611 = vld [vmem:[#allocation11 + $0x328] sm:$0xff]
    %v8612 = vld [vmem:[#allocation11 + $0x330] sm:$0xff]
    %v8613 = vld [vmem:[#allocation11 + $0x338] sm:$0xff]
    %v8614 = vld [vmem:[#allocation11 + $0x340] sm:$0xff]
    %v8615 = vld [vmem:[#allocation11 + $0x348] sm:$0xff]
    %v8616 = vld [vmem:[#allocation11 + $0x350] sm:$0xff]
    %v8617 = vld [vmem:[#allocation11 + $0x358] sm:$0xff]
    %v8618 = vld [vmem:[#allocation11 + $0x360] sm:$0xff]
    %v8619 = vld [vmem:[#allocation11 + $0x368] sm:$0xff]
    %v8620 = vld [vmem:[#allocation11 + $0x370] sm:$0xff]
    %v8621 = vld [vmem:[#allocation11 + $0x378] sm:$0xff]
    %v8622 = vld [vmem:[#allocation11 + $0x380] sm:$0xff]
    %v8623 = vld [vmem:[#allocation11 + $0x388] sm:$0xff]
    %v8624 = vld [vmem:[#allocation11 + $0x390] sm:$0xff]
    %v8625 = vld [vmem:[#allocation11 + $0x398] sm:$0xff]
    %v8626 = vld [vmem:[#allocation11 + $0x3a0] sm:$0xff]
    %v8627 = vld [vmem:[#allocation11 + $0x3a8] sm:$0xff]
    %v8628 = vld [vmem:[#allocation11 + $0x3b0] sm:$0xff]
    %v8629 = vld [vmem:[#allocation11 + $0x3b8] sm:$0xff]
    %v8630 = vld [vmem:[#allocation11 + $0x3c0] sm:$0xff]
    %v8631 = vld [vmem:[#allocation11 + $0x3c8] sm:$0xff]
    %v8632 = vld [vmem:[#allocation11 + $0x3d0] sm:$0xff]
    %v8633 = vld [vmem:[#allocation11 + $0x3d8] sm:$0xff]
    %v8634 = vld [vmem:[#allocation11 + $0x3e0] sm:$0xff]
    %v8635 = vld [vmem:[#allocation11 + $0x3e8] sm:$0xff]
    %v8636 = vld [vmem:[#allocation11 + $0x3f0] sm:$0xff]
    %v8637 = vld [vmem:[#allocation11 + $0x3f8] sm:$0xff]
    %v8638 = vld [vmem:[#allocation13] sm:$0xf]
    %v8640 = vlaneseq
    %v8641 = vshrl.u32 %v8640, 7
    %v8642 = vsub.s32 0, %v8641
    %v8643 = vrot.slane %v8638, %v8642
    %v8644 = vlaneseq
    %v8645 = vshrl.u32 %v8644, 7
    %v8646 = vsub.s32 1, %v8645
    %v8647 = vrot.slane %v8638, %v8646
    %v8648 = vlaneseq
    %v8649 = vshrl.u32 %v8648, 7
    %v8650 = vsub.s32 2, %v8649
    %v8651 = vrot.slane %v8638, %v8650
    %v8652 = vlaneseq
    %v8653 = vshrl.u32 %v8652, 7
    %v8654 = vsub.s32 3, %v8653
    %v8655 = vrot.slane %v8638, %v8654
    %v8788 = vunpack.c.l.b16 %v8510
    %v8789 = vunpack.c.h.b16 %v8510
    %v8790 = vunpack.c.l.b16 %v8511
    %v8791 = vunpack.c.h.b16 %v8511
    %v8792 = vunpack.c.l.b16 %v8512
    %v8793 = vunpack.c.h.b16 %v8512
    %v8794 = vunpack.c.l.b16 %v8513
    %v8795 = vunpack.c.h.b16 %v8513
    %v8796 = vunpack.c.l.b16 %v8514
    %v8797 = vunpack.c.h.b16 %v8514
    %v8798 = vunpack.c.l.b16 %v8515
    %v8799 = vunpack.c.h.b16 %v8515
    %v8800 = vunpack.c.l.b16 %v8516
    %v8801 = vunpack.c.h.b16 %v8516
    %v8802 = vunpack.c.l.b16 %v8517
    %v8803 = vunpack.c.h.b16 %v8517
    %v8804 = vunpack.c.l.b16 %v8518
    %v8805 = vunpack.c.h.b16 %v8518
    %v8806 = vunpack.c.l.b16 %v8519
    %v8807 = vunpack.c.h.b16 %v8519
    %v8808 = vunpack.c.l.b16 %v8520
    %v8809 = vunpack.c.h.b16 %v8520
    %v8810 = vunpack.c.l.b16 %v8521
    %v8811 = vunpack.c.h.b16 %v8521
    %v8812 = vunpack.c.l.b16 %v8522
    %v8813 = vunpack.c.h.b16 %v8522
    %v8814 = vunpack.c.l.b16 %v8523
    %v8815 = vunpack.c.h.b16 %v8523
    %v8816 = vunpack.c.l.b16 %v8524
    %v8817 = vunpack.c.h.b16 %v8524
    %v8818 = vunpack.c.l.b16 %v8525
    %v8819 = vunpack.c.h.b16 %v8525
    %v8820 = vunpack.c.l.b16 %v8526
    %v8821 = vunpack.c.h.b16 %v8526
    %v8822 = vunpack.c.l.b16 %v8527
    %v8823 = vunpack.c.h.b16 %v8527
    %v8824 = vunpack.c.l.b16 %v8528
    %v8825 = vunpack.c.h.b16 %v8528
    %v8826 = vunpack.c.l.b16 %v8529
    %v8827 = vunpack.c.h.b16 %v8529
    %v8828 = vunpack.c.l.b16 %v8530
    %v8829 = vunpack.c.h.b16 %v8530
    %v8830 = vunpack.c.l.b16 %v8531
    %v8831 = vunpack.c.h.b16 %v8531
    %v8832 = vunpack.c.l.b16 %v8532
    %v8833 = vunpack.c.h.b16 %v8532
    %v8834 = vunpack.c.l.b16 %v8533
    %v8835 = vunpack.c.h.b16 %v8533
    %v8836 = vunpack.c.l.b16 %v8534
    %v8837 = vunpack.c.h.b16 %v8534
    %v8838 = vunpack.c.l.b16 %v8535
    %v8839 = vunpack.c.h.b16 %v8535
    %v8840 = vunpack.c.l.b16 %v8536
    %v8841 = vunpack.c.h.b16 %v8536
    %v8842 = vunpack.c.l.b16 %v8537
    %v8843 = vunpack.c.h.b16 %v8537
    %v8844 = vunpack.c.l.b16 %v8538
    %v8845 = vunpack.c.h.b16 %v8538
    %v8846 = vunpack.c.l.b16 %v8539
    %v8847 = vunpack.c.h.b16 %v8539
    %v8848 = vunpack.c.l.b16 %v8540
    %v8849 = vunpack.c.h.b16 %v8540
    %v8850 = vunpack.c.l.b16 %v8541
    %v8851 = vunpack.c.h.b16 %v8541
    %v8852 = vunpack.c.l.b16 %v8542
    %v8853 = vunpack.c.h.b16 %v8542
    %v8854 = vunpack.c.l.b16 %v8543
    %v8855 = vunpack.c.h.b16 %v8543
    %v8856 = vunpack.c.l.b16 %v8544
    %v8857 = vunpack.c.h.b16 %v8544
    %v8858 = vunpack.c.l.b16 %v8545
    %v8859 = vunpack.c.h.b16 %v8545
    %v8860 = vunpack.c.l.b16 %v8546
    %v8861 = vunpack.c.h.b16 %v8546
    %v8862 = vunpack.c.l.b16 %v8547
    %v8863 = vunpack.c.h.b16 %v8547
    %v8864 = vunpack.c.l.b16 %v8548
    %v8865 = vunpack.c.h.b16 %v8548
    %v8866 = vunpack.c.l.b16 %v8549
    %v8867 = vunpack.c.h.b16 %v8549
    %v8868 = vunpack.c.l.b16 %v8550
    %v8869 = vunpack.c.h.b16 %v8550
    %v8870 = vunpack.c.l.b16 %v8551
    %v8871 = vunpack.c.h.b16 %v8551
    %v8872 = vunpack.c.l.b16 %v8552
    %v8873 = vunpack.c.h.b16 %v8552
    %v8874 = vunpack.c.l.b16 %v8553
    %v8875 = vunpack.c.h.b16 %v8553
    %v8876 = vunpack.c.l.b16 %v8554
    %v8877 = vunpack.c.h.b16 %v8554
    %v8878 = vunpack.c.l.b16 %v8555
    %v8879 = vunpack.c.h.b16 %v8555
    %v8880 = vunpack.c.l.b16 %v8556
    %v8881 = vunpack.c.h.b16 %v8556
    %v8882 = vunpack.c.l.b16 %v8557
    %v8883 = vunpack.c.h.b16 %v8557
    %v8884 = vunpack.c.l.b16 %v8558
    %v8885 = vunpack.c.h.b16 %v8558
    %v8886 = vunpack.c.l.b16 %v8559
    %v8887 = vunpack.c.h.b16 %v8559
    %v8888 = vunpack.c.l.b16 %v8560
    %v8889 = vunpack.c.h.b16 %v8560
    %v8890 = vunpack.c.l.b16 %v8561
    %v8891 = vunpack.c.h.b16 %v8561
    %v8892 = vunpack.c.l.b16 %v8562
    %v8893 = vunpack.c.h.b16 %v8562
    %v8894 = vunpack.c.l.b16 %v8563
    %v8895 = vunpack.c.h.b16 %v8563
    %v8896 = vunpack.c.l.b16 %v8564
    %v8897 = vunpack.c.h.b16 %v8564
    %v8898 = vunpack.c.l.b16 %v8565
    %v8899 = vunpack.c.h.b16 %v8565
    %v8900 = vunpack.c.l.b16 %v8566
    %v8901 = vunpack.c.h.b16 %v8566
    %v8902 = vunpack.c.l.b16 %v8567
    %v8903 = vunpack.c.h.b16 %v8567
    %v8904 = vunpack.c.l.b16 %v8568
    %v8905 = vunpack.c.h.b16 %v8568
    %v8906 = vunpack.c.l.b16 %v8569
    %v8907 = vunpack.c.h.b16 %v8569
    %v8908 = vunpack.c.l.b16 %v8570
    %v8909 = vunpack.c.h.b16 %v8570
    %v8910 = vunpack.c.l.b16 %v8571
    %v8911 = vunpack.c.h.b16 %v8571
    %v8912 = vunpack.c.l.b16 %v8572
    %v8913 = vunpack.c.h.b16 %v8572
    %v8914 = vunpack.c.l.b16 %v8573
    %v8915 = vunpack.c.h.b16 %v8573
    %v8916 = vunpack.c.l.b16 %v8574
    %v8917 = vunpack.c.h.b16 %v8574
    %v8918 = vunpack.c.l.b16 %v8575
    %v8919 = vunpack.c.h.b16 %v8575
    %v8920 = vunpack.c.l.b16 %v8576
    %v8921 = vunpack.c.h.b16 %v8576
    %v8922 = vunpack.c.l.b16 %v8577
    %v8923 = vunpack.c.h.b16 %v8577
    %v8924 = vunpack.c.l.b16 %v8578
    %v8925 = vunpack.c.h.b16 %v8578
    %v8926 = vunpack.c.l.b16 %v8579
    %v8927 = vunpack.c.h.b16 %v8579
    %v8928 = vunpack.c.l.b16 %v8580
    %v8929 = vunpack.c.h.b16 %v8580
    %v8930 = vunpack.c.l.b16 %v8581
    %v8931 = vunpack.c.h.b16 %v8581
    %v8932 = vunpack.c.l.b16 %v8582
    %v8933 = vunpack.c.h.b16 %v8582
    %v8934 = vunpack.c.l.b16 %v8583
    %v8935 = vunpack.c.h.b16 %v8583
    %v8936 = vunpack.c.l.b16 %v8584
    %v8937 = vunpack.c.h.b16 %v8584
    %v8938 = vunpack.c.l.b16 %v8585
    %v8939 = vunpack.c.h.b16 %v8585
    %v8940 = vunpack.c.l.b16 %v8586
    %v8941 = vunpack.c.h.b16 %v8586
    %v8942 = vunpack.c.l.b16 %v8587
    %v8943 = vunpack.c.h.b16 %v8587
    %v8944 = vunpack.c.l.b16 %v8588
    %v8945 = vunpack.c.h.b16 %v8588
    %v8946 = vunpack.c.l.b16 %v8589
    %v8947 = vunpack.c.h.b16 %v8589
    %v8948 = vunpack.c.l.b16 %v8590
    %v8949 = vunpack.c.h.b16 %v8590
    %v8950 = vunpack.c.l.b16 %v8591
    %v8951 = vunpack.c.h.b16 %v8591
    %v8952 = vunpack.c.l.b16 %v8592
    %v8953 = vunpack.c.h.b16 %v8592
    %v8954 = vunpack.c.l.b16 %v8593
    %v8955 = vunpack.c.h.b16 %v8593
    %v8956 = vunpack.c.l.b16 %v8594
    %v8957 = vunpack.c.h.b16 %v8594
    %v8958 = vunpack.c.l.b16 %v8595
    %v8959 = vunpack.c.h.b16 %v8595
    %v8960 = vunpack.c.l.b16 %v8596
    %v8961 = vunpack.c.h.b16 %v8596
    %v8962 = vunpack.c.l.b16 %v8597
    %v8963 = vunpack.c.h.b16 %v8597
    %v8964 = vunpack.c.l.b16 %v8598
    %v8965 = vunpack.c.h.b16 %v8598
    %v8966 = vunpack.c.l.b16 %v8599
    %v8967 = vunpack.c.h.b16 %v8599
    %v8968 = vunpack.c.l.b16 %v8600
    %v8969 = vunpack.c.h.b16 %v8600
    %v8970 = vunpack.c.l.b16 %v8601
    %v8971 = vunpack.c.h.b16 %v8601
    %v8972 = vunpack.c.l.b16 %v8602
    %v8973 = vunpack.c.h.b16 %v8602
    %v8974 = vunpack.c.l.b16 %v8603
    %v8975 = vunpack.c.h.b16 %v8603
    %v8976 = vunpack.c.l.b16 %v8604
    %v8977 = vunpack.c.h.b16 %v8604
    %v8978 = vunpack.c.l.b16 %v8605
    %v8979 = vunpack.c.h.b16 %v8605
    %v8980 = vunpack.c.l.b16 %v8606
    %v8981 = vunpack.c.h.b16 %v8606
    %v8982 = vunpack.c.l.b16 %v8607
    %v8983 = vunpack.c.h.b16 %v8607
    %v8984 = vunpack.c.l.b16 %v8608
    %v8985 = vunpack.c.h.b16 %v8608
    %v8986 = vunpack.c.l.b16 %v8609
    %v8987 = vunpack.c.h.b16 %v8609
    %v8988 = vunpack.c.l.b16 %v8610
    %v8989 = vunpack.c.h.b16 %v8610
    %v8990 = vunpack.c.l.b16 %v8611
    %v8991 = vunpack.c.h.b16 %v8611
    %v8992 = vunpack.c.l.b16 %v8612
    %v8993 = vunpack.c.h.b16 %v8612
    %v8994 = vunpack.c.l.b16 %v8613
    %v8995 = vunpack.c.h.b16 %v8613
    %v8996 = vunpack.c.l.b16 %v8614
    %v8997 = vunpack.c.h.b16 %v8614
    %v8998 = vunpack.c.l.b16 %v8615
    %v8999 = vunpack.c.h.b16 %v8615
    %v9000 = vunpack.c.l.b16 %v8616
    %v9001 = vunpack.c.h.b16 %v8616
    %v9002 = vunpack.c.l.b16 %v8617
    %v9003 = vunpack.c.h.b16 %v8617
    %v9004 = vunpack.c.l.b16 %v8618
    %v9005 = vunpack.c.h.b16 %v8618
    %v9006 = vunpack.c.l.b16 %v8619
    %v9007 = vunpack.c.h.b16 %v8619
    %v9008 = vunpack.c.l.b16 %v8620
    %v9009 = vunpack.c.h.b16 %v8620
    %v9010 = vunpack.c.l.b16 %v8621
    %v9011 = vunpack.c.h.b16 %v8621
    %v9012 = vunpack.c.l.b16 %v8622
    %v9013 = vunpack.c.h.b16 %v8622
    %v9014 = vunpack.c.l.b16 %v8623
    %v9015 = vunpack.c.h.b16 %v8623
    %v9016 = vunpack.c.l.b16 %v8624
    %v9017 = vunpack.c.h.b16 %v8624
    %v9018 = vunpack.c.l.b16 %v8625
    %v9019 = vunpack.c.h.b16 %v8625
    %v9020 = vunpack.c.l.b16 %v8626
    %v9021 = vunpack.c.h.b16 %v8626
    %v9022 = vunpack.c.l.b16 %v8627
    %v9023 = vunpack.c.h.b16 %v8627
    %v9024 = vunpack.c.l.b16 %v8628
    %v9025 = vunpack.c.h.b16 %v8628
    %v9026 = vunpack.c.l.b16 %v8629
    %v9027 = vunpack.c.h.b16 %v8629
    %v9028 = vunpack.c.l.b16 %v8630
    %v9029 = vunpack.c.h.b16 %v8630
    %v9030 = vunpack.c.l.b16 %v8631
    %v9031 = vunpack.c.h.b16 %v8631
    %v9032 = vunpack.c.l.b16 %v8632
    %v9033 = vunpack.c.h.b16 %v8632
    %v9034 = vunpack.c.l.b16 %v8633
    %v9035 = vunpack.c.h.b16 %v8633
    %v9036 = vunpack.c.l.b16 %v8634
    %v9037 = vunpack.c.h.b16 %v8634
    %v9038 = vunpack.c.l.b16 %v8635
    %v9039 = vunpack.c.h.b16 %v8635
    %v9040 = vunpack.c.l.b16 %v8636
    %v9041 = vunpack.c.h.b16 %v8636
    %v9042 = vunpack.c.l.b16 %v8637
    %v9043 = vunpack.c.h.b16 %v8637
    %v9044 = vpack.c.b16 %v8792, %v8788
    %v9045 = vpack.c.b16 %v8793, %v8789
    %v9046 = vpack.c.b16 %v8794, %v8790
    %v9047 = vpack.c.b16 %v8795, %v8791
    %v9048 = vpack.c.b16 %v8800, %v8796
    %v9049 = vpack.c.b16 %v8801, %v8797
    %v9050 = vpack.c.b16 %v8802, %v8798
    %v9051 = vpack.c.b16 %v8803, %v8799
    %v9052 = vpack.c.b16 %v8808, %v8804
    %v9053 = vpack.c.b16 %v8809, %v8805
    %v9054 = vpack.c.b16 %v8810, %v8806
    %v9055 = vpack.c.b16 %v8811, %v8807
    %v9056 = vpack.c.b16 %v8816, %v8812
    %v9057 = vpack.c.b16 %v8817, %v8813
    %v9058 = vpack.c.b16 %v8818, %v8814
    %v9059 = vpack.c.b16 %v8819, %v8815
    %v9060 = vpack.c.b16 %v8824, %v8820
    %v9061 = vpack.c.b16 %v8825, %v8821
    %v9062 = vpack.c.b16 %v8826, %v8822
    %v9063 = vpack.c.b16 %v8827, %v8823
    %v9064 = vpack.c.b16 %v8832, %v8828
    %v9065 = vpack.c.b16 %v8833, %v8829
    %v9066 = vpack.c.b16 %v8834, %v8830
    %v9067 = vpack.c.b16 %v8835, %v8831
    %v9068 = vpack.c.b16 %v8840, %v8836
    %v9069 = vpack.c.b16 %v8841, %v8837
    %v9070 = vpack.c.b16 %v8842, %v8838
    %v9071 = vpack.c.b16 %v8843, %v8839
    %v9072 = vpack.c.b16 %v8848, %v8844
    %v9073 = vpack.c.b16 %v8849, %v8845
    %v9074 = vpack.c.b16 %v8850, %v8846
    %v9075 = vpack.c.b16 %v8851, %v8847
    %v9076 = vpack.c.b16 %v8856, %v8852
    %v9077 = vpack.c.b16 %v8857, %v8853
    %v9078 = vpack.c.b16 %v8858, %v8854
    %v9079 = vpack.c.b16 %v8859, %v8855
    %v9080 = vpack.c.b16 %v8864, %v8860
    %v9081 = vpack.c.b16 %v8865, %v8861
    %v9082 = vpack.c.b16 %v8866, %v8862
    %v9083 = vpack.c.b16 %v8867, %v8863
    %v9084 = vpack.c.b16 %v8872, %v8868
    %v9085 = vpack.c.b16 %v8873, %v8869
    %v9086 = vpack.c.b16 %v8874, %v8870
    %v9087 = vpack.c.b16 %v8875, %v8871
    %v9088 = vpack.c.b16 %v8880, %v8876
    %v9089 = vpack.c.b16 %v8881, %v8877
    %v9090 = vpack.c.b16 %v8882, %v8878
    %v9091 = vpack.c.b16 %v8883, %v8879
    %v9092 = vpack.c.b16 %v8888, %v8884
    %v9093 = vpack.c.b16 %v8889, %v8885
    %v9094 = vpack.c.b16 %v8890, %v8886
    %v9095 = vpack.c.b16 %v8891, %v8887
    %v9096 = vpack.c.b16 %v8896, %v8892
    %v9097 = vpack.c.b16 %v8897, %v8893
    %v9098 = vpack.c.b16 %v8898, %v8894
    %v9099 = vpack.c.b16 %v8899, %v8895
    %v9100 = vpack.c.b16 %v8904, %v8900
    %v9101 = vpack.c.b16 %v8905, %v8901
    %v9102 = vpack.c.b16 %v8906, %v8902
    %v9103 = vpack.c.b16 %v8907, %v8903
    %v9104 = vpack.c.b16 %v8912, %v8908
    %v9105 = vpack.c.b16 %v8913, %v8909
    %v9106 = vpack.c.b16 %v8914, %v8910
    %v9107 = vpack.c.b16 %v8915, %v8911
    %v9108 = vpack.c.b16 %v8920, %v8916
    %v9109 = vpack.c.b16 %v8921, %v8917
    %v9110 = vpack.c.b16 %v8922, %v8918
    %v9111 = vpack.c.b16 %v8923, %v8919
    %v9112 = vpack.c.b16 %v8928, %v8924
    %v9113 = vpack.c.b16 %v8929, %v8925
    %v9114 = vpack.c.b16 %v8930, %v8926
    %v9115 = vpack.c.b16 %v8931, %v8927
    %v9116 = vpack.c.b16 %v8936, %v8932
    %v9117 = vpack.c.b16 %v8937, %v8933
    %v9118 = vpack.c.b16 %v8938, %v8934
    %v9119 = vpack.c.b16 %v8939, %v8935
    %v9120 = vpack.c.b16 %v8944, %v8940
    %v9121 = vpack.c.b16 %v8945, %v8941
    %v9122 = vpack.c.b16 %v8946, %v8942
    %v9123 = vpack.c.b16 %v8947, %v8943
    %v9124 = vpack.c.b16 %v8952, %v8948
    %v9125 = vpack.c.b16 %v8953, %v8949
    %v9126 = vpack.c.b16 %v8954, %v8950
    %v9127 = vpack.c.b16 %v8955, %v8951
    %v9128 = vpack.c.b16 %v8960, %v8956
    %v9129 = vpack.c.b16 %v8961, %v8957
    %v9130 = vpack.c.b16 %v8962, %v8958
    %v9131 = vpack.c.b16 %v8963, %v8959
    %v9132 = vpack.c.b16 %v8968, %v8964
    %v9133 = vpack.c.b16 %v8969, %v8965
    %v9134 = vpack.c.b16 %v8970, %v8966
    %v9135 = vpack.c.b16 %v8971, %v8967
    %v9136 = vpack.c.b16 %v8976, %v8972
    %v9137 = vpack.c.b16 %v8977, %v8973
    %v9138 = vpack.c.b16 %v8978, %v8974
    %v9139 = vpack.c.b16 %v8979, %v8975
    %v9140 = vpack.c.b16 %v8984, %v8980
    %v9141 = vpack.c.b16 %v8985, %v8981
    %v9142 = vpack.c.b16 %v8986, %v8982
    %v9143 = vpack.c.b16 %v8987, %v8983
    %v9144 = vpack.c.b16 %v8992, %v8988
    %v9145 = vpack.c.b16 %v8993, %v8989
    %v9146 = vpack.c.b16 %v8994, %v8990
    %v9147 = vpack.c.b16 %v8995, %v8991
    %v9148 = vpack.c.b16 %v9000, %v8996
    %v9149 = vpack.c.b16 %v9001, %v8997
    %v9150 = vpack.c.b16 %v9002, %v8998
    %v9151 = vpack.c.b16 %v9003, %v8999
    %v9152 = vpack.c.b16 %v9008, %v9004
    %v9153 = vpack.c.b16 %v9009, %v9005
    %v9154 = vpack.c.b16 %v9010, %v9006
    %v9155 = vpack.c.b16 %v9011, %v9007
    %v9156 = vpack.c.b16 %v9016, %v9012
    %v9157 = vpack.c.b16 %v9017, %v9013
    %v9158 = vpack.c.b16 %v9018, %v9014
    %v9159 = vpack.c.b16 %v9019, %v9015
    %v9160 = vpack.c.b16 %v9024, %v9020
    %v9161 = vpack.c.b16 %v9025, %v9021
    %v9162 = vpack.c.b16 %v9026, %v9022
    %v9163 = vpack.c.b16 %v9027, %v9023
    %v9164 = vpack.c.b16 %v9032, %v9028
    %v9165 = vpack.c.b16 %v9033, %v9029
    %v9166 = vpack.c.b16 %v9034, %v9030
    %v9167 = vpack.c.b16 %v9035, %v9031
    %v9168 = vpack.c.b16 %v9040, %v9036
    %v9169 = vpack.c.b16 %v9041, %v9037
    %v9170 = vpack.c.b16 %v9042, %v9038
    %v9171 = vpack.c.b16 %v9043, %v9039
    %9300 = vmatprep.subr.bf16.mxu0 %v9045
    %9301 = vmatpush1.bf16.msra.mxu0 %v9044
    %9302 = vmatprep.subr.bf16.mxu0 %v9049
    %9303 = vmatpush1.bf16.msra.mxu0 %v9048
    %9304 = vmatprep.subr.bf16.mxu0 %v9053
    %9305 = vmatpush1.bf16.msra.mxu0 %v9052
    %9306 = vmatprep.subr.bf16.mxu0 %v9057
    %9307 = vmatpush1.bf16.msra.mxu0 %v9056
    %9308 = vmatprep.subr.bf16.mxu0 %v9061
    %9309 = vmatpush1.bf16.msra.mxu0 %v9060
    %9310 = vmatprep.subr.bf16.mxu0 %v9065
    %9311 = vmatpush1.bf16.msra.mxu0 %v9064
    %9312 = vmatprep.subr.bf16.mxu0 %v9069
    %9313 = vmatpush1.bf16.msra.mxu0 %v9068
    %9314 = vmatprep.subr.bf16.mxu0 %v9073
    %9315 = vmatpush1.bf16.msra.mxu0 %v9072
    %9316 = vmatprep.subr.bf16.mxu0 %v9077
    %9317 = vmatpush1.bf16.msra.mxu0 %v9076
    %9318 = vmatprep.subr.bf16.mxu0 %v9081
    %9319 = vmatpush1.bf16.msra.mxu0 %v9080
    %9320 = vmatprep.subr.bf16.mxu0 %v9085
    %9321 = vmatpush1.bf16.msra.mxu0 %v9084
    %9322 = vmatprep.subr.bf16.mxu0 %v9089
    %9323 = vmatpush1.bf16.msra.mxu0 %v9088
    %9324 = vmatprep.subr.bf16.mxu0 %v9093
    %9325 = vmatpush1.bf16.msra.mxu0 %v9092
    %9326 = vmatprep.subr.bf16.mxu0 %v9097
    %9327 = vmatpush1.bf16.msra.mxu0 %v9096
    %9328 = vmatprep.subr.bf16.mxu0 %v9101
    %9329 = vmatpush1.bf16.msra.mxu0 %v9100
    %9330 = vmatprep.subr.bf16.mxu0 %v9105
    %9331 = vmatpush1.bf16.msra.mxu0 %v9104
    %9332 = vmatprep.mubr.bf16.mxu0 %v8479
    %9333 = vmatmul.mubr.bf16.gmra.mrb[0].mxu0 %v8478
    %v9334 = vpop.f32.mrb[0].mxu0
    %v9335 = vadd.f32 %v8643, %v9334
    %v9336 = vpop.f32.mrb[0].mxu0
    %v9337 = vadd.f32 %v8647, %v9336
    %v9338 = vpop.f32.mrb[0].mxu0
    %v9339 = vadd.f32 %v8643, %v9338
    %v9340 = vpop.f32.mrb[0].mxu0
    %v9341 = vadd.f32 %v8647, %v9340
    %9342 = vmatprep.mubr.bf16.mxu0 %v8483
    %9343 = vmatmul.mubr.bf16.gmra.mrb[0].mxu0 %v8482
    %v9344 = vpop.f32.mrb[0].mxu0
    %v9345 = vadd.f32 %v8643, %v9344
    %v9346 = vpop.f32.mrb[0].mxu0
    %v9347 = vadd.f32 %v8647, %v9346
    %v9348 = vpop.f32.mrb[0].mxu0
    %v9349 = vadd.f32 %v8643, %v9348
    %v9350 = vpop.f32.mrb[0].mxu0
    %v9351 = vadd.f32 %v8647, %v9350
    %9352 = vmatprep.mubr.bf16.mxu0 %v8487
    %9353 = vmatmul.mubr.bf16.gmra.mrb[0].mxu0 %v8486
    %v9354 = vpop.f32.mrb[0].mxu0
    %v9355 = vadd.f32 %v8643, %v9354
    %v9356 = vpop.f32.mrb[0].mxu0
    %v9357 = vadd.f32 %v8647, %v9356
    %v9358 = vpop.f32.mrb[0].mxu0
    %v9359 = vadd.f32 %v8643, %v9358
    %v9360 = vpop.f32.mrb[0].mxu0
    %v9361 = vadd.f32 %v8647, %v9360
    %9362 = vmatprep.mubr.bf16.mxu0 %v8491
    %9363 = vmatmul.mubr.bf16.gmra.mrb[0].mxu0 %v8490
    %v9364 = vpop.f32.mrb[0].mxu0
    %v9365 = vadd.f32 %v8643, %v9364
    %v9366 = vpop.f32.mrb[0].mxu0
    %v9367 = vadd.f32 %v8647, %v9366
    %v9368 = vpop.f32.mrb[0].mxu0
    %v9369 = vadd.f32 %v8643, %v9368
    %v9370 = vpop.f32.mrb[0].mxu0
    %v9371 = vadd.f32 %v8647, %v9370
    %9372 = vmatprep.mubr.bf16.mxu0 %v8495
    %9373 = vmatmul.mubr.bf16.gmra.mrb[0].mxu0 %v8494
    %v9374 = vpop.f32.mrb[0].mxu0
    %v9375 = vadd.f32 %v8643, %v9374
    %v9376 = vpop.f32.mrb[0].mxu0
    %v9377 = vadd.f32 %v8647, %v9376
    %v9378 = vpop.f32.mrb[0].mxu0
    %v9379 = vadd.f32 %v8643, %v9378
    %v9380 = vpop.f32.mrb[0].mxu0
    %v9381 = vadd.f32 %v8647, %v9380
    %9382 = vmatprep.mubr.bf16.mxu0 %v8499
    %9383 = vmatmul.mubr.bf16.gmra.mrb[0].mxu0 %v8498
    %v9384 = vpop.f32.mrb[0].mxu0
    %v9385 = vadd.f32 %v8643, %v9384
    %v9386 = vpop.f32.mrb[0].mxu0
    %v9387 = vadd.f32 %v8647, %v9386
    %v9388 = vpop.f32.mrb[0].mxu0
    %v9389 = vadd.f32 %v8643, %v9388
    %v9390 = vpop.f32.mrb[0].mxu0
    %v9391 = vadd.f32 %v8647, %v9390
    %9392 = vmatprep.mubr.bf16.mxu0 %v8503
    %9393 = vmatmul.mubr.bf16.gmra.mrb[0].mxu0 %v8502
    %v9394 = vpop.f32.mrb[0].mxu0
    %v9395 = vadd.f32 %v8643, %v9394
    %v9396 = vpop.f32.mrb[0].mxu0
    %v9397 = vadd.f32 %v8647, %v9396
    %v9398 = vpop.f32.mrb[0].mxu0
    %v9399 = vadd.f32 %v8643, %v9398
    %v9400 = vpop.f32.mrb[0].mxu0
    %v9401 = vadd.f32 %v8647, %v9400
    %9402 = vmatprep.mubr.bf16.mxu0 %v8507
    %9403 = vmatmul.mubr.bf16.gmra.mrb[0].mxu0 %v8506
    %v9404 = vpop.f32.mrb[0].mxu0
    %v9405 = vadd.f32 %v8643, %v9404
    %v9406 = vpop.f32.mrb[0].mxu0
    %v9407 = vadd.f32 %v8647, %v9406
    %v9408 = vpop.f32.mrb[0].mxu0
    %v9409 = vadd.f32 %v8643, %v9408
    %v9410 = vpop.f32.mrb[0].mxu0
    %v9411 = vadd.f32 %v8647, %v9410
    %9412 = vdwg.mxu0
    %9413 = vmatprep.subr.bf16.mxu0 %v9109
    %9414 = vmatpush1.bf16.msra.mxu0 %v9108
    %9415 = vmatprep.subr.bf16.mxu0 %v9113
    %9416 = vmatpush1.bf16.msra.mxu0 %v9112
    %9417 = vmatprep.subr.bf16.mxu0 %v9117
    %9418 = vmatpush1.bf16.msra.mxu0 %v9116
    %9419 = vmatprep.subr.bf16.mxu0 %v9121
    %9420 = vmatpush1.bf16.msra.mxu0 %v9120
    %9421 = vmatprep.subr.bf16.mxu0 %v9125
    %9422 = vmatpush1.bf16.msra.mxu0 %v9124
    %9423 = vmatprep.subr.bf16.mxu0 %v9129
    %9424 = vmatpush1.bf16.msra.mxu0 %v9128
    %9425 = vmatprep.subr.bf16.mxu0 %v9133
    %9426 = vmatpush1.bf16.msra.mxu0 %v9132
    %9427 = vmatprep.subr.bf16.mxu0 %v9137
    %9428 = vmatpush1.bf16.msra.mxu0 %v9136
    %9429 = vmatprep.subr.bf16.mxu0 %v9141
    %9430 = vmatpush1.bf16.msra.mxu0 %v9140
    %9431 = vmatprep.subr.bf16.mxu0 %v9145
    %9432 = vmatpush1.bf16.msra.mxu0 %v9144
    %9433 = vmatprep.subr.bf16.mxu0 %v9149
    %9434 = vmatpush1.bf16.msra.mxu0 %v9148
    %9435 = vmatprep.subr.bf16.mxu0 %v9153
    %9436 = vmatpush1.bf16.msra.mxu0 %v9152
    %9437 = vmatprep.subr.bf16.mxu0 %v9157
    %9438 = vmatpush1.bf16.msra.mxu0 %v9156
    %9439 = vmatprep.subr.bf16.mxu0 %v9161
    %9440 = vmatpush1.bf16.msra.mxu0 %v9160
    %9441 = vmatprep.subr.bf16.mxu0 %v9165
    %9442 = vmatpush1.bf16.msra.mxu0 %v9164
    %9443 = vmatprep.subr.bf16.mxu0 %v9169
    %9444 = vmatpush1.bf16.msra.mxu0 %v9168
    %9445 = vmatprep.mubr.bf16.mxu0 %v8481
    %9446 = vmatmul.mubr.bf16.gmra.mrb[0].mxu0 %v8480
    %v9447 = vpop.f32.mrb[0].mxu0
    %v9448 = vadd.f32 %v9335, %v9447
    %v9449 = vpop.f32.mrb[0].mxu0
    %v9450 = vadd.f32 %v9337, %v9449
    %v9451 = vpop.f32.mrb[0].mxu0
    %v9452 = vadd.f32 %v9339, %v9451
    %v9453 = vpop.f32.mrb[0].mxu0
    %v9454 = vadd.f32 %v9341, %v9453
    %9455 = vmatprep.mubr.bf16.mxu0 %v8485
    %9456 = vmatmul.mubr.bf16.gmra.mrb[0].mxu0 %v8484
    %v9457 = vpop.f32.mrb[0].mxu0
    %v9458 = vadd.f32 %v9345, %v9457
    %v9459 = vpop.f32.mrb[0].mxu0
    %v9460 = vadd.f32 %v9347, %v9459
    %v9461 = vpop.f32.mrb[0].mxu0
    %v9462 = vadd.f32 %v9349, %v9461
    %v9463 = vpop.f32.mrb[0].mxu0
    %v9464 = vadd.f32 %v9351, %v9463
    %9465 = vmatprep.mubr.bf16.mxu0 %v8489
    %9466 = vmatmul.mubr.bf16.gmra.mrb[0].mxu0 %v8488
    %v9467 = vpop.f32.mrb[0].mxu0
    %v9468 = vadd.f32 %v9355, %v9467
    %v9469 = vpop.f32.mrb[0].mxu0
    %v9470 = vadd.f32 %v9357, %v9469
    %v9471 = vpop.f32.mrb[0].mxu0
    %v9472 = vadd.f32 %v9359, %v9471
    %v9473 = vpop.f32.mrb[0].mxu0
    %v9474 = vadd.f32 %v9361, %v9473
    %9475 = vmatprep.mubr.bf16.mxu0 %v8493
    %9476 = vmatmul.mubr.bf16.gmra.mrb[0].mxu0 %v8492
    %v9477 = vpop.f32.mrb[0].mxu0
    %v9478 = vadd.f32 %v9365, %v9477
    %v9479 = vpop.f32.mrb[0].mxu0
    %v9480 = vadd.f32 %v9367, %v9479
    %v9481 = vpop.f32.mrb[0].mxu0
    %v9482 = vadd.f32 %v9369, %v9481
    %v9483 = vpop.f32.mrb[0].mxu0
    %v9484 = vadd.f32 %v9371, %v9483
    %9485 = vmatprep.mubr.bf16.mxu0 %v8497
    %9486 = vmatmul.mubr.bf16.gmra.mrb[0].mxu0 %v8496
    %v9487 = vpop.f32.mrb[0].mxu0
    %v9488 = vadd.f32 %v9375, %v9487
    %v9489 = vpop.f32.mrb[0].mxu0
    %v9490 = vadd.f32 %v9377, %v9489
    %v9491 = vpop.f32.mrb[0].mxu0
    %v9492 = vadd.f32 %v9379, %v9491
    %v9493 = vpop.f32.mrb[0].mxu0
    %v9494 = vadd.f32 %v9381, %v9493
    %9495 = vmatprep.mubr.bf16.mxu0 %v8501
    %9496 = vmatmul.mubr.bf16.gmra.mrb[0].mxu0 %v8500
    %v9497 = vpop.f32.mrb[0].mxu0
    %v9498 = vadd.f32 %v9385, %v9497
    %v9499 = vpop.f32.mrb[0].mxu0
    %v9500 = vadd.f32 %v9387, %v9499
    %v9501 = vpop.f32.mrb[0].mxu0
    %v9502 = vadd.f32 %v9389, %v9501
    %v9503 = vpop.f32.mrb[0].mxu0
    %v9504 = vadd.f32 %v9391, %v9503
    %9505 = vmatprep.mubr.bf16.mxu0 %v8505
    %9506 = vmatmul.mubr.bf16.gmra.mrb[0].mxu0 %v8504
    %v9507 = vpop.f32.mrb[0].mxu0
    %v9508 = vadd.f32 %v9395, %v9507
    %v9509 = vpop.f32.mrb[0].mxu0
    %v9510 = vadd.f32 %v9397, %v9509
    %v9511 = vpop.f32.mrb[0].mxu0
    %v9512 = vadd.f32 %v9399, %v9511
    %v9513 = vpop.f32.mrb[0].mxu0
    %v9514 = vadd.f32 %v9401, %v9513
    %9515 = vmatprep.mubr.bf16.mxu0 %v8509
    %9516 = vmatmul.mubr.bf16.gmra.mrb[0].mxu0 %v8508
    %v9517 = vpop.f32.mrb[0].mxu0
    %v9518 = vadd.f32 %v9405, %v9517
    %v9519 = vpop.f32.mrb[0].mxu0
    %v9520 = vadd.f32 %v9407, %v9519
    %v9521 = vpop.f32.mrb[0].mxu0
    %v9522 = vadd.f32 %v9409, %v9521
    %v9523 = vpop.f32.mrb[0].mxu0
    %v9524 = vadd.f32 %v9411, %v9523
    %9525 = vdwg.mxu0
    %9526 = vmatprep.subr.bf16.mxu0 %v9047
    %9527 = vmatpush1.bf16.msra.mxu0 %v9046
    %9528 = vmatprep.subr.bf16.mxu0 %v9051
    %9529 = vmatpush1.bf16.msra.mxu0 %v9050
    %9530 = vmatprep.subr.bf16.mxu0 %v9055
    %9531 = vmatpush1.bf16.msra.mxu0 %v9054
    %9532 = vmatprep.subr.bf16.mxu0 %v9059
    %9533 = vmatpush1.bf16.msra.mxu0 %v9058
    %9534 = vmatprep.subr.bf16.mxu0 %v9063
    %9535 = vmatpush1.bf16.msra.mxu0 %v9062
    %9536 = vmatprep.subr.bf16.mxu0 %v9067
    %9537 = vmatpush1.bf16.msra.mxu0 %v9066
    %9538 = vmatprep.subr.bf16.mxu0 %v9071
    %9539 = vmatpush1.bf16.msra.mxu0 %v9070
    %9540 = vmatprep.subr.bf16.mxu0 %v9075
    %9541 = vmatpush1.bf16.msra.mxu0 %v9074
    %9542 = vmatprep.subr.bf16.mxu0 %v9079
    %9543 = vmatpush1.bf16.msra.mxu0 %v9078
    %9544 = vmatprep.subr.bf16.mxu0 %v9083
    %9545 = vmatpush1.bf16.msra.mxu0 %v9082
    %9546 = vmatprep.subr.bf16.mxu0 %v9087
    %9547 = vmatpush1.bf16.msra.mxu0 %v9086
    %9548 = vmatprep.subr.bf16.mxu0 %v9091
    %9549 = vmatpush1.bf16.msra.mxu0 %v9090
    %9550 = vmatprep.subr.bf16.mxu0 %v9095
    %9551 = vmatpush1.bf16.msra.mxu0 %v9094
    %9552 = vmatprep.subr.bf16.mxu0 %v9099
    %9553 = vmatpush1.bf16.msra.mxu0 %v9098
    %9554 = vmatprep.subr.bf16.mxu0 %v9103
    %9555 = vmatpush1.bf16.msra.mxu0 %v9102
    %9556 = vmatprep.subr.bf16.mxu0 %v9107
    %9557 = vmatpush1.bf16.msra.mxu0 %v9106
    %9558 = vmatprep.mubr.bf16.mxu0 %v8479
    %9559 = vmatmul.mubr.bf16.gmra.mrb[0].mxu0 %v8478
    %v9560 = vpop.f32.mrb[0].mxu0
    %v9561 = vadd.f32 %v8651, %v9560
    %v9562 = vpop.f32.mrb[0].mxu0
    %v9563 = vadd.f32 %v8655, %v9562
    %v9564 = vpop.f32.mrb[0].mxu0
    %v9565 = vadd.f32 %v8651, %v9564
    %v9566 = vpop.f32.mrb[0].mxu0
    %v9567 = vadd.f32 %v8655, %v9566
    %9568 = vmatprep.mubr.bf16.mxu0 %v8483
    %9569 = vmatmul.mubr.bf16.gmra.mrb[0].mxu0 %v8482
    %v9570 = vpop.f32.mrb[0].mxu0
    %v9571 = vadd.f32 %v8651, %v9570
    %v9572 = vpop.f32.mrb[0].mxu0
    %v9573 = vadd.f32 %v8655, %v9572
    %v9574 = vpop.f32.mrb[0].mxu0
    %v9575 = vadd.f32 %v8651, %v9574
    %v9576 = vpop.f32.mrb[0].mxu0
    %v9577 = vadd.f32 %v8655, %v9576
    %9578 = vmatprep.mubr.bf16.mxu0 %v8487
    %9579 = vmatmul.mubr.bf16.gmra.mrb[0].mxu0 %v8486
    %v9580 = vpop.f32.mrb[0].mxu0
    %v9581 = vadd.f32 %v8651, %v9580
    %v9582 = vpop.f32.mrb[0].mxu0
    %v9583 = vadd.f32 %v8655, %v9582
    %v9584 = vpop.f32.mrb[0].mxu0
    %v9585 = vadd.f32 %v8651, %v9584
    %v9586 = vpop.f32.mrb[0].mxu0
    %v9587 = vadd.f32 %v8655, %v9586
    %9588 = vmatprep.mubr.bf16.mxu0 %v8491
    %9589 = vmatmul.mubr.bf16.gmra.mrb[0].mxu0 %v8490
    %v9590 = vpop.f32.mrb[0].mxu0
    %v9591 = vadd.f32 %v8651, %v9590
    %v9592 = vpop.f32.mrb[0].mxu0
    %v9593 = vadd.f32 %v8655, %v9592
    %v9594 = vpop.f32.mrb[0].mxu0
    %v9595 = vadd.f32 %v8651, %v9594
    %v9596 = vpop.f32.mrb[0].mxu0
    %v9597 = vadd.f32 %v8655, %v9596
    %9598 = vmatprep.mubr.bf16.mxu0 %v8495
    %9599 = vmatmul.mubr.bf16.gmra.mrb[0].mxu0 %v8494
    %v9600 = vpop.f32.mrb[0].mxu0
    %v9601 = vadd.f32 %v8651, %v9600
    %v9602 = vpop.f32.mrb[0].mxu0
    %v9603 = vadd.f32 %v8655, %v9602
    %v9604 = vpop.f32.mrb[0].mxu0
    %v9605 = vadd.f32 %v8651, %v9604
    %v9606 = vpop.f32.mrb[0].mxu0
    %v9607 = vadd.f32 %v8655, %v9606
    %9608 = vmatprep.mubr.bf16.mxu0 %v8499
    %9609 = vmatmul.mubr.bf16.gmra.mrb[0].mxu0 %v8498
    %v9610 = vpop.f32.mrb[0].mxu0
    %v9611 = vadd.f32 %v8651, %v9610
    %v9612 = vpop.f32.mrb[0].mxu0
    %v9613 = vadd.f32 %v8655, %v9612
    %v9614 = vpop.f32.mrb[0].mxu0
    %v9615 = vadd.f32 %v8651, %v9614
    %v9616 = vpop.f32.mrb[0].mxu0
    %v9617 = vadd.f32 %v8655, %v9616
    %9618 = vmatprep.mubr.bf16.mxu0 %v8503
    %9619 = vmatmul.mubr.bf16.gmra.mrb[0].mxu0 %v8502
    %v9620 = vpop.f32.mrb[0].mxu0
    %v9621 = vadd.f32 %v8651, %v9620
    %v9622 = vpop.f32.mrb[0].mxu0
    %v9623 = vadd.f32 %v8655, %v9622
    %v9624 = vpop.f32.mrb[0].mxu0
    %v9625 = vadd.f32 %v8651, %v9624
    %v9626 = vpop.f32.mrb[0].mxu0
    %v9627 = vadd.f32 %v8655, %v9626
    %9628 = vmatprep.mubr.bf16.mxu0 %v8507
    %9629 = vmatmul.mubr.bf16.gmra.mrb[0].mxu0 %v8506
    %v9630 = vpop.f32.mrb[0].mxu0
    %v9631 = vadd.f32 %v8651, %v9630
    %v9632 = vpop.f32.mrb[0].mxu0
    %v9633 = vadd.f32 %v8655, %v9632
    %v9634 = vpop.f32.mrb[0].mxu0
    %v9635 = vadd.f32 %v8651, %v9634
    %v9636 = vpop.f32.mrb[0].mxu0
    %v9637 = vadd.f32 %v8655, %v9636
    %9638 = vdwg.mxu0
    %9639 = vmatprep.subr.bf16.mxu0 %v9111
    %9640 = vmatpush1.bf16.msra.mxu0 %v9110
    %9641 = vmatprep.subr.bf16.mxu0 %v9115
    %9642 = vmatpush1.bf16.msra.mxu0 %v9114
    %9643 = vmatprep.subr.bf16.mxu0 %v9119
    %9644 = vmatpush1.bf16.msra.mxu0 %v9118
    %9645 = vmatprep.subr.bf16.mxu0 %v9123
    %9646 = vmatpush1.bf16.msra.mxu0 %v9122
    %9647 = vmatprep.subr.bf16.mxu0 %v9127
    %9648 = vmatpush1.bf16.msra.mxu0 %v9126
    %9649 = vmatprep.subr.bf16.mxu0 %v9131
    %9650 = vmatpush1.bf16.msra.mxu0 %v9130
    %9651 = vmatprep.subr.bf16.mxu0 %v9135
    %9652 = vmatpush1.bf16.msra.mxu0 %v9134
    %9653 = vmatprep.subr.bf16.mxu0 %v9139
    %9654 = vmatpush1.bf16.msra.mxu0 %v9138
    %9655 = vmatprep.subr.bf16.mxu0 %v9143
    %9656 = vmatpush1.bf16.msra.mxu0 %v9142
    %9657 = vmatprep.subr.bf16.mxu0 %v9147
    %9658 = vmatpush1.bf16.msra.mxu0 %v9146
    %9659 = vmatprep.subr.bf16.mxu0 %v9151
    %9660 = vmatpush1.bf16.msra.mxu0 %v9150
    %9661 = vmatprep.subr.bf16.mxu0 %v9155
    %9662 = vmatpush1.bf16.msra.mxu0 %v9154
    %9663 = vmatprep.subr.bf16.mxu0 %v9159
    %9664 = vmatpush1.bf16.msra.mxu0 %v9158
    %9665 = vmatprep.subr.bf16.mxu0 %v9163
    %9666 = vmatpush1.bf16.msra.mxu0 %v9162
    %9667 = vmatprep.subr.bf16.mxu0 %v9167
    %9668 = vmatpush1.bf16.msra.mxu0 %v9166
    %9669 = vmatprep.subr.bf16.mxu0 %v9171
    %9670 = vmatpush1.bf16.msra.mxu0 %v9170
    %9671 = vmatprep.mubr.bf16.mxu0 %v8481
    %9672 = vmatmul.mubr.bf16.gmra.mrb[0].mxu0 %v8480
    %v9673 = vpop.f32.mrb[0].mxu0
    %v9674 = vadd.f32 %v9561, %v9673
    %v9675 = vpop.f32.mrb[0].mxu0
    %v9676 = vadd.f32 %v9563, %v9675
    %v9677 = vpop.f32.mrb[0].mxu0
    %v9678 = vadd.f32 %v9565, %v9677
    %v9679 = vpop.f32.mrb[0].mxu0
    %v9680 = vadd.f32 %v9567, %v9679
    %9681 = vmatprep.mubr.bf16.mxu0 %v8485
    %9682 = vmatmul.mubr.bf16.gmra.mrb[0].mxu0 %v8484
    %v9683 = vpop.f32.mrb[0].mxu0
    %v9684 = vadd.f32 %v9571, %v9683
    %v9685 = vpop.f32.mrb[0].mxu0
    %v9686 = vadd.f32 %v9573, %v9685
    %v9687 = vpop.f32.mrb[0].mxu0
    %v9688 = vadd.f32 %v9575, %v9687
    %v9689 = vpop.f32.mrb[0].mxu0
    %v9690 = vadd.f32 %v9577, %v9689
    %9691 = vmatprep.mubr.bf16.mxu0 %v8489
    %9692 = vmatmul.mubr.bf16.gmra.mrb[0].mxu0 %v8488
    %v9693 = vpop.f32.mrb[0].mxu0
    %v9694 = vadd.f32 %v9581, %v9693
    %v9695 = vpop.f32.mrb[0].mxu0
    %v9696 = vadd.f32 %v9583, %v9695
    %v9697 = vpop.f32.mrb[0].mxu0
    %v9698 = vadd.f32 %v9585, %v9697
    %v9699 = vpop.f32.mrb[0].mxu0
    %v9700 = vadd.f32 %v9587, %v9699
    %9701 = vmatprep.mubr.bf16.mxu0 %v8493
    %9702 = vmatmul.mubr.bf16.gmra.mrb[0].mxu0 %v8492
    %v9703 = vpop.f32.mrb[0].mxu0
    %v9704 = vadd.f32 %v9591, %v9703
    %v9705 = vpop.f32.mrb[0].mxu0
    %v9706 = vadd.f32 %v9593, %v9705
    %v9707 = vpop.f32.mrb[0].mxu0
    %v9708 = vadd.f32 %v9595, %v9707
    %v9709 = vpop.f32.mrb[0].mxu0
    %v9710 = vadd.f32 %v9597, %v9709
    %9711 = vmatprep.mubr.bf16.mxu0 %v8497
    %9712 = vmatmul.mubr.bf16.gmra.mrb[0].mxu0 %v8496
    %v9713 = vpop.f32.mrb[0].mxu0
    %v9714 = vadd.f32 %v9601, %v9713
    %v9715 = vpop.f32.mrb[0].mxu0
    %v9716 = vadd.f32 %v9603, %v9715
    %v9717 = vpop.f32.mrb[0].mxu0
    %v9718 = vadd.f32 %v9605, %v9717
    %v9719 = vpop.f32.mrb[0].mxu0
    %v9720 = vadd.f32 %v9607, %v9719
    %9721 = vmatprep.mubr.bf16.mxu0 %v8501
    %9722 = vmatmul.mubr.bf16.gmra.mrb[0].mxu0 %v8500
    %v9723 = vpop.f32.mrb[0].mxu0
    %v9724 = vadd.f32 %v9611, %v9723
    %v9725 = vpop.f32.mrb[0].mxu0
    %v9726 = vadd.f32 %v9613, %v9725
    %v9727 = vpop.f32.mrb[0].mxu0
    %v9728 = vadd.f32 %v9615, %v9727
    %v9729 = vpop.f32.mrb[0].mxu0
    %v9730 = vadd.f32 %v9617, %v9729
    %9731 = vmatprep.mubr.bf16.mxu0 %v8505
    %9732 = vmatmul.mubr.bf16.gmra.mrb[0].mxu0 %v8504
    %v9733 = vpop.f32.mrb[0].mxu0
    %v9734 = vadd.f32 %v9621, %v9733
    %v9735 = vpop.f32.mrb[0].mxu0
    %v9736 = vadd.f32 %v9623, %v9735
    %v9737 = vpop.f32.mrb[0].mxu0
    %v9738 = vadd.f32 %v9625, %v9737
    %v9739 = vpop.f32.mrb[0].mxu0
    %v9740 = vadd.f32 %v9627, %v9739
    %9741 = vmatprep.mubr.bf16.mxu0 %v8509
    %9742 = vmatmul.mubr.bf16.gmra.mrb[0].mxu0 %v8508
    %v9743 = vpop.f32.mrb[0].mxu0
    %v9744 = vadd.f32 %v9631, %v9743
    %v9745 = vpop.f32.mrb[0].mxu0
    %v9746 = vadd.f32 %v9633, %v9745
    %v9747 = vpop.f32.mrb[0].mxu0
    %v9748 = vadd.f32 %v9635, %v9747
    %v9749 = vpop.f32.mrb[0].mxu0
    %v9750 = vadd.f32 %v9637, %v9749
    %9751 = vdwg.mxu0
    %v9752 = vmax.f32 %v9448, 0.0
    %v9753 = vmax.f32 %v9450, 0.0
    %v9754 = vmax.f32 %v9674, 0.0
    %v9755 = vmax.f32 %v9676, 0.0
    %v9756 = vmax.f32 %v9452, 0.0
    %v9757 = vmax.f32 %v9454, 0.0
    %v9758 = vmax.f32 %v9678, 0.0
    %v9759 = vmax.f32 %v9680, 0.0
    %v9760 = vmax.f32 %v9458, 0.0
    %v9761 = vmax.f32 %v9460, 0.0
    %v9762 = vmax.f32 %v9684, 0.0
    %v9763 = vmax.f32 %v9686, 0.0
    %v9764 = vmax.f32 %v9462, 0.0
    %v9765 = vmax.f32 %v9464, 0.0
    %v9766 = vmax.f32 %v9688, 0.0
    %v9767 = vmax.f32 %v9690, 0.0
    %v9768 = vmax.f32 %v9468, 0.0
    %v9769 = vmax.f32 %v9470, 0.0
    %v9770 = vmax.f32 %v9694, 0.0
    %v9771 = vmax.f32 %v9696, 0.0
    %v9772 = vmax.f32 %v9472, 0.0
    %v9773 = vmax.f32 %v9474, 0.0
    %v9774 = vmax.f32 %v9698, 0.0
    %v9775 = vmax.f32 %v9700, 0.0
    %v9776 = vmax.f32 %v9478, 0.0
    %v9777 = vmax.f32 %v9480, 0.0
    %v9778 = vmax.f32 %v9704, 0.0
    %v9779 = vmax.f32 %v9706, 0.0
    %v9780 = vmax.f32 %v9482, 0.0
    %v9781 = vmax.f32 %v9484, 0.0
    %v9782 = vmax.f32 %v9708, 0.0
    %v9783 = vmax.f32 %v9710, 0.0
    %v9784 = vmax.f32 %v9488, 0.0
    %v9785 = vmax.f32 %v9490, 0.0
    %v9786 = vmax.f32 %v9714, 0.0
    %v9787 = vmax.f32 %v9716, 0.0
    %v9788 = vmax.f32 %v9492, 0.0
    %v9789 = vmax.f32 %v9494, 0.0
    %v9790 = vmax.f32 %v9718, 0.0
    %v9791 = vmax.f32 %v9720, 0.0
    %v9792 = vmax.f32 %v9498, 0.0
    %v9793 = vmax.f32 %v9500, 0.0
    %v9794 = vmax.f32 %v9724, 0.0
    %v9795 = vmax.f32 %v9726, 0.0
    %v9796 = vmax.f32 %v9502, 0.0
    %v9797 = vmax.f32 %v9504, 0.0
    %v9798 = vmax.f32 %v9728, 0.0
    %v9799 = vmax.f32 %v9730, 0.0
    %v9800 = vmax.f32 %v9508, 0.0
    %v9801 = vmax.f32 %v9510, 0.0
    %v9802 = vmax.f32 %v9734, 0.0
    %v9803 = vmax.f32 %v9736, 0.0
    %v9804 = vmax.f32 %v9512, 0.0
    %v9805 = vmax.f32 %v9514, 0.0
    %v9806 = vmax.f32 %v9738, 0.0
    %v9807 = vmax.f32 %v9740, 0.0
    %v9808 = vmax.f32 %v9518, 0.0
    %v9809 = vmax.f32 %v9520, 0.0
    %v9810 = vmax.f32 %v9744, 0.0
    %v9811 = vmax.f32 %v9746, 0.0
    %v9812 = vmax.f32 %v9522, 0.0
    %v9813 = vmax.f32 %v9524, 0.0
    %v9814 = vmax.f32 %v9748, 0.0
    %v9815 = vmax.f32 %v9750, 0.0
    %v9816 = vpack.c.bf16 %v9756, %v9752
    %v9817 = vpack.c.bf16 %v9757, %v9753
    %v9818 = vpack.c.bf16 %v9758, %v9754
    %v9819 = vpack.c.bf16 %v9759, %v9755
    %v9820 = vpack.c.bf16 %v9764, %v9760
    %v9821 = vpack.c.bf16 %v9765, %v9761
    %v9822 = vpack.c.bf16 %v9766, %v9762
    %v9823 = vpack.c.bf16 %v9767, %v9763
    %v9824 = vpack.c.bf16 %v9772, %v9768
    %v9825 = vpack.c.bf16 %v9773, %v9769
    %v9826 = vpack.c.bf16 %v9774, %v9770
    %v9827 = vpack.c.bf16 %v9775, %v9771
    %v9828 = vpack.c.bf16 %v9780, %v9776
    %v9829 = vpack.c.bf16 %v9781, %v9777
    %v9830 = vpack.c.bf16 %v9782, %v9778
    %v9831 = vpack.c.bf16 %v9783, %v9779
    %v9832 = vpack.c.bf16 %v9788, %v9784
    %v9833 = vpack.c.bf16 %v9789, %v9785
    %v9834 = vpack.c.bf16 %v9790, %v9786
    %v9835 = vpack.c.bf16 %v9791, %v9787
    %v9836 = vpack.c.bf16 %v9796, %v9792
    %v9837 = vpack.c.bf16 %v9797, %v9793
    %v9838 = vpack.c.bf16 %v9798, %v9794
    %v9839 = vpack.c.bf16 %v9799, %v9795
    %v9840 = vpack.c.bf16 %v9804, %v9800
    %v9841 = vpack.c.bf16 %v9805, %v9801
    %v9842 = vpack.c.bf16 %v9806, %v9802
    %v9843 = vpack.c.bf16 %v9807, %v9803
    %v9844 = vpack.c.bf16 %v9812, %v9808
    %v9845 = vpack.c.bf16 %v9813, %v9809
    %v9846 = vpack.c.bf16 %v9814, %v9810
    %v9847 = vpack.c.bf16 %v9815, %v9811
    %v9848 = vld [vmem:[#allocation14] sm:$0xf]
    %v9849 = vld [vmem:[#allocation14 + $0x4] sm:$0xf]
    %v9850 = vld [vmem:[#allocation14 + $0x8] sm:$0xf]
    %v9851 = vld [vmem:[#allocation14 + $0xc] sm:$0xf]
    %v9852 = vld [vmem:[#allocation14 + $0x10] sm:$0xf]
    %v9853 = vld [vmem:[#allocation14 + $0x14] sm:$0xf]
    %v9854 = vld [vmem:[#allocation14 + $0x18] sm:$0xf]
    %v9855 = vld [vmem:[#allocation14 + $0x1c] sm:$0xf]
    %v9856 = vld [vmem:[#allocation14 + $0x20] sm:$0xf]
    %v9857 = vld [vmem:[#allocation14 + $0x24] sm:$0xf]
    %v9858 = vld [vmem:[#allocation14 + $0x28] sm:$0xf]
    %v9859 = vld [vmem:[#allocation14 + $0x2c] sm:$0xf]
    %v9860 = vld [vmem:[#allocation14 + $0x30] sm:$0xf]
    %v9861 = vld [vmem:[#allocation14 + $0x34] sm:$0xf]
    %v9862 = vld [vmem:[#allocation14 + $0x38] sm:$0xf]
    %v9863 = vld [vmem:[#allocation14 + $0x3c] sm:$0xf]
    %v9864 = vld [vmem:[#allocation14 + $0x40] sm:$0xf]
    %v9865 = vld [vmem:[#allocation14 + $0x44] sm:$0xf]
    %v9866 = vld [vmem:[#allocation14 + $0x48] sm:$0xf]
    %v9867 = vld [vmem:[#allocation14 + $0x4c] sm:$0xf]
    %v9868 = vld [vmem:[#allocation14 + $0x50] sm:$0xf]
    %v9869 = vld [vmem:[#allocation14 + $0x54] sm:$0xf]
    %v9870 = vld [vmem:[#allocation14 + $0x58] sm:$0xf]
    %v9871 = vld [vmem:[#allocation14 + $0x5c] sm:$0xf]
    %v9872 = vld [vmem:[#allocation14 + $0x60] sm:$0xf]
    %v9873 = vld [vmem:[#allocation14 + $0x64] sm:$0xf]
    %v9874 = vld [vmem:[#allocation14 + $0x68] sm:$0xf]
    %v9875 = vld [vmem:[#allocation14 + $0x6c] sm:$0xf]
    %v9876 = vld [vmem:[#allocation14 + $0x70] sm:$0xf]
    %v9877 = vld [vmem:[#allocation14 + $0x74] sm:$0xf]
    %v9878 = vld [vmem:[#allocation14 + $0x78] sm:$0xf]
    %v9879 = vld [vmem:[#allocation14 + $0x7c] sm:$0xf]
    %v9880 = vld [vmem:[#allocation14 + $0x80] sm:$0xf]
    %v9881 = vld [vmem:[#allocation14 + $0x84] sm:$0xf]
    %v9882 = vld [vmem:[#allocation14 + $0x88] sm:$0xf]
    %v9883 = vld [vmem:[#allocation14 + $0x8c] sm:$0xf]
    %v9884 = vld [vmem:[#allocation14 + $0x90] sm:$0xf]
    %v9885 = vld [vmem:[#allocation14 + $0x94] sm:$0xf]
    %v9886 = vld [vmem:[#allocation14 + $0x98] sm:$0xf]
    %v9887 = vld [vmem:[#allocation14 + $0x9c] sm:$0xf]
    %v9888 = vld [vmem:[#allocation14 + $0xa0] sm:$0xf]
    %v9889 = vld [vmem:[#allocation14 + $0xa4] sm:$0xf]
    %v9890 = vld [vmem:[#allocation14 + $0xa8] sm:$0xf]
    %v9891 = vld [vmem:[#allocation14 + $0xac] sm:$0xf]
    %v9892 = vld [vmem:[#allocation14 + $0xb0] sm:$0xf]
    %v9893 = vld [vmem:[#allocation14 + $0xb4] sm:$0xf]
    %v9894 = vld [vmem:[#allocation14 + $0xb8] sm:$0xf]
    %v9895 = vld [vmem:[#allocation14 + $0xbc] sm:$0xf]
    %v9896 = vld [vmem:[#allocation14 + $0xc0] sm:$0xf]
    %v9897 = vld [vmem:[#allocation14 + $0xc4] sm:$0xf]
    %v9898 = vld [vmem:[#allocation14 + $0xc8] sm:$0xf]
    %v9899 = vld [vmem:[#allocation14 + $0xcc] sm:$0xf]
    %v9900 = vld [vmem:[#allocation14 + $0xd0] sm:$0xf]
    %v9901 = vld [vmem:[#allocation14 + $0xd4] sm:$0xf]
    %v9902 = vld [vmem:[#allocation14 + $0xd8] sm:$0xf]
    %v9903 = vld [vmem:[#allocation14 + $0xdc] sm:$0xf]
    %v9904 = vld [vmem:[#allocation14 + $0xe0] sm:$0xf]
    %v9905 = vld [vmem:[#allocation14 + $0xe4] sm:$0xf]
    %v9906 = vld [vmem:[#allocation14 + $0xe8] sm:$0xf]
    %v9907 = vld [vmem:[#allocation14 + $0xec] sm:$0xf]
    %v9908 = vld [vmem:[#allocation14 + $0xf0] sm:$0xf]
    %v9909 = vld [vmem:[#allocation14 + $0xf4] sm:$0xf]
    %v9910 = vld [vmem:[#allocation14 + $0xf8] sm:$0xf]
    %v9911 = vld [vmem:[#allocation14 + $0xfc] sm:$0xf]
    %v9912 = vld [vmem:[#allocation16] sm:$0x1]
    %v9914 = vlaneseq
    %v9915 = vshrl.u32 %v9914, 7
    %v9916 = vsub.s32 0, %v9915
    %v9917 = vrot.slane %v9912, %v9916
    %v9983 = vunpack.c.l.b16 %v9848
    %v9984 = vunpack.c.l.b16 %v9849
    %v9985 = vunpack.c.l.b16 %v9850
    %v9986 = vunpack.c.l.b16 %v9851
    %v9987 = vunpack.c.l.b16 %v9852
    %v9988 = vunpack.c.l.b16 %v9853
    %v9989 = vunpack.c.l.b16 %v9854
    %v9990 = vunpack.c.l.b16 %v9855
    %v9991 = vunpack.c.l.b16 %v9856
    %v9992 = vunpack.c.l.b16 %v9857
    %v9993 = vunpack.c.l.b16 %v9858
    %v9994 = vunpack.c.l.b16 %v9859
    %v9995 = vunpack.c.l.b16 %v9860
    %v9996 = vunpack.c.l.b16 %v9861
    %v9997 = vunpack.c.l.b16 %v9862
    %v9998 = vunpack.c.l.b16 %v9863
    %v9999 = vunpack.c.l.b16 %v9864
    %v10000 = vunpack.c.l.b16 %v9865
    %v10001 = vunpack.c.l.b16 %v9866
    %v10002 = vunpack.c.l.b16 %v9867
    %v10003 = vunpack.c.l.b16 %v9868
    %v10004 = vunpack.c.l.b16 %v9869
    %v10005 = vunpack.c.l.b16 %v9870
    %v10006 = vunpack.c.l.b16 %v9871
    %v10007 = vunpack.c.l.b16 %v9872
    %v10008 = vunpack.c.l.b16 %v9873
    %v10009 = vunpack.c.l.b16 %v9874
    %v10010 = vunpack.c.l.b16 %v9875
    %v10011 = vunpack.c.l.b16 %v9876
    %v10012 = vunpack.c.l.b16 %v9877
    %v10013 = vunpack.c.l.b16 %v9878
    %v10014 = vunpack.c.l.b16 %v9879
    %v10015 = vunpack.c.l.b16 %v9880
    %v10016 = vunpack.c.l.b16 %v9881
    %v10017 = vunpack.c.l.b16 %v9882
    %v10018 = vunpack.c.l.b16 %v9883
    %v10019 = vunpack.c.l.b16 %v9884
    %v10020 = vunpack.c.l.b16 %v9885
    %v10021 = vunpack.c.l.b16 %v9886
    %v10022 = vunpack.c.l.b16 %v9887
    %v10023 = vunpack.c.l.b16 %v9888
    %v10024 = vunpack.c.l.b16 %v9889
    %v10025 = vunpack.c.l.b16 %v9890
    %v10026 = vunpack.c.l.b16 %v9891
    %v10027 = vunpack.c.l.b16 %v9892
    %v10028 = vunpack.c.l.b16 %v9893
    %v10029 = vunpack.c.l.b16 %v9894
    %v10030 = vunpack.c.l.b16 %v9895
    %v10031 = vunpack.c.l.b16 %v9896
    %v10032 = vunpack.c.l.b16 %v9897
    %v10033 = vunpack.c.l.b16 %v9898
    %v10034 = vunpack.c.l.b16 %v9899
    %v10035 = vunpack.c.l.b16 %v9900
    %v10036 = vunpack.c.l.b16 %v9901
    %v10037 = vunpack.c.l.b16 %v9902
    %v10038 = vunpack.c.l.b16 %v9903
    %v10039 = vunpack.c.l.b16 %v9904
    %v10040 = vunpack.c.l.b16 %v9905
    %v10041 = vunpack.c.l.b16 %v9906
    %v10042 = vunpack.c.l.b16 %v9907
    %v10043 = vunpack.c.l.b16 %v9908
    %v10044 = vunpack.c.l.b16 %v9909
    %v10045 = vunpack.c.l.b16 %v9910
    %v10046 = vunpack.c.l.b16 %v9911
    %v10047 = vpack.c.b16 %v9984, %v9983
    %v10048 = vpack.c.b16 %v9986, %v9985
    %v10049 = vpack.c.b16 %v9988, %v9987
    %v10050 = vpack.c.b16 %v9990, %v9989
    %v10051 = vpack.c.b16 %v9992, %v9991
    %v10052 = vpack.c.b16 %v9994, %v9993
    %v10053 = vpack.c.b16 %v9996, %v9995
    %v10054 = vpack.c.b16 %v9998, %v9997
    %v10055 = vpack.c.b16 %v10000, %v9999
    %v10056 = vpack.c.b16 %v10002, %v10001
    %v10057 = vpack.c.b16 %v10004, %v10003
    %v10058 = vpack.c.b16 %v10006, %v10005
    %v10059 = vpack.c.b16 %v10008, %v10007
    %v10060 = vpack.c.b16 %v10010, %v10009
    %v10061 = vpack.c.b16 %v10012, %v10011
    %v10062 = vpack.c.b16 %v10014, %v10013
    %v10063 = vpack.c.b16 %v10016, %v10015
    %v10064 = vpack.c.b16 %v10018, %v10017
    %v10065 = vpack.c.b16 %v10020, %v10019
    %v10066 = vpack.c.b16 %v10022, %v10021
    %v10067 = vpack.c.b16 %v10024, %v10023
    %v10068 = vpack.c.b16 %v10026, %v10025
    %v10069 = vpack.c.b16 %v10028, %v10027
    %v10070 = vpack.c.b16 %v10030, %v10029
    %v10071 = vpack.c.b16 %v10032, %v10031
    %v10072 = vpack.c.b16 %v10034, %v10033
    %v10073 = vpack.c.b16 %v10036, %v10035
    %v10074 = vpack.c.b16 %v10038, %v10037
    %v10075 = vpack.c.b16 %v10040, %v10039
    %v10076 = vpack.c.b16 %v10042, %v10041
    %v10077 = vpack.c.b16 %v10044, %v10043
    %v10078 = vpack.c.b16 %v10046, %v10045
    %10111 = vmatprep.subr.bf16.mxu0 0
    %10112 = vmatpush1.bf16.msra.mxu0 %v10047
    %10113 = vmatprep.subr.bf16.mxu0 0
    %10114 = vmatpush1.bf16.msra.mxu0 %v10048
    %10115 = vmatprep.subr.bf16.mxu0 0
    %10116 = vmatpush1.bf16.msra.mxu0 %v10049
    %10117 = vmatprep.subr.bf16.mxu0 0
    %10118 = vmatpush1.bf16.msra.mxu0 %v10050
    %10119 = vmatprep.subr.bf16.mxu0 0
    %10120 = vmatpush1.bf16.msra.mxu0 %v10051
    %10121 = vmatprep.subr.bf16.mxu0 0
    %10122 = vmatpush1.bf16.msra.mxu0 %v10052
    %10123 = vmatprep.subr.bf16.mxu0 0
    %10124 = vmatpush1.bf16.msra.mxu0 %v10053
    %10125 = vmatprep.subr.bf16.mxu0 0
    %10126 = vmatpush1.bf16.msra.mxu0 %v10054
    %10127 = vmatprep.subr.bf16.mxu0 0
    %10128 = vmatpush1.bf16.msra.mxu0 %v10055
    %10129 = vmatprep.subr.bf16.mxu0 0
    %10130 = vmatpush1.bf16.msra.mxu0 %v10056
    %10131 = vmatprep.subr.bf16.mxu0 0
    %10132 = vmatpush1.bf16.msra.mxu0 %v10057
    %10133 = vmatprep.subr.bf16.mxu0 0
    %10134 = vmatpush1.bf16.msra.mxu0 %v10058
    %10135 = vmatprep.subr.bf16.mxu0 0
    %10136 = vmatpush1.bf16.msra.mxu0 %v10059
    %10137 = vmatprep.subr.bf16.mxu0 0
    %10138 = vmatpush1.bf16.msra.mxu0 %v10060
    %10139 = vmatprep.subr.bf16.mxu0 0
    %10140 = vmatpush1.bf16.msra.mxu0 %v10061
    %10141 = vmatprep.subr.bf16.mxu0 0
    %10142 = vmatpush1.bf16.msra.mxu0 %v10062
    %10143 = vmatprep.mubr.bf16.mxu0 %v9817
    %10144 = vmatmul.mubr.bf16.gmra.mrb[0].mxu0 %v9816
    %v10145 = vpop.f32.mrb[0].mxu0
    %v10146 = vadd.f32 %v9917, %v10145
    %v10147 = vpop.f32.mrb[0].mxu0
    %v10148 = vpop.f32.mrb[0].mxu0
    %v10149 = vadd.f32 %v9917, %v10148
    %v10150 = vpop.f32.mrb[0].mxu0
    %10151 = vmatprep.mubr.bf16.mxu0 %v9821
    %10152 = vmatmul.mubr.bf16.gmra.mrb[0].mxu0 %v9820
    %v10153 = vpop.f32.mrb[0].mxu0
    %v10154 = vadd.f32 %v9917, %v10153
    %v10155 = vpop.f32.mrb[0].mxu0
    %v10156 = vpop.f32.mrb[0].mxu0
    %v10157 = vadd.f32 %v9917, %v10156
    %v10158 = vpop.f32.mrb[0].mxu0
    %10159 = vmatprep.mubr.bf16.mxu0 %v9825
    %10160 = vmatmul.mubr.bf16.gmra.mrb[0].mxu0 %v9824
    %v10161 = vpop.f32.mrb[0].mxu0
    %v10162 = vadd.f32 %v9917, %v10161
    %v10163 = vpop.f32.mrb[0].mxu0
    %v10164 = vpop.f32.mrb[0].mxu0
    %v10165 = vadd.f32 %v9917, %v10164
    %v10166 = vpop.f32.mrb[0].mxu0
    %10167 = vmatprep.mubr.bf16.mxu0 %v9829
    %10168 = vmatmul.mubr.bf16.gmra.mrb[0].mxu0 %v9828
    %v10169 = vpop.f32.mrb[0].mxu0
    %v10170 = vadd.f32 %v9917, %v10169
    %v10171 = vpop.f32.mrb[0].mxu0
    %v10172 = vpop.f32.mrb[0].mxu0
    %v10173 = vadd.f32 %v9917, %v10172
    %v10174 = vpop.f32.mrb[0].mxu0
    %10175 = vmatprep.mubr.bf16.mxu0 %v9833
    %10176 = vmatmul.mubr.bf16.gmra.mrb[0].mxu0 %v9832
    %v10177 = vpop.f32.mrb[0].mxu0
    %v10178 = vadd.f32 %v9917, %v10177
    %v10179 = vpop.f32.mrb[0].mxu0
    %v10180 = vpop.f32.mrb[0].mxu0
    %v10181 = vadd.f32 %v9917, %v10180
    %v10182 = vpop.f32.mrb[0].mxu0
    %10183 = vmatprep.mubr.bf16.mxu0 %v9837
    %10184 = vmatmul.mubr.bf16.gmra.mrb[0].mxu0 %v9836
    %v10185 = vpop.f32.mrb[0].mxu0
    %v10186 = vadd.f32 %v9917, %v10185
    %v10187 = vpop.f32.mrb[0].mxu0
    %v10188 = vpop.f32.mrb[0].mxu0
    %v10189 = vadd.f32 %v9917, %v10188
    %v10190 = vpop.f32.mrb[0].mxu0
    %10191 = vmatprep.mubr.bf16.mxu0 %v9841
    %10192 = vmatmul.mubr.bf16.gmra.mrb[0].mxu0 %v9840
    %v10193 = vpop.f32.mrb[0].mxu0
    %v10194 = vadd.f32 %v9917, %v10193
    %v10195 = vpop.f32.mrb[0].mxu0
    %v10196 = vpop.f32.mrb[0].mxu0
    %v10197 = vadd.f32 %v9917, %v10196
    %v10198 = vpop.f32.mrb[0].mxu0
    %10199 = vmatprep.mubr.bf16.mxu0 %v9845
    %10200 = vmatmul.mubr.bf16.gmra.mrb[0].mxu0 %v9844
    %v10201 = vpop.f32.mrb[0].mxu0
    %v10202 = vadd.f32 %v9917, %v10201
    %v10203 = vpop.f32.mrb[0].mxu0
    %v10204 = vpop.f32.mrb[0].mxu0
    %v10205 = vadd.f32 %v9917, %v10204
    %v10206 = vpop.f32.mrb[0].mxu0
    %10207 = vdwg.mxu0
    %10208 = vmatprep.subr.bf16.mxu0 0
    %10209 = vmatpush1.bf16.msra.mxu0 %v10063
    %10210 = vmatprep.subr.bf16.mxu0 0
    %10211 = vmatpush1.bf16.msra.mxu0 %v10064
    %10212 = vmatprep.subr.bf16.mxu0 0
    %10213 = vmatpush1.bf16.msra.mxu0 %v10065
    %10214 = vmatprep.subr.bf16.mxu0 0
    %10215 = vmatpush1.bf16.msra.mxu0 %v10066
    %10216 = vmatprep.subr.bf16.mxu0 0
    %10217 = vmatpush1.bf16.msra.mxu0 %v10067
    %10218 = vmatprep.subr.bf16.mxu0 0
    %10219 = vmatpush1.bf16.msra.mxu0 %v10068
    %10220 = vmatprep.subr.bf16.mxu0 0
    %10221 = vmatpush1.bf16.msra.mxu0 %v10069
    %10222 = vmatprep.subr.bf16.mxu0 0
    %10223 = vmatpush1.bf16.msra.mxu0 %v10070
    %10224 = vmatprep.subr.bf16.mxu0 0
    %10225 = vmatpush1.bf16.msra.mxu0 %v10071
    %10226 = vmatprep.subr.bf16.mxu0 0
    %10227 = vmatpush1.bf16.msra.mxu0 %v10072
    %10228 = vmatprep.subr.bf16.mxu0 0
    %10229 = vmatpush1.bf16.msra.mxu0 %v10073
    %10230 = vmatprep.subr.bf16.mxu0 0
    %10231 = vmatpush1.bf16.msra.mxu0 %v10074
    %10232 = vmatprep.subr.bf16.mxu0 0
    %10233 = vmatpush1.bf16.msra.mxu0 %v10075
    %10234 = vmatprep.subr.bf16.mxu0 0
    %10235 = vmatpush1.bf16.msra.mxu0 %v10076
    %10236 = vmatprep.subr.bf16.mxu0 0
    %10237 = vmatpush1.bf16.msra.mxu0 %v10077
    %10238 = vmatprep.subr.bf16.mxu0 0
    %10239 = vmatpush1.bf16.msra.mxu0 %v10078
    %10240 = vmatprep.mubr.bf16.mxu0 %v9819
    %10241 = vmatmul.mubr.bf16.gmra.mrb[0].mxu0 %v9818
    %v10242 = vpop.f32.mrb[0].mxu0
    %v10243 = vadd.f32 %v10146, %v10242
    %v10244 = vpop.f32.mrb[0].mxu0
    %v10245 = vpop.f32.mrb[0].mxu0
    %v10246 = vadd.f32 %v10149, %v10245
    %v10247 = vpop.f32.mrb[0].mxu0
    %10248 = vmatprep.mubr.bf16.mxu0 %v9823
    %10249 = vmatmul.mubr.bf16.gmra.mrb[0].mxu0 %v9822
    %v10250 = vpop.f32.mrb[0].mxu0
    %v10251 = vadd.f32 %v10154, %v10250
    %v10252 = vpop.f32.mrb[0].mxu0
    %v10253 = vpop.f32.mrb[0].mxu0
    %v10254 = vadd.f32 %v10157, %v10253
    %v10255 = vpop.f32.mrb[0].mxu0
    %10256 = vmatprep.mubr.bf16.mxu0 %v9827
    %10257 = vmatmul.mubr.bf16.gmra.mrb[0].mxu0 %v9826
    %v10258 = vpop.f32.mrb[0].mxu0
    %v10259 = vadd.f32 %v10162, %v10258
    %v10260 = vpop.f32.mrb[0].mxu0
    %v10261 = vpop.f32.mrb[0].mxu0
    %v10262 = vadd.f32 %v10165, %v10261
    %v10263 = vpop.f32.mrb[0].mxu0
    %10264 = vmatprep.mubr.bf16.mxu0 %v9831
    %10265 = vmatmul.mubr.bf16.gmra.mrb[0].mxu0 %v9830
    %v10266 = vpop.f32.mrb[0].mxu0
    %v10267 = vadd.f32 %v10170, %v10266
    %v10268 = vpop.f32.mrb[0].mxu0
    %v10269 = vpop.f32.mrb[0].mxu0
    %v10270 = vadd.f32 %v10173, %v10269
    %v10271 = vpop.f32.mrb[0].mxu0
    %10272 = vmatprep.mubr.bf16.mxu0 %v9835
    %10273 = vmatmul.mubr.bf16.gmra.mrb[0].mxu0 %v9834
    %v10274 = vpop.f32.mrb[0].mxu0
    %v10275 = vadd.f32 %v10178, %v10274
    %v10276 = vpop.f32.mrb[0].mxu0
    %v10277 = vpop.f32.mrb[0].mxu0
    %v10278 = vadd.f32 %v10181, %v10277
    %v10279 = vpop.f32.mrb[0].mxu0
    %10280 = vmatprep.mubr.bf16.mxu0 %v9839
    %10281 = vmatmul.mubr.bf16.gmra.mrb[0].mxu0 %v9838
    %v10282 = vpop.f32.mrb[0].mxu0
    %v10283 = vadd.f32 %v10186, %v10282
    %v10284 = vpop.f32.mrb[0].mxu0
    %v10285 = vpop.f32.mrb[0].mxu0
    %v10286 = vadd.f32 %v10189, %v10285
    %v10287 = vpop.f32.mrb[0].mxu0
    %10288 = vmatprep.mubr.bf16.mxu0 %v9843
    %10289 = vmatmul.mubr.bf16.gmra.mrb[0].mxu0 %v9842
    %v10290 = vpop.f32.mrb[0].mxu0
    %v10291 = vadd.f32 %v10194, %v10290
    %v10292 = vpop.f32.mrb[0].mxu0
    %v10293 = vpop.f32.mrb[0].mxu0
    %v10294 = vadd.f32 %v10197, %v10293
    %v10295 = vpop.f32.mrb[0].mxu0
    %10296 = vmatprep.mubr.bf16.mxu0 %v9847
    %10297 = vmatmul.mubr.bf16.gmra.mrb[0].mxu0 %v9846
    %v10298 = vpop.f32.mrb[0].mxu0
    %v10299 = vadd.f32 %v10202, %v10298
    %v10300 = vpop.f32.mrb[0].mxu0
    %v10301 = vpop.f32.mrb[0].mxu0
    %v10302 = vadd.f32 %v10205, %v10301
    %v10303 = vpop.f32.mrb[0].mxu0
    %10304 = vdwg.mxu0
    %10305 = vst [vmem:[#allocation17] sm:$0xff] %v10243
    %10306 = vst [vmem:[#allocation17 + $0x8] sm:$0xff] %v10246
    %10307 = vst [vmem:[#allocation17 + $0x10] sm:$0xff] %v10251
    %10308 = vst [vmem:[#allocation17 + $0x18] sm:$0xff] %v10254
    %10309 = vst [vmem:[#allocation17 + $0x20] sm:$0xff] %v10259
    %10310 = vst [vmem:[#allocation17 + $0x28] sm:$0xff] %v10262
    %10311 = vst [vmem:[#allocation17 + $0x30] sm:$0xff] %v10267
    %10312 = vst [vmem:[#allocation17 + $0x38] sm:$0xff] %v10270
    %10313 = vst [vmem:[#allocation17 + $0x40] sm:$0xff] %v10275
    %10314 = vst [vmem:[#allocation17 + $0x48] sm:$0xff] %v10278
    %10315 = vst [vmem:[#allocation17 + $0x50] sm:$0xff] %v10283
    %10316 = vst [vmem:[#allocation17 + $0x58] sm:$0xff] %v10286
    %10317 = vst [vmem:[#allocation17 + $0x60] sm:$0xff] %v10291
    %10318 = vst [vmem:[#allocation17 + $0x68] sm:$0xff] %v10294
    %10319 = vst [vmem:[#allocation17 + $0x70] sm:$0xff] %v10299
    %10320 = vst [vmem:[#allocation17 + $0x78] sm:$0xff] %v10302
    // Predicated region
    $region82: #{tpu_custom_call.1} parent=1 // pred_check
      _
    $region83: #{tpu_custom_call.1} parent=1 // pred_check_branch
      %10322 = sbr.rel (0) target = $region85
    $region84: #{tpu_custom_call.1} parent=1 // pred_region
      %s10324 = ssub.s32 2048, 2048
      %10325 = vsyncadd [#allocation4], %s10324
      %s10326 = sshll.u32 [#allocation17], 4
      %s10327 = int_to_ptr.vmem [resolvable:$true] %s10326
      %10332 = dma.vmem_to_hbm [thread:$0]  %s10327, 2048, %s11, [#allocation4], 128, 128, 8
    $region85: #{tpu_custom_call.1} parent=1 // pred_fallthru
      _
    // Predicated region
    $region86: #{tpu_custom_call.1} parent=1 // pred_check
      _
    $region87: #{tpu_custom_call.1} parent=1 // pred_check_branch
      %10334 = sbr.rel (0) target = $region89
    $region88: #{tpu_custom_call.1} parent=1 // pred_region
      %10335 = dma.done [#allocation4], 2048
    $region89: #{tpu_custom_call.1} parent=1 // pred_fallthru
      _
    %10336 = vsyncpa [#allocation3], 1
    %10337 = vsyncpa [#allocation6], 1
    %10338 = vsyncpa [#allocation9], 1
    %10339 = vsyncpa [#allocation12], 1
    %10340 = vsyncpa [#allocation15], 1
    %10341 = vsyncpa [#allocation4], 1

</llo_original>
